<compile_context>
chip_gen: v6e
topology: v6e:2x2x1
jax: 0.10.0
libtpu: 0.0.40
codegen_flags: <defaults>
</compile_context>

<pallas_src>
import functools

import jax
import jax.numpy as jnp
from jax.experimental import pallas as pl
from jax.experimental.pallas import tpu as pltpu

C = 3          # in/out channels of every layer
KH = KW = 3    # kernel size
N_LAYERS = 3
STRIDE = 2
PAD = 1


def _out_dim(d):
    # Conv2d(kernel=3, stride=2, padding=1) output size.
    return (d + 2 * PAD - KH) // STRIDE + 1


def _shift(x, d, axis):
    """Zero-filled shift: out[..., p, ...] = x[..., p + d, ...] (0 when p+d is out of range)."""
    if d == 0:
        return x
    n = x.shape[axis]
    zshape = list(x.shape)
    zshape[axis] = abs(d)
    zeros = jnp.zeros(zshape, x.dtype)
    if d > 0:
        core = jax.lax.slice_in_dim(x, d, n, axis=axis)
        return jnp.concatenate([core, zeros], axis=axis)
    core = jax.lax.slice_in_dim(x, 0, n + d, axis=axis)
    return jnp.concatenate([zeros, core], axis=axis)


def _make_kernel(layer_meta, lm, hf, wf, bt):
    """layer_meta: per layer (spacing s on the original grid, max valid H coord, max valid W coord)."""

    def kernel(w_ref, b_ref, x_ref, o_ref):
        # w_ref: SMEM (N_LAYERS*C*C*KH*KW,) flattened as [layer, co, ci, ki, kj]
        # b_ref: SMEM (N_LAYERS*C,)          flattened as [layer, co]
        # x_ref: VMEM (bt, C, hf, wf) input frame  (frame coord = original coord + lm)
        # o_ref: VMEM (bt, C, hf, wf) last-layer frame (valid samples at original
        #        coords that are multiples of 2**N_LAYERS; decimated in the wrapper)
        chans = [x_ref[:, ci, :, :].astype(jnp.float32) for ci in range(C)]   # (bt, hf, wf)

        for l, (s, maxv_h, maxv_w) in enumerate(layer_meta):
            # ---- hoist this layer's scalars out of all vector loops -------------
            wbase = l * C * C * KH * KW
            w = [[[[w_ref[wbase + ((co * C + ci) * KH + ki) * KW + kj]
                    for kj in range(KW)] for ki in range(KH)]
                  for ci in range(C)] for co in range(C)]
            b = [b_ref[l * C + co] for co in range(C)]

            # ---- gather the 9 taps per input channel (shared by all co) ---------
            # tap[ci][ki][kj][n, p, q] = chans[ci][n, p + s*(ki-1), q + s*(kj-1)], zero-filled.
            taps = []
            for ci in range(C):
                per_ki = []
                for ki in range(KH):
                    xh = _shift(chans[ci], s * (ki - 1), axis=1)
                    per_ki.append([_shift(xh, s * (kj - 1), axis=2) for kj in range(KW)])
                taps.append(per_ki)

            # ---- validity mask: zero everything outside this layer's output range
            #      so the next layer's padding reads (orig < 0 or > maxv) see zeros.
            row = jax.lax.broadcasted_iota(jnp.int32, (hf, wf), 0) - lm
            col = jax.lax.broadcasted_iota(jnp.int32, (hf, wf), 1) - lm
            mask = (row >= 0) & (row <= maxv_h) & (col >= 0) & (col <= maxv_w)
            mask = mask[None]                                           # (1, hf, wf)

            new_chans = []
            for co in range(C):
                # bias folded into the first term; balanced-tree reduction of 27 taps.
                terms = [jnp.full((bt, hf, wf), b[co], jnp.float32)]
                for ci in range(C):
                    for ki in range(KH):
                        for kj in range(KW):
                            terms.append(w[co][ci][ki][kj] * taps[ci][ki][kj])
                while len(terms) > 1:
                    nxt = [terms[i] + terms[i + 1] for i in range(0, len(terms) - 1, 2)]
                    if len(terms) % 2:
                        nxt.append(terms[-1])
                    terms = nxt
                new_chans.append(jnp.where(mask, terms[0], 0.0))
            chans = new_chans

        for co in range(C):
            o_ref[:, co, :, :] = chans[co]

    return kernel


def _conv_stack_pallas(xf, wflat, bflat, layer_meta, lm, bt):
    npad, _, hf, wf = xf.shape
    kernel = _make_kernel(layer_meta, lm, hf, wf, bt)
    return pl.pallas_call(
        kernel,
        out_shape=jax.ShapeDtypeStruct((npad, C, hf, wf), jnp.float32),
        grid=(npad // bt,),
        in_specs=[
            pl.BlockSpec(memory_space=pltpu.MemorySpace.SMEM),        # flattened weights
            pl.BlockSpec(memory_space=pltpu.MemorySpace.SMEM),        # flattened biases
            pl.BlockSpec((bt, C, hf, wf), lambda i: (i, 0, 0, 0)),    # batch tile / step
        ],
        out_specs=pl.BlockSpec((bt, C, hf, wf), lambda i: (i, 0, 0, 0)),
        compiler_params=pltpu.CompilerParams(
            dimension_semantics=("parallel",)),
    )(wflat, bflat, xf)


@jax.jit
def convolutional_max_pooling(x, params):
    """params: list of N_LAYERS (weight (C,C,3,3) OIHW, bias (C,)) tuples."""
    n, c, h, w = x.shape
    assert c == C

    # Per-layer metadata on the original (undecimated) grid: spacing s = 2**l and the
    # largest original coordinate holding a valid output of that layer (per dim).
    layer_meta = []
    hin, win = h, w
    max_read_h = max_read_w = 0
    for l in range(N_LAYERS):
        s = 2 ** l
        ho, wo = _out_dim(hin), _out_dim(win)
        layer_meta.append((s, 2 * s * (ho - 1), 2 * s * (wo - 1)))
        max_read_h = max(max_read_h, s * (2 * ho - 1))
        max_read_w = max(max_read_w, s * (2 * wo - 1))
        hin, win = ho, wo
    oh3, ow3 = hin, win
    layer_meta = tuple(layer_meta)

    lm = 2 ** (N_LAYERS - 1)             # left/top margin: deepest padding read (layer 3)
    rh = max(0, max_read_h - (h - 1))    # right/bottom margins (0 for even sizes like 16)
    rw = max(0, max_read_w - (w - 1))
    hf, wf = h + lm + rh, w + lm + rw

    # Batch tiling: a handful of samples per grid step; tiny batches -> one grid step.
    bt = min(n, 8)
    npad = ((n + bt - 1) // bt) * bt

    # One-time layout prep outside the kernel: frame the input, flatten the params.
    xf = jnp.pad(x.astype(jnp.float32), ((0, npad - n), (0, 0), (lm, rh), (lm, rw)))
    wflat = jnp.concatenate([jnp.reshape(wl, (-1,)) for wl, _ in params]).astype(jnp.float32)
    bflat = jnp.concatenate([bl for _, bl in params]).astype(jnp.float32)

    yf = _conv_stack_pallas(xf, wflat, bflat, layer_meta, lm, bt)

    # Final 8x decimation of the last-layer frame (single strided slice, outside kernel).
    step = 2 ** N_LAYERS
    return yf[:n, :, lm::step, lm::step][:, :, :oh3, :ow3]


def init_params(key):
    # PyTorch Conv2d default init: U(-1/sqrt(fan_in), 1/sqrt(fan_in)), fan_in = Cin*3*3
    params = []
    fan_in = C * KH * KW
    bound = 1.0 / jnp.sqrt(jnp.float32(fan_in))
    for _ in range(N_LAYERS):
        key, kw_, kb_ = jax.random.split(key, 3)
        wl = jax.random.uniform(kw_, (C, C, KH, KW), jnp.float32, -bound, bound)
        bl = jax.random.uniform(kb_, (C,), jnp.float32, -bound, bound)
        params.append((wl, bl))
    return params


def _reference(x, params):
    # pure-XLA reference for sanity checking
    for wl, bl in params:
        x = jax.lax.conv_general_dilated(
            x, wl, window_strides=(2, 2), padding=((1, 1), (1, 1)),
            dimension_numbers=("NCHW", "OIHW", "NCHW"))
        x = x + bl[None, :, None, None]
    return x


if __name__ == "__main__":
    key = jax.random.PRNGKey(0)
    key, kx = jax.random.split(key)
    x = jax.random.normal(kx, (2, 3, 16, 16), jnp.float32)   # NCHW, 3 channels
    params = init_params(key)

    out = jax.block_until_ready(convolutional_max_pooling(x, params))
    assert out.shape == (2, 3, 2, 2), out.shape

    ref = _reference(x, params)
    assert jnp.allclose(out, ref, atol=1e-3, rtol=1e-3), "mismatch vs XLA conv reference"

    print("KERNEL_OK")
</pallas_src>

<mosaic_0001>
module attributes {stable_mosaic.version = 11 : i64} {
  func.func @kernel(%arg0: i32, %arg1: memref<243xf32, #tpu.memory_space<smem>>, %arg2: memref<9xf32, #tpu.memory_space<smem>>, %arg3: memref<2x3x20x20xf32, #tpu.memory_space<vmem>>, %arg4: memref<2x3x20x20xf32, #tpu.memory_space<vmem>>) attributes {dimension_semantics = [#tpu.dimension_semantics<parallel>], iteration_bounds = array<i64: 1>, scalar_prefetch = 0 : i64, scratch_operands = 0 : i64, tpu.core_type = #tpu.core_type<tc>, window_params = [{transform_indices = @transform_0, window_bounds = array<i64: 243>}, {transform_indices = @transform_1, window_bounds = array<i64: 9>}, {transform_indices = @transform_2, window_bounds = array<i64: 2, 3, 20, 20>}, {transform_indices = @transform_3, window_bounds = array<i64: 2, 3, 20, 20>}]} {
    %c0 = arith.constant 0 : index
    %c0_0 = arith.constant 0 : index
    %c0_1 = arith.constant 0 : index
    %c0_2 = arith.constant 0 : index
    %0 = vector.load %arg3[%c0, %c0_0, %c0_1, %c0_2] : memref<2x3x20x20xf32, #tpu.memory_space<vmem>>, vector<2x1x20x20xf32>
    %1 = vector.shape_cast %0 : vector<2x1x20x20xf32> to vector<2x20x20xf32>
    %c0_3 = arith.constant 0 : index
    %c1 = arith.constant 1 : index
    %c0_4 = arith.constant 0 : index
    %c0_5 = arith.constant 0 : index
    %2 = vector.load %arg3[%c0_3, %c1, %c0_4, %c0_5] : memref<2x3x20x20xf32, #tpu.memory_space<vmem>>, vector<2x1x20x20xf32>
    %3 = vector.shape_cast %2 : vector<2x1x20x20xf32> to vector<2x20x20xf32>
    %c0_6 = arith.constant 0 : index
    %c2 = arith.constant 2 : index
    %c0_7 = arith.constant 0 : index
    %c0_8 = arith.constant 0 : index
    %4 = vector.load %arg3[%c0_6, %c2, %c0_7, %c0_8] : memref<2x3x20x20xf32, #tpu.memory_space<vmem>>, vector<2x1x20x20xf32>
    %5 = vector.shape_cast %4 : vector<2x1x20x20xf32> to vector<2x20x20xf32>
    %c0_9 = arith.constant 0 : index
    %6 = memref.load %arg1[%c0_9] : memref<243xf32, #tpu.memory_space<smem>>
    %c1_10 = arith.constant 1 : index
    %7 = memref.load %arg1[%c1_10] : memref<243xf32, #tpu.memory_space<smem>>
    %c2_11 = arith.constant 2 : index
    %8 = memref.load %arg1[%c2_11] : memref<243xf32, #tpu.memory_space<smem>>
    %c3 = arith.constant 3 : index
    %9 = memref.load %arg1[%c3] : memref<243xf32, #tpu.memory_space<smem>>
    %c4 = arith.constant 4 : index
    %10 = memref.load %arg1[%c4] : memref<243xf32, #tpu.memory_space<smem>>
    %c5 = arith.constant 5 : index
    %11 = memref.load %arg1[%c5] : memref<243xf32, #tpu.memory_space<smem>>
    %c6 = arith.constant 6 : index
    %12 = memref.load %arg1[%c6] : memref<243xf32, #tpu.memory_space<smem>>
    %c7 = arith.constant 7 : index
    %13 = memref.load %arg1[%c7] : memref<243xf32, #tpu.memory_space<smem>>
    %c8 = arith.constant 8 : index
    %14 = memref.load %arg1[%c8] : memref<243xf32, #tpu.memory_space<smem>>
    %c9 = arith.constant 9 : index
    %15 = memref.load %arg1[%c9] : memref<243xf32, #tpu.memory_space<smem>>
    %c10 = arith.constant 10 : index
    %16 = memref.load %arg1[%c10] : memref<243xf32, #tpu.memory_space<smem>>
    %c11 = arith.constant 11 : index
    %17 = memref.load %arg1[%c11] : memref<243xf32, #tpu.memory_space<smem>>
    %c12 = arith.constant 12 : index
    %18 = memref.load %arg1[%c12] : memref<243xf32, #tpu.memory_space<smem>>
    %c13 = arith.constant 13 : index
    %19 = memref.load %arg1[%c13] : memref<243xf32, #tpu.memory_space<smem>>
    %c14 = arith.constant 14 : index
    %20 = memref.load %arg1[%c14] : memref<243xf32, #tpu.memory_space<smem>>
    %c15 = arith.constant 15 : index
    %21 = memref.load %arg1[%c15] : memref<243xf32, #tpu.memory_space<smem>>
    %c16 = arith.constant 16 : index
    %22 = memref.load %arg1[%c16] : memref<243xf32, #tpu.memory_space<smem>>
    %c17 = arith.constant 17 : index
    %23 = memref.load %arg1[%c17] : memref<243xf32, #tpu.memory_space<smem>>
    %c18 = arith.constant 18 : index
    %24 = memref.load %arg1[%c18] : memref<243xf32, #tpu.memory_space<smem>>
    %c19 = arith.constant 19 : index
    %25 = memref.load %arg1[%c19] : memref<243xf32, #tpu.memory_space<smem>>
    %c20 = arith.constant 20 : index
    %26 = memref.load %arg1[%c20] : memref<243xf32, #tpu.memory_space<smem>>
    %c21 = arith.constant 21 : index
    %27 = memref.load %arg1[%c21] : memref<243xf32, #tpu.memory_space<smem>>
    %c22 = arith.constant 22 : index
    %28 = memref.load %arg1[%c22] : memref<243xf32, #tpu.memory_space<smem>>
    %c23 = arith.constant 23 : index
    %29 = memref.load %arg1[%c23] : memref<243xf32, #tpu.memory_space<smem>>
    %c24 = arith.constant 24 : index
    %30 = memref.load %arg1[%c24] : memref<243xf32, #tpu.memory_space<smem>>
    %c25 = arith.constant 25 : index
    %31 = memref.load %arg1[%c25] : memref<243xf32, #tpu.memory_space<smem>>
    %c26 = arith.constant 26 : index
    %32 = memref.load %arg1[%c26] : memref<243xf32, #tpu.memory_space<smem>>
    %c27 = arith.constant 27 : index
    %33 = memref.load %arg1[%c27] : memref<243xf32, #tpu.memory_space<smem>>
    %c28 = arith.constant 28 : index
    %34 = memref.load %arg1[%c28] : memref<243xf32, #tpu.memory_space<smem>>
    %c29 = arith.constant 29 : index
    %35 = memref.load %arg1[%c29] : memref<243xf32, #tpu.memory_space<smem>>
    %c30 = arith.constant 30 : index
    %36 = memref.load %arg1[%c30] : memref<243xf32, #tpu.memory_space<smem>>
    %c31 = arith.constant 31 : index
    %37 = memref.load %arg1[%c31] : memref<243xf32, #tpu.memory_space<smem>>
    %c32 = arith.constant 32 : index
    %38 = memref.load %arg1[%c32] : memref<243xf32, #tpu.memory_space<smem>>
    %c33 = arith.constant 33 : index
    %39 = memref.load %arg1[%c33] : memref<243xf32, #tpu.memory_space<smem>>
    %c34 = arith.constant 34 : index
    %40 = memref.load %arg1[%c34] : memref<243xf32, #tpu.memory_space<smem>>
    %c35 = arith.constant 35 : index
    %41 = memref.load %arg1[%c35] : memref<243xf32, #tpu.memory_space<smem>>
    %c36 = arith.constant 36 : index
    %42 = memref.load %arg1[%c36] : memref<243xf32, #tpu.memory_space<smem>>
    %c37 = arith.constant 37 : index
    %43 = memref.load %arg1[%c37] : memref<243xf32, #tpu.memory_space<smem>>
    %c38 = arith.constant 38 : index
    %44 = memref.load %arg1[%c38] : memref<243xf32, #tpu.memory_space<smem>>
    %c39 = arith.constant 39 : index
    %45 = memref.load %arg1[%c39] : memref<243xf32, #tpu.memory_space<smem>>
    %c40 = arith.constant 40 : index
    %46 = memref.load %arg1[%c40] : memref<243xf32, #tpu.memory_space<smem>>
    %c41 = arith.constant 41 : index
    %47 = memref.load %arg1[%c41] : memref<243xf32, #tpu.memory_space<smem>>
    %c42 = arith.constant 42 : index
    %48 = memref.load %arg1[%c42] : memref<243xf32, #tpu.memory_space<smem>>
    %c43 = arith.constant 43 : index
    %49 = memref.load %arg1[%c43] : memref<243xf32, #tpu.memory_space<smem>>
    %c44 = arith.constant 44 : index
    %50 = memref.load %arg1[%c44] : memref<243xf32, #tpu.memory_space<smem>>
    %c45 = arith.constant 45 : index
    %51 = memref.load %arg1[%c45] : memref<243xf32, #tpu.memory_space<smem>>
    %c46 = arith.constant 46 : index
    %52 = memref.load %arg1[%c46] : memref<243xf32, #tpu.memory_space<smem>>
    %c47 = arith.constant 47 : index
    %53 = memref.load %arg1[%c47] : memref<243xf32, #tpu.memory_space<smem>>
    %c48 = arith.constant 48 : index
    %54 = memref.load %arg1[%c48] : memref<243xf32, #tpu.memory_space<smem>>
    %c49 = arith.constant 49 : index
    %55 = memref.load %arg1[%c49] : memref<243xf32, #tpu.memory_space<smem>>
    %c50 = arith.constant 50 : index
    %56 = memref.load %arg1[%c50] : memref<243xf32, #tpu.memory_space<smem>>
    %c51 = arith.constant 51 : index
    %57 = memref.load %arg1[%c51] : memref<243xf32, #tpu.memory_space<smem>>
    %c52 = arith.constant 52 : index
    %58 = memref.load %arg1[%c52] : memref<243xf32, #tpu.memory_space<smem>>
    %c53 = arith.constant 53 : index
    %59 = memref.load %arg1[%c53] : memref<243xf32, #tpu.memory_space<smem>>
    %c54 = arith.constant 54 : index
    %60 = memref.load %arg1[%c54] : memref<243xf32, #tpu.memory_space<smem>>
    %c55 = arith.constant 55 : index
    %61 = memref.load %arg1[%c55] : memref<243xf32, #tpu.memory_space<smem>>
    %c56 = arith.constant 56 : index
    %62 = memref.load %arg1[%c56] : memref<243xf32, #tpu.memory_space<smem>>
    %c57 = arith.constant 57 : index
    %63 = memref.load %arg1[%c57] : memref<243xf32, #tpu.memory_space<smem>>
    %c58 = arith.constant 58 : index
    %64 = memref.load %arg1[%c58] : memref<243xf32, #tpu.memory_space<smem>>
    %c59 = arith.constant 59 : index
    %65 = memref.load %arg1[%c59] : memref<243xf32, #tpu.memory_space<smem>>
    %c60 = arith.constant 60 : index
    %66 = memref.load %arg1[%c60] : memref<243xf32, #tpu.memory_space<smem>>
    %c61 = arith.constant 61 : index
    %67 = memref.load %arg1[%c61] : memref<243xf32, #tpu.memory_space<smem>>
    %c62 = arith.constant 62 : index
    %68 = memref.load %arg1[%c62] : memref<243xf32, #tpu.memory_space<smem>>
    %c63 = arith.constant 63 : index
    %69 = memref.load %arg1[%c63] : memref<243xf32, #tpu.memory_space<smem>>
    %c64 = arith.constant 64 : index
    %70 = memref.load %arg1[%c64] : memref<243xf32, #tpu.memory_space<smem>>
    %c65 = arith.constant 65 : index
    %71 = memref.load %arg1[%c65] : memref<243xf32, #tpu.memory_space<smem>>
    %c66 = arith.constant 66 : index
    %72 = memref.load %arg1[%c66] : memref<243xf32, #tpu.memory_space<smem>>
    %c67 = arith.constant 67 : index
    %73 = memref.load %arg1[%c67] : memref<243xf32, #tpu.memory_space<smem>>
    %c68 = arith.constant 68 : index
    %74 = memref.load %arg1[%c68] : memref<243xf32, #tpu.memory_space<smem>>
    %c69 = arith.constant 69 : index
    %75 = memref.load %arg1[%c69] : memref<243xf32, #tpu.memory_space<smem>>
    %c70 = arith.constant 70 : index
    %76 = memref.load %arg1[%c70] : memref<243xf32, #tpu.memory_space<smem>>
    %c71 = arith.constant 71 : index
    %77 = memref.load %arg1[%c71] : memref<243xf32, #tpu.memory_space<smem>>
    %c72 = arith.constant 72 : index
    %78 = memref.load %arg1[%c72] : memref<243xf32, #tpu.memory_space<smem>>
    %c73 = arith.constant 73 : index
    %79 = memref.load %arg1[%c73] : memref<243xf32, #tpu.memory_space<smem>>
    %c74 = arith.constant 74 : index
    %80 = memref.load %arg1[%c74] : memref<243xf32, #tpu.memory_space<smem>>
    %c75 = arith.constant 75 : index
    %81 = memref.load %arg1[%c75] : memref<243xf32, #tpu.memory_space<smem>>
    %c76 = arith.constant 76 : index
    %82 = memref.load %arg1[%c76] : memref<243xf32, #tpu.memory_space<smem>>
    %c77 = arith.constant 77 : index
    %83 = memref.load %arg1[%c77] : memref<243xf32, #tpu.memory_space<smem>>
    %c78 = arith.constant 78 : index
    %84 = memref.load %arg1[%c78] : memref<243xf32, #tpu.memory_space<smem>>
    %c79 = arith.constant 79 : index
    %85 = memref.load %arg1[%c79] : memref<243xf32, #tpu.memory_space<smem>>
    %c80 = arith.constant 80 : index
    %86 = memref.load %arg1[%c80] : memref<243xf32, #tpu.memory_space<smem>>
    %c0_12 = arith.constant 0 : index
    %87 = memref.load %arg2[%c0_12] : memref<9xf32, #tpu.memory_space<smem>>
    %c1_13 = arith.constant 1 : index
    %88 = memref.load %arg2[%c1_13] : memref<9xf32, #tpu.memory_space<smem>>
    %c2_14 = arith.constant 2 : index
    %89 = memref.load %arg2[%c2_14] : memref<9xf32, #tpu.memory_space<smem>>
    %cst = arith.constant 0.000000e+00 : f32
    %90 = vector.broadcast %cst : f32 to vector<2x1x20xf32>
    %91 = vector.extract_strided_slice %1 {offsets = [0, 0, 0], sizes = [2, 19, 20], strides = [1, 1, 1]} : vector<2x20x20xf32> to vector<2x19x20xf32>
    %92 = tpu.concatenate %90, %91 in 1 : vector<2x1x20xf32>, vector<2x19x20xf32> -> vector<2x20x20xf32>
    %cst_15 = arith.constant 0.000000e+00 : f32
    %93 = vector.broadcast %cst_15 : f32 to vector<2x20x1xf32>
    %94 = vector.extract_strided_slice %92 {offsets = [0, 0, 0], sizes = [2, 20, 19], strides = [1, 1, 1]} : vector<2x20x20xf32> to vector<2x20x19xf32>
    %95 = tpu.concatenate %93, %94 in 2 : vector<2x20x1xf32>, vector<2x20x19xf32> -> vector<2x20x20xf32>
    %cst_16 = arith.constant 0.000000e+00 : f32
    %96 = vector.broadcast %cst_16 : f32 to vector<2x20x1xf32>
    %97 = vector.extract_strided_slice %92 {offsets = [0, 0, 1], sizes = [2, 20, 19], strides = [1, 1, 1]} : vector<2x20x20xf32> to vector<2x20x19xf32>
    %98 = tpu.concatenate %97, %96 in 2 : vector<2x20x19xf32>, vector<2x20x1xf32> -> vector<2x20x20xf32>
    %cst_17 = arith.constant 0.000000e+00 : f32
    %99 = vector.broadcast %cst_17 : f32 to vector<2x20x1xf32>
    %100 = vector.extract_strided_slice %1 {offsets = [0, 0, 0], sizes = [2, 20, 19], strides = [1, 1, 1]} : vector<2x20x20xf32> to vector<2x20x19xf32>
    %101 = tpu.concatenate %99, %100 in 2 : vector<2x20x1xf32>, vector<2x20x19xf32> -> vector<2x20x20xf32>
    %cst_18 = arith.constant 0.000000e+00 : f32
    %102 = vector.broadcast %cst_18 : f32 to vector<2x20x1xf32>
    %103 = vector.extract_strided_slice %1 {offsets = [0, 0, 1], sizes = [2, 20, 19], strides = [1, 1, 1]} : vector<2x20x20xf32> to vector<2x20x19xf32>
    %104 = tpu.concatenate %103, %102 in 2 : vector<2x20x19xf32>, vector<2x20x1xf32> -> vector<2x20x20xf32>
    %cst_19 = arith.constant 0.000000e+00 : f32
    %105 = vector.broadcast %cst_19 : f32 to vector<2x1x20xf32>
    %106 = vector.extract_strided_slice %1 {offsets = [0, 1, 0], sizes = [2, 19, 20], strides = [1, 1, 1]} : vector<2x20x20xf32> to vector<2x19x20xf32>
    %107 = tpu.concatenate %106, %105 in 1 : vector<2x19x20xf32>, vector<2x1x20xf32> -> vector<2x20x20xf32>
    %cst_20 = arith.constant 0.000000e+00 : f32
    %108 = vector.broadcast %cst_20 : f32 to vector<2x20x1xf32>
    %109 = vector.extract_strided_slice %107 {offsets = [0, 0, 0], sizes = [2, 20, 19], strides = [1, 1, 1]} : vector<2x20x20xf32> to vector<2x20x19xf32>
    %110 = tpu.concatenate %108, %109 in 2 : vector<2x20x1xf32>, vector<2x20x19xf32> -> vector<2x20x20xf32>
    %cst_21 = arith.constant 0.000000e+00 : f32
    %111 = vector.broadcast %cst_21 : f32 to vector<2x20x1xf32>
    %112 = vector.extract_strided_slice %107 {offsets = [0, 0, 1], sizes = [2, 20, 19], strides = [1, 1, 1]} : vector<2x20x20xf32> to vector<2x20x19xf32>
    %113 = tpu.concatenate %112, %111 in 2 : vector<2x20x19xf32>, vector<2x20x1xf32> -> vector<2x20x20xf32>
    %cst_22 = arith.constant 0.000000e+00 : f32
    %114 = vector.broadcast %cst_22 : f32 to vector<2x1x20xf32>
    %115 = vector.extract_strided_slice %3 {offsets = [0, 0, 0], sizes = [2, 19, 20], strides = [1, 1, 1]} : vector<2x20x20xf32> to vector<2x19x20xf32>
    %116 = tpu.concatenate %114, %115 in 1 : vector<2x1x20xf32>, vector<2x19x20xf32> -> vector<2x20x20xf32>
    %cst_23 = arith.constant 0.000000e+00 : f32
    %117 = vector.broadcast %cst_23 : f32 to vector<2x20x1xf32>
    %118 = vector.extract_strided_slice %116 {offsets = [0, 0, 0], sizes = [2, 20, 19], strides = [1, 1, 1]} : vector<2x20x20xf32> to vector<2x20x19xf32>
    %119 = tpu.concatenate %117, %118 in 2 : vector<2x20x1xf32>, vector<2x20x19xf32> -> vector<2x20x20xf32>
    %cst_24 = arith.constant 0.000000e+00 : f32
    %120 = vector.broadcast %cst_24 : f32 to vector<2x20x1xf32>
    %121 = vector.extract_strided_slice %116 {offsets = [0, 0, 1], sizes = [2, 20, 19], strides = [1, 1, 1]} : vector<2x20x20xf32> to vector<2x20x19xf32>
    %122 = tpu.concatenate %121, %120 in 2 : vector<2x20x19xf32>, vector<2x20x1xf32> -> vector<2x20x20xf32>
    %cst_25 = arith.constant 0.000000e+00 : f32
    %123 = vector.broadcast %cst_25 : f32 to vector<2x20x1xf32>
    %124 = vector.extract_strided_slice %3 {offsets = [0, 0, 0], sizes = [2, 20, 19], strides = [1, 1, 1]} : vector<2x20x20xf32> to vector<2x20x19xf32>
    %125 = tpu.concatenate %123, %124 in 2 : vector<2x20x1xf32>, vector<2x20x19xf32> -> vector<2x20x20xf32>
    %cst_26 = arith.constant 0.000000e+00 : f32
    %126 = vector.broadcast %cst_26 : f32 to vector<2x20x1xf32>
    %127 = vector.extract_strided_slice %3 {offsets = [0, 0, 1], sizes = [2, 20, 19], strides = [1, 1, 1]} : vector<2x20x20xf32> to vector<2x20x19xf32>
    %128 = tpu.concatenate %127, %126 in 2 : vector<2x20x19xf32>, vector<2x20x1xf32> -> vector<2x20x20xf32>
    %cst_27 = arith.constant 0.000000e+00 : f32
    %129 = vector.broadcast %cst_27 : f32 to vector<2x1x20xf32>
    %130 = vector.extract_strided_slice %3 {offsets = [0, 1, 0], sizes = [2, 19, 20], strides = [1, 1, 1]} : vector<2x20x20xf32> to vector<2x19x20xf32>
    %131 = tpu.concatenate %130, %129 in 1 : vector<2x19x20xf32>, vector<2x1x20xf32> -> vector<2x20x20xf32>
    %cst_28 = arith.constant 0.000000e+00 : f32
    %132 = vector.broadcast %cst_28 : f32 to vector<2x20x1xf32>
    %133 = vector.extract_strided_slice %131 {offsets = [0, 0, 0], sizes = [2, 20, 19], strides = [1, 1, 1]} : vector<2x20x20xf32> to vector<2x20x19xf32>
    %134 = tpu.concatenate %132, %133 in 2 : vector<2x20x1xf32>, vector<2x20x19xf32> -> vector<2x20x20xf32>
    %cst_29 = arith.constant 0.000000e+00 : f32
    %135 = vector.broadcast %cst_29 : f32 to vector<2x20x1xf32>
    %136 = vector.extract_strided_slice %131 {offsets = [0, 0, 1], sizes = [2, 20, 19], strides = [1, 1, 1]} : vector<2x20x20xf32> to vector<2x20x19xf32>
    %137 = tpu.concatenate %136, %135 in 2 : vector<2x20x19xf32>, vector<2x20x1xf32> -> vector<2x20x20xf32>
    %cst_30 = arith.constant 0.000000e+00 : f32
    %138 = vector.broadcast %cst_30 : f32 to vector<2x1x20xf32>
    %139 = vector.extract_strided_slice %5 {offsets = [0, 0, 0], sizes = [2, 19, 20], strides = [1, 1, 1]} : vector<2x20x20xf32> to vector<2x19x20xf32>
    %140 = tpu.concatenate %138, %139 in 1 : vector<2x1x20xf32>, vector<2x19x20xf32> -> vector<2x20x20xf32>
    %cst_31 = arith.constant 0.000000e+00 : f32
    %141 = vector.broadcast %cst_31 : f32 to vector<2x20x1xf32>
    %142 = vector.extract_strided_slice %140 {offsets = [0, 0, 0], sizes = [2, 20, 19], strides = [1, 1, 1]} : vector<2x20x20xf32> to vector<2x20x19xf32>
    %143 = tpu.concatenate %141, %142 in 2 : vector<2x20x1xf32>, vector<2x20x19xf32> -> vector<2x20x20xf32>
    %cst_32 = arith.constant 0.000000e+00 : f32
    %144 = vector.broadcast %cst_32 : f32 to vector<2x20x1xf32>
    %145 = vector.extract_strided_slice %140 {offsets = [0, 0, 1], sizes = [2, 20, 19], strides = [1, 1, 1]} : vector<2x20x20xf32> to vector<2x20x19xf32>
    %146 = tpu.concatenate %145, %144 in 2 : vector<2x20x19xf32>, vector<2x20x1xf32> -> vector<2x20x20xf32>
    %cst_33 = arith.constant 0.000000e+00 : f32
    %147 = vector.broadcast %cst_33 : f32 to vector<2x20x1xf32>
    %148 = vector.extract_strided_slice %5 {offsets = [0, 0, 0], sizes = [2, 20, 19], strides = [1, 1, 1]} : vector<2x20x20xf32> to vector<2x20x19xf32>
    %149 = tpu.concatenate %147, %148 in 2 : vector<2x20x1xf32>, vector<2x20x19xf32> -> vector<2x20x20xf32>
    %cst_34 = arith.constant 0.000000e+00 : f32
    %150 = vector.broadcast %cst_34 : f32 to vector<2x20x1xf32>
    %151 = vector.extract_strided_slice %5 {offsets = [0, 0, 1], sizes = [2, 20, 19], strides = [1, 1, 1]} : vector<2x20x20xf32> to vector<2x20x19xf32>
    %152 = tpu.concatenate %151, %150 in 2 : vector<2x20x19xf32>, vector<2x20x1xf32> -> vector<2x20x20xf32>
    %cst_35 = arith.constant 0.000000e+00 : f32
    %153 = vector.broadcast %cst_35 : f32 to vector<2x1x20xf32>
    %154 = vector.extract_strided_slice %5 {offsets = [0, 1, 0], sizes = [2, 19, 20], strides = [1, 1, 1]} : vector<2x20x20xf32> to vector<2x19x20xf32>
    %155 = tpu.concatenate %154, %153 in 1 : vector<2x19x20xf32>, vector<2x1x20xf32> -> vector<2x20x20xf32>
    %cst_36 = arith.constant 0.000000e+00 : f32
    %156 = vector.broadcast %cst_36 : f32 to vector<2x20x1xf32>
    %157 = vector.extract_strided_slice %155 {offsets = [0, 0, 0], sizes = [2, 20, 19], strides = [1, 1, 1]} : vector<2x20x20xf32> to vector<2x20x19xf32>
    %158 = tpu.concatenate %156, %157 in 2 : vector<2x20x1xf32>, vector<2x20x19xf32> -> vector<2x20x20xf32>
    %cst_37 = arith.constant 0.000000e+00 : f32
    %159 = vector.broadcast %cst_37 : f32 to vector<2x20x1xf32>
    %160 = vector.extract_strided_slice %155 {offsets = [0, 0, 1], sizes = [2, 20, 19], strides = [1, 1, 1]} : vector<2x20x20xf32> to vector<2x20x19xf32>
    %161 = tpu.concatenate %160, %159 in 2 : vector<2x20x19xf32>, vector<2x20x1xf32> -> vector<2x20x20xf32>
    %162 = tpu.iota {dimensions = array<i32: 0>} : vector<20x20xi32>
    %c4_i32 = arith.constant 4 : i32
    %163 = vector.broadcast %c4_i32 : i32 to vector<20x20xi32>
    %164 = arith.subi %162, %163 : vector<20x20xi32>
    %165 = tpu.iota {dimensions = array<i32: 1>} : vector<20x20xi32>
    %c4_i32_38 = arith.constant 4 : i32
    %166 = vector.broadcast %c4_i32_38 : i32 to vector<20x20xi32>
    %167 = arith.subi %165, %166 : vector<20x20xi32>
    %c0_i32 = arith.constant 0 : i32
    %168 = vector.broadcast %c0_i32 : i32 to vector<20x20xi32>
    %169 = arith.cmpi sge, %164, %168 : vector<20x20xi32>
    %c14_i32 = arith.constant 14 : i32
    %170 = vector.broadcast %c14_i32 : i32 to vector<20x20xi32>
    %171 = arith.cmpi sle, %164, %170 : vector<20x20xi32>
    %172 = arith.andi %169, %171 : vector<20x20xi1>
    %c0_i32_39 = arith.constant 0 : i32
    %173 = vector.broadcast %c0_i32_39 : i32 to vector<20x20xi32>
    %174 = arith.cmpi sge, %167, %173 : vector<20x20xi32>
    %175 = arith.andi %172, %174 : vector<20x20xi1>
    %c14_i32_40 = arith.constant 14 : i32
    %176 = vector.broadcast %c14_i32_40 : i32 to vector<20x20xi32>
    %177 = arith.cmpi sle, %167, %176 : vector<20x20xi32>
    %178 = arith.andi %175, %177 : vector<20x20xi1>
    %179 = vector.shape_cast %178 : vector<20x20xi1> to vector<1x20x20xi1>
    %180 = vector.broadcast %87 : f32 to vector<2x20x20xf32>
    %181 = vector.broadcast %6 : f32 to vector<2x20x20xf32>
    %182 = arith.mulf %181, %95 : vector<2x20x20xf32>
    %183 = vector.broadcast %7 : f32 to vector<2x20x20xf32>
    %184 = arith.mulf %183, %92 : vector<2x20x20xf32>
    %185 = vector.broadcast %8 : f32 to vector<2x20x20xf32>
    %186 = arith.mulf %185, %98 : vector<2x20x20xf32>
    %187 = vector.broadcast %9 : f32 to vector<2x20x20xf32>
    %188 = arith.mulf %187, %101 : vector<2x20x20xf32>
    %189 = vector.broadcast %10 : f32 to vector<2x20x20xf32>
    %190 = arith.mulf %189, %1 : vector<2x20x20xf32>
    %191 = vector.broadcast %11 : f32 to vector<2x20x20xf32>
    %192 = arith.mulf %191, %104 : vector<2x20x20xf32>
    %193 = vector.broadcast %12 : f32 to vector<2x20x20xf32>
    %194 = arith.mulf %193, %110 : vector<2x20x20xf32>
    %195 = vector.broadcast %13 : f32 to vector<2x20x20xf32>
    %196 = arith.mulf %195, %107 : vector<2x20x20xf32>
    %197 = vector.broadcast %14 : f32 to vector<2x20x20xf32>
    %198 = arith.mulf %197, %113 : vector<2x20x20xf32>
    %199 = vector.broadcast %15 : f32 to vector<2x20x20xf32>
    %200 = arith.mulf %199, %119 : vector<2x20x20xf32>
    %201 = vector.broadcast %16 : f32 to vector<2x20x20xf32>
    %202 = arith.mulf %201, %116 : vector<2x20x20xf32>
    %203 = vector.broadcast %17 : f32 to vector<2x20x20xf32>
    %204 = arith.mulf %203, %122 : vector<2x20x20xf32>
    %205 = vector.broadcast %18 : f32 to vector<2x20x20xf32>
    %206 = arith.mulf %205, %125 : vector<2x20x20xf32>
    %207 = vector.broadcast %19 : f32 to vector<2x20x20xf32>
    %208 = arith.mulf %207, %3 : vector<2x20x20xf32>
    %209 = vector.broadcast %20 : f32 to vector<2x20x20xf32>
    %210 = arith.mulf %209, %128 : vector<2x20x20xf32>
    %211 = vector.broadcast %21 : f32 to vector<2x20x20xf32>
    %212 = arith.mulf %211, %134 : vector<2x20x20xf32>
    %213 = vector.broadcast %22 : f32 to vector<2x20x20xf32>
    %214 = arith.mulf %213, %131 : vector<2x20x20xf32>
    %215 = vector.broadcast %23 : f32 to vector<2x20x20xf32>
    %216 = arith.mulf %215, %137 : vector<2x20x20xf32>
    %217 = vector.broadcast %24 : f32 to vector<2x20x20xf32>
    %218 = arith.mulf %217, %143 : vector<2x20x20xf32>
    %219 = vector.broadcast %25 : f32 to vector<2x20x20xf32>
    %220 = arith.mulf %219, %140 : vector<2x20x20xf32>
    %221 = vector.broadcast %26 : f32 to vector<2x20x20xf32>
    %222 = arith.mulf %221, %146 : vector<2x20x20xf32>
    %223 = vector.broadcast %27 : f32 to vector<2x20x20xf32>
    %224 = arith.mulf %223, %149 : vector<2x20x20xf32>
    %225 = vector.broadcast %28 : f32 to vector<2x20x20xf32>
    %226 = arith.mulf %225, %5 : vector<2x20x20xf32>
    %227 = vector.broadcast %29 : f32 to vector<2x20x20xf32>
    %228 = arith.mulf %227, %152 : vector<2x20x20xf32>
    %229 = vector.broadcast %30 : f32 to vector<2x20x20xf32>
    %230 = arith.mulf %229, %158 : vector<2x20x20xf32>
    %231 = vector.broadcast %31 : f32 to vector<2x20x20xf32>
    %232 = arith.mulf %231, %155 : vector<2x20x20xf32>
    %233 = vector.broadcast %32 : f32 to vector<2x20x20xf32>
    %234 = arith.mulf %233, %161 : vector<2x20x20xf32>
    %235 = arith.addf %180, %182 : vector<2x20x20xf32>
    %236 = arith.addf %184, %186 : vector<2x20x20xf32>
    %237 = arith.addf %188, %190 : vector<2x20x20xf32>
    %238 = arith.addf %192, %194 : vector<2x20x20xf32>
    %239 = arith.addf %196, %198 : vector<2x20x20xf32>
    %240 = arith.addf %200, %202 : vector<2x20x20xf32>
    %241 = arith.addf %204, %206 : vector<2x20x20xf32>
    %242 = arith.addf %208, %210 : vector<2x20x20xf32>
    %243 = arith.addf %212, %214 : vector<2x20x20xf32>
    %244 = arith.addf %216, %218 : vector<2x20x20xf32>
    %245 = arith.addf %220, %222 : vector<2x20x20xf32>
    %246 = arith.addf %224, %226 : vector<2x20x20xf32>
    %247 = arith.addf %228, %230 : vector<2x20x20xf32>
    %248 = arith.addf %232, %234 : vector<2x20x20xf32>
    %249 = arith.addf %235, %236 : vector<2x20x20xf32>
    %250 = arith.addf %237, %238 : vector<2x20x20xf32>
    %251 = arith.addf %239, %240 : vector<2x20x20xf32>
    %252 = arith.addf %241, %242 : vector<2x20x20xf32>
    %253 = arith.addf %243, %244 : vector<2x20x20xf32>
    %254 = arith.addf %245, %246 : vector<2x20x20xf32>
    %255 = arith.addf %247, %248 : vector<2x20x20xf32>
    %256 = arith.addf %249, %250 : vector<2x20x20xf32>
    %257 = arith.addf %251, %252 : vector<2x20x20xf32>
    %258 = arith.addf %253, %254 : vector<2x20x20xf32>
    %259 = arith.addf %256, %257 : vector<2x20x20xf32>
    %260 = arith.addf %258, %255 : vector<2x20x20xf32>
    %261 = arith.addf %259, %260 : vector<2x20x20xf32>
    %cst_41 = arith.constant 0.000000e+00 : f32
    %262 = vector.shape_cast %179 : vector<1x20x20xi1> to vector<1x20x20xi1>
    %263 = vector.broadcast %262 : vector<1x20x20xi1> to vector<2x20x20xi1>
    %264 = vector.broadcast %cst_41 : f32 to vector<2x20x20xf32>
    %265 = arith.select %263, %261, %264 : vector<2x20x20xi1>, vector<2x20x20xf32>
    %266 = vector.broadcast %88 : f32 to vector<2x20x20xf32>
    %267 = vector.broadcast %33 : f32 to vector<2x20x20xf32>
    %268 = arith.mulf %267, %95 : vector<2x20x20xf32>
    %269 = vector.broadcast %34 : f32 to vector<2x20x20xf32>
    %270 = arith.mulf %269, %92 : vector<2x20x20xf32>
    %271 = vector.broadcast %35 : f32 to vector<2x20x20xf32>
    %272 = arith.mulf %271, %98 : vector<2x20x20xf32>
    %273 = vector.broadcast %36 : f32 to vector<2x20x20xf32>
    %274 = arith.mulf %273, %101 : vector<2x20x20xf32>
    %275 = vector.broadcast %37 : f32 to vector<2x20x20xf32>
    %276 = arith.mulf %275, %1 : vector<2x20x20xf32>
    %277 = vector.broadcast %38 : f32 to vector<2x20x20xf32>
    %278 = arith.mulf %277, %104 : vector<2x20x20xf32>
    %279 = vector.broadcast %39 : f32 to vector<2x20x20xf32>
    %280 = arith.mulf %279, %110 : vector<2x20x20xf32>
    %281 = vector.broadcast %40 : f32 to vector<2x20x20xf32>
    %282 = arith.mulf %281, %107 : vector<2x20x20xf32>
    %283 = vector.broadcast %41 : f32 to vector<2x20x20xf32>
    %284 = arith.mulf %283, %113 : vector<2x20x20xf32>
    %285 = vector.broadcast %42 : f32 to vector<2x20x20xf32>
    %286 = arith.mulf %285, %119 : vector<2x20x20xf32>
    %287 = vector.broadcast %43 : f32 to vector<2x20x20xf32>
    %288 = arith.mulf %287, %116 : vector<2x20x20xf32>
    %289 = vector.broadcast %44 : f32 to vector<2x20x20xf32>
    %290 = arith.mulf %289, %122 : vector<2x20x20xf32>
    %291 = vector.broadcast %45 : f32 to vector<2x20x20xf32>
    %292 = arith.mulf %291, %125 : vector<2x20x20xf32>
    %293 = vector.broadcast %46 : f32 to vector<2x20x20xf32>
    %294 = arith.mulf %293, %3 : vector<2x20x20xf32>
    %295 = vector.broadcast %47 : f32 to vector<2x20x20xf32>
    %296 = arith.mulf %295, %128 : vector<2x20x20xf32>
    %297 = vector.broadcast %48 : f32 to vector<2x20x20xf32>
    %298 = arith.mulf %297, %134 : vector<2x20x20xf32>
    %299 = vector.broadcast %49 : f32 to vector<2x20x20xf32>
    %300 = arith.mulf %299, %131 : vector<2x20x20xf32>
    %301 = vector.broadcast %50 : f32 to vector<2x20x20xf32>
    %302 = arith.mulf %301, %137 : vector<2x20x20xf32>
    %303 = vector.broadcast %51 : f32 to vector<2x20x20xf32>
    %304 = arith.mulf %303, %143 : vector<2x20x20xf32>
    %305 = vector.broadcast %52 : f32 to vector<2x20x20xf32>
    %306 = arith.mulf %305, %140 : vector<2x20x20xf32>
    %307 = vector.broadcast %53 : f32 to vector<2x20x20xf32>
    %308 = arith.mulf %307, %146 : vector<2x20x20xf32>
    %309 = vector.broadcast %54 : f32 to vector<2x20x20xf32>
    %310 = arith.mulf %309, %149 : vector<2x20x20xf32>
    %311 = vector.broadcast %55 : f32 to vector<2x20x20xf32>
    %312 = arith.mulf %311, %5 : vector<2x20x20xf32>
    %313 = vector.broadcast %56 : f32 to vector<2x20x20xf32>
    %314 = arith.mulf %313, %152 : vector<2x20x20xf32>
    %315 = vector.broadcast %57 : f32 to vector<2x20x20xf32>
    %316 = arith.mulf %315, %158 : vector<2x20x20xf32>
    %317 = vector.broadcast %58 : f32 to vector<2x20x20xf32>
    %318 = arith.mulf %317, %155 : vector<2x20x20xf32>
    %319 = vector.broadcast %59 : f32 to vector<2x20x20xf32>
    %320 = arith.mulf %319, %161 : vector<2x20x20xf32>
    %321 = arith.addf %266, %268 : vector<2x20x20xf32>
    %322 = arith.addf %270, %272 : vector<2x20x20xf32>
    %323 = arith.addf %274, %276 : vector<2x20x20xf32>
    %324 = arith.addf %278, %280 : vector<2x20x20xf32>
    %325 = arith.addf %282, %284 : vector<2x20x20xf32>
    %326 = arith.addf %286, %288 : vector<2x20x20xf32>
    %327 = arith.addf %290, %292 : vector<2x20x20xf32>
    %328 = arith.addf %294, %296 : vector<2x20x20xf32>
    %329 = arith.addf %298, %300 : vector<2x20x20xf32>
    %330 = arith.addf %302, %304 : vector<2x20x20xf32>
    %331 = arith.addf %306, %308 : vector<2x20x20xf32>
    %332 = arith.addf %310, %312 : vector<2x20x20xf32>
    %333 = arith.addf %314, %316 : vector<2x20x20xf32>
    %334 = arith.addf %318, %320 : vector<2x20x20xf32>
    %335 = arith.addf %321, %322 : vector<2x20x20xf32>
    %336 = arith.addf %323, %324 : vector<2x20x20xf32>
    %337 = arith.addf %325, %326 : vector<2x20x20xf32>
    %338 = arith.addf %327, %328 : vector<2x20x20xf32>
    %339 = arith.addf %329, %330 : vector<2x20x20xf32>
    %340 = arith.addf %331, %332 : vector<2x20x20xf32>
    %341 = arith.addf %333, %334 : vector<2x20x20xf32>
    %342 = arith.addf %335, %336 : vector<2x20x20xf32>
    %343 = arith.addf %337, %338 : vector<2x20x20xf32>
    %344 = arith.addf %339, %340 : vector<2x20x20xf32>
    %345 = arith.addf %342, %343 : vector<2x20x20xf32>
    %346 = arith.addf %344, %341 : vector<2x20x20xf32>
    %347 = arith.addf %345, %346 : vector<2x20x20xf32>
    %cst_42 = arith.constant 0.000000e+00 : f32
    %348 = vector.shape_cast %179 : vector<1x20x20xi1> to vector<1x20x20xi1>
    %349 = vector.broadcast %348 : vector<1x20x20xi1> to vector<2x20x20xi1>
    %350 = vector.broadcast %cst_42 : f32 to vector<2x20x20xf32>
    %351 = arith.select %349, %347, %350 : vector<2x20x20xi1>, vector<2x20x20xf32>
    %352 = vector.broadcast %89 : f32 to vector<2x20x20xf32>
    %353 = vector.broadcast %60 : f32 to vector<2x20x20xf32>
    %354 = arith.mulf %353, %95 : vector<2x20x20xf32>
    %355 = vector.broadcast %61 : f32 to vector<2x20x20xf32>
    %356 = arith.mulf %355, %92 : vector<2x20x20xf32>
    %357 = vector.broadcast %62 : f32 to vector<2x20x20xf32>
    %358 = arith.mulf %357, %98 : vector<2x20x20xf32>
    %359 = vector.broadcast %63 : f32 to vector<2x20x20xf32>
    %360 = arith.mulf %359, %101 : vector<2x20x20xf32>
    %361 = vector.broadcast %64 : f32 to vector<2x20x20xf32>
    %362 = arith.mulf %361, %1 : vector<2x20x20xf32>
    %363 = vector.broadcast %65 : f32 to vector<2x20x20xf32>
    %364 = arith.mulf %363, %104 : vector<2x20x20xf32>
    %365 = vector.broadcast %66 : f32 to vector<2x20x20xf32>
    %366 = arith.mulf %365, %110 : vector<2x20x20xf32>
    %367 = vector.broadcast %67 : f32 to vector<2x20x20xf32>
    %368 = arith.mulf %367, %107 : vector<2x20x20xf32>
    %369 = vector.broadcast %68 : f32 to vector<2x20x20xf32>
    %370 = arith.mulf %369, %113 : vector<2x20x20xf32>
    %371 = vector.broadcast %69 : f32 to vector<2x20x20xf32>
    %372 = arith.mulf %371, %119 : vector<2x20x20xf32>
    %373 = vector.broadcast %70 : f32 to vector<2x20x20xf32>
    %374 = arith.mulf %373, %116 : vector<2x20x20xf32>
    %375 = vector.broadcast %71 : f32 to vector<2x20x20xf32>
    %376 = arith.mulf %375, %122 : vector<2x20x20xf32>
    %377 = vector.broadcast %72 : f32 to vector<2x20x20xf32>
    %378 = arith.mulf %377, %125 : vector<2x20x20xf32>
    %379 = vector.broadcast %73 : f32 to vector<2x20x20xf32>
    %380 = arith.mulf %379, %3 : vector<2x20x20xf32>
    %381 = vector.broadcast %74 : f32 to vector<2x20x20xf32>
    %382 = arith.mulf %381, %128 : vector<2x20x20xf32>
    %383 = vector.broadcast %75 : f32 to vector<2x20x20xf32>
    %384 = arith.mulf %383, %134 : vector<2x20x20xf32>
    %385 = vector.broadcast %76 : f32 to vector<2x20x20xf32>
    %386 = arith.mulf %385, %131 : vector<2x20x20xf32>
    %387 = vector.broadcast %77 : f32 to vector<2x20x20xf32>
    %388 = arith.mulf %387, %137 : vector<2x20x20xf32>
    %389 = vector.broadcast %78 : f32 to vector<2x20x20xf32>
    %390 = arith.mulf %389, %143 : vector<2x20x20xf32>
    %391 = vector.broadcast %79 : f32 to vector<2x20x20xf32>
    %392 = arith.mulf %391, %140 : vector<2x20x20xf32>
    %393 = vector.broadcast %80 : f32 to vector<2x20x20xf32>
    %394 = arith.mulf %393, %146 : vector<2x20x20xf32>
    %395 = vector.broadcast %81 : f32 to vector<2x20x20xf32>
    %396 = arith.mulf %395, %149 : vector<2x20x20xf32>
    %397 = vector.broadcast %82 : f32 to vector<2x20x20xf32>
    %398 = arith.mulf %397, %5 : vector<2x20x20xf32>
    %399 = vector.broadcast %83 : f32 to vector<2x20x20xf32>
    %400 = arith.mulf %399, %152 : vector<2x20x20xf32>
    %401 = vector.broadcast %84 : f32 to vector<2x20x20xf32>
    %402 = arith.mulf %401, %158 : vector<2x20x20xf32>
    %403 = vector.broadcast %85 : f32 to vector<2x20x20xf32>
    %404 = arith.mulf %403, %155 : vector<2x20x20xf32>
    %405 = vector.broadcast %86 : f32 to vector<2x20x20xf32>
    %406 = arith.mulf %405, %161 : vector<2x20x20xf32>
    %407 = arith.addf %352, %354 : vector<2x20x20xf32>
    %408 = arith.addf %356, %358 : vector<2x20x20xf32>
    %409 = arith.addf %360, %362 : vector<2x20x20xf32>
    %410 = arith.addf %364, %366 : vector<2x20x20xf32>
    %411 = arith.addf %368, %370 : vector<2x20x20xf32>
    %412 = arith.addf %372, %374 : vector<2x20x20xf32>
    %413 = arith.addf %376, %378 : vector<2x20x20xf32>
    %414 = arith.addf %380, %382 : vector<2x20x20xf32>
    %415 = arith.addf %384, %386 : vector<2x20x20xf32>
    %416 = arith.addf %388, %390 : vector<2x20x20xf32>
    %417 = arith.addf %392, %394 : vector<2x20x20xf32>
    %418 = arith.addf %396, %398 : vector<2x20x20xf32>
    %419 = arith.addf %400, %402 : vector<2x20x20xf32>
    %420 = arith.addf %404, %406 : vector<2x20x20xf32>
    %421 = arith.addf %407, %408 : vector<2x20x20xf32>
    %422 = arith.addf %409, %410 : vector<2x20x20xf32>
    %423 = arith.addf %411, %412 : vector<2x20x20xf32>
    %424 = arith.addf %413, %414 : vector<2x20x20xf32>
    %425 = arith.addf %415, %416 : vector<2x20x20xf32>
    %426 = arith.addf %417, %418 : vector<2x20x20xf32>
    %427 = arith.addf %419, %420 : vector<2x20x20xf32>
    %428 = arith.addf %421, %422 : vector<2x20x20xf32>
    %429 = arith.addf %423, %424 : vector<2x20x20xf32>
    %430 = arith.addf %425, %426 : vector<2x20x20xf32>
    %431 = arith.addf %428, %429 : vector<2x20x20xf32>
    %432 = arith.addf %430, %427 : vector<2x20x20xf32>
    %433 = arith.addf %431, %432 : vector<2x20x20xf32>
    %cst_43 = arith.constant 0.000000e+00 : f32
    %434 = vector.shape_cast %179 : vector<1x20x20xi1> to vector<1x20x20xi1>
    %435 = vector.broadcast %434 : vector<1x20x20xi1> to vector<2x20x20xi1>
    %436 = vector.broadcast %cst_43 : f32 to vector<2x20x20xf32>
    %437 = arith.select %435, %433, %436 : vector<2x20x20xi1>, vector<2x20x20xf32>
    %c81 = arith.constant 81 : index
    %438 = memref.load %arg1[%c81] : memref<243xf32, #tpu.memory_space<smem>>
    %c82 = arith.constant 82 : index
    %439 = memref.load %arg1[%c82] : memref<243xf32, #tpu.memory_space<smem>>
    %c83 = arith.constant 83 : index
    %440 = memref.load %arg1[%c83] : memref<243xf32, #tpu.memory_space<smem>>
    %c84 = arith.constant 84 : index
    %441 = memref.load %arg1[%c84] : memref<243xf32, #tpu.memory_space<smem>>
    %c85 = arith.constant 85 : index
    %442 = memref.load %arg1[%c85] : memref<243xf32, #tpu.memory_space<smem>>
    %c86 = arith.constant 86 : index
    %443 = memref.load %arg1[%c86] : memref<243xf32, #tpu.memory_space<smem>>
    %c87 = arith.constant 87 : index
    %444 = memref.load %arg1[%c87] : memref<243xf32, #tpu.memory_space<smem>>
    %c88 = arith.constant 88 : index
    %445 = memref.load %arg1[%c88] : memref<243xf32, #tpu.memory_space<smem>>
    %c89 = arith.constant 89 : index
    %446 = memref.load %arg1[%c89] : memref<243xf32, #tpu.memory_space<smem>>
    %c90 = arith.constant 90 : index
    %447 = memref.load %arg1[%c90] : memref<243xf32, #tpu.memory_space<smem>>
    %c91 = arith.constant 91 : index
    %448 = memref.load %arg1[%c91] : memref<243xf32, #tpu.memory_space<smem>>
    %c92 = arith.constant 92 : index
    %449 = memref.load %arg1[%c92] : memref<243xf32, #tpu.memory_space<smem>>
    %c93 = arith.constant 93 : index
    %450 = memref.load %arg1[%c93] : memref<243xf32, #tpu.memory_space<smem>>
    %c94 = arith.constant 94 : index
    %451 = memref.load %arg1[%c94] : memref<243xf32, #tpu.memory_space<smem>>
    %c95 = arith.constant 95 : index
    %452 = memref.load %arg1[%c95] : memref<243xf32, #tpu.memory_space<smem>>
    %c96 = arith.constant 96 : index
    %453 = memref.load %arg1[%c96] : memref<243xf32, #tpu.memory_space<smem>>
    %c97 = arith.constant 97 : index
    %454 = memref.load %arg1[%c97] : memref<243xf32, #tpu.memory_space<smem>>
    %c98 = arith.constant 98 : index
    %455 = memref.load %arg1[%c98] : memref<243xf32, #tpu.memory_space<smem>>
    %c99 = arith.constant 99 : index
    %456 = memref.load %arg1[%c99] : memref<243xf32, #tpu.memory_space<smem>>
    %c100 = arith.constant 100 : index
    %457 = memref.load %arg1[%c100] : memref<243xf32, #tpu.memory_space<smem>>
    %c101 = arith.constant 101 : index
    %458 = memref.load %arg1[%c101] : memref<243xf32, #tpu.memory_space<smem>>
    %c102 = arith.constant 102 : index
    %459 = memref.load %arg1[%c102] : memref<243xf32, #tpu.memory_space<smem>>
    %c103 = arith.constant 103 : index
    %460 = memref.load %arg1[%c103] : memref<243xf32, #tpu.memory_space<smem>>
    %c104 = arith.constant 104 : index
    %461 = memref.load %arg1[%c104] : memref<243xf32, #tpu.memory_space<smem>>
    %c105 = arith.constant 105 : index
    %462 = memref.load %arg1[%c105] : memref<243xf32, #tpu.memory_space<smem>>
    %c106 = arith.constant 106 : index
    %463 = memref.load %arg1[%c106] : memref<243xf32, #tpu.memory_space<smem>>
    %c107 = arith.constant 107 : index
    %464 = memref.load %arg1[%c107] : memref<243xf32, #tpu.memory_space<smem>>
    %c108 = arith.constant 108 : index
    %465 = memref.load %arg1[%c108] : memref<243xf32, #tpu.memory_space<smem>>
    %c109 = arith.constant 109 : index
    %466 = memref.load %arg1[%c109] : memref<243xf32, #tpu.memory_space<smem>>
    %c110 = arith.constant 110 : index
    %467 = memref.load %arg1[%c110] : memref<243xf32, #tpu.memory_space<smem>>
    %c111 = arith.constant 111 : index
    %468 = memref.load %arg1[%c111] : memref<243xf32, #tpu.memory_space<smem>>
    %c112 = arith.constant 112 : index
    %469 = memref.load %arg1[%c112] : memref<243xf32, #tpu.memory_space<smem>>
    %c113 = arith.constant 113 : index
    %470 = memref.load %arg1[%c113] : memref<243xf32, #tpu.memory_space<smem>>
    %c114 = arith.constant 114 : index
    %471 = memref.load %arg1[%c114] : memref<243xf32, #tpu.memory_space<smem>>
    %c115 = arith.constant 115 : index
    %472 = memref.load %arg1[%c115] : memref<243xf32, #tpu.memory_space<smem>>
    %c116 = arith.constant 116 : index
    %473 = memref.load %arg1[%c116] : memref<243xf32, #tpu.memory_space<smem>>
    %c117 = arith.constant 117 : index
    %474 = memref.load %arg1[%c117] : memref<243xf32, #tpu.memory_space<smem>>
    %c118 = arith.constant 118 : index
    %475 = memref.load %arg1[%c118] : memref<243xf32, #tpu.memory_space<smem>>
    %c119 = arith.constant 119 : index
    %476 = memref.load %arg1[%c119] : memref<243xf32, #tpu.memory_space<smem>>
    %c120 = arith.constant 120 : index
    %477 = memref.load %arg1[%c120] : memref<243xf32, #tpu.memory_space<smem>>
    %c121 = arith.constant 121 : index
    %478 = memref.load %arg1[%c121] : memref<243xf32, #tpu.memory_space<smem>>
    %c122 = arith.constant 122 : index
    %479 = memref.load %arg1[%c122] : memref<243xf32, #tpu.memory_space<smem>>
    %c123 = arith.constant 123 : index
    %480 = memref.load %arg1[%c123] : memref<243xf32, #tpu.memory_space<smem>>
    %c124 = arith.constant 124 : index
    %481 = memref.load %arg1[%c124] : memref<243xf32, #tpu.memory_space<smem>>
    %c125 = arith.constant 125 : index
    %482 = memref.load %arg1[%c125] : memref<243xf32, #tpu.memory_space<smem>>
    %c126 = arith.constant 126 : index
    %483 = memref.load %arg1[%c126] : memref<243xf32, #tpu.memory_space<smem>>
    %c127 = arith.constant 127 : index
    %484 = memref.load %arg1[%c127] : memref<243xf32, #tpu.memory_space<smem>>
    %c128 = arith.constant 128 : index
    %485 = memref.load %arg1[%c128] : memref<243xf32, #tpu.memory_space<smem>>
    %c129 = arith.constant 129 : index
    %486 = memref.load %arg1[%c129] : memref<243xf32, #tpu.memory_space<smem>>
    %c130 = arith.constant 130 : index
    %487 = memref.load %arg1[%c130] : memref<243xf32, #tpu.memory_space<smem>>
    %c131 = arith.constant 131 : index
    %488 = memref.load %arg1[%c131] : memref<243xf32, #tpu.memory_space<smem>>
    %c132 = arith.constant 132 : index
    %489 = memref.load %arg1[%c132] : memref<243xf32, #tpu.memory_space<smem>>
    %c133 = arith.constant 133 : index
    %490 = memref.load %arg1[%c133] : memref<243xf32, #tpu.memory_space<smem>>
    %c134 = arith.constant 134 : index
    %491 = memref.load %arg1[%c134] : memref<243xf32, #tpu.memory_space<smem>>
    %c135 = arith.constant 135 : index
    %492 = memref.load %arg1[%c135] : memref<243xf32, #tpu.memory_space<smem>>
    %c136 = arith.constant 136 : index
    %493 = memref.load %arg1[%c136] : memref<243xf32, #tpu.memory_space<smem>>
    %c137 = arith.constant 137 : index
    %494 = memref.load %arg1[%c137] : memref<243xf32, #tpu.memory_space<smem>>
    %c138 = arith.constant 138 : index
    %495 = memref.load %arg1[%c138] : memref<243xf32, #tpu.memory_space<smem>>
    %c139 = arith.constant 139 : index
    %496 = memref.load %arg1[%c139] : memref<243xf32, #tpu.memory_space<smem>>
    %c140 = arith.constant 140 : index
    %497 = memref.load %arg1[%c140] : memref<243xf32, #tpu.memory_space<smem>>
    %c141 = arith.constant 141 : index
    %498 = memref.load %arg1[%c141] : memref<243xf32, #tpu.memory_space<smem>>
    %c142 = arith.constant 142 : index
    %499 = memref.load %arg1[%c142] : memref<243xf32, #tpu.memory_space<smem>>
    %c143 = arith.constant 143 : index
    %500 = memref.load %arg1[%c143] : memref<243xf32, #tpu.memory_space<smem>>
    %c144 = arith.constant 144 : index
    %501 = memref.load %arg1[%c144] : memref<243xf32, #tpu.memory_space<smem>>
    %c145 = arith.constant 145 : index
    %502 = memref.load %arg1[%c145] : memref<243xf32, #tpu.memory_space<smem>>
    %c146 = arith.constant 146 : index
    %503 = memref.load %arg1[%c146] : memref<243xf32, #tpu.memory_space<smem>>
    %c147 = arith.constant 147 : index
    %504 = memref.load %arg1[%c147] : memref<243xf32, #tpu.memory_space<smem>>
    %c148 = arith.constant 148 : index
    %505 = memref.load %arg1[%c148] : memref<243xf32, #tpu.memory_space<smem>>
    %c149 = arith.constant 149 : index
    %506 = memref.load %arg1[%c149] : memref<243xf32, #tpu.memory_space<smem>>
    %c150 = arith.constant 150 : index
    %507 = memref.load %arg1[%c150] : memref<243xf32, #tpu.memory_space<smem>>
    %c151 = arith.constant 151 : index
    %508 = memref.load %arg1[%c151] : memref<243xf32, #tpu.memory_space<smem>>
    %c152 = arith.constant 152 : index
    %509 = memref.load %arg1[%c152] : memref<243xf32, #tpu.memory_space<smem>>
    %c153 = arith.constant 153 : index
    %510 = memref.load %arg1[%c153] : memref<243xf32, #tpu.memory_space<smem>>
    %c154 = arith.constant 154 : index
    %511 = memref.load %arg1[%c154] : memref<243xf32, #tpu.memory_space<smem>>
    %c155 = arith.constant 155 : index
    %512 = memref.load %arg1[%c155] : memref<243xf32, #tpu.memory_space<smem>>
    %c156 = arith.constant 156 : index
    %513 = memref.load %arg1[%c156] : memref<243xf32, #tpu.memory_space<smem>>
    %c157 = arith.constant 157 : index
    %514 = memref.load %arg1[%c157] : memref<243xf32, #tpu.memory_space<smem>>
    %c158 = arith.constant 158 : index
    %515 = memref.load %arg1[%c158] : memref<243xf32, #tpu.memory_space<smem>>
    %c159 = arith.constant 159 : index
    %516 = memref.load %arg1[%c159] : memref<243xf32, #tpu.memory_space<smem>>
    %c160 = arith.constant 160 : index
    %517 = memref.load %arg1[%c160] : memref<243xf32, #tpu.memory_space<smem>>
    %c161 = arith.constant 161 : index
    %518 = memref.load %arg1[%c161] : memref<243xf32, #tpu.memory_space<smem>>
    %c3_44 = arith.constant 3 : index
    %519 = memref.load %arg2[%c3_44] : memref<9xf32, #tpu.memory_space<smem>>
    %c4_45 = arith.constant 4 : index
    %520 = memref.load %arg2[%c4_45] : memref<9xf32, #tpu.memory_space<smem>>
    %c5_46 = arith.constant 5 : index
    %521 = memref.load %arg2[%c5_46] : memref<9xf32, #tpu.memory_space<smem>>
    %cst_47 = arith.constant 0.000000e+00 : f32
    %522 = vector.broadcast %cst_47 : f32 to vector<2x2x20xf32>
    %523 = vector.extract_strided_slice %265 {offsets = [0, 0, 0], sizes = [2, 18, 20], strides = [1, 1, 1]} : vector<2x20x20xf32> to vector<2x18x20xf32>
    %524 = tpu.concatenate %522, %523 in 1 : vector<2x2x20xf32>, vector<2x18x20xf32> -> vector<2x20x20xf32>
    %cst_48 = arith.constant 0.000000e+00 : f32
    %525 = vector.broadcast %cst_48 : f32 to vector<2x20x2xf32>
    %526 = vector.extract_strided_slice %524 {offsets = [0, 0, 0], sizes = [2, 20, 18], strides = [1, 1, 1]} : vector<2x20x20xf32> to vector<2x20x18xf32>
    %527 = tpu.concatenate %525, %526 in 2 : vector<2x20x2xf32>, vector<2x20x18xf32> -> vector<2x20x20xf32>
    %cst_49 = arith.constant 0.000000e+00 : f32
    %528 = vector.broadcast %cst_49 : f32 to vector<2x20x2xf32>
    %529 = vector.extract_strided_slice %524 {offsets = [0, 0, 2], sizes = [2, 20, 18], strides = [1, 1, 1]} : vector<2x20x20xf32> to vector<2x20x18xf32>
    %530 = tpu.concatenate %529, %528 in 2 : vector<2x20x18xf32>, vector<2x20x2xf32> -> vector<2x20x20xf32>
    %cst_50 = arith.constant 0.000000e+00 : f32
    %531 = vector.broadcast %cst_50 : f32 to vector<2x20x2xf32>
    %532 = vector.extract_strided_slice %265 {offsets = [0, 0, 0], sizes = [2, 20, 18], strides = [1, 1, 1]} : vector<2x20x20xf32> to vector<2x20x18xf32>
    %533 = tpu.concatenate %531, %532 in 2 : vector<2x20x2xf32>, vector<2x20x18xf32> -> vector<2x20x20xf32>
    %cst_51 = arith.constant 0.000000e+00 : f32
    %534 = vector.broadcast %cst_51 : f32 to vector<2x20x2xf32>
    %535 = vector.extract_strided_slice %265 {offsets = [0, 0, 2], sizes = [2, 20, 18], strides = [1, 1, 1]} : vector<2x20x20xf32> to vector<2x20x18xf32>
    %536 = tpu.concatenate %535, %534 in 2 : vector<2x20x18xf32>, vector<2x20x2xf32> -> vector<2x20x20xf32>
    %cst_52 = arith.constant 0.000000e+00 : f32
    %537 = vector.broadcast %cst_52 : f32 to vector<2x2x20xf32>
    %538 = vector.extract_strided_slice %265 {offsets = [0, 2, 0], sizes = [2, 18, 20], strides = [1, 1, 1]} : vector<2x20x20xf32> to vector<2x18x20xf32>
    %539 = tpu.concatenate %538, %537 in 1 : vector<2x18x20xf32>, vector<2x2x20xf32> -> vector<2x20x20xf32>
    %cst_53 = arith.constant 0.000000e+00 : f32
    %540 = vector.broadcast %cst_53 : f32 to vector<2x20x2xf32>
    %541 = vector.extract_strided_slice %539 {offsets = [0, 0, 0], sizes = [2, 20, 18], strides = [1, 1, 1]} : vector<2x20x20xf32> to vector<2x20x18xf32>
    %542 = tpu.concatenate %540, %541 in 2 : vector<2x20x2xf32>, vector<2x20x18xf32> -> vector<2x20x20xf32>
    %cst_54 = arith.constant 0.000000e+00 : f32
    %543 = vector.broadcast %cst_54 : f32 to vector<2x20x2xf32>
    %544 = vector.extract_strided_slice %539 {offsets = [0, 0, 2], sizes = [2, 20, 18], strides = [1, 1, 1]} : vector<2x20x20xf32> to vector<2x20x18xf32>
    %545 = tpu.concatenate %544, %543 in 2 : vector<2x20x18xf32>, vector<2x20x2xf32> -> vector<2x20x20xf32>
    %cst_55 = arith.constant 0.000000e+00 : f32
    %546 = vector.broadcast %cst_55 : f32 to vector<2x2x20xf32>
    %547 = vector.extract_strided_slice %351 {offsets = [0, 0, 0], sizes = [2, 18, 20], strides = [1, 1, 1]} : vector<2x20x20xf32> to vector<2x18x20xf32>
    %548 = tpu.concatenate %546, %547 in 1 : vector<2x2x20xf32>, vector<2x18x20xf32> -> vector<2x20x20xf32>
    %cst_56 = arith.constant 0.000000e+00 : f32
    %549 = vector.broadcast %cst_56 : f32 to vector<2x20x2xf32>
    %550 = vector.extract_strided_slice %548 {offsets = [0, 0, 0], sizes = [2, 20, 18], strides = [1, 1, 1]} : vector<2x20x20xf32> to vector<2x20x18xf32>
    %551 = tpu.concatenate %549, %550 in 2 : vector<2x20x2xf32>, vector<2x20x18xf32> -> vector<2x20x20xf32>
    %cst_57 = arith.constant 0.000000e+00 : f32
    %552 = vector.broadcast %cst_57 : f32 to vector<2x20x2xf32>
    %553 = vector.extract_strided_slice %548 {offsets = [0, 0, 2], sizes = [2, 20, 18], strides = [1, 1, 1]} : vector<2x20x20xf32> to vector<2x20x18xf32>
    %554 = tpu.concatenate %553, %552 in 2 : vector<2x20x18xf32>, vector<2x20x2xf32> -> vector<2x20x20xf32>
    %cst_58 = arith.constant 0.000000e+00 : f32
    %555 = vector.broadcast %cst_58 : f32 to vector<2x20x2xf32>
    %556 = vector.extract_strided_slice %351 {offsets = [0, 0, 0], sizes = [2, 20, 18], strides = [1, 1, 1]} : vector<2x20x20xf32> to vector<2x20x18xf32>
    %557 = tpu.concatenate %555, %556 in 2 : vector<2x20x2xf32>, vector<2x20x18xf32> -> vector<2x20x20xf32>
    %cst_59 = arith.constant 0.000000e+00 : f32
    %558 = vector.broadcast %cst_59 : f32 to vector<2x20x2xf32>
    %559 = vector.extract_strided_slice %351 {offsets = [0, 0, 2], sizes = [2, 20, 18], strides = [1, 1, 1]} : vector<2x20x20xf32> to vector<2x20x18xf32>
    %560 = tpu.concatenate %559, %558 in 2 : vector<2x20x18xf32>, vector<2x20x2xf32> -> vector<2x20x20xf32>
    %cst_60 = arith.constant 0.000000e+00 : f32
    %561 = vector.broadcast %cst_60 : f32 to vector<2x2x20xf32>
    %562 = vector.extract_strided_slice %351 {offsets = [0, 2, 0], sizes = [2, 18, 20], strides = [1, 1, 1]} : vector<2x20x20xf32> to vector<2x18x20xf32>
    %563 = tpu.concatenate %562, %561 in 1 : vector<2x18x20xf32>, vector<2x2x20xf32> -> vector<2x20x20xf32>
    %cst_61 = arith.constant 0.000000e+00 : f32
    %564 = vector.broadcast %cst_61 : f32 to vector<2x20x2xf32>
    %565 = vector.extract_strided_slice %563 {offsets = [0, 0, 0], sizes = [2, 20, 18], strides = [1, 1, 1]} : vector<2x20x20xf32> to vector<2x20x18xf32>
    %566 = tpu.concatenate %564, %565 in 2 : vector<2x20x2xf32>, vector<2x20x18xf32> -> vector<2x20x20xf32>
    %cst_62 = arith.constant 0.000000e+00 : f32
    %567 = vector.broadcast %cst_62 : f32 to vector<2x20x2xf32>
    %568 = vector.extract_strided_slice %563 {offsets = [0, 0, 2], sizes = [2, 20, 18], strides = [1, 1, 1]} : vector<2x20x20xf32> to vector<2x20x18xf32>
    %569 = tpu.concatenate %568, %567 in 2 : vector<2x20x18xf32>, vector<2x20x2xf32> -> vector<2x20x20xf32>
    %cst_63 = arith.constant 0.000000e+00 : f32
    %570 = vector.broadcast %cst_63 : f32 to vector<2x2x20xf32>
    %571 = vector.extract_strided_slice %437 {offsets = [0, 0, 0], sizes = [2, 18, 20], strides = [1, 1, 1]} : vector<2x20x20xf32> to vector<2x18x20xf32>
    %572 = tpu.concatenate %570, %571 in 1 : vector<2x2x20xf32>, vector<2x18x20xf32> -> vector<2x20x20xf32>
    %cst_64 = arith.constant 0.000000e+00 : f32
    %573 = vector.broadcast %cst_64 : f32 to vector<2x20x2xf32>
    %574 = vector.extract_strided_slice %572 {offsets = [0, 0, 0], sizes = [2, 20, 18], strides = [1, 1, 1]} : vector<2x20x20xf32> to vector<2x20x18xf32>
    %575 = tpu.concatenate %573, %574 in 2 : vector<2x20x2xf32>, vector<2x20x18xf32> -> vector<2x20x20xf32>
    %cst_65 = arith.constant 0.000000e+00 : f32
    %576 = vector.broadcast %cst_65 : f32 to vector<2x20x2xf32>
    %577 = vector.extract_strided_slice %572 {offsets = [0, 0, 2], sizes = [2, 20, 18], strides = [1, 1, 1]} : vector<2x20x20xf32> to vector<2x20x18xf32>
    %578 = tpu.concatenate %577, %576 in 2 : vector<2x20x18xf32>, vector<2x20x2xf32> -> vector<2x20x20xf32>
    %cst_66 = arith.constant 0.000000e+00 : f32
    %579 = vector.broadcast %cst_66 : f32 to vector<2x20x2xf32>
    %580 = vector.extract_strided_slice %437 {offsets = [0, 0, 0], sizes = [2, 20, 18], strides = [1, 1, 1]} : vector<2x20x20xf32> to vector<2x20x18xf32>
    %581 = tpu.concatenate %579, %580 in 2 : vector<2x20x2xf32>, vector<2x20x18xf32> -> vector<2x20x20xf32>
    %cst_67 = arith.constant 0.000000e+00 : f32
    %582 = vector.broadcast %cst_67 : f32 to vector<2x20x2xf32>
    %583 = vector.extract_strided_slice %437 {offsets = [0, 0, 2], sizes = [2, 20, 18], strides = [1, 1, 1]} : vector<2x20x20xf32> to vector<2x20x18xf32>
    %584 = tpu.concatenate %583, %582 in 2 : vector<2x20x18xf32>, vector<2x20x2xf32> -> vector<2x20x20xf32>
    %cst_68 = arith.constant 0.000000e+00 : f32
    %585 = vector.broadcast %cst_68 : f32 to vector<2x2x20xf32>
    %586 = vector.extract_strided_slice %437 {offsets = [0, 2, 0], sizes = [2, 18, 20], strides = [1, 1, 1]} : vector<2x20x20xf32> to vector<2x18x20xf32>
    %587 = tpu.concatenate %586, %585 in 1 : vector<2x18x20xf32>, vector<2x2x20xf32> -> vector<2x20x20xf32>
    %cst_69 = arith.constant 0.000000e+00 : f32
    %588 = vector.broadcast %cst_69 : f32 to vector<2x20x2xf32>
    %589 = vector.extract_strided_slice %587 {offsets = [0, 0, 0], sizes = [2, 20, 18], strides = [1, 1, 1]} : vector<2x20x20xf32> to vector<2x20x18xf32>
    %590 = tpu.concatenate %588, %589 in 2 : vector<2x20x2xf32>, vector<2x20x18xf32> -> vector<2x20x20xf32>
    %cst_70 = arith.constant 0.000000e+00 : f32
    %591 = vector.broadcast %cst_70 : f32 to vector<2x20x2xf32>
    %592 = vector.extract_strided_slice %587 {offsets = [0, 0, 2], sizes = [2, 20, 18], strides = [1, 1, 1]} : vector<2x20x20xf32> to vector<2x20x18xf32>
    %593 = tpu.concatenate %592, %591 in 2 : vector<2x20x18xf32>, vector<2x20x2xf32> -> vector<2x20x20xf32>
    %594 = tpu.iota {dimensions = array<i32: 0>} : vector<20x20xi32>
    %c4_i32_71 = arith.constant 4 : i32
    %595 = vector.broadcast %c4_i32_71 : i32 to vector<20x20xi32>
    %596 = arith.subi %594, %595 : vector<20x20xi32>
    %597 = tpu.iota {dimensions = array<i32: 1>} : vector<20x20xi32>
    %c4_i32_72 = arith.constant 4 : i32
    %598 = vector.broadcast %c4_i32_72 : i32 to vector<20x20xi32>
    %599 = arith.subi %597, %598 : vector<20x20xi32>
    %c0_i32_73 = arith.constant 0 : i32
    %600 = vector.broadcast %c0_i32_73 : i32 to vector<20x20xi32>
    %601 = arith.cmpi sge, %596, %600 : vector<20x20xi32>
    %c12_i32 = arith.constant 12 : i32
    %602 = vector.broadcast %c12_i32 : i32 to vector<20x20xi32>
    %603 = arith.cmpi sle, %596, %602 : vector<20x20xi32>
    %604 = arith.andi %601, %603 : vector<20x20xi1>
    %c0_i32_74 = arith.constant 0 : i32
    %605 = vector.broadcast %c0_i32_74 : i32 to vector<20x20xi32>
    %606 = arith.cmpi sge, %599, %605 : vector<20x20xi32>
    %607 = arith.andi %604, %606 : vector<20x20xi1>
    %c12_i32_75 = arith.constant 12 : i32
    %608 = vector.broadcast %c12_i32_75 : i32 to vector<20x20xi32>
    %609 = arith.cmpi sle, %599, %608 : vector<20x20xi32>
    %610 = arith.andi %607, %609 : vector<20x20xi1>
    %611 = vector.shape_cast %610 : vector<20x20xi1> to vector<1x20x20xi1>
    %612 = vector.broadcast %519 : f32 to vector<2x20x20xf32>
    %613 = vector.broadcast %438 : f32 to vector<2x20x20xf32>
    %614 = arith.mulf %613, %527 : vector<2x20x20xf32>
    %615 = vector.broadcast %439 : f32 to vector<2x20x20xf32>
    %616 = arith.mulf %615, %524 : vector<2x20x20xf32>
    %617 = vector.broadcast %440 : f32 to vector<2x20x20xf32>
    %618 = arith.mulf %617, %530 : vector<2x20x20xf32>
    %619 = vector.broadcast %441 : f32 to vector<2x20x20xf32>
    %620 = arith.mulf %619, %533 : vector<2x20x20xf32>
    %621 = vector.broadcast %442 : f32 to vector<2x20x20xf32>
    %622 = arith.mulf %621, %265 : vector<2x20x20xf32>
    %623 = vector.broadcast %443 : f32 to vector<2x20x20xf32>
    %624 = arith.mulf %623, %536 : vector<2x20x20xf32>
    %625 = vector.broadcast %444 : f32 to vector<2x20x20xf32>
    %626 = arith.mulf %625, %542 : vector<2x20x20xf32>
    %627 = vector.broadcast %445 : f32 to vector<2x20x20xf32>
    %628 = arith.mulf %627, %539 : vector<2x20x20xf32>
    %629 = vector.broadcast %446 : f32 to vector<2x20x20xf32>
    %630 = arith.mulf %629, %545 : vector<2x20x20xf32>
    %631 = vector.broadcast %447 : f32 to vector<2x20x20xf32>
    %632 = arith.mulf %631, %551 : vector<2x20x20xf32>
    %633 = vector.broadcast %448 : f32 to vector<2x20x20xf32>
    %634 = arith.mulf %633, %548 : vector<2x20x20xf32>
    %635 = vector.broadcast %449 : f32 to vector<2x20x20xf32>
    %636 = arith.mulf %635, %554 : vector<2x20x20xf32>
    %637 = vector.broadcast %450 : f32 to vector<2x20x20xf32>
    %638 = arith.mulf %637, %557 : vector<2x20x20xf32>
    %639 = vector.broadcast %451 : f32 to vector<2x20x20xf32>
    %640 = arith.mulf %639, %351 : vector<2x20x20xf32>
    %641 = vector.broadcast %452 : f32 to vector<2x20x20xf32>
    %642 = arith.mulf %641, %560 : vector<2x20x20xf32>
    %643 = vector.broadcast %453 : f32 to vector<2x20x20xf32>
    %644 = arith.mulf %643, %566 : vector<2x20x20xf32>
    %645 = vector.broadcast %454 : f32 to vector<2x20x20xf32>
    %646 = arith.mulf %645, %563 : vector<2x20x20xf32>
    %647 = vector.broadcast %455 : f32 to vector<2x20x20xf32>
    %648 = arith.mulf %647, %569 : vector<2x20x20xf32>
    %649 = vector.broadcast %456 : f32 to vector<2x20x20xf32>
    %650 = arith.mulf %649, %575 : vector<2x20x20xf32>
    %651 = vector.broadcast %457 : f32 to vector<2x20x20xf32>
    %652 = arith.mulf %651, %572 : vector<2x20x20xf32>
    %653 = vector.broadcast %458 : f32 to vector<2x20x20xf32>
    %654 = arith.mulf %653, %578 : vector<2x20x20xf32>
    %655 = vector.broadcast %459 : f32 to vector<2x20x20xf32>
    %656 = arith.mulf %655, %581 : vector<2x20x20xf32>
    %657 = vector.broadcast %460 : f32 to vector<2x20x20xf32>
    %658 = arith.mulf %657, %437 : vector<2x20x20xf32>
    %659 = vector.broadcast %461 : f32 to vector<2x20x20xf32>
    %660 = arith.mulf %659, %584 : vector<2x20x20xf32>
    %661 = vector.broadcast %462 : f32 to vector<2x20x20xf32>
    %662 = arith.mulf %661, %590 : vector<2x20x20xf32>
    %663 = vector.broadcast %463 : f32 to vector<2x20x20xf32>
    %664 = arith.mulf %663, %587 : vector<2x20x20xf32>
    %665 = vector.broadcast %464 : f32 to vector<2x20x20xf32>
    %666 = arith.mulf %665, %593 : vector<2x20x20xf32>
    %667 = arith.addf %612, %614 : vector<2x20x20xf32>
    %668 = arith.addf %616, %618 : vector<2x20x20xf32>
    %669 = arith.addf %620, %622 : vector<2x20x20xf32>
    %670 = arith.addf %624, %626 : vector<2x20x20xf32>
    %671 = arith.addf %628, %630 : vector<2x20x20xf32>
    %672 = arith.addf %632, %634 : vector<2x20x20xf32>
    %673 = arith.addf %636, %638 : vector<2x20x20xf32>
    %674 = arith.addf %640, %642 : vector<2x20x20xf32>
    %675 = arith.addf %644, %646 : vector<2x20x20xf32>
    %676 = arith.addf %648, %650 : vector<2x20x20xf32>
    %677 = arith.addf %652, %654 : vector<2x20x20xf32>
    %678 = arith.addf %656, %658 : vector<2x20x20xf32>
    %679 = arith.addf %660, %662 : vector<2x20x20xf32>
    %680 = arith.addf %664, %666 : vector<2x20x20xf32>
    %681 = arith.addf %667, %668 : vector<2x20x20xf32>
    %682 = arith.addf %669, %670 : vector<2x20x20xf32>
    %683 = arith.addf %671, %672 : vector<2x20x20xf32>
    %684 = arith.addf %673, %674 : vector<2x20x20xf32>
    %685 = arith.addf %675, %676 : vector<2x20x20xf32>
    %686 = arith.addf %677, %678 : vector<2x20x20xf32>
    %687 = arith.addf %679, %680 : vector<2x20x20xf32>
    %688 = arith.addf %681, %682 : vector<2x20x20xf32>
    %689 = arith.addf %683, %684 : vector<2x20x20xf32>
    %690 = arith.addf %685, %686 : vector<2x20x20xf32>
    %691 = arith.addf %688, %689 : vector<2x20x20xf32>
    %692 = arith.addf %690, %687 : vector<2x20x20xf32>
    %693 = arith.addf %691, %692 : vector<2x20x20xf32>
    %cst_76 = arith.constant 0.000000e+00 : f32
    %694 = vector.shape_cast %611 : vector<1x20x20xi1> to vector<1x20x20xi1>
    %695 = vector.broadcast %694 : vector<1x20x20xi1> to vector<2x20x20xi1>
    %696 = vector.broadcast %cst_76 : f32 to vector<2x20x20xf32>
    %697 = arith.select %695, %693, %696 : vector<2x20x20xi1>, vector<2x20x20xf32>
    %698 = vector.broadcast %520 : f32 to vector<2x20x20xf32>
    %699 = vector.broadcast %465 : f32 to vector<2x20x20xf32>
    %700 = arith.mulf %699, %527 : vector<2x20x20xf32>
    %701 = vector.broadcast %466 : f32 to vector<2x20x20xf32>
    %702 = arith.mulf %701, %524 : vector<2x20x20xf32>
    %703 = vector.broadcast %467 : f32 to vector<2x20x20xf32>
    %704 = arith.mulf %703, %530 : vector<2x20x20xf32>
    %705 = vector.broadcast %468 : f32 to vector<2x20x20xf32>
    %706 = arith.mulf %705, %533 : vector<2x20x20xf32>
    %707 = vector.broadcast %469 : f32 to vector<2x20x20xf32>
    %708 = arith.mulf %707, %265 : vector<2x20x20xf32>
    %709 = vector.broadcast %470 : f32 to vector<2x20x20xf32>
    %710 = arith.mulf %709, %536 : vector<2x20x20xf32>
    %711 = vector.broadcast %471 : f32 to vector<2x20x20xf32>
    %712 = arith.mulf %711, %542 : vector<2x20x20xf32>
    %713 = vector.broadcast %472 : f32 to vector<2x20x20xf32>
    %714 = arith.mulf %713, %539 : vector<2x20x20xf32>
    %715 = vector.broadcast %473 : f32 to vector<2x20x20xf32>
    %716 = arith.mulf %715, %545 : vector<2x20x20xf32>
    %717 = vector.broadcast %474 : f32 to vector<2x20x20xf32>
    %718 = arith.mulf %717, %551 : vector<2x20x20xf32>
    %719 = vector.broadcast %475 : f32 to vector<2x20x20xf32>
    %720 = arith.mulf %719, %548 : vector<2x20x20xf32>
    %721 = vector.broadcast %476 : f32 to vector<2x20x20xf32>
    %722 = arith.mulf %721, %554 : vector<2x20x20xf32>
    %723 = vector.broadcast %477 : f32 to vector<2x20x20xf32>
    %724 = arith.mulf %723, %557 : vector<2x20x20xf32>
    %725 = vector.broadcast %478 : f32 to vector<2x20x20xf32>
    %726 = arith.mulf %725, %351 : vector<2x20x20xf32>
    %727 = vector.broadcast %479 : f32 to vector<2x20x20xf32>
    %728 = arith.mulf %727, %560 : vector<2x20x20xf32>
    %729 = vector.broadcast %480 : f32 to vector<2x20x20xf32>
    %730 = arith.mulf %729, %566 : vector<2x20x20xf32>
    %731 = vector.broadcast %481 : f32 to vector<2x20x20xf32>
    %732 = arith.mulf %731, %563 : vector<2x20x20xf32>
    %733 = vector.broadcast %482 : f32 to vector<2x20x20xf32>
    %734 = arith.mulf %733, %569 : vector<2x20x20xf32>
    %735 = vector.broadcast %483 : f32 to vector<2x20x20xf32>
    %736 = arith.mulf %735, %575 : vector<2x20x20xf32>
    %737 = vector.broadcast %484 : f32 to vector<2x20x20xf32>
    %738 = arith.mulf %737, %572 : vector<2x20x20xf32>
    %739 = vector.broadcast %485 : f32 to vector<2x20x20xf32>
    %740 = arith.mulf %739, %578 : vector<2x20x20xf32>
    %741 = vector.broadcast %486 : f32 to vector<2x20x20xf32>
    %742 = arith.mulf %741, %581 : vector<2x20x20xf32>
    %743 = vector.broadcast %487 : f32 to vector<2x20x20xf32>
    %744 = arith.mulf %743, %437 : vector<2x20x20xf32>
    %745 = vector.broadcast %488 : f32 to vector<2x20x20xf32>
    %746 = arith.mulf %745, %584 : vector<2x20x20xf32>
    %747 = vector.broadcast %489 : f32 to vector<2x20x20xf32>
    %748 = arith.mulf %747, %590 : vector<2x20x20xf32>
    %749 = vector.broadcast %490 : f32 to vector<2x20x20xf32>
    %750 = arith.mulf %749, %587 : vector<2x20x20xf32>
    %751 = vector.broadcast %491 : f32 to vector<2x20x20xf32>
    %752 = arith.mulf %751, %593 : vector<2x20x20xf32>
    %753 = arith.addf %698, %700 : vector<2x20x20xf32>
    %754 = arith.addf %702, %704 : vector<2x20x20xf32>
    %755 = arith.addf %706, %708 : vector<2x20x20xf32>
    %756 = arith.addf %710, %712 : vector<2x20x20xf32>
    %757 = arith.addf %714, %716 : vector<2x20x20xf32>
    %758 = arith.addf %718, %720 : vector<2x20x20xf32>
    %759 = arith.addf %722, %724 : vector<2x20x20xf32>
    %760 = arith.addf %726, %728 : vector<2x20x20xf32>
    %761 = arith.addf %730, %732 : vector<2x20x20xf32>
    %762 = arith.addf %734, %736 : vector<2x20x20xf32>
    %763 = arith.addf %738, %740 : vector<2x20x20xf32>
    %764 = arith.addf %742, %744 : vector<2x20x20xf32>
    %765 = arith.addf %746, %748 : vector<2x20x20xf32>
    %766 = arith.addf %750, %752 : vector<2x20x20xf32>
    %767 = arith.addf %753, %754 : vector<2x20x20xf32>
    %768 = arith.addf %755, %756 : vector<2x20x20xf32>
    %769 = arith.addf %757, %758 : vector<2x20x20xf32>
    %770 = arith.addf %759, %760 : vector<2x20x20xf32>
    %771 = arith.addf %761, %762 : vector<2x20x20xf32>
    %772 = arith.addf %763, %764 : vector<2x20x20xf32>
    %773 = arith.addf %765, %766 : vector<2x20x20xf32>
    %774 = arith.addf %767, %768 : vector<2x20x20xf32>
    %775 = arith.addf %769, %770 : vector<2x20x20xf32>
    %776 = arith.addf %771, %772 : vector<2x20x20xf32>
    %777 = arith.addf %774, %775 : vector<2x20x20xf32>
    %778 = arith.addf %776, %773 : vector<2x20x20xf32>
    %779 = arith.addf %777, %778 : vector<2x20x20xf32>
    %cst_77 = arith.constant 0.000000e+00 : f32
    %780 = vector.shape_cast %611 : vector<1x20x20xi1> to vector<1x20x20xi1>
    %781 = vector.broadcast %780 : vector<1x20x20xi1> to vector<2x20x20xi1>
    %782 = vector.broadcast %cst_77 : f32 to vector<2x20x20xf32>
    %783 = arith.select %781, %779, %782 : vector<2x20x20xi1>, vector<2x20x20xf32>
    %784 = vector.broadcast %521 : f32 to vector<2x20x20xf32>
    %785 = vector.broadcast %492 : f32 to vector<2x20x20xf32>
    %786 = arith.mulf %785, %527 : vector<2x20x20xf32>
    %787 = vector.broadcast %493 : f32 to vector<2x20x20xf32>
    %788 = arith.mulf %787, %524 : vector<2x20x20xf32>
    %789 = vector.broadcast %494 : f32 to vector<2x20x20xf32>
    %790 = arith.mulf %789, %530 : vector<2x20x20xf32>
    %791 = vector.broadcast %495 : f32 to vector<2x20x20xf32>
    %792 = arith.mulf %791, %533 : vector<2x20x20xf32>
    %793 = vector.broadcast %496 : f32 to vector<2x20x20xf32>
    %794 = arith.mulf %793, %265 : vector<2x20x20xf32>
    %795 = vector.broadcast %497 : f32 to vector<2x20x20xf32>
    %796 = arith.mulf %795, %536 : vector<2x20x20xf32>
    %797 = vector.broadcast %498 : f32 to vector<2x20x20xf32>
    %798 = arith.mulf %797, %542 : vector<2x20x20xf32>
    %799 = vector.broadcast %499 : f32 to vector<2x20x20xf32>
    %800 = arith.mulf %799, %539 : vector<2x20x20xf32>
    %801 = vector.broadcast %500 : f32 to vector<2x20x20xf32>
    %802 = arith.mulf %801, %545 : vector<2x20x20xf32>
    %803 = vector.broadcast %501 : f32 to vector<2x20x20xf32>
    %804 = arith.mulf %803, %551 : vector<2x20x20xf32>
    %805 = vector.broadcast %502 : f32 to vector<2x20x20xf32>
    %806 = arith.mulf %805, %548 : vector<2x20x20xf32>
    %807 = vector.broadcast %503 : f32 to vector<2x20x20xf32>
    %808 = arith.mulf %807, %554 : vector<2x20x20xf32>
    %809 = vector.broadcast %504 : f32 to vector<2x20x20xf32>
    %810 = arith.mulf %809, %557 : vector<2x20x20xf32>
    %811 = vector.broadcast %505 : f32 to vector<2x20x20xf32>
    %812 = arith.mulf %811, %351 : vector<2x20x20xf32>
    %813 = vector.broadcast %506 : f32 to vector<2x20x20xf32>
    %814 = arith.mulf %813, %560 : vector<2x20x20xf32>
    %815 = vector.broadcast %507 : f32 to vector<2x20x20xf32>
    %816 = arith.mulf %815, %566 : vector<2x20x20xf32>
    %817 = vector.broadcast %508 : f32 to vector<2x20x20xf32>
    %818 = arith.mulf %817, %563 : vector<2x20x20xf32>
    %819 = vector.broadcast %509 : f32 to vector<2x20x20xf32>
    %820 = arith.mulf %819, %569 : vector<2x20x20xf32>
    %821 = vector.broadcast %510 : f32 to vector<2x20x20xf32>
    %822 = arith.mulf %821, %575 : vector<2x20x20xf32>
    %823 = vector.broadcast %511 : f32 to vector<2x20x20xf32>
    %824 = arith.mulf %823, %572 : vector<2x20x20xf32>
    %825 = vector.broadcast %512 : f32 to vector<2x20x20xf32>
    %826 = arith.mulf %825, %578 : vector<2x20x20xf32>
    %827 = vector.broadcast %513 : f32 to vector<2x20x20xf32>
    %828 = arith.mulf %827, %581 : vector<2x20x20xf32>
    %829 = vector.broadcast %514 : f32 to vector<2x20x20xf32>
    %830 = arith.mulf %829, %437 : vector<2x20x20xf32>
    %831 = vector.broadcast %515 : f32 to vector<2x20x20xf32>
    %832 = arith.mulf %831, %584 : vector<2x20x20xf32>
    %833 = vector.broadcast %516 : f32 to vector<2x20x20xf32>
    %834 = arith.mulf %833, %590 : vector<2x20x20xf32>
    %835 = vector.broadcast %517 : f32 to vector<2x20x20xf32>
    %836 = arith.mulf %835, %587 : vector<2x20x20xf32>
    %837 = vector.broadcast %518 : f32 to vector<2x20x20xf32>
    %838 = arith.mulf %837, %593 : vector<2x20x20xf32>
    %839 = arith.addf %784, %786 : vector<2x20x20xf32>
    %840 = arith.addf %788, %790 : vector<2x20x20xf32>
    %841 = arith.addf %792, %794 : vector<2x20x20xf32>
    %842 = arith.addf %796, %798 : vector<2x20x20xf32>
    %843 = arith.addf %800, %802 : vector<2x20x20xf32>
    %844 = arith.addf %804, %806 : vector<2x20x20xf32>
    %845 = arith.addf %808, %810 : vector<2x20x20xf32>
    %846 = arith.addf %812, %814 : vector<2x20x20xf32>
    %847 = arith.addf %816, %818 : vector<2x20x20xf32>
    %848 = arith.addf %820, %822 : vector<2x20x20xf32>
    %849 = arith.addf %824, %826 : vector<2x20x20xf32>
    %850 = arith.addf %828, %830 : vector<2x20x20xf32>
    %851 = arith.addf %832, %834 : vector<2x20x20xf32>
    %852 = arith.addf %836, %838 : vector<2x20x20xf32>
    %853 = arith.addf %839, %840 : vector<2x20x20xf32>
    %854 = arith.addf %841, %842 : vector<2x20x20xf32>
    %855 = arith.addf %843, %844 : vector<2x20x20xf32>
    %856 = arith.addf %845, %846 : vector<2x20x20xf32>
    %857 = arith.addf %847, %848 : vector<2x20x20xf32>
    %858 = arith.addf %849, %850 : vector<2x20x20xf32>
    %859 = arith.addf %851, %852 : vector<2x20x20xf32>
    %860 = arith.addf %853, %854 : vector<2x20x20xf32>
    %861 = arith.addf %855, %856 : vector<2x20x20xf32>
    %862 = arith.addf %857, %858 : vector<2x20x20xf32>
    %863 = arith.addf %860, %861 : vector<2x20x20xf32>
    %864 = arith.addf %862, %859 : vector<2x20x20xf32>
    %865 = arith.addf %863, %864 : vector<2x20x20xf32>
    %cst_78 = arith.constant 0.000000e+00 : f32
    %866 = vector.shape_cast %611 : vector<1x20x20xi1> to vector<1x20x20xi1>
    %867 = vector.broadcast %866 : vector<1x20x20xi1> to vector<2x20x20xi1>
    %868 = vector.broadcast %cst_78 : f32 to vector<2x20x20xf32>
    %869 = arith.select %867, %865, %868 : vector<2x20x20xi1>, vector<2x20x20xf32>
    %c162 = arith.constant 162 : index
    %870 = memref.load %arg1[%c162] : memref<243xf32, #tpu.memory_space<smem>>
    %c163 = arith.constant 163 : index
    %871 = memref.load %arg1[%c163] : memref<243xf32, #tpu.memory_space<smem>>
    %c164 = arith.constant 164 : index
    %872 = memref.load %arg1[%c164] : memref<243xf32, #tpu.memory_space<smem>>
    %c165 = arith.constant 165 : index
    %873 = memref.load %arg1[%c165] : memref<243xf32, #tpu.memory_space<smem>>
    %c166 = arith.constant 166 : index
    %874 = memref.load %arg1[%c166] : memref<243xf32, #tpu.memory_space<smem>>
    %c167 = arith.constant 167 : index
    %875 = memref.load %arg1[%c167] : memref<243xf32, #tpu.memory_space<smem>>
    %c168 = arith.constant 168 : index
    %876 = memref.load %arg1[%c168] : memref<243xf32, #tpu.memory_space<smem>>
    %c169 = arith.constant 169 : index
    %877 = memref.load %arg1[%c169] : memref<243xf32, #tpu.memory_space<smem>>
    %c170 = arith.constant 170 : index
    %878 = memref.load %arg1[%c170] : memref<243xf32, #tpu.memory_space<smem>>
    %c171 = arith.constant 171 : index
    %879 = memref.load %arg1[%c171] : memref<243xf32, #tpu.memory_space<smem>>
    %c172 = arith.constant 172 : index
    %880 = memref.load %arg1[%c172] : memref<243xf32, #tpu.memory_space<smem>>
    %c173 = arith.constant 173 : index
    %881 = memref.load %arg1[%c173] : memref<243xf32, #tpu.memory_space<smem>>
    %c174 = arith.constant 174 : index
    %882 = memref.load %arg1[%c174] : memref<243xf32, #tpu.memory_space<smem>>
    %c175 = arith.constant 175 : index
    %883 = memref.load %arg1[%c175] : memref<243xf32, #tpu.memory_space<smem>>
    %c176 = arith.constant 176 : index
    %884 = memref.load %arg1[%c176] : memref<243xf32, #tpu.memory_space<smem>>
    %c177 = arith.constant 177 : index
    %885 = memref.load %arg1[%c177] : memref<243xf32, #tpu.memory_space<smem>>
    %c178 = arith.constant 178 : index
    %886 = memref.load %arg1[%c178] : memref<243xf32, #tpu.memory_space<smem>>
    %c179 = arith.constant 179 : index
    %887 = memref.load %arg1[%c179] : memref<243xf32, #tpu.memory_space<smem>>
    %c180 = arith.constant 180 : index
    %888 = memref.load %arg1[%c180] : memref<243xf32, #tpu.memory_space<smem>>
    %c181 = arith.constant 181 : index
    %889 = memref.load %arg1[%c181] : memref<243xf32, #tpu.memory_space<smem>>
    %c182 = arith.constant 182 : index
    %890 = memref.load %arg1[%c182] : memref<243xf32, #tpu.memory_space<smem>>
    %c183 = arith.constant 183 : index
    %891 = memref.load %arg1[%c183] : memref<243xf32, #tpu.memory_space<smem>>
    %c184 = arith.constant 184 : index
    %892 = memref.load %arg1[%c184] : memref<243xf32, #tpu.memory_space<smem>>
    %c185 = arith.constant 185 : index
    %893 = memref.load %arg1[%c185] : memref<243xf32, #tpu.memory_space<smem>>
    %c186 = arith.constant 186 : index
    %894 = memref.load %arg1[%c186] : memref<243xf32, #tpu.memory_space<smem>>
    %c187 = arith.constant 187 : index
    %895 = memref.load %arg1[%c187] : memref<243xf32, #tpu.memory_space<smem>>
    %c188 = arith.constant 188 : index
    %896 = memref.load %arg1[%c188] : memref<243xf32, #tpu.memory_space<smem>>
    %c189 = arith.constant 189 : index
    %897 = memref.load %arg1[%c189] : memref<243xf32, #tpu.memory_space<smem>>
    %c190 = arith.constant 190 : index
    %898 = memref.load %arg1[%c190] : memref<243xf32, #tpu.memory_space<smem>>
    %c191 = arith.constant 191 : index
    %899 = memref.load %arg1[%c191] : memref<243xf32, #tpu.memory_space<smem>>
    %c192 = arith.constant 192 : index
    %900 = memref.load %arg1[%c192] : memref<243xf32, #tpu.memory_space<smem>>
    %c193 = arith.constant 193 : index
    %901 = memref.load %arg1[%c193] : memref<243xf32, #tpu.memory_space<smem>>
    %c194 = arith.constant 194 : index
    %902 = memref.load %arg1[%c194] : memref<243xf32, #tpu.memory_space<smem>>
    %c195 = arith.constant 195 : index
    %903 = memref.load %arg1[%c195] : memref<243xf32, #tpu.memory_space<smem>>
    %c196 = arith.constant 196 : index
    %904 = memref.load %arg1[%c196] : memref<243xf32, #tpu.memory_space<smem>>
    %c197 = arith.constant 197 : index
    %905 = memref.load %arg1[%c197] : memref<243xf32, #tpu.memory_space<smem>>
    %c198 = arith.constant 198 : index
    %906 = memref.load %arg1[%c198] : memref<243xf32, #tpu.memory_space<smem>>
    %c199 = arith.constant 199 : index
    %907 = memref.load %arg1[%c199] : memref<243xf32, #tpu.memory_space<smem>>
    %c200 = arith.constant 200 : index
    %908 = memref.load %arg1[%c200] : memref<243xf32, #tpu.memory_space<smem>>
    %c201 = arith.constant 201 : index
    %909 = memref.load %arg1[%c201] : memref<243xf32, #tpu.memory_space<smem>>
    %c202 = arith.constant 202 : index
    %910 = memref.load %arg1[%c202] : memref<243xf32, #tpu.memory_space<smem>>
    %c203 = arith.constant 203 : index
    %911 = memref.load %arg1[%c203] : memref<243xf32, #tpu.memory_space<smem>>
    %c204 = arith.constant 204 : index
    %912 = memref.load %arg1[%c204] : memref<243xf32, #tpu.memory_space<smem>>
    %c205 = arith.constant 205 : index
    %913 = memref.load %arg1[%c205] : memref<243xf32, #tpu.memory_space<smem>>
    %c206 = arith.constant 206 : index
    %914 = memref.load %arg1[%c206] : memref<243xf32, #tpu.memory_space<smem>>
    %c207 = arith.constant 207 : index
    %915 = memref.load %arg1[%c207] : memref<243xf32, #tpu.memory_space<smem>>
    %c208 = arith.constant 208 : index
    %916 = memref.load %arg1[%c208] : memref<243xf32, #tpu.memory_space<smem>>
    %c209 = arith.constant 209 : index
    %917 = memref.load %arg1[%c209] : memref<243xf32, #tpu.memory_space<smem>>
    %c210 = arith.constant 210 : index
    %918 = memref.load %arg1[%c210] : memref<243xf32, #tpu.memory_space<smem>>
    %c211 = arith.constant 211 : index
    %919 = memref.load %arg1[%c211] : memref<243xf32, #tpu.memory_space<smem>>
    %c212 = arith.constant 212 : index
    %920 = memref.load %arg1[%c212] : memref<243xf32, #tpu.memory_space<smem>>
    %c213 = arith.constant 213 : index
    %921 = memref.load %arg1[%c213] : memref<243xf32, #tpu.memory_space<smem>>
    %c214 = arith.constant 214 : index
    %922 = memref.load %arg1[%c214] : memref<243xf32, #tpu.memory_space<smem>>
    %c215 = arith.constant 215 : index
    %923 = memref.load %arg1[%c215] : memref<243xf32, #tpu.memory_space<smem>>
    %c216 = arith.constant 216 : index
    %924 = memref.load %arg1[%c216] : memref<243xf32, #tpu.memory_space<smem>>
    %c217 = arith.constant 217 : index
    %925 = memref.load %arg1[%c217] : memref<243xf32, #tpu.memory_space<smem>>
    %c218 = arith.constant 218 : index
    %926 = memref.load %arg1[%c218] : memref<243xf32, #tpu.memory_space<smem>>
    %c219 = arith.constant 219 : index
    %927 = memref.load %arg1[%c219] : memref<243xf32, #tpu.memory_space<smem>>
    %c220 = arith.constant 220 : index
    %928 = memref.load %arg1[%c220] : memref<243xf32, #tpu.memory_space<smem>>
    %c221 = arith.constant 221 : index
    %929 = memref.load %arg1[%c221] : memref<243xf32, #tpu.memory_space<smem>>
    %c222 = arith.constant 222 : index
    %930 = memref.load %arg1[%c222] : memref<243xf32, #tpu.memory_space<smem>>
    %c223 = arith.constant 223 : index
    %931 = memref.load %arg1[%c223] : memref<243xf32, #tpu.memory_space<smem>>
    %c224 = arith.constant 224 : index
    %932 = memref.load %arg1[%c224] : memref<243xf32, #tpu.memory_space<smem>>
    %c225 = arith.constant 225 : index
    %933 = memref.load %arg1[%c225] : memref<243xf32, #tpu.memory_space<smem>>
    %c226 = arith.constant 226 : index
    %934 = memref.load %arg1[%c226] : memref<243xf32, #tpu.memory_space<smem>>
    %c227 = arith.constant 227 : index
    %935 = memref.load %arg1[%c227] : memref<243xf32, #tpu.memory_space<smem>>
    %c228 = arith.constant 228 : index
    %936 = memref.load %arg1[%c228] : memref<243xf32, #tpu.memory_space<smem>>
    %c229 = arith.constant 229 : index
    %937 = memref.load %arg1[%c229] : memref<243xf32, #tpu.memory_space<smem>>
    %c230 = arith.constant 230 : index
    %938 = memref.load %arg1[%c230] : memref<243xf32, #tpu.memory_space<smem>>
    %c231 = arith.constant 231 : index
    %939 = memref.load %arg1[%c231] : memref<243xf32, #tpu.memory_space<smem>>
    %c232 = arith.constant 232 : index
    %940 = memref.load %arg1[%c232] : memref<243xf32, #tpu.memory_space<smem>>
    %c233 = arith.constant 233 : index
    %941 = memref.load %arg1[%c233] : memref<243xf32, #tpu.memory_space<smem>>
    %c234 = arith.constant 234 : index
    %942 = memref.load %arg1[%c234] : memref<243xf32, #tpu.memory_space<smem>>
    %c235 = arith.constant 235 : index
    %943 = memref.load %arg1[%c235] : memref<243xf32, #tpu.memory_space<smem>>
    %c236 = arith.constant 236 : index
    %944 = memref.load %arg1[%c236] : memref<243xf32, #tpu.memory_space<smem>>
    %c237 = arith.constant 237 : index
    %945 = memref.load %arg1[%c237] : memref<243xf32, #tpu.memory_space<smem>>
    %c238 = arith.constant 238 : index
    %946 = memref.load %arg1[%c238] : memref<243xf32, #tpu.memory_space<smem>>
    %c239 = arith.constant 239 : index
    %947 = memref.load %arg1[%c239] : memref<243xf32, #tpu.memory_space<smem>>
    %c240 = arith.constant 240 : index
    %948 = memref.load %arg1[%c240] : memref<243xf32, #tpu.memory_space<smem>>
    %c241 = arith.constant 241 : index
    %949 = memref.load %arg1[%c241] : memref<243xf32, #tpu.memory_space<smem>>
    %c242 = arith.constant 242 : index
    %950 = memref.load %arg1[%c242] : memref<243xf32, #tpu.memory_space<smem>>
    %c6_79 = arith.constant 6 : index
    %951 = memref.load %arg2[%c6_79] : memref<9xf32, #tpu.memory_space<smem>>
    %c7_80 = arith.constant 7 : index
    %952 = memref.load %arg2[%c7_80] : memref<9xf32, #tpu.memory_space<smem>>
    %c8_81 = arith.constant 8 : index
    %953 = memref.load %arg2[%c8_81] : memref<9xf32, #tpu.memory_space<smem>>
    %cst_82 = arith.constant 0.000000e+00 : f32
    %954 = vector.broadcast %cst_82 : f32 to vector<2x4x20xf32>
    %955 = vector.extract_strided_slice %697 {offsets = [0, 0, 0], sizes = [2, 16, 20], strides = [1, 1, 1]} : vector<2x20x20xf32> to vector<2x16x20xf32>
    %956 = tpu.concatenate %954, %955 in 1 : vector<2x4x20xf32>, vector<2x16x20xf32> -> vector<2x20x20xf32>
    %cst_83 = arith.constant 0.000000e+00 : f32
    %957 = vector.broadcast %cst_83 : f32 to vector<2x20x4xf32>
    %958 = vector.extract_strided_slice %956 {offsets = [0, 0, 0], sizes = [2, 20, 16], strides = [1, 1, 1]} : vector<2x20x20xf32> to vector<2x20x16xf32>
    %959 = tpu.concatenate %957, %958 in 2 : vector<2x20x4xf32>, vector<2x20x16xf32> -> vector<2x20x20xf32>
    %cst_84 = arith.constant 0.000000e+00 : f32
    %960 = vector.broadcast %cst_84 : f32 to vector<2x20x4xf32>
    %961 = vector.extract_strided_slice %956 {offsets = [0, 0, 4], sizes = [2, 20, 16], strides = [1, 1, 1]} : vector<2x20x20xf32> to vector<2x20x16xf32>
    %962 = tpu.concatenate %961, %960 in 2 : vector<2x20x16xf32>, vector<2x20x4xf32> -> vector<2x20x20xf32>
    %cst_85 = arith.constant 0.000000e+00 : f32
    %963 = vector.broadcast %cst_85 : f32 to vector<2x20x4xf32>
    %964 = vector.extract_strided_slice %697 {offsets = [0, 0, 0], sizes = [2, 20, 16], strides = [1, 1, 1]} : vector<2x20x20xf32> to vector<2x20x16xf32>
    %965 = tpu.concatenate %963, %964 in 2 : vector<2x20x4xf32>, vector<2x20x16xf32> -> vector<2x20x20xf32>
    %cst_86 = arith.constant 0.000000e+00 : f32
    %966 = vector.broadcast %cst_86 : f32 to vector<2x20x4xf32>
    %967 = vector.extract_strided_slice %697 {offsets = [0, 0, 4], sizes = [2, 20, 16], strides = [1, 1, 1]} : vector<2x20x20xf32> to vector<2x20x16xf32>
    %968 = tpu.concatenate %967, %966 in 2 : vector<2x20x16xf32>, vector<2x20x4xf32> -> vector<2x20x20xf32>
    %cst_87 = arith.constant 0.000000e+00 : f32
    %969 = vector.broadcast %cst_87 : f32 to vector<2x4x20xf32>
    %970 = vector.extract_strided_slice %697 {offsets = [0, 4, 0], sizes = [2, 16, 20], strides = [1, 1, 1]} : vector<2x20x20xf32> to vector<2x16x20xf32>
    %971 = tpu.concatenate %970, %969 in 1 : vector<2x16x20xf32>, vector<2x4x20xf32> -> vector<2x20x20xf32>
    %cst_88 = arith.constant 0.000000e+00 : f32
    %972 = vector.broadcast %cst_88 : f32 to vector<2x20x4xf32>
    %973 = vector.extract_strided_slice %971 {offsets = [0, 0, 0], sizes = [2, 20, 16], strides = [1, 1, 1]} : vector<2x20x20xf32> to vector<2x20x16xf32>
    %974 = tpu.concatenate %972, %973 in 2 : vector<2x20x4xf32>, vector<2x20x16xf32> -> vector<2x20x20xf32>
    %cst_89 = arith.constant 0.000000e+00 : f32
    %975 = vector.broadcast %cst_89 : f32 to vector<2x20x4xf32>
    %976 = vector.extract_strided_slice %971 {offsets = [0, 0, 4], sizes = [2, 20, 16], strides = [1, 1, 1]} : vector<2x20x20xf32> to vector<2x20x16xf32>
    %977 = tpu.concatenate %976, %975 in 2 : vector<2x20x16xf32>, vector<2x20x4xf32> -> vector<2x20x20xf32>
    %cst_90 = arith.constant 0.000000e+00 : f32
    %978 = vector.broadcast %cst_90 : f32 to vector<2x4x20xf32>
    %979 = vector.extract_strided_slice %783 {offsets = [0, 0, 0], sizes = [2, 16, 20], strides = [1, 1, 1]} : vector<2x20x20xf32> to vector<2x16x20xf32>
    %980 = tpu.concatenate %978, %979 in 1 : vector<2x4x20xf32>, vector<2x16x20xf32> -> vector<2x20x20xf32>
    %cst_91 = arith.constant 0.000000e+00 : f32
    %981 = vector.broadcast %cst_91 : f32 to vector<2x20x4xf32>
    %982 = vector.extract_strided_slice %980 {offsets = [0, 0, 0], sizes = [2, 20, 16], strides = [1, 1, 1]} : vector<2x20x20xf32> to vector<2x20x16xf32>
    %983 = tpu.concatenate %981, %982 in 2 : vector<2x20x4xf32>, vector<2x20x16xf32> -> vector<2x20x20xf32>
    %cst_92 = arith.constant 0.000000e+00 : f32
    %984 = vector.broadcast %cst_92 : f32 to vector<2x20x4xf32>
    %985 = vector.extract_strided_slice %980 {offsets = [0, 0, 4], sizes = [2, 20, 16], strides = [1, 1, 1]} : vector<2x20x20xf32> to vector<2x20x16xf32>
    %986 = tpu.concatenate %985, %984 in 2 : vector<2x20x16xf32>, vector<2x20x4xf32> -> vector<2x20x20xf32>
    %cst_93 = arith.constant 0.000000e+00 : f32
    %987 = vector.broadcast %cst_93 : f32 to vector<2x20x4xf32>
    %988 = vector.extract_strided_slice %783 {offsets = [0, 0, 0], sizes = [2, 20, 16], strides = [1, 1, 1]} : vector<2x20x20xf32> to vector<2x20x16xf32>
    %989 = tpu.concatenate %987, %988 in 2 : vector<2x20x4xf32>, vector<2x20x16xf32> -> vector<2x20x20xf32>
    %cst_94 = arith.constant 0.000000e+00 : f32
    %990 = vector.broadcast %cst_94 : f32 to vector<2x20x4xf32>
    %991 = vector.extract_strided_slice %783 {offsets = [0, 0, 4], sizes = [2, 20, 16], strides = [1, 1, 1]} : vector<2x20x20xf32> to vector<2x20x16xf32>
    %992 = tpu.concatenate %991, %990 in 2 : vector<2x20x16xf32>, vector<2x20x4xf32> -> vector<2x20x20xf32>
    %cst_95 = arith.constant 0.000000e+00 : f32
    %993 = vector.broadcast %cst_95 : f32 to vector<2x4x20xf32>
    %994 = vector.extract_strided_slice %783 {offsets = [0, 4, 0], sizes = [2, 16, 20], strides = [1, 1, 1]} : vector<2x20x20xf32> to vector<2x16x20xf32>
    %995 = tpu.concatenate %994, %993 in 1 : vector<2x16x20xf32>, vector<2x4x20xf32> -> vector<2x20x20xf32>
    %cst_96 = arith.constant 0.000000e+00 : f32
    %996 = vector.broadcast %cst_96 : f32 to vector<2x20x4xf32>
    %997 = vector.extract_strided_slice %995 {offsets = [0, 0, 0], sizes = [2, 20, 16], strides = [1, 1, 1]} : vector<2x20x20xf32> to vector<2x20x16xf32>
    %998 = tpu.concatenate %996, %997 in 2 : vector<2x20x4xf32>, vector<2x20x16xf32> -> vector<2x20x20xf32>
    %cst_97 = arith.constant 0.000000e+00 : f32
    %999 = vector.broadcast %cst_97 : f32 to vector<2x20x4xf32>
    %1000 = vector.extract_strided_slice %995 {offsets = [0, 0, 4], sizes = [2, 20, 16], strides = [1, 1, 1]} : vector<2x20x20xf32> to vector<2x20x16xf32>
    %1001 = tpu.concatenate %1000, %999 in 2 : vector<2x20x16xf32>, vector<2x20x4xf32> -> vector<2x20x20xf32>
    %cst_98 = arith.constant 0.000000e+00 : f32
    %1002 = vector.broadcast %cst_98 : f32 to vector<2x4x20xf32>
    %1003 = vector.extract_strided_slice %869 {offsets = [0, 0, 0], sizes = [2, 16, 20], strides = [1, 1, 1]} : vector<2x20x20xf32> to vector<2x16x20xf32>
    %1004 = tpu.concatenate %1002, %1003 in 1 : vector<2x4x20xf32>, vector<2x16x20xf32> -> vector<2x20x20xf32>
    %cst_99 = arith.constant 0.000000e+00 : f32
    %1005 = vector.broadcast %cst_99 : f32 to vector<2x20x4xf32>
    %1006 = vector.extract_strided_slice %1004 {offsets = [0, 0, 0], sizes = [2, 20, 16], strides = [1, 1, 1]} : vector<2x20x20xf32> to vector<2x20x16xf32>
    %1007 = tpu.concatenate %1005, %1006 in 2 : vector<2x20x4xf32>, vector<2x20x16xf32> -> vector<2x20x20xf32>
    %cst_100 = arith.constant 0.000000e+00 : f32
    %1008 = vector.broadcast %cst_100 : f32 to vector<2x20x4xf32>
    %1009 = vector.extract_strided_slice %1004 {offsets = [0, 0, 4], sizes = [2, 20, 16], strides = [1, 1, 1]} : vector<2x20x20xf32> to vector<2x20x16xf32>
    %1010 = tpu.concatenate %1009, %1008 in 2 : vector<2x20x16xf32>, vector<2x20x4xf32> -> vector<2x20x20xf32>
    %cst_101 = arith.constant 0.000000e+00 : f32
    %1011 = vector.broadcast %cst_101 : f32 to vector<2x20x4xf32>
    %1012 = vector.extract_strided_slice %869 {offsets = [0, 0, 0], sizes = [2, 20, 16], strides = [1, 1, 1]} : vector<2x20x20xf32> to vector<2x20x16xf32>
    %1013 = tpu.concatenate %1011, %1012 in 2 : vector<2x20x4xf32>, vector<2x20x16xf32> -> vector<2x20x20xf32>
    %cst_102 = arith.constant 0.000000e+00 : f32
    %1014 = vector.broadcast %cst_102 : f32 to vector<2x20x4xf32>
    %1015 = vector.extract_strided_slice %869 {offsets = [0, 0, 4], sizes = [2, 20, 16], strides = [1, 1, 1]} : vector<2x20x20xf32> to vector<2x20x16xf32>
    %1016 = tpu.concatenate %1015, %1014 in 2 : vector<2x20x16xf32>, vector<2x20x4xf32> -> vector<2x20x20xf32>
    %cst_103 = arith.constant 0.000000e+00 : f32
    %1017 = vector.broadcast %cst_103 : f32 to vector<2x4x20xf32>
    %1018 = vector.extract_strided_slice %869 {offsets = [0, 4, 0], sizes = [2, 16, 20], strides = [1, 1, 1]} : vector<2x20x20xf32> to vector<2x16x20xf32>
    %1019 = tpu.concatenate %1018, %1017 in 1 : vector<2x16x20xf32>, vector<2x4x20xf32> -> vector<2x20x20xf32>
    %cst_104 = arith.constant 0.000000e+00 : f32
    %1020 = vector.broadcast %cst_104 : f32 to vector<2x20x4xf32>
    %1021 = vector.extract_strided_slice %1019 {offsets = [0, 0, 0], sizes = [2, 20, 16], strides = [1, 1, 1]} : vector<2x20x20xf32> to vector<2x20x16xf32>
    %1022 = tpu.concatenate %1020, %1021 in 2 : vector<2x20x4xf32>, vector<2x20x16xf32> -> vector<2x20x20xf32>
    %cst_105 = arith.constant 0.000000e+00 : f32
    %1023 = vector.broadcast %cst_105 : f32 to vector<2x20x4xf32>
    %1024 = vector.extract_strided_slice %1019 {offsets = [0, 0, 4], sizes = [2, 20, 16], strides = [1, 1, 1]} : vector<2x20x20xf32> to vector<2x20x16xf32>
    %1025 = tpu.concatenate %1024, %1023 in 2 : vector<2x20x16xf32>, vector<2x20x4xf32> -> vector<2x20x20xf32>
    %1026 = tpu.iota {dimensions = array<i32: 0>} : vector<20x20xi32>
    %c4_i32_106 = arith.constant 4 : i32
    %1027 = vector.broadcast %c4_i32_106 : i32 to vector<20x20xi32>
    %1028 = arith.subi %1026, %1027 : vector<20x20xi32>
    %1029 = tpu.iota {dimensions = array<i32: 1>} : vector<20x20xi32>
    %c4_i32_107 = arith.constant 4 : i32
    %1030 = vector.broadcast %c4_i32_107 : i32 to vector<20x20xi32>
    %1031 = arith.subi %1029, %1030 : vector<20x20xi32>
    %c0_i32_108 = arith.constant 0 : i32
    %1032 = vector.broadcast %c0_i32_108 : i32 to vector<20x20xi32>
    %1033 = arith.cmpi sge, %1028, %1032 : vector<20x20xi32>
    %c8_i32 = arith.constant 8 : i32
    %1034 = vector.broadcast %c8_i32 : i32 to vector<20x20xi32>
    %1035 = arith.cmpi sle, %1028, %1034 : vector<20x20xi32>
    %1036 = arith.andi %1033, %1035 : vector<20x20xi1>
    %c0_i32_109 = arith.constant 0 : i32
    %1037 = vector.broadcast %c0_i32_109 : i32 to vector<20x20xi32>
    %1038 = arith.cmpi sge, %1031, %1037 : vector<20x20xi32>
    %1039 = arith.andi %1036, %1038 : vector<20x20xi1>
    %c8_i32_110 = arith.constant 8 : i32
    %1040 = vector.broadcast %c8_i32_110 : i32 to vector<20x20xi32>
    %1041 = arith.cmpi sle, %1031, %1040 : vector<20x20xi32>
    %1042 = arith.andi %1039, %1041 : vector<20x20xi1>
    %1043 = vector.shape_cast %1042 : vector<20x20xi1> to vector<1x20x20xi1>
    %1044 = vector.broadcast %951 : f32 to vector<2x20x20xf32>
    %1045 = vector.broadcast %870 : f32 to vector<2x20x20xf32>
    %1046 = arith.mulf %1045, %959 : vector<2x20x20xf32>
    %1047 = vector.broadcast %871 : f32 to vector<2x20x20xf32>
    %1048 = arith.mulf %1047, %956 : vector<2x20x20xf32>
    %1049 = vector.broadcast %872 : f32 to vector<2x20x20xf32>
    %1050 = arith.mulf %1049, %962 : vector<2x20x20xf32>
    %1051 = vector.broadcast %873 : f32 to vector<2x20x20xf32>
    %1052 = arith.mulf %1051, %965 : vector<2x20x20xf32>
    %1053 = vector.broadcast %874 : f32 to vector<2x20x20xf32>
    %1054 = arith.mulf %1053, %697 : vector<2x20x20xf32>
    %1055 = vector.broadcast %875 : f32 to vector<2x20x20xf32>
    %1056 = arith.mulf %1055, %968 : vector<2x20x20xf32>
    %1057 = vector.broadcast %876 : f32 to vector<2x20x20xf32>
    %1058 = arith.mulf %1057, %974 : vector<2x20x20xf32>
    %1059 = vector.broadcast %877 : f32 to vector<2x20x20xf32>
    %1060 = arith.mulf %1059, %971 : vector<2x20x20xf32>
    %1061 = vector.broadcast %878 : f32 to vector<2x20x20xf32>
    %1062 = arith.mulf %1061, %977 : vector<2x20x20xf32>
    %1063 = vector.broadcast %879 : f32 to vector<2x20x20xf32>
    %1064 = arith.mulf %1063, %983 : vector<2x20x20xf32>
    %1065 = vector.broadcast %880 : f32 to vector<2x20x20xf32>
    %1066 = arith.mulf %1065, %980 : vector<2x20x20xf32>
    %1067 = vector.broadcast %881 : f32 to vector<2x20x20xf32>
    %1068 = arith.mulf %1067, %986 : vector<2x20x20xf32>
    %1069 = vector.broadcast %882 : f32 to vector<2x20x20xf32>
    %1070 = arith.mulf %1069, %989 : vector<2x20x20xf32>
    %1071 = vector.broadcast %883 : f32 to vector<2x20x20xf32>
    %1072 = arith.mulf %1071, %783 : vector<2x20x20xf32>
    %1073 = vector.broadcast %884 : f32 to vector<2x20x20xf32>
    %1074 = arith.mulf %1073, %992 : vector<2x20x20xf32>
    %1075 = vector.broadcast %885 : f32 to vector<2x20x20xf32>
    %1076 = arith.mulf %1075, %998 : vector<2x20x20xf32>
    %1077 = vector.broadcast %886 : f32 to vector<2x20x20xf32>
    %1078 = arith.mulf %1077, %995 : vector<2x20x20xf32>
    %1079 = vector.broadcast %887 : f32 to vector<2x20x20xf32>
    %1080 = arith.mulf %1079, %1001 : vector<2x20x20xf32>
    %1081 = vector.broadcast %888 : f32 to vector<2x20x20xf32>
    %1082 = arith.mulf %1081, %1007 : vector<2x20x20xf32>
    %1083 = vector.broadcast %889 : f32 to vector<2x20x20xf32>
    %1084 = arith.mulf %1083, %1004 : vector<2x20x20xf32>
    %1085 = vector.broadcast %890 : f32 to vector<2x20x20xf32>
    %1086 = arith.mulf %1085, %1010 : vector<2x20x20xf32>
    %1087 = vector.broadcast %891 : f32 to vector<2x20x20xf32>
    %1088 = arith.mulf %1087, %1013 : vector<2x20x20xf32>
    %1089 = vector.broadcast %892 : f32 to vector<2x20x20xf32>
    %1090 = arith.mulf %1089, %869 : vector<2x20x20xf32>
    %1091 = vector.broadcast %893 : f32 to vector<2x20x20xf32>
    %1092 = arith.mulf %1091, %1016 : vector<2x20x20xf32>
    %1093 = vector.broadcast %894 : f32 to vector<2x20x20xf32>
    %1094 = arith.mulf %1093, %1022 : vector<2x20x20xf32>
    %1095 = vector.broadcast %895 : f32 to vector<2x20x20xf32>
    %1096 = arith.mulf %1095, %1019 : vector<2x20x20xf32>
    %1097 = vector.broadcast %896 : f32 to vector<2x20x20xf32>
    %1098 = arith.mulf %1097, %1025 : vector<2x20x20xf32>
    %1099 = arith.addf %1044, %1046 : vector<2x20x20xf32>
    %1100 = arith.addf %1048, %1050 : vector<2x20x20xf32>
    %1101 = arith.addf %1052, %1054 : vector<2x20x20xf32>
    %1102 = arith.addf %1056, %1058 : vector<2x20x20xf32>
    %1103 = arith.addf %1060, %1062 : vector<2x20x20xf32>
    %1104 = arith.addf %1064, %1066 : vector<2x20x20xf32>
    %1105 = arith.addf %1068, %1070 : vector<2x20x20xf32>
    %1106 = arith.addf %1072, %1074 : vector<2x20x20xf32>
    %1107 = arith.addf %1076, %1078 : vector<2x20x20xf32>
    %1108 = arith.addf %1080, %1082 : vector<2x20x20xf32>
    %1109 = arith.addf %1084, %1086 : vector<2x20x20xf32>
    %1110 = arith.addf %1088, %1090 : vector<2x20x20xf32>
    %1111 = arith.addf %1092, %1094 : vector<2x20x20xf32>
    %1112 = arith.addf %1096, %1098 : vector<2x20x20xf32>
    %1113 = arith.addf %1099, %1100 : vector<2x20x20xf32>
    %1114 = arith.addf %1101, %1102 : vector<2x20x20xf32>
    %1115 = arith.addf %1103, %1104 : vector<2x20x20xf32>
    %1116 = arith.addf %1105, %1106 : vector<2x20x20xf32>
    %1117 = arith.addf %1107, %1108 : vector<2x20x20xf32>
    %1118 = arith.addf %1109, %1110 : vector<2x20x20xf32>
    %1119 = arith.addf %1111, %1112 : vector<2x20x20xf32>
    %1120 = arith.addf %1113, %1114 : vector<2x20x20xf32>
    %1121 = arith.addf %1115, %1116 : vector<2x20x20xf32>
    %1122 = arith.addf %1117, %1118 : vector<2x20x20xf32>
    %1123 = arith.addf %1120, %1121 : vector<2x20x20xf32>
    %1124 = arith.addf %1122, %1119 : vector<2x20x20xf32>
    %1125 = arith.addf %1123, %1124 : vector<2x20x20xf32>
    %cst_111 = arith.constant 0.000000e+00 : f32
    %1126 = vector.shape_cast %1043 : vector<1x20x20xi1> to vector<1x20x20xi1>
    %1127 = vector.broadcast %1126 : vector<1x20x20xi1> to vector<2x20x20xi1>
    %1128 = vector.broadcast %cst_111 : f32 to vector<2x20x20xf32>
    %1129 = arith.select %1127, %1125, %1128 : vector<2x20x20xi1>, vector<2x20x20xf32>
    %1130 = vector.broadcast %952 : f32 to vector<2x20x20xf32>
    %1131 = vector.broadcast %897 : f32 to vector<2x20x20xf32>
    %1132 = arith.mulf %1131, %959 : vector<2x20x20xf32>
    %1133 = vector.broadcast %898 : f32 to vector<2x20x20xf32>
    %1134 = arith.mulf %1133, %956 : vector<2x20x20xf32>
    %1135 = vector.broadcast %899 : f32 to vector<2x20x20xf32>
    %1136 = arith.mulf %1135, %962 : vector<2x20x20xf32>
    %1137 = vector.broadcast %900 : f32 to vector<2x20x20xf32>
    %1138 = arith.mulf %1137, %965 : vector<2x20x20xf32>
    %1139 = vector.broadcast %901 : f32 to vector<2x20x20xf32>
    %1140 = arith.mulf %1139, %697 : vector<2x20x20xf32>
    %1141 = vector.broadcast %902 : f32 to vector<2x20x20xf32>
    %1142 = arith.mulf %1141, %968 : vector<2x20x20xf32>
    %1143 = vector.broadcast %903 : f32 to vector<2x20x20xf32>
    %1144 = arith.mulf %1143, %974 : vector<2x20x20xf32>
    %1145 = vector.broadcast %904 : f32 to vector<2x20x20xf32>
    %1146 = arith.mulf %1145, %971 : vector<2x20x20xf32>
    %1147 = vector.broadcast %905 : f32 to vector<2x20x20xf32>
    %1148 = arith.mulf %1147, %977 : vector<2x20x20xf32>
    %1149 = vector.broadcast %906 : f32 to vector<2x20x20xf32>
    %1150 = arith.mulf %1149, %983 : vector<2x20x20xf32>
    %1151 = vector.broadcast %907 : f32 to vector<2x20x20xf32>
    %1152 = arith.mulf %1151, %980 : vector<2x20x20xf32>
    %1153 = vector.broadcast %908 : f32 to vector<2x20x20xf32>
    %1154 = arith.mulf %1153, %986 : vector<2x20x20xf32>
    %1155 = vector.broadcast %909 : f32 to vector<2x20x20xf32>
    %1156 = arith.mulf %1155, %989 : vector<2x20x20xf32>
    %1157 = vector.broadcast %910 : f32 to vector<2x20x20xf32>
    %1158 = arith.mulf %1157, %783 : vector<2x20x20xf32>
    %1159 = vector.broadcast %911 : f32 to vector<2x20x20xf32>
    %1160 = arith.mulf %1159, %992 : vector<2x20x20xf32>
    %1161 = vector.broadcast %912 : f32 to vector<2x20x20xf32>
    %1162 = arith.mulf %1161, %998 : vector<2x20x20xf32>
    %1163 = vector.broadcast %913 : f32 to vector<2x20x20xf32>
    %1164 = arith.mulf %1163, %995 : vector<2x20x20xf32>
    %1165 = vector.broadcast %914 : f32 to vector<2x20x20xf32>
    %1166 = arith.mulf %1165, %1001 : vector<2x20x20xf32>
    %1167 = vector.broadcast %915 : f32 to vector<2x20x20xf32>
    %1168 = arith.mulf %1167, %1007 : vector<2x20x20xf32>
    %1169 = vector.broadcast %916 : f32 to vector<2x20x20xf32>
    %1170 = arith.mulf %1169, %1004 : vector<2x20x20xf32>
    %1171 = vector.broadcast %917 : f32 to vector<2x20x20xf32>
    %1172 = arith.mulf %1171, %1010 : vector<2x20x20xf32>
    %1173 = vector.broadcast %918 : f32 to vector<2x20x20xf32>
    %1174 = arith.mulf %1173, %1013 : vector<2x20x20xf32>
    %1175 = vector.broadcast %919 : f32 to vector<2x20x20xf32>
    %1176 = arith.mulf %1175, %869 : vector<2x20x20xf32>
    %1177 = vector.broadcast %920 : f32 to vector<2x20x20xf32>
    %1178 = arith.mulf %1177, %1016 : vector<2x20x20xf32>
    %1179 = vector.broadcast %921 : f32 to vector<2x20x20xf32>
    %1180 = arith.mulf %1179, %1022 : vector<2x20x20xf32>
    %1181 = vector.broadcast %922 : f32 to vector<2x20x20xf32>
    %1182 = arith.mulf %1181, %1019 : vector<2x20x20xf32>
    %1183 = vector.broadcast %923 : f32 to vector<2x20x20xf32>
    %1184 = arith.mulf %1183, %1025 : vector<2x20x20xf32>
    %1185 = arith.addf %1130, %1132 : vector<2x20x20xf32>
    %1186 = arith.addf %1134, %1136 : vector<2x20x20xf32>
    %1187 = arith.addf %1138, %1140 : vector<2x20x20xf32>
    %1188 = arith.addf %1142, %1144 : vector<2x20x20xf32>
    %1189 = arith.addf %1146, %1148 : vector<2x20x20xf32>
    %1190 = arith.addf %1150, %1152 : vector<2x20x20xf32>
    %1191 = arith.addf %1154, %1156 : vector<2x20x20xf32>
    %1192 = arith.addf %1158, %1160 : vector<2x20x20xf32>
    %1193 = arith.addf %1162, %1164 : vector<2x20x20xf32>
    %1194 = arith.addf %1166, %1168 : vector<2x20x20xf32>
    %1195 = arith.addf %1170, %1172 : vector<2x20x20xf32>
    %1196 = arith.addf %1174, %1176 : vector<2x20x20xf32>
    %1197 = arith.addf %1178, %1180 : vector<2x20x20xf32>
    %1198 = arith.addf %1182, %1184 : vector<2x20x20xf32>
    %1199 = arith.addf %1185, %1186 : vector<2x20x20xf32>
    %1200 = arith.addf %1187, %1188 : vector<2x20x20xf32>
    %1201 = arith.addf %1189, %1190 : vector<2x20x20xf32>
    %1202 = arith.addf %1191, %1192 : vector<2x20x20xf32>
    %1203 = arith.addf %1193, %1194 : vector<2x20x20xf32>
    %1204 = arith.addf %1195, %1196 : vector<2x20x20xf32>
    %1205 = arith.addf %1197, %1198 : vector<2x20x20xf32>
    %1206 = arith.addf %1199, %1200 : vector<2x20x20xf32>
    %1207 = arith.addf %1201, %1202 : vector<2x20x20xf32>
    %1208 = arith.addf %1203, %1204 : vector<2x20x20xf32>
    %1209 = arith.addf %1206, %1207 : vector<2x20x20xf32>
    %1210 = arith.addf %1208, %1205 : vector<2x20x20xf32>
    %1211 = arith.addf %1209, %1210 : vector<2x20x20xf32>
    %cst_112 = arith.constant 0.000000e+00 : f32
    %1212 = vector.shape_cast %1043 : vector<1x20x20xi1> to vector<1x20x20xi1>
    %1213 = vector.broadcast %1212 : vector<1x20x20xi1> to vector<2x20x20xi1>
    %1214 = vector.broadcast %cst_112 : f32 to vector<2x20x20xf32>
    %1215 = arith.select %1213, %1211, %1214 : vector<2x20x20xi1>, vector<2x20x20xf32>
    %1216 = vector.broadcast %953 : f32 to vector<2x20x20xf32>
    %1217 = vector.broadcast %924 : f32 to vector<2x20x20xf32>
    %1218 = arith.mulf %1217, %959 : vector<2x20x20xf32>
    %1219 = vector.broadcast %925 : f32 to vector<2x20x20xf32>
    %1220 = arith.mulf %1219, %956 : vector<2x20x20xf32>
    %1221 = vector.broadcast %926 : f32 to vector<2x20x20xf32>
    %1222 = arith.mulf %1221, %962 : vector<2x20x20xf32>
    %1223 = vector.broadcast %927 : f32 to vector<2x20x20xf32>
    %1224 = arith.mulf %1223, %965 : vector<2x20x20xf32>
    %1225 = vector.broadcast %928 : f32 to vector<2x20x20xf32>
    %1226 = arith.mulf %1225, %697 : vector<2x20x20xf32>
    %1227 = vector.broadcast %929 : f32 to vector<2x20x20xf32>
    %1228 = arith.mulf %1227, %968 : vector<2x20x20xf32>
    %1229 = vector.broadcast %930 : f32 to vector<2x20x20xf32>
    %1230 = arith.mulf %1229, %974 : vector<2x20x20xf32>
    %1231 = vector.broadcast %931 : f32 to vector<2x20x20xf32>
    %1232 = arith.mulf %1231, %971 : vector<2x20x20xf32>
    %1233 = vector.broadcast %932 : f32 to vector<2x20x20xf32>
    %1234 = arith.mulf %1233, %977 : vector<2x20x20xf32>
    %1235 = vector.broadcast %933 : f32 to vector<2x20x20xf32>
    %1236 = arith.mulf %1235, %983 : vector<2x20x20xf32>
    %1237 = vector.broadcast %934 : f32 to vector<2x20x20xf32>
    %1238 = arith.mulf %1237, %980 : vector<2x20x20xf32>
    %1239 = vector.broadcast %935 : f32 to vector<2x20x20xf32>
    %1240 = arith.mulf %1239, %986 : vector<2x20x20xf32>
    %1241 = vector.broadcast %936 : f32 to vector<2x20x20xf32>
    %1242 = arith.mulf %1241, %989 : vector<2x20x20xf32>
    %1243 = vector.broadcast %937 : f32 to vector<2x20x20xf32>
    %1244 = arith.mulf %1243, %783 : vector<2x20x20xf32>
    %1245 = vector.broadcast %938 : f32 to vector<2x20x20xf32>
    %1246 = arith.mulf %1245, %992 : vector<2x20x20xf32>
    %1247 = vector.broadcast %939 : f32 to vector<2x20x20xf32>
    %1248 = arith.mulf %1247, %998 : vector<2x20x20xf32>
    %1249 = vector.broadcast %940 : f32 to vector<2x20x20xf32>
    %1250 = arith.mulf %1249, %995 : vector<2x20x20xf32>
    %1251 = vector.broadcast %941 : f32 to vector<2x20x20xf32>
    %1252 = arith.mulf %1251, %1001 : vector<2x20x20xf32>
    %1253 = vector.broadcast %942 : f32 to vector<2x20x20xf32>
    %1254 = arith.mulf %1253, %1007 : vector<2x20x20xf32>
    %1255 = vector.broadcast %943 : f32 to vector<2x20x20xf32>
    %1256 = arith.mulf %1255, %1004 : vector<2x20x20xf32>
    %1257 = vector.broadcast %944 : f32 to vector<2x20x20xf32>
    %1258 = arith.mulf %1257, %1010 : vector<2x20x20xf32>
    %1259 = vector.broadcast %945 : f32 to vector<2x20x20xf32>
    %1260 = arith.mulf %1259, %1013 : vector<2x20x20xf32>
    %1261 = vector.broadcast %946 : f32 to vector<2x20x20xf32>
    %1262 = arith.mulf %1261, %869 : vector<2x20x20xf32>
    %1263 = vector.broadcast %947 : f32 to vector<2x20x20xf32>
    %1264 = arith.mulf %1263, %1016 : vector<2x20x20xf32>
    %1265 = vector.broadcast %948 : f32 to vector<2x20x20xf32>
    %1266 = arith.mulf %1265, %1022 : vector<2x20x20xf32>
    %1267 = vector.broadcast %949 : f32 to vector<2x20x20xf32>
    %1268 = arith.mulf %1267, %1019 : vector<2x20x20xf32>
    %1269 = vector.broadcast %950 : f32 to vector<2x20x20xf32>
    %1270 = arith.mulf %1269, %1025 : vector<2x20x20xf32>
    %1271 = arith.addf %1216, %1218 : vector<2x20x20xf32>
    %1272 = arith.addf %1220, %1222 : vector<2x20x20xf32>
    %1273 = arith.addf %1224, %1226 : vector<2x20x20xf32>
    %1274 = arith.addf %1228, %1230 : vector<2x20x20xf32>
    %1275 = arith.addf %1232, %1234 : vector<2x20x20xf32>
    %1276 = arith.addf %1236, %1238 : vector<2x20x20xf32>
    %1277 = arith.addf %1240, %1242 : vector<2x20x20xf32>
    %1278 = arith.addf %1244, %1246 : vector<2x20x20xf32>
    %1279 = arith.addf %1248, %1250 : vector<2x20x20xf32>
    %1280 = arith.addf %1252, %1254 : vector<2x20x20xf32>
    %1281 = arith.addf %1256, %1258 : vector<2x20x20xf32>
    %1282 = arith.addf %1260, %1262 : vector<2x20x20xf32>
    %1283 = arith.addf %1264, %1266 : vector<2x20x20xf32>
    %1284 = arith.addf %1268, %1270 : vector<2x20x20xf32>
    %1285 = arith.addf %1271, %1272 : vector<2x20x20xf32>
    %1286 = arith.addf %1273, %1274 : vector<2x20x20xf32>
    %1287 = arith.addf %1275, %1276 : vector<2x20x20xf32>
    %1288 = arith.addf %1277, %1278 : vector<2x20x20xf32>
    %1289 = arith.addf %1279, %1280 : vector<2x20x20xf32>
    %1290 = arith.addf %1281, %1282 : vector<2x20x20xf32>
    %1291 = arith.addf %1283, %1284 : vector<2x20x20xf32>
    %1292 = arith.addf %1285, %1286 : vector<2x20x20xf32>
    %1293 = arith.addf %1287, %1288 : vector<2x20x20xf32>
    %1294 = arith.addf %1289, %1290 : vector<2x20x20xf32>
    %1295 = arith.addf %1292, %1293 : vector<2x20x20xf32>
    %1296 = arith.addf %1294, %1291 : vector<2x20x20xf32>
    %1297 = arith.addf %1295, %1296 : vector<2x20x20xf32>
    %cst_113 = arith.constant 0.000000e+00 : f32
    %1298 = vector.shape_cast %1043 : vector<1x20x20xi1> to vector<1x20x20xi1>
    %1299 = vector.broadcast %1298 : vector<1x20x20xi1> to vector<2x20x20xi1>
    %1300 = vector.broadcast %cst_113 : f32 to vector<2x20x20xf32>
    %1301 = arith.select %1299, %1297, %1300 : vector<2x20x20xi1>, vector<2x20x20xf32>
    %c0_114 = arith.constant 0 : index
    %c0_115 = arith.constant 0 : index
    %c0_116 = arith.constant 0 : index
    %c0_117 = arith.constant 0 : index
    %1302 = vector.load %arg4[%c0_114, %c0_115, %c0_116, %c0_117] : memref<2x3x20x20xf32, #tpu.memory_space<vmem>>, vector<2x1x20x20xf32>
    %1303 = vector.shape_cast %1302 : vector<2x1x20x20xf32> to vector<2x20x20xf32>
    %1304 = vector.shape_cast %1129 : vector<2x20x20xf32> to vector<2x1x20x20xf32>
    tpu.vector_store %arg4[%c0_114, %c0_115, %c0_116, %c0_117], %1304 {strides = array<i32>} : memref<2x3x20x20xf32, #tpu.memory_space<vmem>>, vector<2x1x20x20xf32>,
    %c0_118 = arith.constant 0 : index
    %c1_119 = arith.constant 1 : index
    %c0_120 = arith.constant 0 : index
    %c0_121 = arith.constant 0 : index
    %1305 = vector.load %arg4[%c0_118, %c1_119, %c0_120, %c0_121] : memref<2x3x20x20xf32, #tpu.memory_space<vmem>>, vector<2x1x20x20xf32>
    %1306 = vector.shape_cast %1305 : vector<2x1x20x20xf32> to vector<2x20x20xf32>
    %1307 = vector.shape_cast %1215 : vector<2x20x20xf32> to vector<2x1x20x20xf32>
    tpu.vector_store %arg4[%c0_118, %c1_119, %c0_120, %c0_121], %1307 {strides = array<i32>} : memref<2x3x20x20xf32, #tpu.memory_space<vmem>>, vector<2x1x20x20xf32>,
    %c0_122 = arith.constant 0 : index
    %c2_123 = arith.constant 2 : index
    %c0_124 = arith.constant 0 : index
    %c0_125 = arith.constant 0 : index
    %1308 = vector.load %arg4[%c0_122, %c2_123, %c0_124, %c0_125] : memref<2x3x20x20xf32, #tpu.memory_space<vmem>>, vector<2x1x20x20xf32>
    %1309 = vector.shape_cast %1308 : vector<2x1x20x20xf32> to vector<2x20x20xf32>
    %1310 = vector.shape_cast %1301 : vector<2x20x20xf32> to vector<2x1x20x20xf32>
    tpu.vector_store %arg4[%c0_122, %c2_123, %c0_124, %c0_125], %1310 {strides = array<i32>} : memref<2x3x20x20xf32, #tpu.memory_space<vmem>>, vector<2x1x20x20xf32>,
    return
  }
  func.func @transform_0(%arg0: i32) -> i32 {
    %c0_i32 = arith.constant 0 : i32
    %c0_i32_0 = arith.constant 0 : i32
    return %c0_i32 : i32
  }
  func.func @transform_1(%arg0: i32) -> i32 {
    %c0_i32 = arith.constant 0 : i32
    %c0_i32_0 = arith.constant 0 : i32
    return %c0_i32 : i32
  }
  func.func @transform_2(%arg0: i32) -> (i32, i32, i32, i32) {
    %c0_i32 = arith.constant 0 : i32
    %c0_i32_0 = arith.constant 0 : i32
    %c0_i32_1 = arith.constant 0 : i32
    %c0_i32_2 = arith.constant 0 : i32
    return %arg0, %c0_i32, %c0_i32_0, %c0_i32_1 : i32, i32, i32, i32
  }
  func.func @transform_3(%arg0: i32) -> (i32, i32, i32, i32) {
    %c0_i32 = arith.constant 0 : i32
    %c0_i32_0 = arith.constant 0 : i32
    %c0_i32_1 = arith.constant 0 : i32
    %c0_i32_2 = arith.constant 0 : i32
    return %arg0, %c0_i32, %c0_i32_0, %c0_i32_1 : i32, i32, i32, i32
  }
}

</mosaic_0001>

<llo_original>
// kernel: convolutional_max_pooling.1
$region0: #{convolutional_max_pooling.1}
  #allocation0 [shape = 'u32[]', space=smem, size = 0x4, offset = 0x4, fixed_abs, tag = 'smem constant byte address 0x4 - core index']
  #allocation1 [shape = 'u32[144,128]{1,0:T(1,128)}', space=vmem, size = 0x12000, scoped, tag = 'internal scratch']
  %s0 = inlined_call_operand.vmem [shape: f32[243], index: 0, kind: input, shape index: {}]
  %s1 = inlined_call_operand.vmem [shape: f32[9], index: 1, kind: input, shape index: {}]
  %s2 = inlined_call_operand.vmem [shape: f32[2,3,20,20], index: 2, kind: input, shape index: {}]
  %s3 = inlined_call_operand.vmem [shape: f32[2,3,20,20], index: 3, kind: output, shape index: {}]
  %s4 = sld [smem:[#allocation0]]
  $region30: #{convolutional_max_pooling.1} parent=0
    _
  %s6 = ssub.s32 1, %s4
  %s7 = scalar_select 0, %s6, %s4
  $region1: #{convolutional_max_pooling.1} parent=0
    #allocation2 [shape = 'u8[1024]{0}', space=smem, size = 0x400, scoped, tag = 'input window, operand 0, single buffered']
    #allocation3 [shape = 's32[1]{0}', space=sflag, size = 0x4, scoped, tag = 'scoped memory for convolutional_max_pooling.1']
    #allocation4 [shape = 'u8[512]{0}', space=smem, size = 0x200, scoped, tag = 'input window, operand 1, single buffered']
    #allocation5 [shape = 's32[1]{0}', space=sflag, size = 0x4, scoped, tag = 'scoped memory for convolutional_max_pooling.1']
    %8 = vsyncpa [#allocation3], 0
    %9 = vsyncpa [#allocation5], 0
    // Predicated region
    $region2: #{convolutional_max_pooling.1} parent=1 // pred_check
      _
    $region3: #{convolutional_max_pooling.1} parent=1 // pred_check_branch
      %11 = sbr.rel (0) target = $region5
    $region4: #{convolutional_max_pooling.1} parent=1 // pred_region
      %s13 = ssub.s32 32, 32
      %14 = vsyncadd [#allocation3], %s13
      %s16 = sshll.u32 %s0, 4
      %s17 = int_to_ptr.vmem [resolvable:$true] %s16
      %19 = dma.vmem_to_smem %s17, 32, [#allocation2], [#allocation3]
    $region5: #{convolutional_max_pooling.1} parent=1 // pred_fallthru
      _
    // Predicated region
    $region6: #{convolutional_max_pooling.1} parent=1 // pred_check
      _
    $region7: #{convolutional_max_pooling.1} parent=1 // pred_check_branch
      %21 = sbr.rel (0) target = $region9
    $region8: #{convolutional_max_pooling.1} parent=1 // pred_region
      %s23 = ssub.s32 16, 16
      %24 = vsyncadd [#allocation5], %s23
      %s26 = sshll.u32 %s1, 4
      %s27 = int_to_ptr.vmem [resolvable:$true] %s26
      %29 = dma.vmem_to_smem %s27, 16, [#allocation4], [#allocation5]
    $region9: #{convolutional_max_pooling.1} parent=1 // pred_fallthru
      _
    // Predicated region
    $region10: #{convolutional_max_pooling.1} parent=1 // pred_check
      _
    $region11: #{convolutional_max_pooling.1} parent=1 // pred_check_branch
      %31 = sbr.rel (0) target = $region13
    $region12: #{convolutional_max_pooling.1} parent=1 // pred_region
      _
    $region13: #{convolutional_max_pooling.1} parent=1 // pred_fallthru
      _
    // Predicated region
    $region14: #{convolutional_max_pooling.1} parent=1 // pred_check
      _
    $region15: #{convolutional_max_pooling.1} parent=1 // pred_check_branch
      %33 = sbr.rel (0) target = $region17
    $region16: #{convolutional_max_pooling.1} parent=1 // pred_region
      %34 = dma.done [#allocation3], 32
    $region17: #{convolutional_max_pooling.1} parent=1 // pred_fallthru
      _
    // Predicated region
    $region18: #{convolutional_max_pooling.1} parent=1 // pred_check
      _
    $region19: #{convolutional_max_pooling.1} parent=1 // pred_check_branch
      %36 = sbr.rel (0) target = $region21
    $region20: #{convolutional_max_pooling.1} parent=1 // pred_region
      %37 = dma.done [#allocation5], 16
    $region21: #{convolutional_max_pooling.1} parent=1 // pred_fallthru
      _
    %38 = sfence
    %v39 = vld [vmem:[%s2] sm:$0xff]
    %v40 = vld [vmem:[%s2 + $0x8] sm:$0xff]
    %v41 = vld [vmem:[%s2 + $0x10] sm:$0xf]
    %v42 = vld [vmem:[%s2 + $0x48] sm:$0xff]
    %v43 = vld [vmem:[%s2 + $0x50] sm:$0xff]
    %v44 = vld [vmem:[%s2 + $0x58] sm:$0xf]
    %s45 = scalar_lea.vmem %s2, 24
    %v46 = vld [vmem:[%s45] sm:$0xff]
    %v47 = vld [vmem:[%s45 + $0x8] sm:$0xff]
    %v48 = vld [vmem:[%s45 + $0x10] sm:$0xf]
    %v49 = vld [vmem:[%s45 + $0x48] sm:$0xff]
    %v50 = vld [vmem:[%s45 + $0x50] sm:$0xff]
    %v51 = vld [vmem:[%s45 + $0x58] sm:$0xf]
    %s52 = scalar_lea.vmem %s2, 48
    %v53 = vld [vmem:[%s52] sm:$0xff]
    %v54 = vld [vmem:[%s52 + $0x8] sm:$0xff]
    %v55 = vld [vmem:[%s52 + $0x10] sm:$0xf]
    %v56 = vld [vmem:[%s52 + $0x48] sm:$0xff]
    %v57 = vld [vmem:[%s52 + $0x50] sm:$0xff]
    %v58 = vld [vmem:[%s52 + $0x58] sm:$0xf]
    %s59 = sld [smem:[#allocation2]]
    %s60 = sld [smem:[#allocation2 + $0x1]]
    %s61 = sld [smem:[#allocation2 + $0x2]]
    %s62 = sld [smem:[#allocation2 + $0x3]]
    %s63 = sld [smem:[#allocation2 + $0x4]]
    %s64 = sld [smem:[#allocation2 + $0x5]]
    %s65 = sld [smem:[#allocation2 + $0x6]]
    %s66 = sld [smem:[#allocation2 + $0x7]]
    %s67 = sld [smem:[#allocation2 + $0x8]]
    %s68 = sld [smem:[#allocation2 + $0x9]]
    %s69 = sld [smem:[#allocation2 + $0xa]]
    %s70 = sld [smem:[#allocation2 + $0xb]]
    %s71 = sld [smem:[#allocation2 + $0xc]]
    %s72 = sld [smem:[#allocation2 + $0xd]]
    %s73 = sld [smem:[#allocation2 + $0xe]]
    %s74 = sld [smem:[#allocation2 + $0xf]]
    %s75 = sld [smem:[#allocation2 + $0x10]]
    %s76 = sld [smem:[#allocation2 + $0x11]]
    %s77 = sld [smem:[#allocation2 + $0x12]]
    %s78 = sld [smem:[#allocation2 + $0x13]]
    %s79 = sld [smem:[#allocation2 + $0x14]]
    %s80 = sld [smem:[#allocation2 + $0x15]]
    %s81 = sld [smem:[#allocation2 + $0x16]]
    %s82 = sld [smem:[#allocation2 + $0x17]]
    %s83 = sld [smem:[#allocation2 + $0x18]]
    %s84 = sld [smem:[#allocation2 + $0x19]]
    %s85 = sld [smem:[#allocation2 + $0x1a]]
    %s86 = sld [smem:[#allocation2 + $0x1b]]
    %s87 = sld [smem:[#allocation2 + $0x1c]]
    %s88 = sld [smem:[#allocation2 + $0x1d]]
    %s89 = sld [smem:[#allocation2 + $0x1e]]
    %s90 = sld [smem:[#allocation2 + $0x1f]]
    %s91 = sld [smem:[#allocation2 + $0x20]]
    %s92 = sld [smem:[#allocation2 + $0x21]]
    %s93 = sld [smem:[#allocation2 + $0x22]]
    %s94 = sld [smem:[#allocation2 + $0x23]]
    %s95 = sld [smem:[#allocation2 + $0x24]]
    %s96 = sld [smem:[#allocation2 + $0x25]]
    %s97 = sld [smem:[#allocation2 + $0x26]]
    %s98 = sld [smem:[#allocation2 + $0x27]]
    %s99 = sld [smem:[#allocation2 + $0x28]]
    %s100 = sld [smem:[#allocation2 + $0x29]]
    %s101 = sld [smem:[#allocation2 + $0x2a]]
    %s102 = sld [smem:[#allocation2 + $0x2b]]
    %s103 = sld [smem:[#allocation2 + $0x2c]]
    %s104 = sld [smem:[#allocation2 + $0x2d]]
    %s105 = sld [smem:[#allocation2 + $0x2e]]
    %s106 = sld [smem:[#allocation2 + $0x2f]]
    %s107 = sld [smem:[#allocation2 + $0x30]]
    %s108 = sld [smem:[#allocation2 + $0x31]]
    %s109 = sld [smem:[#allocation2 + $0x32]]
    %s110 = sld [smem:[#allocation2 + $0x33]]
    %s111 = sld [smem:[#allocation2 + $0x34]]
    %s112 = sld [smem:[#allocation2 + $0x35]]
    %s113 = sld [smem:[#allocation2 + $0x36]]
    %s114 = sld [smem:[#allocation2 + $0x37]]
    %s115 = sld [smem:[#allocation2 + $0x38]]
    %s116 = sld [smem:[#allocation2 + $0x39]]
    %s117 = sld [smem:[#allocation2 + $0x3a]]
    %s118 = sld [smem:[#allocation2 + $0x3b]]
    %s119 = sld [smem:[#allocation2 + $0x3c]]
    %s120 = sld [smem:[#allocation2 + $0x3d]]
    %s121 = sld [smem:[#allocation2 + $0x3e]]
    %s122 = sld [smem:[#allocation2 + $0x3f]]
    %s123 = sld [smem:[#allocation2 + $0x40]]
    %s124 = sld [smem:[#allocation2 + $0x41]]
    %s125 = sld [smem:[#allocation2 + $0x42]]
    %s126 = sld [smem:[#allocation2 + $0x43]]
    %s127 = sld [smem:[#allocation2 + $0x44]]
    %s128 = sld [smem:[#allocation2 + $0x45]]
    %s129 = sld [smem:[#allocation2 + $0x46]]
    %s130 = sld [smem:[#allocation2 + $0x47]]
    %s131 = sld [smem:[#allocation2 + $0x48]]
    %s132 = sld [smem:[#allocation2 + $0x49]]
    %s133 = sld [smem:[#allocation2 + $0x4a]]
    %s134 = sld [smem:[#allocation2 + $0x4b]]
    %s135 = sld [smem:[#allocation2 + $0x4c]]
    %s136 = sld [smem:[#allocation2 + $0x4d]]
    %s137 = sld [smem:[#allocation2 + $0x4e]]
    %s138 = sld [smem:[#allocation2 + $0x4f]]
    %s139 = sld [smem:[#allocation2 + $0x50]]
    %s140 = sld [smem:[#allocation4]]
    %s141 = sld [smem:[#allocation4 + $0x1]]
    %s142 = sld [smem:[#allocation4 + $0x2]]
    %vm149 = vcmask 1040384
    %v150 = vrot.slane %v39, 7
    %v151 = vrot.slane %v40, 7
    %v152 = vsel %vm149, %v150, %v151
    %v153 = vrot.slane %v41, 7
    %v154 = vsel %vm149, %v151, %v153
    %v155 = vrot.slane %v42, 7
    %v156 = vrot.slane %v43, 7
    %v157 = vsel %vm149, %v155, %v156
    %v158 = vrot.slane %v44, 7
    %v159 = vsel %vm149, %v156, %v158
    %v166 = vsel %vm149, 0.0, %v150
    %v167 = vsel %vm149, 0.0, %v155
    %170 = vrot.lane.b32.xlu0 %v166, 1
    %v171 = vpop.permute.xlu0 %170
    %172 = vrot.lane.b32.xlu0 %v152, 1
    %v173 = vpop.permute.xlu0 %172
    %174 = vrot.lane.b32.xlu0 %v154, 1
    %v175 = vpop.permute.xlu0 %174
    %176 = vrot.lane.b32.xlu0 %v167, 1
    %v177 = vpop.permute.xlu0 %176
    %178 = vrot.lane.b32.xlu0 %v157, 1
    %v179 = vpop.permute.xlu0 %178
    %180 = vrot.lane.b32.xlu0 %v159, 1
    %v181 = vpop.permute.xlu0 %180
    %vm188 = vcmask 7168
    %v189 = vsel %vm188, 0.0, %v171
    %v190 = vsel %vm188, 0.0, %v173
    %v191 = vsel %vm188, 0.0, %v175
    %v192 = vsel %vm188, 0.0, %v177
    %v193 = vsel %vm188, 0.0, %v179
    %v194 = vsel %vm188, 0.0, %v181
    %195 = vrot.lane.b32.xlu0 %v166, 127
    %v196 = vpop.permute.xlu0 %195
    %197 = vrot.lane.b32.xlu0 %v152, 127
    %v198 = vpop.permute.xlu0 %197
    %199 = vrot.lane.b32.xlu0 %v154, 127
    %v200 = vpop.permute.xlu0 %199
    %201 = vrot.lane.b32.xlu0 %v167, 127
    %v202 = vpop.permute.xlu0 %201
    %203 = vrot.lane.b32.xlu0 %v157, 127
    %v204 = vpop.permute.xlu0 %203
    %205 = vrot.lane.b32.xlu0 %v159, 127
    %v206 = vpop.permute.xlu0 %205
    %vm213 = vcmask 154624
    %v214 = vsel %vm213, %v196, 0.0
    %v215 = vsel %vm213, %v198, 0.0
    %v216 = vsel %vm213, %v200, 0.0
    %v217 = vsel %vm213, %v202, 0.0
    %v218 = vsel %vm213, %v204, 0.0
    %v219 = vsel %vm213, %v206, 0.0
    %220 = vrot.lane.b32.xlu0 %v39, 1
    %v221 = vpop.permute.xlu0 %220
    %222 = vrot.lane.b32.xlu0 %v40, 1
    %v223 = vpop.permute.xlu0 %222
    %224 = vrot.lane.b32.xlu0 %v41, 1
    %v225 = vpop.permute.xlu0 %224
    %226 = vrot.lane.b32.xlu0 %v42, 1
    %v227 = vpop.permute.xlu0 %226
    %228 = vrot.lane.b32.xlu0 %v43, 1
    %v229 = vpop.permute.xlu0 %228
    %230 = vrot.lane.b32.xlu0 %v44, 1
    %v231 = vpop.permute.xlu0 %230
    %v238 = vsel %vm188, 0.0, %v221
    %v239 = vsel %vm188, 0.0, %v223
    %v240 = vsel %vm188, 0.0, %v225
    %v241 = vsel %vm188, 0.0, %v227
    %v242 = vsel %vm188, 0.0, %v229
    %v243 = vsel %vm188, 0.0, %v231
    %244 = vrot.lane.b32.xlu0 %v39, 127
    %v245 = vpop.permute.xlu0 %244
    %246 = vrot.lane.b32.xlu0 %v40, 127
    %v247 = vpop.permute.xlu0 %246
    %248 = vrot.lane.b32.xlu0 %v41, 127
    %v249 = vpop.permute.xlu0 %248
    %250 = vrot.lane.b32.xlu0 %v42, 127
    %v251 = vpop.permute.xlu0 %250
    %252 = vrot.lane.b32.xlu0 %v43, 127
    %v253 = vpop.permute.xlu0 %252
    %254 = vrot.lane.b32.xlu0 %v44, 127
    %v255 = vpop.permute.xlu0 %254
    %v262 = vsel %vm213, %v245, 0.0
    %v263 = vsel %vm213, %v247, 0.0
    %v264 = vsel %vm213, %v249, 0.0
    %v265 = vsel %vm213, %v251, 0.0
    %v266 = vsel %vm213, %v253, 0.0
    %v267 = vsel %vm213, %v255, 0.0
    %vm268 = vcmask 1046528
    %v269 = vrot.slane %v39, 1
    %v270 = vrot.slane %v40, 1
    %v271 = vsel %vm268, %v269, %v270
    %v272 = vrot.slane %v41, 1
    %v273 = vsel %vm268, %v270, %v272
    %v274 = vrot.slane %v42, 1
    %v275 = vrot.slane %v43, 1
    %v276 = vsel %vm268, %v274, %v275
    %v277 = vrot.slane %v44, 1
    %v278 = vsel %vm268, %v275, %v277
    %vm285 = vcmask 1042432
    %v286 = vsel %vm285, %v272, 0.0
    %v287 = vsel %vm285, %v277, 0.0
    %290 = vrot.lane.b32.xlu0 %v271, 1
    %v291 = vpop.permute.xlu0 %290
    %292 = vrot.lane.b32.xlu0 %v273, 1
    %v293 = vpop.permute.xlu0 %292
    %294 = vrot.lane.b32.xlu0 %v286, 1
    %v295 = vpop.permute.xlu0 %294
    %296 = vrot.lane.b32.xlu0 %v276, 1
    %v297 = vpop.permute.xlu0 %296
    %298 = vrot.lane.b32.xlu0 %v278, 1
    %v299 = vpop.permute.xlu0 %298
    %300 = vrot.lane.b32.xlu0 %v287, 1
    %v301 = vpop.permute.xlu0 %300
    %v308 = vsel %vm188, 0.0, %v291
    %v309 = vsel %vm188, 0.0, %v293
    %v310 = vsel %vm188, 0.0, %v295
    %v311 = vsel %vm188, 0.0, %v297
    %v312 = vsel %vm188, 0.0, %v299
    %v313 = vsel %vm188, 0.0, %v301
    %314 = vrot.lane.b32.xlu0 %v271, 127
    %v315 = vpop.permute.xlu0 %314
    %316 = vrot.lane.b32.xlu0 %v273, 127
    %v317 = vpop.permute.xlu0 %316
    %318 = vrot.lane.b32.xlu0 %v286, 127
    %v319 = vpop.permute.xlu0 %318
    %320 = vrot.lane.b32.xlu0 %v276, 127
    %v321 = vpop.permute.xlu0 %320
    %322 = vrot.lane.b32.xlu0 %v278, 127
    %v323 = vpop.permute.xlu0 %322
    %324 = vrot.lane.b32.xlu0 %v287, 127
    %v325 = vpop.permute.xlu0 %324
    %v332 = vsel %vm213, %v315, 0.0
    %v333 = vsel %vm213, %v317, 0.0
    %v334 = vsel %vm213, %v319, 0.0
    %v335 = vsel %vm213, %v321, 0.0
    %v336 = vsel %vm213, %v323, 0.0
    %v337 = vsel %vm213, %v325, 0.0
    %v344 = vrot.slane %v46, 7
    %v345 = vrot.slane %v47, 7
    %v346 = vsel %vm149, %v344, %v345
    %v347 = vrot.slane %v48, 7
    %v348 = vsel %vm149, %v345, %v347
    %v349 = vrot.slane %v49, 7
    %v350 = vrot.slane %v50, 7
    %v351 = vsel %vm149, %v349, %v350
    %v352 = vrot.slane %v51, 7
    %v353 = vsel %vm149, %v350, %v352
    %v360 = vsel %vm149, 0.0, %v344
    %v361 = vsel %vm149, 0.0, %v349
    %364 = vrot.lane.b32.xlu0 %v360, 1
    %v365 = vpop.permute.xlu0 %364
    %366 = vrot.lane.b32.xlu0 %v346, 1
    %v367 = vpop.permute.xlu0 %366
    %368 = vrot.lane.b32.xlu0 %v348, 1
    %v369 = vpop.permute.xlu0 %368
    %370 = vrot.lane.b32.xlu0 %v361, 1
    %v371 = vpop.permute.xlu0 %370
    %372 = vrot.lane.b32.xlu0 %v351, 1
    %v373 = vpop.permute.xlu0 %372
    %374 = vrot.lane.b32.xlu0 %v353, 1
    %v375 = vpop.permute.xlu0 %374
    %v382 = vsel %vm188, 0.0, %v365
    %v383 = vsel %vm188, 0.0, %v367
    %v384 = vsel %vm188, 0.0, %v369
    %v385 = vsel %vm188, 0.0, %v371
    %v386 = vsel %vm188, 0.0, %v373
    %v387 = vsel %vm188, 0.0, %v375
    %388 = vrot.lane.b32.xlu0 %v360, 127
    %v389 = vpop.permute.xlu0 %388
    %390 = vrot.lane.b32.xlu0 %v346, 127
    %v391 = vpop.permute.xlu0 %390
    %392 = vrot.lane.b32.xlu0 %v348, 127
    %v393 = vpop.permute.xlu0 %392
    %394 = vrot.lane.b32.xlu0 %v361, 127
    %v395 = vpop.permute.xlu0 %394
    %396 = vrot.lane.b32.xlu0 %v351, 127
    %v397 = vpop.permute.xlu0 %396
    %398 = vrot.lane.b32.xlu0 %v353, 127
    %v399 = vpop.permute.xlu0 %398
    %v406 = vsel %vm213, %v389, 0.0
    %v407 = vsel %vm213, %v391, 0.0
    %v408 = vsel %vm213, %v393, 0.0
    %v409 = vsel %vm213, %v395, 0.0
    %v410 = vsel %vm213, %v397, 0.0
    %v411 = vsel %vm213, %v399, 0.0
    %412 = vrot.lane.b32.xlu0 %v46, 1
    %v413 = vpop.permute.xlu0 %412
    %414 = vrot.lane.b32.xlu0 %v47, 1
    %v415 = vpop.permute.xlu0 %414
    %416 = vrot.lane.b32.xlu0 %v48, 1
    %v417 = vpop.permute.xlu0 %416
    %418 = vrot.lane.b32.xlu0 %v49, 1
    %v419 = vpop.permute.xlu0 %418
    %420 = vrot.lane.b32.xlu0 %v50, 1
    %v421 = vpop.permute.xlu0 %420
    %422 = vrot.lane.b32.xlu0 %v51, 1
    %v423 = vpop.permute.xlu0 %422
    %v430 = vsel %vm188, 0.0, %v413
    %v431 = vsel %vm188, 0.0, %v415
    %v432 = vsel %vm188, 0.0, %v417
    %v433 = vsel %vm188, 0.0, %v419
    %v434 = vsel %vm188, 0.0, %v421
    %v435 = vsel %vm188, 0.0, %v423
    %436 = vrot.lane.b32.xlu0 %v46, 127
    %v437 = vpop.permute.xlu0 %436
    %438 = vrot.lane.b32.xlu0 %v47, 127
    %v439 = vpop.permute.xlu0 %438
    %440 = vrot.lane.b32.xlu0 %v48, 127
    %v441 = vpop.permute.xlu0 %440
    %442 = vrot.lane.b32.xlu0 %v49, 127
    %v443 = vpop.permute.xlu0 %442
    %444 = vrot.lane.b32.xlu0 %v50, 127
    %v445 = vpop.permute.xlu0 %444
    %446 = vrot.lane.b32.xlu0 %v51, 127
    %v447 = vpop.permute.xlu0 %446
    %v454 = vsel %vm213, %v437, 0.0
    %v455 = vsel %vm213, %v439, 0.0
    %v456 = vsel %vm213, %v441, 0.0
    %v457 = vsel %vm213, %v443, 0.0
    %v458 = vsel %vm213, %v445, 0.0
    %v459 = vsel %vm213, %v447, 0.0
    %v460 = vrot.slane %v46, 1
    %v461 = vrot.slane %v47, 1
    %v462 = vsel %vm268, %v460, %v461
    %v463 = vrot.slane %v48, 1
    %v464 = vsel %vm268, %v461, %v463
    %v465 = vrot.slane %v49, 1
    %v466 = vrot.slane %v50, 1
    %v467 = vsel %vm268, %v465, %v466
    %v468 = vrot.slane %v51, 1
    %v469 = vsel %vm268, %v466, %v468
    %v476 = vsel %vm285, %v463, 0.0
    %v477 = vsel %vm285, %v468, 0.0
    %480 = vrot.lane.b32.xlu0 %v462, 1
    %v481 = vpop.permute.xlu0 %480
    %482 = vrot.lane.b32.xlu0 %v464, 1
    %v483 = vpop.permute.xlu0 %482
    %484 = vrot.lane.b32.xlu0 %v476, 1
    %v485 = vpop.permute.xlu0 %484
    %486 = vrot.lane.b32.xlu0 %v467, 1
    %v487 = vpop.permute.xlu0 %486
    %488 = vrot.lane.b32.xlu0 %v469, 1
    %v489 = vpop.permute.xlu0 %488
    %490 = vrot.lane.b32.xlu0 %v477, 1
    %v491 = vpop.permute.xlu0 %490
    %v498 = vsel %vm188, 0.0, %v481
    %v499 = vsel %vm188, 0.0, %v483
    %v500 = vsel %vm188, 0.0, %v485
    %v501 = vsel %vm188, 0.0, %v487
    %v502 = vsel %vm188, 0.0, %v489
    %v503 = vsel %vm188, 0.0, %v491
    %504 = vrot.lane.b32.xlu0 %v462, 127
    %v505 = vpop.permute.xlu0 %504
    %506 = vrot.lane.b32.xlu0 %v464, 127
    %v507 = vpop.permute.xlu0 %506
    %508 = vrot.lane.b32.xlu0 %v476, 127
    %v509 = vpop.permute.xlu0 %508
    %510 = vrot.lane.b32.xlu0 %v467, 127
    %v511 = vpop.permute.xlu0 %510
    %512 = vrot.lane.b32.xlu0 %v469, 127
    %v513 = vpop.permute.xlu0 %512
    %514 = vrot.lane.b32.xlu0 %v477, 127
    %v515 = vpop.permute.xlu0 %514
    %v522 = vsel %vm213, %v505, 0.0
    %v523 = vsel %vm213, %v507, 0.0
    %v524 = vsel %vm213, %v509, 0.0
    %v525 = vsel %vm213, %v511, 0.0
    %v526 = vsel %vm213, %v513, 0.0
    %v527 = vsel %vm213, %v515, 0.0
    %v534 = vrot.slane %v53, 7
    %v535 = vrot.slane %v54, 7
    %v536 = vsel %vm149, %v534, %v535
    %v537 = vrot.slane %v55, 7
    %v538 = vsel %vm149, %v535, %v537
    %v539 = vrot.slane %v56, 7
    %v540 = vrot.slane %v57, 7
    %v541 = vsel %vm149, %v539, %v540
    %v542 = vrot.slane %v58, 7
    %v543 = vsel %vm149, %v540, %v542
    %v550 = vsel %vm149, 0.0, %v534
    %v551 = vsel %vm149, 0.0, %v539
    %554 = vrot.lane.b32.xlu0 %v550, 1
    %v555 = vpop.permute.xlu0 %554
    %556 = vrot.lane.b32.xlu0 %v536, 1
    %v557 = vpop.permute.xlu0 %556
    %558 = vrot.lane.b32.xlu0 %v538, 1
    %v559 = vpop.permute.xlu0 %558
    %560 = vrot.lane.b32.xlu0 %v551, 1
    %v561 = vpop.permute.xlu0 %560
    %562 = vrot.lane.b32.xlu0 %v541, 1
    %v563 = vpop.permute.xlu0 %562
    %564 = vrot.lane.b32.xlu0 %v543, 1
    %v565 = vpop.permute.xlu0 %564
    %v572 = vsel %vm188, 0.0, %v555
    %v573 = vsel %vm188, 0.0, %v557
    %v574 = vsel %vm188, 0.0, %v559
    %v575 = vsel %vm188, 0.0, %v561
    %v576 = vsel %vm188, 0.0, %v563
    %v577 = vsel %vm188, 0.0, %v565
    %578 = vrot.lane.b32.xlu0 %v550, 127
    %v579 = vpop.permute.xlu0 %578
    %580 = vrot.lane.b32.xlu0 %v536, 127
    %v581 = vpop.permute.xlu0 %580
    %582 = vrot.lane.b32.xlu0 %v538, 127
    %v583 = vpop.permute.xlu0 %582
    %584 = vrot.lane.b32.xlu0 %v551, 127
    %v585 = vpop.permute.xlu0 %584
    %586 = vrot.lane.b32.xlu0 %v541, 127
    %v587 = vpop.permute.xlu0 %586
    %588 = vrot.lane.b32.xlu0 %v543, 127
    %v589 = vpop.permute.xlu0 %588
    %v596 = vsel %vm213, %v579, 0.0
    %v597 = vsel %vm213, %v581, 0.0
    %v598 = vsel %vm213, %v583, 0.0
    %v599 = vsel %vm213, %v585, 0.0
    %v600 = vsel %vm213, %v587, 0.0
    %v601 = vsel %vm213, %v589, 0.0
    %602 = vrot.lane.b32.xlu0 %v53, 1
    %v603 = vpop.permute.xlu0 %602
    %604 = vrot.lane.b32.xlu0 %v54, 1
    %v605 = vpop.permute.xlu0 %604
    %606 = vrot.lane.b32.xlu0 %v55, 1
    %v607 = vpop.permute.xlu0 %606
    %608 = vrot.lane.b32.xlu0 %v56, 1
    %v609 = vpop.permute.xlu0 %608
    %610 = vrot.lane.b32.xlu0 %v57, 1
    %v611 = vpop.permute.xlu0 %610
    %612 = vrot.lane.b32.xlu0 %v58, 1
    %v613 = vpop.permute.xlu0 %612
    %v620 = vsel %vm188, 0.0, %v603
    %v621 = vsel %vm188, 0.0, %v605
    %v622 = vsel %vm188, 0.0, %v607
    %v623 = vsel %vm188, 0.0, %v609
    %v624 = vsel %vm188, 0.0, %v611
    %v625 = vsel %vm188, 0.0, %v613
    %626 = vrot.lane.b32.xlu0 %v53, 127
    %v627 = vpop.permute.xlu0 %626
    %628 = vrot.lane.b32.xlu0 %v54, 127
    %v629 = vpop.permute.xlu0 %628
    %630 = vrot.lane.b32.xlu0 %v55, 127
    %v631 = vpop.permute.xlu0 %630
    %632 = vrot.lane.b32.xlu0 %v56, 127
    %v633 = vpop.permute.xlu0 %632
    %634 = vrot.lane.b32.xlu0 %v57, 127
    %v635 = vpop.permute.xlu0 %634
    %636 = vrot.lane.b32.xlu0 %v58, 127
    %v637 = vpop.permute.xlu0 %636
    %v644 = vsel %vm213, %v627, 0.0
    %v645 = vsel %vm213, %v629, 0.0
    %v646 = vsel %vm213, %v631, 0.0
    %v647 = vsel %vm213, %v633, 0.0
    %v648 = vsel %vm213, %v635, 0.0
    %v649 = vsel %vm213, %v637, 0.0
    %v650 = vrot.slane %v53, 1
    %v651 = vrot.slane %v54, 1
    %v652 = vsel %vm268, %v650, %v651
    %v653 = vrot.slane %v55, 1
    %v654 = vsel %vm268, %v651, %v653
    %v655 = vrot.slane %v56, 1
    %v656 = vrot.slane %v57, 1
    %v657 = vsel %vm268, %v655, %v656
    %v658 = vrot.slane %v58, 1
    %v659 = vsel %vm268, %v656, %v658
    %v666 = vsel %vm285, %v653, 0.0
    %v667 = vsel %vm285, %v658, 0.0
    %670 = vrot.lane.b32.xlu0 %v652, 1
    %v671 = vpop.permute.xlu0 %670
    %672 = vrot.lane.b32.xlu0 %v654, 1
    %v673 = vpop.permute.xlu0 %672
    %674 = vrot.lane.b32.xlu0 %v666, 1
    %v675 = vpop.permute.xlu0 %674
    %676 = vrot.lane.b32.xlu0 %v657, 1
    %v677 = vpop.permute.xlu0 %676
    %678 = vrot.lane.b32.xlu0 %v659, 1
    %v679 = vpop.permute.xlu0 %678
    %680 = vrot.lane.b32.xlu0 %v667, 1
    %v681 = vpop.permute.xlu0 %680
    %v688 = vsel %vm188, 0.0, %v671
    %v689 = vsel %vm188, 0.0, %v673
    %v690 = vsel %vm188, 0.0, %v675
    %v691 = vsel %vm188, 0.0, %v677
    %v692 = vsel %vm188, 0.0, %v679
    %v693 = vsel %vm188, 0.0, %v681
    %694 = vrot.lane.b32.xlu0 %v652, 127
    %v695 = vpop.permute.xlu0 %694
    %696 = vrot.lane.b32.xlu0 %v654, 127
    %v697 = vpop.permute.xlu0 %696
    %698 = vrot.lane.b32.xlu0 %v666, 127
    %v699 = vpop.permute.xlu0 %698
    %700 = vrot.lane.b32.xlu0 %v657, 127
    %v701 = vpop.permute.xlu0 %700
    %702 = vrot.lane.b32.xlu0 %v659, 127
    %v703 = vpop.permute.xlu0 %702
    %704 = vrot.lane.b32.xlu0 %v667, 127
    %v705 = vpop.permute.xlu0 %704
    %v712 = vsel %vm213, %v695, 0.0
    %v713 = vsel %vm213, %v697, 0.0
    %v714 = vsel %vm213, %v699, 0.0
    %v715 = vsel %vm213, %v701, 0.0
    %v716 = vsel %vm213, %v703, 0.0
    %v717 = vsel %vm213, %v705, 0.0
    %v718 = vlaneseq
    %v719 = vshrl.u32 %v718, 7
    %v720 = vadd.s32 %v719, 8
    %v721 = vadd.s32 %v719, 16
    %v722 = vsub.s32 %v719, 4
    %v723 = vsub.s32 %v720, 4
    %v724 = vsub.s32 %v721, 4
    %v725 = vlaneseq
    %v726 = vand.u32 %v725, 127
    %v727 = vsub.s32 %v726, 4
    %vm728 = vcmp.ge.s32.totalorder %v722, 0
    %vm729 = vcmp.ge.s32.totalorder %v723, 0
    %vm730 = vcmp.ge.s32.totalorder %v724, 0
    %vm731 = vcmp.le.s32.totalorder %v722, 14
    %vm732 = vcmp.le.s32.totalorder %v723, 14
    %vm733 = vcmp.le.s32.totalorder %v724, 14
    %vm734 = vmand %vm728, %vm731
    %vm735 = vmand %vm729, %vm732
    %vm736 = vmand %vm730, %vm733
    %vm737 = vcmp.ge.s32.totalorder %v727, 0
    %vm738 = vmand %vm734, %vm737
    %vm739 = vmand %vm735, %vm737
    %vm740 = vmand %vm736, %vm737
    %vm741 = vcmp.le.s32.totalorder %v727, 14
    %vm742 = vmand %vm738, %vm741
    %vm743 = vmand %vm739, %vm741
    %vm744 = vmand %vm740, %vm741
    %v745 = vstv %s140
    %v746 = vstv %s59
    %v747 = vmul.f32 %v746, %v189
    %v748 = vmul.f32 %v746, %v190
    %v749 = vmul.f32 %v746, %v191
    %v750 = vmul.f32 %v746, %v192
    %v751 = vmul.f32 %v746, %v193
    %v752 = vmul.f32 %v746, %v194
    %v753 = vstv %s60
    %v754 = vmul.f32 %v753, %v166
    %v755 = vmul.f32 %v753, %v152
    %v756 = vmul.f32 %v753, %v154
    %v757 = vmul.f32 %v753, %v167
    %v758 = vmul.f32 %v753, %v157
    %v759 = vmul.f32 %v753, %v159
    %v760 = vstv %s61
    %v761 = vmul.f32 %v760, %v214
    %v762 = vmul.f32 %v760, %v215
    %v763 = vmul.f32 %v760, %v216
    %v764 = vmul.f32 %v760, %v217
    %v765 = vmul.f32 %v760, %v218
    %v766 = vmul.f32 %v760, %v219
    %v767 = vstv %s62
    %v768 = vmul.f32 %v767, %v238
    %v769 = vmul.f32 %v767, %v239
    %v770 = vmul.f32 %v767, %v240
    %v771 = vmul.f32 %v767, %v241
    %v772 = vmul.f32 %v767, %v242
    %v773 = vmul.f32 %v767, %v243
    %v774 = vstv %s63
    %v775 = vmul.f32 %v774, %v39
    %v776 = vmul.f32 %v774, %v40
    %v777 = vmul.f32 %v774, %v41
    %v778 = vmul.f32 %v774, %v42
    %v779 = vmul.f32 %v774, %v43
    %v780 = vmul.f32 %v774, %v44
    %v781 = vstv %s64
    %v782 = vmul.f32 %v781, %v262
    %v783 = vmul.f32 %v781, %v263
    %v784 = vmul.f32 %v781, %v264
    %v785 = vmul.f32 %v781, %v265
    %v786 = vmul.f32 %v781, %v266
    %v787 = vmul.f32 %v781, %v267
    %v788 = vstv %s65
    %v789 = vmul.f32 %v788, %v308
    %v790 = vmul.f32 %v788, %v309
    %v791 = vmul.f32 %v788, %v310
    %v792 = vmul.f32 %v788, %v311
    %v793 = vmul.f32 %v788, %v312
    %v794 = vmul.f32 %v788, %v313
    %v795 = vstv %s66
    %v796 = vmul.f32 %v795, %v271
    %v797 = vmul.f32 %v795, %v273
    %v798 = vmul.f32 %v795, %v286
    %v799 = vmul.f32 %v795, %v276
    %v800 = vmul.f32 %v795, %v278
    %v801 = vmul.f32 %v795, %v287
    %v802 = vstv %s67
    %v803 = vmul.f32 %v802, %v332
    %v804 = vmul.f32 %v802, %v333
    %v805 = vmul.f32 %v802, %v334
    %v806 = vmul.f32 %v802, %v335
    %v807 = vmul.f32 %v802, %v336
    %v808 = vmul.f32 %v802, %v337
    %v809 = vstv %s68
    %v810 = vmul.f32 %v809, %v382
    %v811 = vmul.f32 %v809, %v383
    %v812 = vmul.f32 %v809, %v384
    %v813 = vmul.f32 %v809, %v385
    %v814 = vmul.f32 %v809, %v386
    %v815 = vmul.f32 %v809, %v387
    %v816 = vstv %s69
    %v817 = vmul.f32 %v816, %v360
    %v818 = vmul.f32 %v816, %v346
    %v819 = vmul.f32 %v816, %v348
    %v820 = vmul.f32 %v816, %v361
    %v821 = vmul.f32 %v816, %v351
    %v822 = vmul.f32 %v816, %v353
    %v823 = vstv %s70
    %v824 = vmul.f32 %v823, %v406
    %v825 = vmul.f32 %v823, %v407
    %v826 = vmul.f32 %v823, %v408
    %v827 = vmul.f32 %v823, %v409
    %v828 = vmul.f32 %v823, %v410
    %v829 = vmul.f32 %v823, %v411
    %v830 = vstv %s71
    %v831 = vmul.f32 %v830, %v430
    %v832 = vmul.f32 %v830, %v431
    %v833 = vmul.f32 %v830, %v432
    %v834 = vmul.f32 %v830, %v433
    %v835 = vmul.f32 %v830, %v434
    %v836 = vmul.f32 %v830, %v435
    %v837 = vstv %s72
    %v838 = vmul.f32 %v837, %v46
    %v839 = vmul.f32 %v837, %v47
    %v840 = vmul.f32 %v837, %v48
    %v841 = vmul.f32 %v837, %v49
    %v842 = vmul.f32 %v837, %v50
    %v843 = vmul.f32 %v837, %v51
    %v844 = vstv %s73
    %v845 = vmul.f32 %v844, %v454
    %v846 = vmul.f32 %v844, %v455
    %v847 = vmul.f32 %v844, %v456
    %v848 = vmul.f32 %v844, %v457
    %v849 = vmul.f32 %v844, %v458
    %v850 = vmul.f32 %v844, %v459
    %v851 = vstv %s74
    %v852 = vmul.f32 %v851, %v498
    %v853 = vmul.f32 %v851, %v499
    %v854 = vmul.f32 %v851, %v500
    %v855 = vmul.f32 %v851, %v501
    %v856 = vmul.f32 %v851, %v502
    %v857 = vmul.f32 %v851, %v503
    %v858 = vstv %s75
    %v859 = vmul.f32 %v858, %v462
    %v860 = vmul.f32 %v858, %v464
    %v861 = vmul.f32 %v858, %v476
    %v862 = vmul.f32 %v858, %v467
    %v863 = vmul.f32 %v858, %v469
    %v864 = vmul.f32 %v858, %v477
    %v865 = vstv %s76
    %v866 = vmul.f32 %v865, %v522
    %v867 = vmul.f32 %v865, %v523
    %v868 = vmul.f32 %v865, %v524
    %v869 = vmul.f32 %v865, %v525
    %v870 = vmul.f32 %v865, %v526
    %v871 = vmul.f32 %v865, %v527
    %v872 = vstv %s77
    %v873 = vmul.f32 %v872, %v572
    %v874 = vmul.f32 %v872, %v573
    %v875 = vmul.f32 %v872, %v574
    %v876 = vmul.f32 %v872, %v575
    %v877 = vmul.f32 %v872, %v576
    %v878 = vmul.f32 %v872, %v577
    %v879 = vstv %s78
    %v880 = vmul.f32 %v879, %v550
    %v881 = vmul.f32 %v879, %v536
    %v882 = vmul.f32 %v879, %v538
    %v883 = vmul.f32 %v879, %v551
    %v884 = vmul.f32 %v879, %v541
    %v885 = vmul.f32 %v879, %v543
    %v886 = vstv %s79
    %v887 = vmul.f32 %v886, %v596
    %v888 = vmul.f32 %v886, %v597
    %v889 = vmul.f32 %v886, %v598
    %v890 = vmul.f32 %v886, %v599
    %v891 = vmul.f32 %v886, %v600
    %v892 = vmul.f32 %v886, %v601
    %v893 = vstv %s80
    %v894 = vmul.f32 %v893, %v620
    %v895 = vmul.f32 %v893, %v621
    %v896 = vmul.f32 %v893, %v622
    %v897 = vmul.f32 %v893, %v623
    %v898 = vmul.f32 %v893, %v624
    %v899 = vmul.f32 %v893, %v625
    %v900 = vstv %s81
    %v901 = vmul.f32 %v900, %v53
    %v902 = vmul.f32 %v900, %v54
    %v903 = vmul.f32 %v900, %v55
    %v904 = vmul.f32 %v900, %v56
    %v905 = vmul.f32 %v900, %v57
    %v906 = vmul.f32 %v900, %v58
    %v907 = vstv %s82
    %v908 = vmul.f32 %v907, %v644
    %v909 = vmul.f32 %v907, %v645
    %v910 = vmul.f32 %v907, %v646
    %v911 = vmul.f32 %v907, %v647
    %v912 = vmul.f32 %v907, %v648
    %v913 = vmul.f32 %v907, %v649
    %v914 = vstv %s83
    %v915 = vmul.f32 %v914, %v688
    %v916 = vmul.f32 %v914, %v689
    %v917 = vmul.f32 %v914, %v690
    %v918 = vmul.f32 %v914, %v691
    %v919 = vmul.f32 %v914, %v692
    %v920 = vmul.f32 %v914, %v693
    %v921 = vstv %s84
    %v922 = vmul.f32 %v921, %v652
    %v923 = vmul.f32 %v921, %v654
    %v924 = vmul.f32 %v921, %v666
    %v925 = vmul.f32 %v921, %v657
    %v926 = vmul.f32 %v921, %v659
    %v927 = vmul.f32 %v921, %v667
    %v928 = vstv %s85
    %v929 = vmul.f32 %v928, %v712
    %v930 = vmul.f32 %v928, %v713
    %v931 = vmul.f32 %v928, %v714
    %v932 = vmul.f32 %v928, %v715
    %v933 = vmul.f32 %v928, %v716
    %v934 = vmul.f32 %v928, %v717
    %v935 = vadd.f32 %v745, %v747
    %v936 = vadd.f32 %v745, %v748
    %v937 = vadd.f32 %v745, %v749
    %v938 = vadd.f32 %v745, %v750
    %v939 = vadd.f32 %v745, %v751
    %v940 = vadd.f32 %v745, %v752
    %v941 = vadd.f32 %v754, %v761
    %v942 = vadd.f32 %v755, %v762
    %v943 = vadd.f32 %v756, %v763
    %v944 = vadd.f32 %v757, %v764
    %v945 = vadd.f32 %v758, %v765
    %v946 = vadd.f32 %v759, %v766
    %v947 = vadd.f32 %v768, %v775
    %v948 = vadd.f32 %v769, %v776
    %v949 = vadd.f32 %v770, %v777
    %v950 = vadd.f32 %v771, %v778
    %v951 = vadd.f32 %v772, %v779
    %v952 = vadd.f32 %v773, %v780
    %v953 = vadd.f32 %v782, %v789
    %v954 = vadd.f32 %v783, %v790
    %v955 = vadd.f32 %v784, %v791
    %v956 = vadd.f32 %v785, %v792
    %v957 = vadd.f32 %v786, %v793
    %v958 = vadd.f32 %v787, %v794
    %v959 = vadd.f32 %v796, %v803
    %v960 = vadd.f32 %v797, %v804
    %v961 = vadd.f32 %v798, %v805
    %v962 = vadd.f32 %v799, %v806
    %v963 = vadd.f32 %v800, %v807
    %v964 = vadd.f32 %v801, %v808
    %v965 = vadd.f32 %v810, %v817
    %v966 = vadd.f32 %v811, %v818
    %v967 = vadd.f32 %v812, %v819
    %v968 = vadd.f32 %v813, %v820
    %v969 = vadd.f32 %v814, %v821
    %v970 = vadd.f32 %v815, %v822
    %v971 = vadd.f32 %v824, %v831
    %v972 = vadd.f32 %v825, %v832
    %v973 = vadd.f32 %v826, %v833
    %v974 = vadd.f32 %v827, %v834
    %v975 = vadd.f32 %v828, %v835
    %v976 = vadd.f32 %v829, %v836
    %v977 = vadd.f32 %v838, %v845
    %v978 = vadd.f32 %v839, %v846
    %v979 = vadd.f32 %v840, %v847
    %v980 = vadd.f32 %v841, %v848
    %v981 = vadd.f32 %v842, %v849
    %v982 = vadd.f32 %v843, %v850
    %v983 = vadd.f32 %v852, %v859
    %v984 = vadd.f32 %v853, %v860
    %v985 = vadd.f32 %v854, %v861
    %v986 = vadd.f32 %v855, %v862
    %v987 = vadd.f32 %v856, %v863
    %v988 = vadd.f32 %v857, %v864
    %v989 = vadd.f32 %v866, %v873
    %v990 = vadd.f32 %v867, %v874
    %v991 = vadd.f32 %v868, %v875
    %v992 = vadd.f32 %v869, %v876
    %v993 = vadd.f32 %v870, %v877
    %v994 = vadd.f32 %v871, %v878
    %v995 = vadd.f32 %v880, %v887
    %v996 = vadd.f32 %v881, %v888
    %v997 = vadd.f32 %v882, %v889
    %v998 = vadd.f32 %v883, %v890
    %v999 = vadd.f32 %v884, %v891
    %v1000 = vadd.f32 %v885, %v892
    %v1001 = vadd.f32 %v894, %v901
    %v1002 = vadd.f32 %v895, %v902
    %v1003 = vadd.f32 %v896, %v903
    %v1004 = vadd.f32 %v897, %v904
    %v1005 = vadd.f32 %v898, %v905
    %v1006 = vadd.f32 %v899, %v906
    %v1007 = vadd.f32 %v908, %v915
    %v1008 = vadd.f32 %v909, %v916
    %v1009 = vadd.f32 %v910, %v917
    %v1010 = vadd.f32 %v911, %v918
    %v1011 = vadd.f32 %v912, %v919
    %v1012 = vadd.f32 %v913, %v920
    %v1013 = vadd.f32 %v922, %v929
    %v1014 = vadd.f32 %v923, %v930
    %v1015 = vadd.f32 %v924, %v931
    %v1016 = vadd.f32 %v925, %v932
    %v1017 = vadd.f32 %v926, %v933
    %v1018 = vadd.f32 %v927, %v934
    %v1019 = vadd.f32 %v935, %v941
    %v1020 = vadd.f32 %v936, %v942
    %v1021 = vadd.f32 %v937, %v943
    %v1022 = vadd.f32 %v938, %v944
    %v1023 = vadd.f32 %v939, %v945
    %v1024 = vadd.f32 %v940, %v946
    %v1025 = vadd.f32 %v947, %v953
    %v1026 = vadd.f32 %v948, %v954
    %v1027 = vadd.f32 %v949, %v955
    %v1028 = vadd.f32 %v950, %v956
    %v1029 = vadd.f32 %v951, %v957
    %v1030 = vadd.f32 %v952, %v958
    %v1031 = vadd.f32 %v959, %v965
    %v1032 = vadd.f32 %v960, %v966
    %v1033 = vadd.f32 %v961, %v967
    %v1034 = vadd.f32 %v962, %v968
    %v1035 = vadd.f32 %v963, %v969
    %v1036 = vadd.f32 %v964, %v970
    %v1037 = vadd.f32 %v971, %v977
    %v1038 = vadd.f32 %v972, %v978
    %v1039 = vadd.f32 %v973, %v979
    %v1040 = vadd.f32 %v974, %v980
    %v1041 = vadd.f32 %v975, %v981
    %v1042 = vadd.f32 %v976, %v982
    %v1043 = vadd.f32 %v983, %v989
    %v1044 = vadd.f32 %v984, %v990
    %v1045 = vadd.f32 %v985, %v991
    %v1046 = vadd.f32 %v986, %v992
    %v1047 = vadd.f32 %v987, %v993
    %v1048 = vadd.f32 %v988, %v994
    %v1049 = vadd.f32 %v995, %v1001
    %v1050 = vadd.f32 %v996, %v1002
    %v1051 = vadd.f32 %v997, %v1003
    %v1052 = vadd.f32 %v998, %v1004
    %v1053 = vadd.f32 %v999, %v1005
    %v1054 = vadd.f32 %v1000, %v1006
    %v1055 = vadd.f32 %v1007, %v1013
    %v1056 = vadd.f32 %v1008, %v1014
    %v1057 = vadd.f32 %v1009, %v1015
    %v1058 = vadd.f32 %v1010, %v1016
    %v1059 = vadd.f32 %v1011, %v1017
    %v1060 = vadd.f32 %v1012, %v1018
    %v1061 = vadd.f32 %v1019, %v1025
    %v1062 = vadd.f32 %v1020, %v1026
    %v1063 = vadd.f32 %v1021, %v1027
    %v1064 = vadd.f32 %v1022, %v1028
    %v1065 = vadd.f32 %v1023, %v1029
    %v1066 = vadd.f32 %v1024, %v1030
    %v1067 = vadd.f32 %v1031, %v1037
    %v1068 = vadd.f32 %v1032, %v1038
    %v1069 = vadd.f32 %v1033, %v1039
    %v1070 = vadd.f32 %v1034, %v1040
    %v1071 = vadd.f32 %v1035, %v1041
    %v1072 = vadd.f32 %v1036, %v1042
    %v1073 = vadd.f32 %v1043, %v1049
    %v1074 = vadd.f32 %v1044, %v1050
    %v1075 = vadd.f32 %v1045, %v1051
    %v1076 = vadd.f32 %v1046, %v1052
    %v1077 = vadd.f32 %v1047, %v1053
    %v1078 = vadd.f32 %v1048, %v1054
    %v1079 = vadd.f32 %v1061, %v1067
    %v1080 = vadd.f32 %v1062, %v1068
    %v1081 = vadd.f32 %v1063, %v1069
    %v1082 = vadd.f32 %v1064, %v1070
    %v1083 = vadd.f32 %v1065, %v1071
    %v1084 = vadd.f32 %v1066, %v1072
    %v1085 = vadd.f32 %v1073, %v1055
    %v1086 = vadd.f32 %v1074, %v1056
    %v1087 = vadd.f32 %v1075, %v1057
    %v1088 = vadd.f32 %v1076, %v1058
    %v1089 = vadd.f32 %v1077, %v1059
    %v1090 = vadd.f32 %v1078, %v1060
    %v1091 = vadd.f32 %v1079, %v1085
    %v1092 = vadd.f32 %v1080, %v1086
    %v1093 = vadd.f32 %v1081, %v1087
    %v1094 = vadd.f32 %v1082, %v1088
    %v1095 = vadd.f32 %v1083, %v1089
    %v1096 = vadd.f32 %v1084, %v1090
    %v1097 = vsel %vm742, 1, 0
    %v1098 = vsel %vm743, 1, 0
    %v1099 = vsel %vm744, 1, 0
    %vm1100 = vcmp.eq.s32.totalorder %v1097, 1
    %vm1101 = vcmp.eq.s32.totalorder %v1098, 1
    %vm1102 = vcmp.eq.s32.totalorder %v1099, 1
    %v1103 = vsel %vm1100, %v1091, 0.0
    %v1104 = vsel %vm1101, %v1092, 0.0
    %v1105 = vsel %vm1102, %v1093, 0.0
    %v1106 = vsel %vm1100, %v1094, 0.0
    %v1107 = vsel %vm1101, %v1095, 0.0
    %v1108 = vsel %vm1102, %v1096, 0.0
    %v1109 = vstv %s141
    %v1110 = vstv %s86
    %v1111 = vmul.f32 %v1110, %v189
    %v1112 = vmul.f32 %v1110, %v190
    %v1113 = vmul.f32 %v1110, %v191
    %v1114 = vmul.f32 %v1110, %v192
    %v1115 = vmul.f32 %v1110, %v193
    %v1116 = vmul.f32 %v1110, %v194
    %v1117 = vstv %s87
    %v1118 = vmul.f32 %v1117, %v166
    %v1119 = vmul.f32 %v1117, %v152
    %v1120 = vmul.f32 %v1117, %v154
    %v1121 = vmul.f32 %v1117, %v167
    %v1122 = vmul.f32 %v1117, %v157
    %v1123 = vmul.f32 %v1117, %v159
    %v1124 = vstv %s88
    %v1125 = vmul.f32 %v1124, %v214
    %v1126 = vmul.f32 %v1124, %v215
    %v1127 = vmul.f32 %v1124, %v216
    %v1128 = vmul.f32 %v1124, %v217
    %v1129 = vmul.f32 %v1124, %v218
    %v1130 = vmul.f32 %v1124, %v219
    %v1131 = vstv %s89
    %v1132 = vmul.f32 %v1131, %v238
    %v1133 = vmul.f32 %v1131, %v239
    %v1134 = vmul.f32 %v1131, %v240
    %v1135 = vmul.f32 %v1131, %v241
    %v1136 = vmul.f32 %v1131, %v242
    %v1137 = vmul.f32 %v1131, %v243
    %v1138 = vstv %s90
    %v1139 = vmul.f32 %v1138, %v39
    %v1140 = vmul.f32 %v1138, %v40
    %v1141 = vmul.f32 %v1138, %v41
    %v1142 = vmul.f32 %v1138, %v42
    %v1143 = vmul.f32 %v1138, %v43
    %v1144 = vmul.f32 %v1138, %v44
    %v1145 = vstv %s91
    %v1146 = vmul.f32 %v1145, %v262
    %v1147 = vmul.f32 %v1145, %v263
    %v1148 = vmul.f32 %v1145, %v264
    %v1149 = vmul.f32 %v1145, %v265
    %v1150 = vmul.f32 %v1145, %v266
    %v1151 = vmul.f32 %v1145, %v267
    %v1152 = vstv %s92
    %v1153 = vmul.f32 %v1152, %v308
    %v1154 = vmul.f32 %v1152, %v309
    %v1155 = vmul.f32 %v1152, %v310
    %v1156 = vmul.f32 %v1152, %v311
    %v1157 = vmul.f32 %v1152, %v312
    %v1158 = vmul.f32 %v1152, %v313
    %v1159 = vstv %s93
    %v1160 = vmul.f32 %v1159, %v271
    %v1161 = vmul.f32 %v1159, %v273
    %v1162 = vmul.f32 %v1159, %v286
    %v1163 = vmul.f32 %v1159, %v276
    %v1164 = vmul.f32 %v1159, %v278
    %v1165 = vmul.f32 %v1159, %v287
    %v1166 = vstv %s94
    %v1167 = vmul.f32 %v1166, %v332
    %v1168 = vmul.f32 %v1166, %v333
    %v1169 = vmul.f32 %v1166, %v334
    %v1170 = vmul.f32 %v1166, %v335
    %v1171 = vmul.f32 %v1166, %v336
    %v1172 = vmul.f32 %v1166, %v337
    %v1173 = vstv %s95
    %v1174 = vmul.f32 %v1173, %v382
    %v1175 = vmul.f32 %v1173, %v383
    %v1176 = vmul.f32 %v1173, %v384
    %v1177 = vmul.f32 %v1173, %v385
    %v1178 = vmul.f32 %v1173, %v386
    %v1179 = vmul.f32 %v1173, %v387
    %v1180 = vstv %s96
    %v1181 = vmul.f32 %v1180, %v360
    %v1182 = vmul.f32 %v1180, %v346
    %v1183 = vmul.f32 %v1180, %v348
    %v1184 = vmul.f32 %v1180, %v361
    %v1185 = vmul.f32 %v1180, %v351
    %v1186 = vmul.f32 %v1180, %v353
    %v1187 = vstv %s97
    %v1188 = vmul.f32 %v1187, %v406
    %v1189 = vmul.f32 %v1187, %v407
    %v1190 = vmul.f32 %v1187, %v408
    %v1191 = vmul.f32 %v1187, %v409
    %v1192 = vmul.f32 %v1187, %v410
    %v1193 = vmul.f32 %v1187, %v411
    %v1194 = vstv %s98
    %v1195 = vmul.f32 %v1194, %v430
    %v1196 = vmul.f32 %v1194, %v431
    %v1197 = vmul.f32 %v1194, %v432
    %v1198 = vmul.f32 %v1194, %v433
    %v1199 = vmul.f32 %v1194, %v434
    %v1200 = vmul.f32 %v1194, %v435
    %v1201 = vstv %s99
    %v1202 = vmul.f32 %v1201, %v46
    %v1203 = vmul.f32 %v1201, %v47
    %v1204 = vmul.f32 %v1201, %v48
    %v1205 = vmul.f32 %v1201, %v49
    %v1206 = vmul.f32 %v1201, %v50
    %v1207 = vmul.f32 %v1201, %v51
    %v1208 = vstv %s100
    %v1209 = vmul.f32 %v1208, %v454
    %v1210 = vmul.f32 %v1208, %v455
    %v1211 = vmul.f32 %v1208, %v456
    %v1212 = vmul.f32 %v1208, %v457
    %v1213 = vmul.f32 %v1208, %v458
    %v1214 = vmul.f32 %v1208, %v459
    %v1215 = vstv %s101
    %v1216 = vmul.f32 %v1215, %v498
    %v1217 = vmul.f32 %v1215, %v499
    %v1218 = vmul.f32 %v1215, %v500
    %v1219 = vmul.f32 %v1215, %v501
    %v1220 = vmul.f32 %v1215, %v502
    %v1221 = vmul.f32 %v1215, %v503
    %v1222 = vstv %s102
    %v1223 = vmul.f32 %v1222, %v462
    %v1224 = vmul.f32 %v1222, %v464
    %v1225 = vmul.f32 %v1222, %v476
    %v1226 = vmul.f32 %v1222, %v467
    %v1227 = vmul.f32 %v1222, %v469
    %v1228 = vmul.f32 %v1222, %v477
    %v1229 = vstv %s103
    %v1230 = vmul.f32 %v1229, %v522
    %v1231 = vmul.f32 %v1229, %v523
    %v1232 = vmul.f32 %v1229, %v524
    %v1233 = vmul.f32 %v1229, %v525
    %v1234 = vmul.f32 %v1229, %v526
    %v1235 = vmul.f32 %v1229, %v527
    %v1236 = vstv %s104
    %v1237 = vmul.f32 %v1236, %v572
    %v1238 = vmul.f32 %v1236, %v573
    %v1239 = vmul.f32 %v1236, %v574
    %v1240 = vmul.f32 %v1236, %v575
    %v1241 = vmul.f32 %v1236, %v576
    %v1242 = vmul.f32 %v1236, %v577
    %v1243 = vstv %s105
    %v1244 = vmul.f32 %v1243, %v550
    %v1245 = vmul.f32 %v1243, %v536
    %v1246 = vmul.f32 %v1243, %v538
    %v1247 = vmul.f32 %v1243, %v551
    %v1248 = vmul.f32 %v1243, %v541
    %v1249 = vmul.f32 %v1243, %v543
    %v1250 = vstv %s106
    %v1251 = vmul.f32 %v1250, %v596
    %v1252 = vmul.f32 %v1250, %v597
    %v1253 = vmul.f32 %v1250, %v598
    %v1254 = vmul.f32 %v1250, %v599
    %v1255 = vmul.f32 %v1250, %v600
    %v1256 = vmul.f32 %v1250, %v601
    %v1257 = vstv %s107
    %v1258 = vmul.f32 %v1257, %v620
    %v1259 = vmul.f32 %v1257, %v621
    %v1260 = vmul.f32 %v1257, %v622
    %v1261 = vmul.f32 %v1257, %v623
    %v1262 = vmul.f32 %v1257, %v624
    %v1263 = vmul.f32 %v1257, %v625
    %v1264 = vstv %s108
    %v1265 = vmul.f32 %v1264, %v53
    %v1266 = vmul.f32 %v1264, %v54
    %v1267 = vmul.f32 %v1264, %v55
    %v1268 = vmul.f32 %v1264, %v56
    %v1269 = vmul.f32 %v1264, %v57
    %v1270 = vmul.f32 %v1264, %v58
    %v1271 = vstv %s109
    %v1272 = vmul.f32 %v1271, %v644
    %v1273 = vmul.f32 %v1271, %v645
    %v1274 = vmul.f32 %v1271, %v646
    %v1275 = vmul.f32 %v1271, %v647
    %v1276 = vmul.f32 %v1271, %v648
    %v1277 = vmul.f32 %v1271, %v649
    %v1278 = vstv %s110
    %v1279 = vmul.f32 %v1278, %v688
    %v1280 = vmul.f32 %v1278, %v689
    %v1281 = vmul.f32 %v1278, %v690
    %v1282 = vmul.f32 %v1278, %v691
    %v1283 = vmul.f32 %v1278, %v692
    %v1284 = vmul.f32 %v1278, %v693
    %v1285 = vstv %s111
    %v1286 = vmul.f32 %v1285, %v652
    %v1287 = vmul.f32 %v1285, %v654
    %v1288 = vmul.f32 %v1285, %v666
    %v1289 = vmul.f32 %v1285, %v657
    %v1290 = vmul.f32 %v1285, %v659
    %v1291 = vmul.f32 %v1285, %v667
    %v1292 = vstv %s112
    %v1293 = vmul.f32 %v1292, %v712
    %v1294 = vmul.f32 %v1292, %v713
    %v1295 = vmul.f32 %v1292, %v714
    %v1296 = vmul.f32 %v1292, %v715
    %v1297 = vmul.f32 %v1292, %v716
    %v1298 = vmul.f32 %v1292, %v717
    %v1299 = vadd.f32 %v1109, %v1111
    %v1300 = vadd.f32 %v1109, %v1112
    %v1301 = vadd.f32 %v1109, %v1113
    %v1302 = vadd.f32 %v1109, %v1114
    %v1303 = vadd.f32 %v1109, %v1115
    %v1304 = vadd.f32 %v1109, %v1116
    %v1305 = vadd.f32 %v1118, %v1125
    %v1306 = vadd.f32 %v1119, %v1126
    %v1307 = vadd.f32 %v1120, %v1127
    %v1308 = vadd.f32 %v1121, %v1128
    %v1309 = vadd.f32 %v1122, %v1129
    %v1310 = vadd.f32 %v1123, %v1130
    %v1311 = vadd.f32 %v1132, %v1139
    %v1312 = vadd.f32 %v1133, %v1140
    %v1313 = vadd.f32 %v1134, %v1141
    %v1314 = vadd.f32 %v1135, %v1142
    %v1315 = vadd.f32 %v1136, %v1143
    %v1316 = vadd.f32 %v1137, %v1144
    %v1317 = vadd.f32 %v1146, %v1153
    %v1318 = vadd.f32 %v1147, %v1154
    %v1319 = vadd.f32 %v1148, %v1155
    %v1320 = vadd.f32 %v1149, %v1156
    %v1321 = vadd.f32 %v1150, %v1157
    %v1322 = vadd.f32 %v1151, %v1158
    %v1323 = vadd.f32 %v1160, %v1167
    %v1324 = vadd.f32 %v1161, %v1168
    %v1325 = vadd.f32 %v1162, %v1169
    %v1326 = vadd.f32 %v1163, %v1170
    %v1327 = vadd.f32 %v1164, %v1171
    %v1328 = vadd.f32 %v1165, %v1172
    %v1329 = vadd.f32 %v1174, %v1181
    %v1330 = vadd.f32 %v1175, %v1182
    %v1331 = vadd.f32 %v1176, %v1183
    %v1332 = vadd.f32 %v1177, %v1184
    %v1333 = vadd.f32 %v1178, %v1185
    %v1334 = vadd.f32 %v1179, %v1186
    %v1335 = vadd.f32 %v1188, %v1195
    %v1336 = vadd.f32 %v1189, %v1196
    %v1337 = vadd.f32 %v1190, %v1197
    %v1338 = vadd.f32 %v1191, %v1198
    %v1339 = vadd.f32 %v1192, %v1199
    %v1340 = vadd.f32 %v1193, %v1200
    %v1341 = vadd.f32 %v1202, %v1209
    %v1342 = vadd.f32 %v1203, %v1210
    %v1343 = vadd.f32 %v1204, %v1211
    %v1344 = vadd.f32 %v1205, %v1212
    %v1345 = vadd.f32 %v1206, %v1213
    %v1346 = vadd.f32 %v1207, %v1214
    %v1347 = vadd.f32 %v1216, %v1223
    %v1348 = vadd.f32 %v1217, %v1224
    %v1349 = vadd.f32 %v1218, %v1225
    %v1350 = vadd.f32 %v1219, %v1226
    %v1351 = vadd.f32 %v1220, %v1227
    %v1352 = vadd.f32 %v1221, %v1228
    %v1353 = vadd.f32 %v1230, %v1237
    %v1354 = vadd.f32 %v1231, %v1238
    %v1355 = vadd.f32 %v1232, %v1239
    %v1356 = vadd.f32 %v1233, %v1240
    %v1357 = vadd.f32 %v1234, %v1241
    %v1358 = vadd.f32 %v1235, %v1242
    %v1359 = vadd.f32 %v1244, %v1251
    %v1360 = vadd.f32 %v1245, %v1252
    %v1361 = vadd.f32 %v1246, %v1253
    %v1362 = vadd.f32 %v1247, %v1254
    %v1363 = vadd.f32 %v1248, %v1255
    %v1364 = vadd.f32 %v1249, %v1256
    %v1365 = vadd.f32 %v1258, %v1265
    %v1366 = vadd.f32 %v1259, %v1266
    %v1367 = vadd.f32 %v1260, %v1267
    %v1368 = vadd.f32 %v1261, %v1268
    %v1369 = vadd.f32 %v1262, %v1269
    %v1370 = vadd.f32 %v1263, %v1270
    %v1371 = vadd.f32 %v1272, %v1279
    %v1372 = vadd.f32 %v1273, %v1280
    %v1373 = vadd.f32 %v1274, %v1281
    %v1374 = vadd.f32 %v1275, %v1282
    %v1375 = vadd.f32 %v1276, %v1283
    %v1376 = vadd.f32 %v1277, %v1284
    %v1377 = vadd.f32 %v1286, %v1293
    %v1378 = vadd.f32 %v1287, %v1294
    %v1379 = vadd.f32 %v1288, %v1295
    %v1380 = vadd.f32 %v1289, %v1296
    %v1381 = vadd.f32 %v1290, %v1297
    %v1382 = vadd.f32 %v1291, %v1298
    %v1383 = vadd.f32 %v1299, %v1305
    %v1384 = vadd.f32 %v1300, %v1306
    %v1385 = vadd.f32 %v1301, %v1307
    %v1386 = vadd.f32 %v1302, %v1308
    %v1387 = vadd.f32 %v1303, %v1309
    %v1388 = vadd.f32 %v1304, %v1310
    %v1389 = vadd.f32 %v1311, %v1317
    %v1390 = vadd.f32 %v1312, %v1318
    %v1391 = vadd.f32 %v1313, %v1319
    %v1392 = vadd.f32 %v1314, %v1320
    %v1393 = vadd.f32 %v1315, %v1321
    %v1394 = vadd.f32 %v1316, %v1322
    %v1395 = vadd.f32 %v1323, %v1329
    %v1396 = vadd.f32 %v1324, %v1330
    %v1397 = vadd.f32 %v1325, %v1331
    %v1398 = vadd.f32 %v1326, %v1332
    %v1399 = vadd.f32 %v1327, %v1333
    %v1400 = vadd.f32 %v1328, %v1334
    %v1401 = vadd.f32 %v1335, %v1341
    %v1402 = vadd.f32 %v1336, %v1342
    %v1403 = vadd.f32 %v1337, %v1343
    %v1404 = vadd.f32 %v1338, %v1344
    %v1405 = vadd.f32 %v1339, %v1345
    %v1406 = vadd.f32 %v1340, %v1346
    %v1407 = vadd.f32 %v1347, %v1353
    %v1408 = vadd.f32 %v1348, %v1354
    %v1409 = vadd.f32 %v1349, %v1355
    %v1410 = vadd.f32 %v1350, %v1356
    %v1411 = vadd.f32 %v1351, %v1357
    %v1412 = vadd.f32 %v1352, %v1358
    %v1413 = vadd.f32 %v1359, %v1365
    %v1414 = vadd.f32 %v1360, %v1366
    %v1415 = vadd.f32 %v1361, %v1367
    %v1416 = vadd.f32 %v1362, %v1368
    %v1417 = vadd.f32 %v1363, %v1369
    %v1418 = vadd.f32 %v1364, %v1370
    %v1419 = vadd.f32 %v1371, %v1377
    %v1420 = vadd.f32 %v1372, %v1378
    %v1421 = vadd.f32 %v1373, %v1379
    %v1422 = vadd.f32 %v1374, %v1380
    %v1423 = vadd.f32 %v1375, %v1381
    %v1424 = vadd.f32 %v1376, %v1382
    %v1425 = vadd.f32 %v1383, %v1389
    %v1426 = vadd.f32 %v1384, %v1390
    %v1427 = vadd.f32 %v1385, %v1391
    %v1428 = vadd.f32 %v1386, %v1392
    %v1429 = vadd.f32 %v1387, %v1393
    %v1430 = vadd.f32 %v1388, %v1394
    %v1431 = vadd.f32 %v1395, %v1401
    %v1432 = vadd.f32 %v1396, %v1402
    %v1433 = vadd.f32 %v1397, %v1403
    %v1434 = vadd.f32 %v1398, %v1404
    %v1435 = vadd.f32 %v1399, %v1405
    %v1436 = vadd.f32 %v1400, %v1406
    %v1437 = vadd.f32 %v1407, %v1413
    %v1438 = vadd.f32 %v1408, %v1414
    %v1439 = vadd.f32 %v1409, %v1415
    %v1440 = vadd.f32 %v1410, %v1416
    %v1441 = vadd.f32 %v1411, %v1417
    %v1442 = vadd.f32 %v1412, %v1418
    %v1443 = vadd.f32 %v1425, %v1431
    %v1444 = vadd.f32 %v1426, %v1432
    %v1445 = vadd.f32 %v1427, %v1433
    %v1446 = vadd.f32 %v1428, %v1434
    %v1447 = vadd.f32 %v1429, %v1435
    %v1448 = vadd.f32 %v1430, %v1436
    %v1449 = vadd.f32 %v1437, %v1419
    %v1450 = vadd.f32 %v1438, %v1420
    %v1451 = vadd.f32 %v1439, %v1421
    %v1452 = vadd.f32 %v1440, %v1422
    %v1453 = vadd.f32 %v1441, %v1423
    %v1454 = vadd.f32 %v1442, %v1424
    %v1455 = vadd.f32 %v1443, %v1449
    %v1456 = vadd.f32 %v1444, %v1450
    %v1457 = vadd.f32 %v1445, %v1451
    %v1458 = vadd.f32 %v1446, %v1452
    %v1459 = vadd.f32 %v1447, %v1453
    %v1460 = vadd.f32 %v1448, %v1454
    %v1461 = vsel %vm1100, %v1455, 0.0
    %v1462 = vsel %vm1101, %v1456, 0.0
    %v1463 = vsel %vm1102, %v1457, 0.0
    %v1464 = vsel %vm1100, %v1458, 0.0
    %v1465 = vsel %vm1101, %v1459, 0.0
    %v1466 = vsel %vm1102, %v1460, 0.0
    %v1467 = vstv %s142
    %v1468 = vstv %s113
    %v1469 = vmul.f32 %v1468, %v189
    %v1470 = vmul.f32 %v1468, %v190
    %v1471 = vmul.f32 %v1468, %v191
    %v1472 = vmul.f32 %v1468, %v192
    %v1473 = vmul.f32 %v1468, %v193
    %v1474 = vmul.f32 %v1468, %v194
    %v1475 = vstv %s114
    %v1476 = vmul.f32 %v1475, %v166
    %v1477 = vmul.f32 %v1475, %v152
    %v1478 = vmul.f32 %v1475, %v154
    %v1479 = vmul.f32 %v1475, %v167
    %v1480 = vmul.f32 %v1475, %v157
    %v1481 = vmul.f32 %v1475, %v159
    %v1482 = vstv %s115
    %v1483 = vmul.f32 %v1482, %v214
    %v1484 = vmul.f32 %v1482, %v215
    %v1485 = vmul.f32 %v1482, %v216
    %v1486 = vmul.f32 %v1482, %v217
    %v1487 = vmul.f32 %v1482, %v218
    %v1488 = vmul.f32 %v1482, %v219
    %v1489 = vstv %s116
    %v1490 = vmul.f32 %v1489, %v238
    %v1491 = vmul.f32 %v1489, %v239
    %v1492 = vmul.f32 %v1489, %v240
    %v1493 = vmul.f32 %v1489, %v241
    %v1494 = vmul.f32 %v1489, %v242
    %v1495 = vmul.f32 %v1489, %v243
    %v1496 = vstv %s117
    %v1497 = vmul.f32 %v1496, %v39
    %v1498 = vmul.f32 %v1496, %v40
    %v1499 = vmul.f32 %v1496, %v41
    %v1500 = vmul.f32 %v1496, %v42
    %v1501 = vmul.f32 %v1496, %v43
    %v1502 = vmul.f32 %v1496, %v44
    %v1503 = vstv %s118
    %v1504 = vmul.f32 %v1503, %v262
    %v1505 = vmul.f32 %v1503, %v263
    %v1506 = vmul.f32 %v1503, %v264
    %v1507 = vmul.f32 %v1503, %v265
    %v1508 = vmul.f32 %v1503, %v266
    %v1509 = vmul.f32 %v1503, %v267
    %v1510 = vstv %s119
    %v1511 = vmul.f32 %v1510, %v308
    %v1512 = vmul.f32 %v1510, %v309
    %v1513 = vmul.f32 %v1510, %v310
    %v1514 = vmul.f32 %v1510, %v311
    %v1515 = vmul.f32 %v1510, %v312
    %v1516 = vmul.f32 %v1510, %v313
    %v1517 = vstv %s120
    %v1518 = vmul.f32 %v1517, %v271
    %v1519 = vmul.f32 %v1517, %v273
    %v1520 = vmul.f32 %v1517, %v286
    %v1521 = vmul.f32 %v1517, %v276
    %v1522 = vmul.f32 %v1517, %v278
    %v1523 = vmul.f32 %v1517, %v287
    %v1524 = vstv %s121
    %v1525 = vmul.f32 %v1524, %v332
    %v1526 = vmul.f32 %v1524, %v333
    %v1527 = vmul.f32 %v1524, %v334
    %v1528 = vmul.f32 %v1524, %v335
    %v1529 = vmul.f32 %v1524, %v336
    %v1530 = vmul.f32 %v1524, %v337
    %v1531 = vstv %s122
    %v1532 = vmul.f32 %v1531, %v382
    %v1533 = vmul.f32 %v1531, %v383
    %v1534 = vmul.f32 %v1531, %v384
    %v1535 = vmul.f32 %v1531, %v385
    %v1536 = vmul.f32 %v1531, %v386
    %v1537 = vmul.f32 %v1531, %v387
    %v1538 = vstv %s123
    %v1539 = vmul.f32 %v1538, %v360
    %v1540 = vmul.f32 %v1538, %v346
    %v1541 = vmul.f32 %v1538, %v348
    %v1542 = vmul.f32 %v1538, %v361
    %v1543 = vmul.f32 %v1538, %v351
    %v1544 = vmul.f32 %v1538, %v353
    %v1545 = vstv %s124
    %v1546 = vmul.f32 %v1545, %v406
    %v1547 = vmul.f32 %v1545, %v407
    %v1548 = vmul.f32 %v1545, %v408
    %v1549 = vmul.f32 %v1545, %v409
    %v1550 = vmul.f32 %v1545, %v410
    %v1551 = vmul.f32 %v1545, %v411
    %v1552 = vstv %s125
    %v1553 = vmul.f32 %v1552, %v430
    %v1554 = vmul.f32 %v1552, %v431
    %v1555 = vmul.f32 %v1552, %v432
    %v1556 = vmul.f32 %v1552, %v433
    %v1557 = vmul.f32 %v1552, %v434
    %v1558 = vmul.f32 %v1552, %v435
    %v1559 = vstv %s126
    %v1560 = vmul.f32 %v1559, %v46
    %v1561 = vmul.f32 %v1559, %v47
    %v1562 = vmul.f32 %v1559, %v48
    %v1563 = vmul.f32 %v1559, %v49
    %v1564 = vmul.f32 %v1559, %v50
    %v1565 = vmul.f32 %v1559, %v51
    %v1566 = vstv %s127
    %v1567 = vmul.f32 %v1566, %v454
    %v1568 = vmul.f32 %v1566, %v455
    %v1569 = vmul.f32 %v1566, %v456
    %v1570 = vmul.f32 %v1566, %v457
    %v1571 = vmul.f32 %v1566, %v458
    %v1572 = vmul.f32 %v1566, %v459
    %v1573 = vstv %s128
    %v1574 = vmul.f32 %v1573, %v498
    %v1575 = vmul.f32 %v1573, %v499
    %v1576 = vmul.f32 %v1573, %v500
    %v1577 = vmul.f32 %v1573, %v501
    %v1578 = vmul.f32 %v1573, %v502
    %v1579 = vmul.f32 %v1573, %v503
    %v1580 = vstv %s129
    %v1581 = vmul.f32 %v1580, %v462
    %v1582 = vmul.f32 %v1580, %v464
    %v1583 = vmul.f32 %v1580, %v476
    %v1584 = vmul.f32 %v1580, %v467
    %v1585 = vmul.f32 %v1580, %v469
    %v1586 = vmul.f32 %v1580, %v477
    %v1587 = vstv %s130
    %v1588 = vmul.f32 %v1587, %v522
    %v1589 = vmul.f32 %v1587, %v523
    %v1590 = vmul.f32 %v1587, %v524
    %v1591 = vmul.f32 %v1587, %v525
    %v1592 = vmul.f32 %v1587, %v526
    %v1593 = vmul.f32 %v1587, %v527
    %v1594 = vstv %s131
    %v1595 = vmul.f32 %v1594, %v572
    %v1596 = vmul.f32 %v1594, %v573
    %v1597 = vmul.f32 %v1594, %v574
    %v1598 = vmul.f32 %v1594, %v575
    %v1599 = vmul.f32 %v1594, %v576
    %v1600 = vmul.f32 %v1594, %v577
    %v1601 = vstv %s132
    %v1602 = vmul.f32 %v1601, %v550
    %v1603 = vmul.f32 %v1601, %v536
    %v1604 = vmul.f32 %v1601, %v538
    %v1605 = vmul.f32 %v1601, %v551
    %v1606 = vmul.f32 %v1601, %v541
    %v1607 = vmul.f32 %v1601, %v543
    %v1608 = vstv %s133
    %v1609 = vmul.f32 %v1608, %v596
    %v1610 = vmul.f32 %v1608, %v597
    %v1611 = vmul.f32 %v1608, %v598
    %v1612 = vmul.f32 %v1608, %v599
    %v1613 = vmul.f32 %v1608, %v600
    %v1614 = vmul.f32 %v1608, %v601
    %v1615 = vstv %s134
    %v1616 = vmul.f32 %v1615, %v620
    %v1617 = vmul.f32 %v1615, %v621
    %v1618 = vmul.f32 %v1615, %v622
    %v1619 = vmul.f32 %v1615, %v623
    %v1620 = vmul.f32 %v1615, %v624
    %v1621 = vmul.f32 %v1615, %v625
    %v1622 = vstv %s135
    %v1623 = vmul.f32 %v1622, %v53
    %v1624 = vmul.f32 %v1622, %v54
    %v1625 = vmul.f32 %v1622, %v55
    %v1626 = vmul.f32 %v1622, %v56
    %v1627 = vmul.f32 %v1622, %v57
    %v1628 = vmul.f32 %v1622, %v58
    %v1629 = vstv %s136
    %v1630 = vmul.f32 %v1629, %v644
    %v1631 = vmul.f32 %v1629, %v645
    %v1632 = vmul.f32 %v1629, %v646
    %v1633 = vmul.f32 %v1629, %v647
    %v1634 = vmul.f32 %v1629, %v648
    %v1635 = vmul.f32 %v1629, %v649
    %v1636 = vstv %s137
    %v1637 = vmul.f32 %v1636, %v688
    %v1638 = vmul.f32 %v1636, %v689
    %v1639 = vmul.f32 %v1636, %v690
    %v1640 = vmul.f32 %v1636, %v691
    %v1641 = vmul.f32 %v1636, %v692
    %v1642 = vmul.f32 %v1636, %v693
    %v1643 = vstv %s138
    %v1644 = vmul.f32 %v1643, %v652
    %v1645 = vmul.f32 %v1643, %v654
    %v1646 = vmul.f32 %v1643, %v666
    %v1647 = vmul.f32 %v1643, %v657
    %v1648 = vmul.f32 %v1643, %v659
    %v1649 = vmul.f32 %v1643, %v667
    %v1650 = vstv %s139
    %v1651 = vmul.f32 %v1650, %v712
    %v1652 = vmul.f32 %v1650, %v713
    %v1653 = vmul.f32 %v1650, %v714
    %v1654 = vmul.f32 %v1650, %v715
    %v1655 = vmul.f32 %v1650, %v716
    %v1656 = vmul.f32 %v1650, %v717
    %v1657 = vadd.f32 %v1467, %v1469
    %v1658 = vadd.f32 %v1467, %v1470
    %v1659 = vadd.f32 %v1467, %v1471
    %v1660 = vadd.f32 %v1467, %v1472
    %v1661 = vadd.f32 %v1467, %v1473
    %v1662 = vadd.f32 %v1467, %v1474
    %v1663 = vadd.f32 %v1476, %v1483
    %v1664 = vadd.f32 %v1477, %v1484
    %v1665 = vadd.f32 %v1478, %v1485
    %v1666 = vadd.f32 %v1479, %v1486
    %v1667 = vadd.f32 %v1480, %v1487
    %v1668 = vadd.f32 %v1481, %v1488
    %v1669 = vadd.f32 %v1490, %v1497
    %v1670 = vadd.f32 %v1491, %v1498
    %v1671 = vadd.f32 %v1492, %v1499
    %v1672 = vadd.f32 %v1493, %v1500
    %v1673 = vadd.f32 %v1494, %v1501
    %v1674 = vadd.f32 %v1495, %v1502
    %v1675 = vadd.f32 %v1504, %v1511
    %v1676 = vadd.f32 %v1505, %v1512
    %v1677 = vadd.f32 %v1506, %v1513
    %v1678 = vadd.f32 %v1507, %v1514
    %v1679 = vadd.f32 %v1508, %v1515
    %v1680 = vadd.f32 %v1509, %v1516
    %v1681 = vadd.f32 %v1518, %v1525
    %v1682 = vadd.f32 %v1519, %v1526
    %v1683 = vadd.f32 %v1520, %v1527
    %v1684 = vadd.f32 %v1521, %v1528
    %v1685 = vadd.f32 %v1522, %v1529
    %v1686 = vadd.f32 %v1523, %v1530
    %v1687 = vadd.f32 %v1532, %v1539
    %v1688 = vadd.f32 %v1533, %v1540
    %v1689 = vadd.f32 %v1534, %v1541
    %v1690 = vadd.f32 %v1535, %v1542
    %v1691 = vadd.f32 %v1536, %v1543
    %v1692 = vadd.f32 %v1537, %v1544
    %v1693 = vadd.f32 %v1546, %v1553
    %v1694 = vadd.f32 %v1547, %v1554
    %v1695 = vadd.f32 %v1548, %v1555
    %v1696 = vadd.f32 %v1549, %v1556
    %v1697 = vadd.f32 %v1550, %v1557
    %v1698 = vadd.f32 %v1551, %v1558
    %v1699 = vadd.f32 %v1560, %v1567
    %v1700 = vadd.f32 %v1561, %v1568
    %v1701 = vadd.f32 %v1562, %v1569
    %v1702 = vadd.f32 %v1563, %v1570
    %v1703 = vadd.f32 %v1564, %v1571
    %v1704 = vadd.f32 %v1565, %v1572
    %v1705 = vadd.f32 %v1574, %v1581
    %v1706 = vadd.f32 %v1575, %v1582
    %v1707 = vadd.f32 %v1576, %v1583
    %v1708 = vadd.f32 %v1577, %v1584
    %v1709 = vadd.f32 %v1578, %v1585
    %v1710 = vadd.f32 %v1579, %v1586
    %v1711 = vadd.f32 %v1588, %v1595
    %v1712 = vadd.f32 %v1589, %v1596
    %v1713 = vadd.f32 %v1590, %v1597
    %v1714 = vadd.f32 %v1591, %v1598
    %v1715 = vadd.f32 %v1592, %v1599
    %v1716 = vadd.f32 %v1593, %v1600
    %v1717 = vadd.f32 %v1602, %v1609
    %v1718 = vadd.f32 %v1603, %v1610
    %v1719 = vadd.f32 %v1604, %v1611
    %v1720 = vadd.f32 %v1605, %v1612
    %v1721 = vadd.f32 %v1606, %v1613
    %v1722 = vadd.f32 %v1607, %v1614
    %v1723 = vadd.f32 %v1616, %v1623
    %v1724 = vadd.f32 %v1617, %v1624
    %v1725 = vadd.f32 %v1618, %v1625
    %v1726 = vadd.f32 %v1619, %v1626
    %v1727 = vadd.f32 %v1620, %v1627
    %v1728 = vadd.f32 %v1621, %v1628
    %v1729 = vadd.f32 %v1630, %v1637
    %v1730 = vadd.f32 %v1631, %v1638
    %v1731 = vadd.f32 %v1632, %v1639
    %v1732 = vadd.f32 %v1633, %v1640
    %v1733 = vadd.f32 %v1634, %v1641
    %v1734 = vadd.f32 %v1635, %v1642
    %v1735 = vadd.f32 %v1644, %v1651
    %v1736 = vadd.f32 %v1645, %v1652
    %v1737 = vadd.f32 %v1646, %v1653
    %v1738 = vadd.f32 %v1647, %v1654
    %v1739 = vadd.f32 %v1648, %v1655
    %v1740 = vadd.f32 %v1649, %v1656
    %v1741 = vadd.f32 %v1657, %v1663
    %v1742 = vadd.f32 %v1658, %v1664
    %v1743 = vadd.f32 %v1659, %v1665
    %v1744 = vadd.f32 %v1660, %v1666
    %v1745 = vadd.f32 %v1661, %v1667
    %v1746 = vadd.f32 %v1662, %v1668
    %v1747 = vadd.f32 %v1669, %v1675
    %v1748 = vadd.f32 %v1670, %v1676
    %v1749 = vadd.f32 %v1671, %v1677
    %v1750 = vadd.f32 %v1672, %v1678
    %v1751 = vadd.f32 %v1673, %v1679
    %v1752 = vadd.f32 %v1674, %v1680
    %v1753 = vadd.f32 %v1681, %v1687
    %v1754 = vadd.f32 %v1682, %v1688
    %v1755 = vadd.f32 %v1683, %v1689
    %v1756 = vadd.f32 %v1684, %v1690
    %v1757 = vadd.f32 %v1685, %v1691
    %v1758 = vadd.f32 %v1686, %v1692
    %v1759 = vadd.f32 %v1693, %v1699
    %v1760 = vadd.f32 %v1694, %v1700
    %v1761 = vadd.f32 %v1695, %v1701
    %v1762 = vadd.f32 %v1696, %v1702
    %v1763 = vadd.f32 %v1697, %v1703
    %v1764 = vadd.f32 %v1698, %v1704
    %v1765 = vadd.f32 %v1705, %v1711
    %v1766 = vadd.f32 %v1706, %v1712
    %v1767 = vadd.f32 %v1707, %v1713
    %v1768 = vadd.f32 %v1708, %v1714
    %v1769 = vadd.f32 %v1709, %v1715
    %v1770 = vadd.f32 %v1710, %v1716
    %v1771 = vadd.f32 %v1717, %v1723
    %v1772 = vadd.f32 %v1718, %v1724
    %v1773 = vadd.f32 %v1719, %v1725
    %v1774 = vadd.f32 %v1720, %v1726
    %v1775 = vadd.f32 %v1721, %v1727
    %v1776 = vadd.f32 %v1722, %v1728
    %v1777 = vadd.f32 %v1729, %v1735
    %v1778 = vadd.f32 %v1730, %v1736
    %v1779 = vadd.f32 %v1731, %v1737
    %v1780 = vadd.f32 %v1732, %v1738
    %v1781 = vadd.f32 %v1733, %v1739
    %v1782 = vadd.f32 %v1734, %v1740
    %v1783 = vadd.f32 %v1741, %v1747
    %v1784 = vadd.f32 %v1742, %v1748
    %v1785 = vadd.f32 %v1743, %v1749
    %v1786 = vadd.f32 %v1744, %v1750
    %v1787 = vadd.f32 %v1745, %v1751
    %v1788 = vadd.f32 %v1746, %v1752
    %v1789 = vadd.f32 %v1753, %v1759
    %v1790 = vadd.f32 %v1754, %v1760
    %v1791 = vadd.f32 %v1755, %v1761
    %v1792 = vadd.f32 %v1756, %v1762
    %v1793 = vadd.f32 %v1757, %v1763
    %v1794 = vadd.f32 %v1758, %v1764
    %v1795 = vadd.f32 %v1765, %v1771
    %v1796 = vadd.f32 %v1766, %v1772
    %v1797 = vadd.f32 %v1767, %v1773
    %v1798 = vadd.f32 %v1768, %v1774
    %v1799 = vadd.f32 %v1769, %v1775
    %v1800 = vadd.f32 %v1770, %v1776
    %v1801 = vadd.f32 %v1783, %v1789
    %v1802 = vadd.f32 %v1784, %v1790
    %v1803 = vadd.f32 %v1785, %v1791
    %v1804 = vadd.f32 %v1786, %v1792
    %v1805 = vadd.f32 %v1787, %v1793
    %v1806 = vadd.f32 %v1788, %v1794
    %v1807 = vadd.f32 %v1795, %v1777
    %v1808 = vadd.f32 %v1796, %v1778
    %v1809 = vadd.f32 %v1797, %v1779
    %v1810 = vadd.f32 %v1798, %v1780
    %v1811 = vadd.f32 %v1799, %v1781
    %v1812 = vadd.f32 %v1800, %v1782
    %v1813 = vadd.f32 %v1801, %v1807
    %v1814 = vadd.f32 %v1802, %v1808
    %v1815 = vadd.f32 %v1803, %v1809
    %v1816 = vadd.f32 %v1804, %v1810
    %v1817 = vadd.f32 %v1805, %v1811
    %v1818 = vadd.f32 %v1806, %v1812
    %v1819 = vsel %vm1100, %v1813, 0.0
    %v1820 = vsel %vm1101, %v1814, 0.0
    %v1821 = vsel %vm1102, %v1815, 0.0
    %v1822 = vsel %vm1100, %v1816, 0.0
    %v1823 = vsel %vm1101, %v1817, 0.0
    %v1824 = vsel %vm1102, %v1818, 0.0
    %s1825 = sld [smem:[#allocation2 + $0x51]]
    %s1826 = sld [smem:[#allocation2 + $0x52]]
    %s1827 = sld [smem:[#allocation2 + $0x53]]
    %s1828 = sld [smem:[#allocation2 + $0x54]]
    %s1829 = sld [smem:[#allocation2 + $0x55]]
    %s1830 = sld [smem:[#allocation2 + $0x56]]
    %s1831 = sld [smem:[#allocation2 + $0x57]]
    %s1832 = sld [smem:[#allocation2 + $0x58]]
    %s1833 = sld [smem:[#allocation2 + $0x59]]
    %s1834 = sld [smem:[#allocation2 + $0x5a]]
    %s1835 = sld [smem:[#allocation2 + $0x5b]]
    %s1836 = sld [smem:[#allocation2 + $0x5c]]
    %s1837 = sld [smem:[#allocation2 + $0x5d]]
    %s1838 = sld [smem:[#allocation2 + $0x5e]]
    %s1839 = sld [smem:[#allocation2 + $0x5f]]
    %s1840 = sld [smem:[#allocation2 + $0x60]]
    %s1841 = sld [smem:[#allocation2 + $0x61]]
    %s1842 = sld [smem:[#allocation2 + $0x62]]
    %s1843 = sld [smem:[#allocation2 + $0x63]]
    %s1844 = sld [smem:[#allocation2 + $0x64]]
    %s1845 = sld [smem:[#allocation2 + $0x65]]
    %s1846 = sld [smem:[#allocation2 + $0x66]]
    %s1847 = sld [smem:[#allocation2 + $0x67]]
    %s1848 = sld [smem:[#allocation2 + $0x68]]
    %s1849 = sld [smem:[#allocation2 + $0x69]]
    %s1850 = sld [smem:[#allocation2 + $0x6a]]
    %s1851 = sld [smem:[#allocation2 + $0x6b]]
    %s1852 = sld [smem:[#allocation2 + $0x6c]]
    %s1853 = sld [smem:[#allocation2 + $0x6d]]
    %s1854 = sld [smem:[#allocation2 + $0x6e]]
    %s1855 = sld [smem:[#allocation2 + $0x6f]]
    %s1856 = sld [smem:[#allocation2 + $0x70]]
    %s1857 = sld [smem:[#allocation2 + $0x71]]
    %s1858 = sld [smem:[#allocation2 + $0x72]]
    %s1859 = sld [smem:[#allocation2 + $0x73]]
    %s1860 = sld [smem:[#allocation2 + $0x74]]
    %s1861 = sld [smem:[#allocation2 + $0x75]]
    %s1862 = sld [smem:[#allocation2 + $0x76]]
    %s1863 = sld [smem:[#allocation2 + $0x77]]
    %s1864 = sld [smem:[#allocation2 + $0x78]]
    %s1865 = sld [smem:[#allocation2 + $0x79]]
    %s1866 = sld [smem:[#allocation2 + $0x7a]]
    %s1867 = sld [smem:[#allocation2 + $0x7b]]
    %s1868 = sld [smem:[#allocation2 + $0x7c]]
    %s1869 = sld [smem:[#allocation2 + $0x7d]]
    %s1870 = sld [smem:[#allocation2 + $0x7e]]
    %s1871 = sld [smem:[#allocation2 + $0x7f]]
    %s1872 = sld [smem:[#allocation2 + $0x80]]
    %s1873 = sld [smem:[#allocation2 + $0x81]]
    %s1874 = sld [smem:[#allocation2 + $0x82]]
    %s1875 = sld [smem:[#allocation2 + $0x83]]
    %s1876 = sld [smem:[#allocation2 + $0x84]]
    %s1877 = sld [smem:[#allocation2 + $0x85]]
    %s1878 = sld [smem:[#allocation2 + $0x86]]
    %s1879 = sld [smem:[#allocation2 + $0x87]]
    %s1880 = sld [smem:[#allocation2 + $0x88]]
    %s1881 = sld [smem:[#allocation2 + $0x89]]
    %s1882 = sld [smem:[#allocation2 + $0x8a]]
    %s1883 = sld [smem:[#allocation2 + $0x8b]]
    %s1884 = sld [smem:[#allocation2 + $0x8c]]
    %s1885 = sld [smem:[#allocation2 + $0x8d]]
    %s1886 = sld [smem:[#allocation2 + $0x8e]]
    %s1887 = sld [smem:[#allocation2 + $0x8f]]
    %s1888 = sld [smem:[#allocation2 + $0x90]]
    %s1889 = sld [smem:[#allocation2 + $0x91]]
    %s1890 = sld [smem:[#allocation2 + $0x92]]
    %s1891 = sld [smem:[#allocation2 + $0x93]]
    %s1892 = sld [smem:[#allocation2 + $0x94]]
    %s1893 = sld [smem:[#allocation2 + $0x95]]
    %s1894 = sld [smem:[#allocation2 + $0x96]]
    %s1895 = sld [smem:[#allocation2 + $0x97]]
    %s1896 = sld [smem:[#allocation2 + $0x98]]
    %s1897 = sld [smem:[#allocation2 + $0x99]]
    %s1898 = sld [smem:[#allocation2 + $0x9a]]
    %s1899 = sld [smem:[#allocation2 + $0x9b]]
    %s1900 = sld [smem:[#allocation2 + $0x9c]]
    %s1901 = sld [smem:[#allocation2 + $0x9d]]
    %s1902 = sld [smem:[#allocation2 + $0x9e]]
    %s1903 = sld [smem:[#allocation2 + $0x9f]]
    %s1904 = sld [smem:[#allocation2 + $0xa0]]
    %s1905 = sld [smem:[#allocation2 + $0xa1]]
    %s1906 = sld [smem:[#allocation4 + $0x3]]
    %s1907 = sld [smem:[#allocation4 + $0x4]]
    %s1908 = sld [smem:[#allocation4 + $0x5]]
    %vm1915 = vcmask 1041408
    %v1916 = vrot.slane %v1103, 6
    %v1917 = vrot.slane %v1104, 6
    %v1918 = vsel %vm1915, %v1916, %v1917
    %v1919 = vrot.slane %v1105, 6
    %v1920 = vsel %vm1915, %v1917, %v1919
    %v1921 = vrot.slane %v1106, 6
    %v1922 = vrot.slane %v1107, 6
    %v1923 = vsel %vm1915, %v1921, %v1922
    %v1924 = vrot.slane %v1108, 6
    %v1925 = vsel %vm1915, %v1922, %v1924
    %v1932 = vsel %vm1915, 0.0, %v1916
    %v1933 = vsel %vm1915, 0.0, %v1921
    %1936 = vrot.lane.b32.xlu0 %v1932, 2
    %v1937 = vpop.permute.xlu0 %1936
    %1938 = vrot.lane.b32.xlu0 %v1918, 2
    %v1939 = vpop.permute.xlu0 %1938
    %1940 = vrot.lane.b32.xlu0 %v1920, 2
    %v1941 = vpop.permute.xlu0 %1940
    %1942 = vrot.lane.b32.xlu0 %v1933, 2
    %v1943 = vpop.permute.xlu0 %1942
    %1944 = vrot.lane.b32.xlu0 %v1923, 2
    %v1945 = vpop.permute.xlu0 %1944
    %1946 = vrot.lane.b32.xlu0 %v1925, 2
    %v1947 = vpop.permute.xlu0 %1946
    %vm1954 = vcmask 15360
    %v1955 = vsel %vm1954, 0.0, %v1937
    %v1956 = vsel %vm1954, 0.0, %v1939
    %v1957 = vsel %vm1954, 0.0, %v1941
    %v1958 = vsel %vm1954, 0.0, %v1943
    %v1959 = vsel %vm1954, 0.0, %v1945
    %v1960 = vsel %vm1954, 0.0, %v1947
    %1961 = vrot.lane.b32.xlu0 %v1932, 126
    %v1962 = vpop.permute.xlu0 %1961
    %1963 = vrot.lane.b32.xlu0 %v1918, 126
    %v1964 = vpop.permute.xlu0 %1963
    %1965 = vrot.lane.b32.xlu0 %v1920, 126
    %v1966 = vpop.permute.xlu0 %1965
    %1967 = vrot.lane.b32.xlu0 %v1933, 126
    %v1968 = vpop.permute.xlu0 %1967
    %1969 = vrot.lane.b32.xlu0 %v1923, 126
    %v1970 = vpop.permute.xlu0 %1969
    %1971 = vrot.lane.b32.xlu0 %v1925, 126
    %v1972 = vpop.permute.xlu0 %1971
    %vm1979 = vcmask 146432
    %v1980 = vsel %vm1979, %v1962, 0.0
    %v1981 = vsel %vm1979, %v1964, 0.0
    %v1982 = vsel %vm1979, %v1966, 0.0
    %v1983 = vsel %vm1979, %v1968, 0.0
    %v1984 = vsel %vm1979, %v1970, 0.0
    %v1985 = vsel %vm1979, %v1972, 0.0
    %1986 = vrot.lane.b32.xlu0 %v1103, 2
    %v1987 = vpop.permute.xlu0 %1986
    %1988 = vrot.lane.b32.xlu0 %v1104, 2
    %v1989 = vpop.permute.xlu0 %1988
    %1990 = vrot.lane.b32.xlu0 %v1105, 2
    %v1991 = vpop.permute.xlu0 %1990
    %1992 = vrot.lane.b32.xlu0 %v1106, 2
    %v1993 = vpop.permute.xlu0 %1992
    %1994 = vrot.lane.b32.xlu0 %v1107, 2
    %v1995 = vpop.permute.xlu0 %1994
    %1996 = vrot.lane.b32.xlu0 %v1108, 2
    %v1997 = vpop.permute.xlu0 %1996
    %v2004 = vsel %vm1954, 0.0, %v1987
    %v2005 = vsel %vm1954, 0.0, %v1989
    %v2006 = vsel %vm1954, 0.0, %v1991
    %v2007 = vsel %vm1954, 0.0, %v1993
    %v2008 = vsel %vm1954, 0.0, %v1995
    %v2009 = vsel %vm1954, 0.0, %v1997
    %2010 = vrot.lane.b32.xlu0 %v1103, 126
    %v2011 = vpop.permute.xlu0 %2010
    %2012 = vrot.lane.b32.xlu0 %v1104, 126
    %v2013 = vpop.permute.xlu0 %2012
    %2014 = vrot.lane.b32.xlu0 %v1105, 126
    %v2015 = vpop.permute.xlu0 %2014
    %2016 = vrot.lane.b32.xlu0 %v1106, 126
    %v2017 = vpop.permute.xlu0 %2016
    %2018 = vrot.lane.b32.xlu0 %v1107, 126
    %v2019 = vpop.permute.xlu0 %2018
    %2020 = vrot.lane.b32.xlu0 %v1108, 126
    %v2021 = vpop.permute.xlu0 %2020
    %v2028 = vsel %vm1979, %v2011, 0.0
    %v2029 = vsel %vm1979, %v2013, 0.0
    %v2030 = vsel %vm1979, %v2015, 0.0
    %v2031 = vsel %vm1979, %v2017, 0.0
    %v2032 = vsel %vm1979, %v2019, 0.0
    %v2033 = vsel %vm1979, %v2021, 0.0
    %vm2034 = vcmask 1045504
    %v2035 = vrot.slane %v1103, 2
    %v2036 = vrot.slane %v1104, 2
    %v2037 = vsel %vm2034, %v2035, %v2036
    %v2038 = vrot.slane %v1105, 2
    %v2039 = vsel %vm2034, %v2036, %v2038
    %v2040 = vrot.slane %v1106, 2
    %v2041 = vrot.slane %v1107, 2
    %v2042 = vsel %vm2034, %v2040, %v2041
    %v2043 = vrot.slane %v1108, 2
    %v2044 = vsel %vm2034, %v2041, %v2043
    %v2051 = vsel %vm1915, %v2038, 0.0
    %v2052 = vsel %vm1915, %v2043, 0.0
    %2055 = vrot.lane.b32.xlu0 %v2037, 2
    %v2056 = vpop.permute.xlu0 %2055
    %2057 = vrot.lane.b32.xlu0 %v2039, 2
    %v2058 = vpop.permute.xlu0 %2057
    %2059 = vrot.lane.b32.xlu0 %v2051, 2
    %v2060 = vpop.permute.xlu0 %2059
    %2061 = vrot.lane.b32.xlu0 %v2042, 2
    %v2062 = vpop.permute.xlu0 %2061
    %2063 = vrot.lane.b32.xlu0 %v2044, 2
    %v2064 = vpop.permute.xlu0 %2063
    %2065 = vrot.lane.b32.xlu0 %v2052, 2
    %v2066 = vpop.permute.xlu0 %2065
    %v2073 = vsel %vm1954, 0.0, %v2056
    %v2074 = vsel %vm1954, 0.0, %v2058
    %v2075 = vsel %vm1954, 0.0, %v2060
    %v2076 = vsel %vm1954, 0.0, %v2062
    %v2077 = vsel %vm1954, 0.0, %v2064
    %v2078 = vsel %vm1954, 0.0, %v2066
    %2079 = vrot.lane.b32.xlu0 %v2037, 126
    %v2080 = vpop.permute.xlu0 %2079
    %2081 = vrot.lane.b32.xlu0 %v2039, 126
    %v2082 = vpop.permute.xlu0 %2081
    %2083 = vrot.lane.b32.xlu0 %v2051, 126
    %v2084 = vpop.permute.xlu0 %2083
    %2085 = vrot.lane.b32.xlu0 %v2042, 126
    %v2086 = vpop.permute.xlu0 %2085
    %2087 = vrot.lane.b32.xlu0 %v2044, 126
    %v2088 = vpop.permute.xlu0 %2087
    %2089 = vrot.lane.b32.xlu0 %v2052, 126
    %v2090 = vpop.permute.xlu0 %2089
    %v2097 = vsel %vm1979, %v2080, 0.0
    %v2098 = vsel %vm1979, %v2082, 0.0
    %v2099 = vsel %vm1979, %v2084, 0.0
    %v2100 = vsel %vm1979, %v2086, 0.0
    %v2101 = vsel %vm1979, %v2088, 0.0
    %v2102 = vsel %vm1979, %v2090, 0.0
    %v2109 = vrot.slane %v1461, 6
    %v2110 = vrot.slane %v1462, 6
    %v2111 = vsel %vm1915, %v2109, %v2110
    %v2112 = vrot.slane %v1463, 6
    %v2113 = vsel %vm1915, %v2110, %v2112
    %v2114 = vrot.slane %v1464, 6
    %v2115 = vrot.slane %v1465, 6
    %v2116 = vsel %vm1915, %v2114, %v2115
    %v2117 = vrot.slane %v1466, 6
    %v2118 = vsel %vm1915, %v2115, %v2117
    %v2125 = vsel %vm1915, 0.0, %v2109
    %v2126 = vsel %vm1915, 0.0, %v2114
    %2129 = vrot.lane.b32.xlu0 %v2125, 2
    %v2130 = vpop.permute.xlu0 %2129
    %2131 = vrot.lane.b32.xlu0 %v2111, 2
    %v2132 = vpop.permute.xlu0 %2131
    %2133 = vrot.lane.b32.xlu0 %v2113, 2
    %v2134 = vpop.permute.xlu0 %2133
    %2135 = vrot.lane.b32.xlu0 %v2126, 2
    %v2136 = vpop.permute.xlu0 %2135
    %2137 = vrot.lane.b32.xlu0 %v2116, 2
    %v2138 = vpop.permute.xlu0 %2137
    %2139 = vrot.lane.b32.xlu0 %v2118, 2
    %v2140 = vpop.permute.xlu0 %2139
    %v2147 = vsel %vm1954, 0.0, %v2130
    %v2148 = vsel %vm1954, 0.0, %v2132
    %v2149 = vsel %vm1954, 0.0, %v2134
    %v2150 = vsel %vm1954, 0.0, %v2136
    %v2151 = vsel %vm1954, 0.0, %v2138
    %v2152 = vsel %vm1954, 0.0, %v2140
    %2153 = vrot.lane.b32.xlu0 %v2125, 126
    %v2154 = vpop.permute.xlu0 %2153
    %2155 = vrot.lane.b32.xlu0 %v2111, 126
    %v2156 = vpop.permute.xlu0 %2155
    %2157 = vrot.lane.b32.xlu0 %v2113, 126
    %v2158 = vpop.permute.xlu0 %2157
    %2159 = vrot.lane.b32.xlu0 %v2126, 126
    %v2160 = vpop.permute.xlu0 %2159
    %2161 = vrot.lane.b32.xlu0 %v2116, 126
    %v2162 = vpop.permute.xlu0 %2161
    %2163 = vrot.lane.b32.xlu0 %v2118, 126
    %v2164 = vpop.permute.xlu0 %2163
    %v2171 = vsel %vm1979, %v2154, 0.0
    %v2172 = vsel %vm1979, %v2156, 0.0
    %v2173 = vsel %vm1979, %v2158, 0.0
    %v2174 = vsel %vm1979, %v2160, 0.0
    %v2175 = vsel %vm1979, %v2162, 0.0
    %v2176 = vsel %vm1979, %v2164, 0.0
    %2177 = vrot.lane.b32.xlu0 %v1461, 2
    %v2178 = vpop.permute.xlu0 %2177
    %2179 = vrot.lane.b32.xlu0 %v1462, 2
    %v2180 = vpop.permute.xlu0 %2179
    %2181 = vrot.lane.b32.xlu0 %v1463, 2
    %v2182 = vpop.permute.xlu0 %2181
    %2183 = vrot.lane.b32.xlu0 %v1464, 2
    %v2184 = vpop.permute.xlu0 %2183
    %2185 = vrot.lane.b32.xlu0 %v1465, 2
    %v2186 = vpop.permute.xlu0 %2185
    %2187 = vrot.lane.b32.xlu0 %v1466, 2
    %v2188 = vpop.permute.xlu0 %2187
    %v2195 = vsel %vm1954, 0.0, %v2178
    %v2196 = vsel %vm1954, 0.0, %v2180
    %v2197 = vsel %vm1954, 0.0, %v2182
    %v2198 = vsel %vm1954, 0.0, %v2184
    %v2199 = vsel %vm1954, 0.0, %v2186
    %v2200 = vsel %vm1954, 0.0, %v2188
    %2201 = vrot.lane.b32.xlu0 %v1461, 126
    %v2202 = vpop.permute.xlu0 %2201
    %2203 = vrot.lane.b32.xlu0 %v1462, 126
    %v2204 = vpop.permute.xlu0 %2203
    %2205 = vrot.lane.b32.xlu0 %v1463, 126
    %v2206 = vpop.permute.xlu0 %2205
    %2207 = vrot.lane.b32.xlu0 %v1464, 126
    %v2208 = vpop.permute.xlu0 %2207
    %2209 = vrot.lane.b32.xlu0 %v1465, 126
    %v2210 = vpop.permute.xlu0 %2209
    %2211 = vrot.lane.b32.xlu0 %v1466, 126
    %v2212 = vpop.permute.xlu0 %2211
    %v2219 = vsel %vm1979, %v2202, 0.0
    %v2220 = vsel %vm1979, %v2204, 0.0
    %v2221 = vsel %vm1979, %v2206, 0.0
    %v2222 = vsel %vm1979, %v2208, 0.0
    %v2223 = vsel %vm1979, %v2210, 0.0
    %v2224 = vsel %vm1979, %v2212, 0.0
    %v2225 = vrot.slane %v1461, 2
    %v2226 = vrot.slane %v1462, 2
    %v2227 = vsel %vm2034, %v2225, %v2226
    %v2228 = vrot.slane %v1463, 2
    %v2229 = vsel %vm2034, %v2226, %v2228
    %v2230 = vrot.slane %v1464, 2
    %v2231 = vrot.slane %v1465, 2
    %v2232 = vsel %vm2034, %v2230, %v2231
    %v2233 = vrot.slane %v1466, 2
    %v2234 = vsel %vm2034, %v2231, %v2233
    %v2241 = vsel %vm1915, %v2228, 0.0
    %v2242 = vsel %vm1915, %v2233, 0.0
    %2245 = vrot.lane.b32.xlu0 %v2227, 2
    %v2246 = vpop.permute.xlu0 %2245
    %2247 = vrot.lane.b32.xlu0 %v2229, 2
    %v2248 = vpop.permute.xlu0 %2247
    %2249 = vrot.lane.b32.xlu0 %v2241, 2
    %v2250 = vpop.permute.xlu0 %2249
    %2251 = vrot.lane.b32.xlu0 %v2232, 2
    %v2252 = vpop.permute.xlu0 %2251
    %2253 = vrot.lane.b32.xlu0 %v2234, 2
    %v2254 = vpop.permute.xlu0 %2253
    %2255 = vrot.lane.b32.xlu0 %v2242, 2
    %v2256 = vpop.permute.xlu0 %2255
    %v2263 = vsel %vm1954, 0.0, %v2246
    %v2264 = vsel %vm1954, 0.0, %v2248
    %v2265 = vsel %vm1954, 0.0, %v2250
    %v2266 = vsel %vm1954, 0.0, %v2252
    %v2267 = vsel %vm1954, 0.0, %v2254
    %v2268 = vsel %vm1954, 0.0, %v2256
    %2269 = vrot.lane.b32.xlu0 %v2227, 126
    %v2270 = vpop.permute.xlu0 %2269
    %2271 = vrot.lane.b32.xlu0 %v2229, 126
    %v2272 = vpop.permute.xlu0 %2271
    %2273 = vrot.lane.b32.xlu0 %v2241, 126
    %v2274 = vpop.permute.xlu0 %2273
    %2275 = vrot.lane.b32.xlu0 %v2232, 126
    %v2276 = vpop.permute.xlu0 %2275
    %2277 = vrot.lane.b32.xlu0 %v2234, 126
    %v2278 = vpop.permute.xlu0 %2277
    %2279 = vrot.lane.b32.xlu0 %v2242, 126
    %v2280 = vpop.permute.xlu0 %2279
    %v2287 = vsel %vm1979, %v2270, 0.0
    %v2288 = vsel %vm1979, %v2272, 0.0
    %v2289 = vsel %vm1979, %v2274, 0.0
    %v2290 = vsel %vm1979, %v2276, 0.0
    %v2291 = vsel %vm1979, %v2278, 0.0
    %v2292 = vsel %vm1979, %v2280, 0.0
    %v2299 = vrot.slane %v1819, 6
    %v2300 = vrot.slane %v1820, 6
    %v2301 = vsel %vm1915, %v2299, %v2300
    %v2302 = vrot.slane %v1821, 6
    %v2303 = vsel %vm1915, %v2300, %v2302
    %v2304 = vrot.slane %v1822, 6
    %v2305 = vrot.slane %v1823, 6
    %v2306 = vsel %vm1915, %v2304, %v2305
    %v2307 = vrot.slane %v1824, 6
    %v2308 = vsel %vm1915, %v2305, %v2307
    %v2315 = vsel %vm1915, 0.0, %v2299
    %v2316 = vsel %vm1915, 0.0, %v2304
    %2319 = vrot.lane.b32.xlu0 %v2315, 2
    %v2320 = vpop.permute.xlu0 %2319
    %2321 = vrot.lane.b32.xlu0 %v2301, 2
    %v2322 = vpop.permute.xlu0 %2321
    %2323 = vrot.lane.b32.xlu0 %v2303, 2
    %v2324 = vpop.permute.xlu0 %2323
    %2325 = vrot.lane.b32.xlu0 %v2316, 2
    %v2326 = vpop.permute.xlu0 %2325
    %2327 = vrot.lane.b32.xlu0 %v2306, 2
    %v2328 = vpop.permute.xlu0 %2327
    %2329 = vrot.lane.b32.xlu0 %v2308, 2
    %v2330 = vpop.permute.xlu0 %2329
    %v2337 = vsel %vm1954, 0.0, %v2320
    %v2338 = vsel %vm1954, 0.0, %v2322
    %v2339 = vsel %vm1954, 0.0, %v2324
    %v2340 = vsel %vm1954, 0.0, %v2326
    %v2341 = vsel %vm1954, 0.0, %v2328
    %v2342 = vsel %vm1954, 0.0, %v2330
    %2343 = vrot.lane.b32.xlu0 %v2315, 126
    %v2344 = vpop.permute.xlu0 %2343
    %2345 = vrot.lane.b32.xlu0 %v2301, 126
    %v2346 = vpop.permute.xlu0 %2345
    %2347 = vrot.lane.b32.xlu0 %v2303, 126
    %v2348 = vpop.permute.xlu0 %2347
    %2349 = vrot.lane.b32.xlu0 %v2316, 126
    %v2350 = vpop.permute.xlu0 %2349
    %2351 = vrot.lane.b32.xlu0 %v2306, 126
    %v2352 = vpop.permute.xlu0 %2351
    %2353 = vrot.lane.b32.xlu0 %v2308, 126
    %v2354 = vpop.permute.xlu0 %2353
    %v2361 = vsel %vm1979, %v2344, 0.0
    %v2362 = vsel %vm1979, %v2346, 0.0
    %v2363 = vsel %vm1979, %v2348, 0.0
    %v2364 = vsel %vm1979, %v2350, 0.0
    %v2365 = vsel %vm1979, %v2352, 0.0
    %v2366 = vsel %vm1979, %v2354, 0.0
    %2367 = vrot.lane.b32.xlu0 %v1819, 2
    %v2368 = vpop.permute.xlu0 %2367
    %2369 = vrot.lane.b32.xlu0 %v1820, 2
    %v2370 = vpop.permute.xlu0 %2369
    %2371 = vrot.lane.b32.xlu0 %v1821, 2
    %v2372 = vpop.permute.xlu0 %2371
    %2373 = vrot.lane.b32.xlu0 %v1822, 2
    %v2374 = vpop.permute.xlu0 %2373
    %2375 = vrot.lane.b32.xlu0 %v1823, 2
    %v2376 = vpop.permute.xlu0 %2375
    %2377 = vrot.lane.b32.xlu0 %v1824, 2
    %v2378 = vpop.permute.xlu0 %2377
    %v2385 = vsel %vm1954, 0.0, %v2368
    %v2386 = vsel %vm1954, 0.0, %v2370
    %v2387 = vsel %vm1954, 0.0, %v2372
    %v2388 = vsel %vm1954, 0.0, %v2374
    %v2389 = vsel %vm1954, 0.0, %v2376
    %v2390 = vsel %vm1954, 0.0, %v2378
    %2391 = vrot.lane.b32.xlu0 %v1819, 126
    %v2392 = vpop.permute.xlu0 %2391
    %2393 = vrot.lane.b32.xlu0 %v1820, 126
    %v2394 = vpop.permute.xlu0 %2393
    %2395 = vrot.lane.b32.xlu0 %v1821, 126
    %v2396 = vpop.permute.xlu0 %2395
    %2397 = vrot.lane.b32.xlu0 %v1822, 126
    %v2398 = vpop.permute.xlu0 %2397
    %2399 = vrot.lane.b32.xlu0 %v1823, 126
    %v2400 = vpop.permute.xlu0 %2399
    %2401 = vrot.lane.b32.xlu0 %v1824, 126
    %v2402 = vpop.permute.xlu0 %2401
    %v2409 = vsel %vm1979, %v2392, 0.0
    %v2410 = vsel %vm1979, %v2394, 0.0
    %v2411 = vsel %vm1979, %v2396, 0.0
    %v2412 = vsel %vm1979, %v2398, 0.0
    %v2413 = vsel %vm1979, %v2400, 0.0
    %v2414 = vsel %vm1979, %v2402, 0.0
    %v2415 = vrot.slane %v1819, 2
    %v2416 = vrot.slane %v1820, 2
    %v2417 = vsel %vm2034, %v2415, %v2416
    %v2418 = vrot.slane %v1821, 2
    %v2419 = vsel %vm2034, %v2416, %v2418
    %v2420 = vrot.slane %v1822, 2
    %v2421 = vrot.slane %v1823, 2
    %v2422 = vsel %vm2034, %v2420, %v2421
    %v2423 = vrot.slane %v1824, 2
    %v2424 = vsel %vm2034, %v2421, %v2423
    %v2431 = vsel %vm1915, %v2418, 0.0
    %v2432 = vsel %vm1915, %v2423, 0.0
    %2435 = vrot.lane.b32.xlu0 %v2417, 2
    %v2436 = vpop.permute.xlu0 %2435
    %2437 = vrot.lane.b32.xlu0 %v2419, 2
    %v2438 = vpop.permute.xlu0 %2437
    %2439 = vrot.lane.b32.xlu0 %v2431, 2
    %v2440 = vpop.permute.xlu0 %2439
    %2441 = vrot.lane.b32.xlu0 %v2422, 2
    %v2442 = vpop.permute.xlu0 %2441
    %2443 = vrot.lane.b32.xlu0 %v2424, 2
    %v2444 = vpop.permute.xlu0 %2443
    %2445 = vrot.lane.b32.xlu0 %v2432, 2
    %v2446 = vpop.permute.xlu0 %2445
    %v2453 = vsel %vm1954, 0.0, %v2436
    %v2454 = vsel %vm1954, 0.0, %v2438
    %v2455 = vsel %vm1954, 0.0, %v2440
    %v2456 = vsel %vm1954, 0.0, %v2442
    %v2457 = vsel %vm1954, 0.0, %v2444
    %v2458 = vsel %vm1954, 0.0, %v2446
    %2459 = vrot.lane.b32.xlu0 %v2417, 126
    %v2460 = vpop.permute.xlu0 %2459
    %2461 = vrot.lane.b32.xlu0 %v2419, 126
    %v2462 = vpop.permute.xlu0 %2461
    %2463 = vrot.lane.b32.xlu0 %v2431, 126
    %v2464 = vpop.permute.xlu0 %2463
    %2465 = vrot.lane.b32.xlu0 %v2422, 126
    %v2466 = vpop.permute.xlu0 %2465
    %2467 = vrot.lane.b32.xlu0 %v2424, 126
    %v2468 = vpop.permute.xlu0 %2467
    %2469 = vrot.lane.b32.xlu0 %v2432, 126
    %v2470 = vpop.permute.xlu0 %2469
    %v2477 = vsel %vm1979, %v2460, 0.0
    %v2478 = vsel %vm1979, %v2462, 0.0
    %v2479 = vsel %vm1979, %v2464, 0.0
    %v2480 = vsel %vm1979, %v2466, 0.0
    %v2481 = vsel %vm1979, %v2468, 0.0
    %v2482 = vsel %vm1979, %v2470, 0.0
    %vm2483 = vcmp.le.s32.totalorder %v722, 12
    %vm2484 = vcmp.le.s32.totalorder %v723, 12
    %vm2485 = vcmp.le.s32.totalorder %v724, 12
    %vm2486 = vmand %vm728, %vm2483
    %vm2487 = vmand %vm729, %vm2484
    %vm2488 = vmand %vm730, %vm2485
    %vm2489 = vmand %vm2486, %vm737
    %vm2490 = vmand %vm2487, %vm737
    %vm2491 = vmand %vm2488, %vm737
    %vm2492 = vcmp.le.s32.totalorder %v727, 12
    %vm2493 = vmand %vm2489, %vm2492
    %vm2494 = vmand %vm2490, %vm2492
    %vm2495 = vmand %vm2491, %vm2492
    %v2496 = vstv %s1906
    %v2497 = vstv %s1825
    %v2498 = vmul.f32 %v2497, %v1955
    %v2499 = vmul.f32 %v2497, %v1956
    %v2500 = vmul.f32 %v2497, %v1957
    %v2501 = vmul.f32 %v2497, %v1958
    %v2502 = vmul.f32 %v2497, %v1959
    %v2503 = vmul.f32 %v2497, %v1960
    %v2504 = vstv %s1826
    %v2505 = vmul.f32 %v2504, %v1932
    %v2506 = vmul.f32 %v2504, %v1918
    %v2507 = vmul.f32 %v2504, %v1920
    %v2508 = vmul.f32 %v2504, %v1933
    %v2509 = vmul.f32 %v2504, %v1923
    %v2510 = vmul.f32 %v2504, %v1925
    %v2511 = vstv %s1827
    %v2512 = vmul.f32 %v2511, %v1980
    %v2513 = vmul.f32 %v2511, %v1981
    %v2514 = vmul.f32 %v2511, %v1982
    %v2515 = vmul.f32 %v2511, %v1983
    %v2516 = vmul.f32 %v2511, %v1984
    %v2517 = vmul.f32 %v2511, %v1985
    %v2518 = vstv %s1828
    %v2519 = vmul.f32 %v2518, %v2004
    %v2520 = vmul.f32 %v2518, %v2005
    %v2521 = vmul.f32 %v2518, %v2006
    %v2522 = vmul.f32 %v2518, %v2007
    %v2523 = vmul.f32 %v2518, %v2008
    %v2524 = vmul.f32 %v2518, %v2009
    %v2525 = vstv %s1829
    %v2526 = vmul.f32 %v2525, %v1103
    %v2527 = vmul.f32 %v2525, %v1104
    %v2528 = vmul.f32 %v2525, %v1105
    %v2529 = vmul.f32 %v2525, %v1106
    %v2530 = vmul.f32 %v2525, %v1107
    %v2531 = vmul.f32 %v2525, %v1108
    %v2532 = vstv %s1830
    %v2533 = vmul.f32 %v2532, %v2028
    %v2534 = vmul.f32 %v2532, %v2029
    %v2535 = vmul.f32 %v2532, %v2030
    %v2536 = vmul.f32 %v2532, %v2031
    %v2537 = vmul.f32 %v2532, %v2032
    %v2538 = vmul.f32 %v2532, %v2033
    %v2539 = vstv %s1831
    %v2540 = vmul.f32 %v2539, %v2073
    %v2541 = vmul.f32 %v2539, %v2074
    %v2542 = vmul.f32 %v2539, %v2075
    %v2543 = vmul.f32 %v2539, %v2076
    %v2544 = vmul.f32 %v2539, %v2077
    %v2545 = vmul.f32 %v2539, %v2078
    %v2546 = vstv %s1832
    %v2547 = vmul.f32 %v2546, %v2037
    %v2548 = vmul.f32 %v2546, %v2039
    %v2549 = vmul.f32 %v2546, %v2051
    %v2550 = vmul.f32 %v2546, %v2042
    %v2551 = vmul.f32 %v2546, %v2044
    %v2552 = vmul.f32 %v2546, %v2052
    %v2553 = vstv %s1833
    %v2554 = vmul.f32 %v2553, %v2097
    %v2555 = vmul.f32 %v2553, %v2098
    %v2556 = vmul.f32 %v2553, %v2099
    %v2557 = vmul.f32 %v2553, %v2100
    %v2558 = vmul.f32 %v2553, %v2101
    %v2559 = vmul.f32 %v2553, %v2102
    %v2560 = vstv %s1834
    %v2561 = vmul.f32 %v2560, %v2147
    %v2562 = vmul.f32 %v2560, %v2148
    %v2563 = vmul.f32 %v2560, %v2149
    %v2564 = vmul.f32 %v2560, %v2150
    %v2565 = vmul.f32 %v2560, %v2151
    %v2566 = vmul.f32 %v2560, %v2152
    %v2567 = vstv %s1835
    %v2568 = vmul.f32 %v2567, %v2125
    %v2569 = vmul.f32 %v2567, %v2111
    %v2570 = vmul.f32 %v2567, %v2113
    %v2571 = vmul.f32 %v2567, %v2126
    %v2572 = vmul.f32 %v2567, %v2116
    %v2573 = vmul.f32 %v2567, %v2118
    %v2574 = vstv %s1836
    %v2575 = vmul.f32 %v2574, %v2171
    %v2576 = vmul.f32 %v2574, %v2172
    %v2577 = vmul.f32 %v2574, %v2173
    %v2578 = vmul.f32 %v2574, %v2174
    %v2579 = vmul.f32 %v2574, %v2175
    %v2580 = vmul.f32 %v2574, %v2176
    %v2581 = vstv %s1837
    %v2582 = vmul.f32 %v2581, %v2195
    %v2583 = vmul.f32 %v2581, %v2196
    %v2584 = vmul.f32 %v2581, %v2197
    %v2585 = vmul.f32 %v2581, %v2198
    %v2586 = vmul.f32 %v2581, %v2199
    %v2587 = vmul.f32 %v2581, %v2200
    %v2588 = vstv %s1838
    %v2589 = vmul.f32 %v2588, %v1461
    %v2590 = vmul.f32 %v2588, %v1462
    %v2591 = vmul.f32 %v2588, %v1463
    %v2592 = vmul.f32 %v2588, %v1464
    %v2593 = vmul.f32 %v2588, %v1465
    %v2594 = vmul.f32 %v2588, %v1466
    %v2595 = vstv %s1839
    %v2596 = vmul.f32 %v2595, %v2219
    %v2597 = vmul.f32 %v2595, %v2220
    %v2598 = vmul.f32 %v2595, %v2221
    %v2599 = vmul.f32 %v2595, %v2222
    %v2600 = vmul.f32 %v2595, %v2223
    %v2601 = vmul.f32 %v2595, %v2224
    %v2602 = vstv %s1840
    %v2603 = vmul.f32 %v2602, %v2263
    %v2604 = vmul.f32 %v2602, %v2264
    %v2605 = vmul.f32 %v2602, %v2265
    %v2606 = vmul.f32 %v2602, %v2266
    %v2607 = vmul.f32 %v2602, %v2267
    %v2608 = vmul.f32 %v2602, %v2268
    %v2609 = vstv %s1841
    %v2610 = vmul.f32 %v2609, %v2227
    %v2611 = vmul.f32 %v2609, %v2229
    %v2612 = vmul.f32 %v2609, %v2241
    %v2613 = vmul.f32 %v2609, %v2232
    %v2614 = vmul.f32 %v2609, %v2234
    %v2615 = vmul.f32 %v2609, %v2242
    %v2616 = vstv %s1842
    %v2617 = vmul.f32 %v2616, %v2287
    %v2618 = vmul.f32 %v2616, %v2288
    %v2619 = vmul.f32 %v2616, %v2289
    %v2620 = vmul.f32 %v2616, %v2290
    %v2621 = vmul.f32 %v2616, %v2291
    %v2622 = vmul.f32 %v2616, %v2292
    %v2623 = vstv %s1843
    %v2624 = vmul.f32 %v2623, %v2337
    %v2625 = vmul.f32 %v2623, %v2338
    %v2626 = vmul.f32 %v2623, %v2339
    %v2627 = vmul.f32 %v2623, %v2340
    %v2628 = vmul.f32 %v2623, %v2341
    %v2629 = vmul.f32 %v2623, %v2342
    %v2630 = vstv %s1844
    %v2631 = vmul.f32 %v2630, %v2315
    %v2632 = vmul.f32 %v2630, %v2301
    %v2633 = vmul.f32 %v2630, %v2303
    %v2634 = vmul.f32 %v2630, %v2316
    %v2635 = vmul.f32 %v2630, %v2306
    %v2636 = vmul.f32 %v2630, %v2308
    %v2637 = vstv %s1845
    %v2638 = vmul.f32 %v2637, %v2361
    %v2639 = vmul.f32 %v2637, %v2362
    %v2640 = vmul.f32 %v2637, %v2363
    %v2641 = vmul.f32 %v2637, %v2364
    %v2642 = vmul.f32 %v2637, %v2365
    %v2643 = vmul.f32 %v2637, %v2366
    %v2644 = vstv %s1846
    %v2645 = vmul.f32 %v2644, %v2385
    %v2646 = vmul.f32 %v2644, %v2386
    %v2647 = vmul.f32 %v2644, %v2387
    %v2648 = vmul.f32 %v2644, %v2388
    %v2649 = vmul.f32 %v2644, %v2389
    %v2650 = vmul.f32 %v2644, %v2390
    %v2651 = vstv %s1847
    %v2652 = vmul.f32 %v2651, %v1819
    %v2653 = vmul.f32 %v2651, %v1820
    %v2654 = vmul.f32 %v2651, %v1821
    %v2655 = vmul.f32 %v2651, %v1822
    %v2656 = vmul.f32 %v2651, %v1823
    %v2657 = vmul.f32 %v2651, %v1824
    %v2658 = vstv %s1848
    %v2659 = vmul.f32 %v2658, %v2409
    %v2660 = vmul.f32 %v2658, %v2410
    %v2661 = vmul.f32 %v2658, %v2411
    %v2662 = vmul.f32 %v2658, %v2412
    %v2663 = vmul.f32 %v2658, %v2413
    %v2664 = vmul.f32 %v2658, %v2414
    %v2665 = vstv %s1849
    %v2666 = vmul.f32 %v2665, %v2453
    %v2667 = vmul.f32 %v2665, %v2454
    %v2668 = vmul.f32 %v2665, %v2455
    %v2669 = vmul.f32 %v2665, %v2456
    %v2670 = vmul.f32 %v2665, %v2457
    %v2671 = vmul.f32 %v2665, %v2458
    %v2672 = vstv %s1850
    %v2673 = vmul.f32 %v2672, %v2417
    %v2674 = vmul.f32 %v2672, %v2419
    %v2675 = vmul.f32 %v2672, %v2431
    %v2676 = vmul.f32 %v2672, %v2422
    %v2677 = vmul.f32 %v2672, %v2424
    %v2678 = vmul.f32 %v2672, %v2432
    %v2679 = vstv %s1851
    %v2680 = vmul.f32 %v2679, %v2477
    %v2681 = vmul.f32 %v2679, %v2478
    %v2682 = vmul.f32 %v2679, %v2479
    %v2683 = vmul.f32 %v2679, %v2480
    %v2684 = vmul.f32 %v2679, %v2481
    %v2685 = vmul.f32 %v2679, %v2482
    %v2686 = vadd.f32 %v2496, %v2498
    %v2687 = vadd.f32 %v2496, %v2499
    %v2688 = vadd.f32 %v2496, %v2500
    %v2689 = vadd.f32 %v2496, %v2501
    %v2690 = vadd.f32 %v2496, %v2502
    %v2691 = vadd.f32 %v2496, %v2503
    %v2692 = vadd.f32 %v2505, %v2512
    %v2693 = vadd.f32 %v2506, %v2513
    %v2694 = vadd.f32 %v2507, %v2514
    %v2695 = vadd.f32 %v2508, %v2515
    %v2696 = vadd.f32 %v2509, %v2516
    %v2697 = vadd.f32 %v2510, %v2517
    %v2698 = vadd.f32 %v2519, %v2526
    %v2699 = vadd.f32 %v2520, %v2527
    %v2700 = vadd.f32 %v2521, %v2528
    %v2701 = vadd.f32 %v2522, %v2529
    %v2702 = vadd.f32 %v2523, %v2530
    %v2703 = vadd.f32 %v2524, %v2531
    %v2704 = vadd.f32 %v2533, %v2540
    %v2705 = vadd.f32 %v2534, %v2541
    %v2706 = vadd.f32 %v2535, %v2542
    %v2707 = vadd.f32 %v2536, %v2543
    %v2708 = vadd.f32 %v2537, %v2544
    %v2709 = vadd.f32 %v2538, %v2545
    %v2710 = vadd.f32 %v2547, %v2554
    %v2711 = vadd.f32 %v2548, %v2555
    %v2712 = vadd.f32 %v2549, %v2556
    %v2713 = vadd.f32 %v2550, %v2557
    %v2714 = vadd.f32 %v2551, %v2558
    %v2715 = vadd.f32 %v2552, %v2559
    %v2716 = vadd.f32 %v2561, %v2568
    %v2717 = vadd.f32 %v2562, %v2569
    %v2718 = vadd.f32 %v2563, %v2570
    %v2719 = vadd.f32 %v2564, %v2571
    %v2720 = vadd.f32 %v2565, %v2572
    %v2721 = vadd.f32 %v2566, %v2573
    %v2722 = vadd.f32 %v2575, %v2582
    %v2723 = vadd.f32 %v2576, %v2583
    %v2724 = vadd.f32 %v2577, %v2584
    %v2725 = vadd.f32 %v2578, %v2585
    %v2726 = vadd.f32 %v2579, %v2586
    %v2727 = vadd.f32 %v2580, %v2587
    %v2728 = vadd.f32 %v2589, %v2596
    %v2729 = vadd.f32 %v2590, %v2597
    %v2730 = vadd.f32 %v2591, %v2598
    %v2731 = vadd.f32 %v2592, %v2599
    %v2732 = vadd.f32 %v2593, %v2600
    %v2733 = vadd.f32 %v2594, %v2601
    %v2734 = vadd.f32 %v2603, %v2610
    %v2735 = vadd.f32 %v2604, %v2611
    %v2736 = vadd.f32 %v2605, %v2612
    %v2737 = vadd.f32 %v2606, %v2613
    %v2738 = vadd.f32 %v2607, %v2614
    %v2739 = vadd.f32 %v2608, %v2615
    %v2740 = vadd.f32 %v2617, %v2624
    %v2741 = vadd.f32 %v2618, %v2625
    %v2742 = vadd.f32 %v2619, %v2626
    %v2743 = vadd.f32 %v2620, %v2627
    %v2744 = vadd.f32 %v2621, %v2628
    %v2745 = vadd.f32 %v2622, %v2629
    %v2746 = vadd.f32 %v2631, %v2638
    %v2747 = vadd.f32 %v2632, %v2639
    %v2748 = vadd.f32 %v2633, %v2640
    %v2749 = vadd.f32 %v2634, %v2641
    %v2750 = vadd.f32 %v2635, %v2642
    %v2751 = vadd.f32 %v2636, %v2643
    %v2752 = vadd.f32 %v2645, %v2652
    %v2753 = vadd.f32 %v2646, %v2653
    %v2754 = vadd.f32 %v2647, %v2654
    %v2755 = vadd.f32 %v2648, %v2655
    %v2756 = vadd.f32 %v2649, %v2656
    %v2757 = vadd.f32 %v2650, %v2657
    %v2758 = vadd.f32 %v2659, %v2666
    %v2759 = vadd.f32 %v2660, %v2667
    %v2760 = vadd.f32 %v2661, %v2668
    %v2761 = vadd.f32 %v2662, %v2669
    %v2762 = vadd.f32 %v2663, %v2670
    %v2763 = vadd.f32 %v2664, %v2671
    %v2764 = vadd.f32 %v2673, %v2680
    %v2765 = vadd.f32 %v2674, %v2681
    %v2766 = vadd.f32 %v2675, %v2682
    %v2767 = vadd.f32 %v2676, %v2683
    %v2768 = vadd.f32 %v2677, %v2684
    %v2769 = vadd.f32 %v2678, %v2685
    %v2770 = vadd.f32 %v2686, %v2692
    %v2771 = vadd.f32 %v2687, %v2693
    %v2772 = vadd.f32 %v2688, %v2694
    %v2773 = vadd.f32 %v2689, %v2695
    %v2774 = vadd.f32 %v2690, %v2696
    %v2775 = vadd.f32 %v2691, %v2697
    %v2776 = vadd.f32 %v2698, %v2704
    %v2777 = vadd.f32 %v2699, %v2705
    %v2778 = vadd.f32 %v2700, %v2706
    %v2779 = vadd.f32 %v2701, %v2707
    %v2780 = vadd.f32 %v2702, %v2708
    %v2781 = vadd.f32 %v2703, %v2709
    %v2782 = vadd.f32 %v2710, %v2716
    %v2783 = vadd.f32 %v2711, %v2717
    %v2784 = vadd.f32 %v2712, %v2718
    %v2785 = vadd.f32 %v2713, %v2719
    %v2786 = vadd.f32 %v2714, %v2720
    %v2787 = vadd.f32 %v2715, %v2721
    %v2788 = vadd.f32 %v2722, %v2728
    %v2789 = vadd.f32 %v2723, %v2729
    %v2790 = vadd.f32 %v2724, %v2730
    %v2791 = vadd.f32 %v2725, %v2731
    %v2792 = vadd.f32 %v2726, %v2732
    %v2793 = vadd.f32 %v2727, %v2733
    %v2794 = vadd.f32 %v2734, %v2740
    %v2795 = vadd.f32 %v2735, %v2741
    %v2796 = vadd.f32 %v2736, %v2742
    %v2797 = vadd.f32 %v2737, %v2743
    %v2798 = vadd.f32 %v2738, %v2744
    %v2799 = vadd.f32 %v2739, %v2745
    %v2800 = vadd.f32 %v2746, %v2752
    %v2801 = vadd.f32 %v2747, %v2753
    %v2802 = vadd.f32 %v2748, %v2754
    %v2803 = vadd.f32 %v2749, %v2755
    %v2804 = vadd.f32 %v2750, %v2756
    %v2805 = vadd.f32 %v2751, %v2757
    %v2806 = vadd.f32 %v2758, %v2764
    %v2807 = vadd.f32 %v2759, %v2765
    %v2808 = vadd.f32 %v2760, %v2766
    %v2809 = vadd.f32 %v2761, %v2767
    %v2810 = vadd.f32 %v2762, %v2768
    %v2811 = vadd.f32 %v2763, %v2769
    %v2812 = vadd.f32 %v2770, %v2776
    %v2813 = vadd.f32 %v2771, %v2777
    %v2814 = vadd.f32 %v2772, %v2778
    %v2815 = vadd.f32 %v2773, %v2779
    %v2816 = vadd.f32 %v2774, %v2780
    %v2817 = vadd.f32 %v2775, %v2781
    %v2818 = vadd.f32 %v2782, %v2788
    %v2819 = vadd.f32 %v2783, %v2789
    %v2820 = vadd.f32 %v2784, %v2790
    %v2821 = vadd.f32 %v2785, %v2791
    %v2822 = vadd.f32 %v2786, %v2792
    %v2823 = vadd.f32 %v2787, %v2793
    %v2824 = vadd.f32 %v2794, %v2800
    %v2825 = vadd.f32 %v2795, %v2801
    %v2826 = vadd.f32 %v2796, %v2802
    %v2827 = vadd.f32 %v2797, %v2803
    %v2828 = vadd.f32 %v2798, %v2804
    %v2829 = vadd.f32 %v2799, %v2805
    %v2830 = vadd.f32 %v2812, %v2818
    %v2831 = vadd.f32 %v2813, %v2819
    %v2832 = vadd.f32 %v2814, %v2820
    %v2833 = vadd.f32 %v2815, %v2821
    %v2834 = vadd.f32 %v2816, %v2822
    %v2835 = vadd.f32 %v2817, %v2823
    %v2836 = vadd.f32 %v2824, %v2806
    %v2837 = vadd.f32 %v2825, %v2807
    %v2838 = vadd.f32 %v2826, %v2808
    %v2839 = vadd.f32 %v2827, %v2809
    %v2840 = vadd.f32 %v2828, %v2810
    %v2841 = vadd.f32 %v2829, %v2811
    %v2842 = vadd.f32 %v2830, %v2836
    %v2843 = vadd.f32 %v2831, %v2837
    %v2844 = vadd.f32 %v2832, %v2838
    %v2845 = vadd.f32 %v2833, %v2839
    %v2846 = vadd.f32 %v2834, %v2840
    %v2847 = vadd.f32 %v2835, %v2841
    %v2848 = vsel %vm2493, 1, 0
    %v2849 = vsel %vm2494, 1, 0
    %v2850 = vsel %vm2495, 1, 0
    %vm2851 = vcmp.eq.s32.totalorder %v2848, 1
    %vm2852 = vcmp.eq.s32.totalorder %v2849, 1
    %vm2853 = vcmp.eq.s32.totalorder %v2850, 1
    %v2854 = vsel %vm2851, %v2842, 0.0
    %v2855 = vsel %vm2852, %v2843, 0.0
    %v2856 = vsel %vm2853, %v2844, 0.0
    %v2857 = vsel %vm2851, %v2845, 0.0
    %v2858 = vsel %vm2852, %v2846, 0.0
    %v2859 = vsel %vm2853, %v2847, 0.0
    %v2860 = vstv %s1907
    %v2861 = vstv %s1852
    %v2862 = vmul.f32 %v2861, %v1955
    %v2863 = vmul.f32 %v2861, %v1956
    %v2864 = vmul.f32 %v2861, %v1957
    %v2865 = vmul.f32 %v2861, %v1958
    %v2866 = vmul.f32 %v2861, %v1959
    %v2867 = vmul.f32 %v2861, %v1960
    %v2868 = vstv %s1853
    %v2869 = vmul.f32 %v2868, %v1932
    %v2870 = vmul.f32 %v2868, %v1918
    %v2871 = vmul.f32 %v2868, %v1920
    %v2872 = vmul.f32 %v2868, %v1933
    %v2873 = vmul.f32 %v2868, %v1923
    %v2874 = vmul.f32 %v2868, %v1925
    %v2875 = vstv %s1854
    %v2876 = vmul.f32 %v2875, %v1980
    %v2877 = vmul.f32 %v2875, %v1981
    %v2878 = vmul.f32 %v2875, %v1982
    %v2879 = vmul.f32 %v2875, %v1983
    %v2880 = vmul.f32 %v2875, %v1984
    %v2881 = vmul.f32 %v2875, %v1985
    %v2882 = vstv %s1855
    %v2883 = vmul.f32 %v2882, %v2004
    %v2884 = vmul.f32 %v2882, %v2005
    %v2885 = vmul.f32 %v2882, %v2006
    %v2886 = vmul.f32 %v2882, %v2007
    %v2887 = vmul.f32 %v2882, %v2008
    %v2888 = vmul.f32 %v2882, %v2009
    %v2889 = vstv %s1856
    %v2890 = vmul.f32 %v2889, %v1103
    %v2891 = vmul.f32 %v2889, %v1104
    %v2892 = vmul.f32 %v2889, %v1105
    %v2893 = vmul.f32 %v2889, %v1106
    %v2894 = vmul.f32 %v2889, %v1107
    %v2895 = vmul.f32 %v2889, %v1108
    %v2896 = vstv %s1857
    %v2897 = vmul.f32 %v2896, %v2028
    %v2898 = vmul.f32 %v2896, %v2029
    %v2899 = vmul.f32 %v2896, %v2030
    %v2900 = vmul.f32 %v2896, %v2031
    %v2901 = vmul.f32 %v2896, %v2032
    %v2902 = vmul.f32 %v2896, %v2033
    %v2903 = vstv %s1858
    %v2904 = vmul.f32 %v2903, %v2073
    %v2905 = vmul.f32 %v2903, %v2074
    %v2906 = vmul.f32 %v2903, %v2075
    %v2907 = vmul.f32 %v2903, %v2076
    %v2908 = vmul.f32 %v2903, %v2077
    %v2909 = vmul.f32 %v2903, %v2078
    %v2910 = vstv %s1859
    %v2911 = vmul.f32 %v2910, %v2037
    %v2912 = vmul.f32 %v2910, %v2039
    %v2913 = vmul.f32 %v2910, %v2051
    %v2914 = vmul.f32 %v2910, %v2042
    %v2915 = vmul.f32 %v2910, %v2044
    %v2916 = vmul.f32 %v2910, %v2052
    %v2917 = vstv %s1860
    %v2918 = vmul.f32 %v2917, %v2097
    %v2919 = vmul.f32 %v2917, %v2098
    %v2920 = vmul.f32 %v2917, %v2099
    %v2921 = vmul.f32 %v2917, %v2100
    %v2922 = vmul.f32 %v2917, %v2101
    %v2923 = vmul.f32 %v2917, %v2102
    %v2924 = vstv %s1861
    %v2925 = vmul.f32 %v2924, %v2147
    %v2926 = vmul.f32 %v2924, %v2148
    %v2927 = vmul.f32 %v2924, %v2149
    %v2928 = vmul.f32 %v2924, %v2150
    %v2929 = vmul.f32 %v2924, %v2151
    %v2930 = vmul.f32 %v2924, %v2152
    %v2931 = vstv %s1862
    %v2932 = vmul.f32 %v2931, %v2125
    %v2933 = vmul.f32 %v2931, %v2111
    %v2934 = vmul.f32 %v2931, %v2113
    %v2935 = vmul.f32 %v2931, %v2126
    %v2936 = vmul.f32 %v2931, %v2116
    %v2937 = vmul.f32 %v2931, %v2118
    %v2938 = vstv %s1863
    %v2939 = vmul.f32 %v2938, %v2171
    %v2940 = vmul.f32 %v2938, %v2172
    %v2941 = vmul.f32 %v2938, %v2173
    %v2942 = vmul.f32 %v2938, %v2174
    %v2943 = vmul.f32 %v2938, %v2175
    %v2944 = vmul.f32 %v2938, %v2176
    %v2945 = vstv %s1864
    %v2946 = vmul.f32 %v2945, %v2195
    %v2947 = vmul.f32 %v2945, %v2196
    %v2948 = vmul.f32 %v2945, %v2197
    %v2949 = vmul.f32 %v2945, %v2198
    %v2950 = vmul.f32 %v2945, %v2199
    %v2951 = vmul.f32 %v2945, %v2200
    %v2952 = vstv %s1865
    %v2953 = vmul.f32 %v2952, %v1461
    %v2954 = vmul.f32 %v2952, %v1462
    %v2955 = vmul.f32 %v2952, %v1463
    %v2956 = vmul.f32 %v2952, %v1464
    %v2957 = vmul.f32 %v2952, %v1465
    %v2958 = vmul.f32 %v2952, %v1466
    %v2959 = vstv %s1866
    %v2960 = vmul.f32 %v2959, %v2219
    %v2961 = vmul.f32 %v2959, %v2220
    %v2962 = vmul.f32 %v2959, %v2221
    %v2963 = vmul.f32 %v2959, %v2222
    %v2964 = vmul.f32 %v2959, %v2223
    %v2965 = vmul.f32 %v2959, %v2224
    %v2966 = vstv %s1867
    %v2967 = vmul.f32 %v2966, %v2263
    %v2968 = vmul.f32 %v2966, %v2264
    %v2969 = vmul.f32 %v2966, %v2265
    %v2970 = vmul.f32 %v2966, %v2266
    %v2971 = vmul.f32 %v2966, %v2267
    %v2972 = vmul.f32 %v2966, %v2268
    %v2973 = vstv %s1868
    %v2974 = vmul.f32 %v2973, %v2227
    %v2975 = vmul.f32 %v2973, %v2229
    %v2976 = vmul.f32 %v2973, %v2241
    %v2977 = vmul.f32 %v2973, %v2232
    %v2978 = vmul.f32 %v2973, %v2234
    %v2979 = vmul.f32 %v2973, %v2242
    %v2980 = vstv %s1869
    %v2981 = vmul.f32 %v2980, %v2287
    %v2982 = vmul.f32 %v2980, %v2288
    %v2983 = vmul.f32 %v2980, %v2289
    %v2984 = vmul.f32 %v2980, %v2290
    %v2985 = vmul.f32 %v2980, %v2291
    %v2986 = vmul.f32 %v2980, %v2292
    %v2987 = vstv %s1870
    %v2988 = vmul.f32 %v2987, %v2337
    %v2989 = vmul.f32 %v2987, %v2338
    %v2990 = vmul.f32 %v2987, %v2339
    %v2991 = vmul.f32 %v2987, %v2340
    %v2992 = vmul.f32 %v2987, %v2341
    %v2993 = vmul.f32 %v2987, %v2342
    %v2994 = vstv %s1871
    %v2995 = vmul.f32 %v2994, %v2315
    %v2996 = vmul.f32 %v2994, %v2301
    %v2997 = vmul.f32 %v2994, %v2303
    %v2998 = vmul.f32 %v2994, %v2316
    %v2999 = vmul.f32 %v2994, %v2306
    %v3000 = vmul.f32 %v2994, %v2308
    %v3001 = vstv %s1872
    %v3002 = vmul.f32 %v3001, %v2361
    %v3003 = vmul.f32 %v3001, %v2362
    %v3004 = vmul.f32 %v3001, %v2363
    %v3005 = vmul.f32 %v3001, %v2364
    %v3006 = vmul.f32 %v3001, %v2365
    %v3007 = vmul.f32 %v3001, %v2366
    %v3008 = vstv %s1873
    %v3009 = vmul.f32 %v3008, %v2385
    %v3010 = vmul.f32 %v3008, %v2386
    %v3011 = vmul.f32 %v3008, %v2387
    %v3012 = vmul.f32 %v3008, %v2388
    %v3013 = vmul.f32 %v3008, %v2389
    %v3014 = vmul.f32 %v3008, %v2390
    %v3015 = vstv %s1874
    %v3016 = vmul.f32 %v3015, %v1819
    %v3017 = vmul.f32 %v3015, %v1820
    %v3018 = vmul.f32 %v3015, %v1821
    %v3019 = vmul.f32 %v3015, %v1822
    %v3020 = vmul.f32 %v3015, %v1823
    %v3021 = vmul.f32 %v3015, %v1824
    %v3022 = vstv %s1875
    %v3023 = vmul.f32 %v3022, %v2409
    %v3024 = vmul.f32 %v3022, %v2410
    %v3025 = vmul.f32 %v3022, %v2411
    %v3026 = vmul.f32 %v3022, %v2412
    %v3027 = vmul.f32 %v3022, %v2413
    %v3028 = vmul.f32 %v3022, %v2414
    %v3029 = vstv %s1876
    %v3030 = vmul.f32 %v3029, %v2453
    %v3031 = vmul.f32 %v3029, %v2454
    %v3032 = vmul.f32 %v3029, %v2455
    %v3033 = vmul.f32 %v3029, %v2456
    %v3034 = vmul.f32 %v3029, %v2457
    %v3035 = vmul.f32 %v3029, %v2458
    %v3036 = vstv %s1877
    %v3037 = vmul.f32 %v3036, %v2417
    %v3038 = vmul.f32 %v3036, %v2419
    %v3039 = vmul.f32 %v3036, %v2431
    %v3040 = vmul.f32 %v3036, %v2422
    %v3041 = vmul.f32 %v3036, %v2424
    %v3042 = vmul.f32 %v3036, %v2432
    %v3043 = vstv %s1878
    %v3044 = vmul.f32 %v3043, %v2477
    %v3045 = vmul.f32 %v3043, %v2478
    %v3046 = vmul.f32 %v3043, %v2479
    %v3047 = vmul.f32 %v3043, %v2480
    %v3048 = vmul.f32 %v3043, %v2481
    %v3049 = vmul.f32 %v3043, %v2482
    %v3050 = vadd.f32 %v2860, %v2862
    %v3051 = vadd.f32 %v2860, %v2863
    %v3052 = vadd.f32 %v2860, %v2864
    %v3053 = vadd.f32 %v2860, %v2865
    %v3054 = vadd.f32 %v2860, %v2866
    %v3055 = vadd.f32 %v2860, %v2867
    %v3056 = vadd.f32 %v2869, %v2876
    %v3057 = vadd.f32 %v2870, %v2877
    %v3058 = vadd.f32 %v2871, %v2878
    %v3059 = vadd.f32 %v2872, %v2879
    %v3060 = vadd.f32 %v2873, %v2880
    %v3061 = vadd.f32 %v2874, %v2881
    %v3062 = vadd.f32 %v2883, %v2890
    %v3063 = vadd.f32 %v2884, %v2891
    %v3064 = vadd.f32 %v2885, %v2892
    %v3065 = vadd.f32 %v2886, %v2893
    %v3066 = vadd.f32 %v2887, %v2894
    %v3067 = vadd.f32 %v2888, %v2895
    %v3068 = vadd.f32 %v2897, %v2904
    %v3069 = vadd.f32 %v2898, %v2905
    %v3070 = vadd.f32 %v2899, %v2906
    %v3071 = vadd.f32 %v2900, %v2907
    %v3072 = vadd.f32 %v2901, %v2908
    %v3073 = vadd.f32 %v2902, %v2909
    %v3074 = vadd.f32 %v2911, %v2918
    %v3075 = vadd.f32 %v2912, %v2919
    %v3076 = vadd.f32 %v2913, %v2920
    %v3077 = vadd.f32 %v2914, %v2921
    %v3078 = vadd.f32 %v2915, %v2922
    %v3079 = vadd.f32 %v2916, %v2923
    %v3080 = vadd.f32 %v2925, %v2932
    %v3081 = vadd.f32 %v2926, %v2933
    %v3082 = vadd.f32 %v2927, %v2934
    %v3083 = vadd.f32 %v2928, %v2935
    %v3084 = vadd.f32 %v2929, %v2936
    %v3085 = vadd.f32 %v2930, %v2937
    %v3086 = vadd.f32 %v2939, %v2946
    %v3087 = vadd.f32 %v2940, %v2947
    %v3088 = vadd.f32 %v2941, %v2948
    %v3089 = vadd.f32 %v2942, %v2949
    %v3090 = vadd.f32 %v2943, %v2950
    %v3091 = vadd.f32 %v2944, %v2951
    %v3092 = vadd.f32 %v2953, %v2960
    %v3093 = vadd.f32 %v2954, %v2961
    %v3094 = vadd.f32 %v2955, %v2962
    %v3095 = vadd.f32 %v2956, %v2963
    %v3096 = vadd.f32 %v2957, %v2964
    %v3097 = vadd.f32 %v2958, %v2965
    %v3098 = vadd.f32 %v2967, %v2974
    %v3099 = vadd.f32 %v2968, %v2975
    %v3100 = vadd.f32 %v2969, %v2976
    %v3101 = vadd.f32 %v2970, %v2977
    %v3102 = vadd.f32 %v2971, %v2978
    %v3103 = vadd.f32 %v2972, %v2979
    %v3104 = vadd.f32 %v2981, %v2988
    %v3105 = vadd.f32 %v2982, %v2989
    %v3106 = vadd.f32 %v2983, %v2990
    %v3107 = vadd.f32 %v2984, %v2991
    %v3108 = vadd.f32 %v2985, %v2992
    %v3109 = vadd.f32 %v2986, %v2993
    %v3110 = vadd.f32 %v2995, %v3002
    %v3111 = vadd.f32 %v2996, %v3003
    %v3112 = vadd.f32 %v2997, %v3004
    %v3113 = vadd.f32 %v2998, %v3005
    %v3114 = vadd.f32 %v2999, %v3006
    %v3115 = vadd.f32 %v3000, %v3007
    %v3116 = vadd.f32 %v3009, %v3016
    %v3117 = vadd.f32 %v3010, %v3017
    %v3118 = vadd.f32 %v3011, %v3018
    %v3119 = vadd.f32 %v3012, %v3019
    %v3120 = vadd.f32 %v3013, %v3020
    %v3121 = vadd.f32 %v3014, %v3021
    %v3122 = vadd.f32 %v3023, %v3030
    %v3123 = vadd.f32 %v3024, %v3031
    %v3124 = vadd.f32 %v3025, %v3032
    %v3125 = vadd.f32 %v3026, %v3033
    %v3126 = vadd.f32 %v3027, %v3034
    %v3127 = vadd.f32 %v3028, %v3035
    %v3128 = vadd.f32 %v3037, %v3044
    %v3129 = vadd.f32 %v3038, %v3045
    %v3130 = vadd.f32 %v3039, %v3046
    %v3131 = vadd.f32 %v3040, %v3047
    %v3132 = vadd.f32 %v3041, %v3048
    %v3133 = vadd.f32 %v3042, %v3049
    %v3134 = vadd.f32 %v3050, %v3056
    %v3135 = vadd.f32 %v3051, %v3057
    %v3136 = vadd.f32 %v3052, %v3058
    %v3137 = vadd.f32 %v3053, %v3059
    %v3138 = vadd.f32 %v3054, %v3060
    %v3139 = vadd.f32 %v3055, %v3061
    %v3140 = vadd.f32 %v3062, %v3068
    %v3141 = vadd.f32 %v3063, %v3069
    %v3142 = vadd.f32 %v3064, %v3070
    %v3143 = vadd.f32 %v3065, %v3071
    %v3144 = vadd.f32 %v3066, %v3072
    %v3145 = vadd.f32 %v3067, %v3073
    %v3146 = vadd.f32 %v3074, %v3080
    %v3147 = vadd.f32 %v3075, %v3081
    %v3148 = vadd.f32 %v3076, %v3082
    %v3149 = vadd.f32 %v3077, %v3083
    %v3150 = vadd.f32 %v3078, %v3084
    %v3151 = vadd.f32 %v3079, %v3085
    %v3152 = vadd.f32 %v3086, %v3092
    %v3153 = vadd.f32 %v3087, %v3093
    %v3154 = vadd.f32 %v3088, %v3094
    %v3155 = vadd.f32 %v3089, %v3095
    %v3156 = vadd.f32 %v3090, %v3096
    %v3157 = vadd.f32 %v3091, %v3097
    %v3158 = vadd.f32 %v3098, %v3104
    %v3159 = vadd.f32 %v3099, %v3105
    %v3160 = vadd.f32 %v3100, %v3106
    %v3161 = vadd.f32 %v3101, %v3107
    %v3162 = vadd.f32 %v3102, %v3108
    %v3163 = vadd.f32 %v3103, %v3109
    %v3164 = vadd.f32 %v3110, %v3116
    %v3165 = vadd.f32 %v3111, %v3117
    %v3166 = vadd.f32 %v3112, %v3118
    %v3167 = vadd.f32 %v3113, %v3119
    %v3168 = vadd.f32 %v3114, %v3120
    %v3169 = vadd.f32 %v3115, %v3121
    %v3170 = vadd.f32 %v3122, %v3128
    %v3171 = vadd.f32 %v3123, %v3129
    %v3172 = vadd.f32 %v3124, %v3130
    %v3173 = vadd.f32 %v3125, %v3131
    %v3174 = vadd.f32 %v3126, %v3132
    %v3175 = vadd.f32 %v3127, %v3133
    %v3176 = vadd.f32 %v3134, %v3140
    %v3177 = vadd.f32 %v3135, %v3141
    %v3178 = vadd.f32 %v3136, %v3142
    %v3179 = vadd.f32 %v3137, %v3143
    %v3180 = vadd.f32 %v3138, %v3144
    %v3181 = vadd.f32 %v3139, %v3145
    %v3182 = vadd.f32 %v3146, %v3152
    %v3183 = vadd.f32 %v3147, %v3153
    %v3184 = vadd.f32 %v3148, %v3154
    %v3185 = vadd.f32 %v3149, %v3155
    %v3186 = vadd.f32 %v3150, %v3156
    %v3187 = vadd.f32 %v3151, %v3157
    %v3188 = vadd.f32 %v3158, %v3164
    %v3189 = vadd.f32 %v3159, %v3165
    %v3190 = vadd.f32 %v3160, %v3166
    %v3191 = vadd.f32 %v3161, %v3167
    %v3192 = vadd.f32 %v3162, %v3168
    %v3193 = vadd.f32 %v3163, %v3169
    %v3194 = vadd.f32 %v3176, %v3182
    %v3195 = vadd.f32 %v3177, %v3183
    %v3196 = vadd.f32 %v3178, %v3184
    %v3197 = vadd.f32 %v3179, %v3185
    %v3198 = vadd.f32 %v3180, %v3186
    %v3199 = vadd.f32 %v3181, %v3187
    %v3200 = vadd.f32 %v3188, %v3170
    %v3201 = vadd.f32 %v3189, %v3171
    %v3202 = vadd.f32 %v3190, %v3172
    %v3203 = vadd.f32 %v3191, %v3173
    %v3204 = vadd.f32 %v3192, %v3174
    %v3205 = vadd.f32 %v3193, %v3175
    %v3206 = vadd.f32 %v3194, %v3200
    %v3207 = vadd.f32 %v3195, %v3201
    %v3208 = vadd.f32 %v3196, %v3202
    %v3209 = vadd.f32 %v3197, %v3203
    %v3210 = vadd.f32 %v3198, %v3204
    %v3211 = vadd.f32 %v3199, %v3205
    %v3212 = vsel %vm2851, %v3206, 0.0
    %v3213 = vsel %vm2852, %v3207, 0.0
    %v3214 = vsel %vm2853, %v3208, 0.0
    %v3215 = vsel %vm2851, %v3209, 0.0
    %v3216 = vsel %vm2852, %v3210, 0.0
    %v3217 = vsel %vm2853, %v3211, 0.0
    %v3218 = vstv %s1908
    %v3219 = vstv %s1879
    %v3220 = vmul.f32 %v3219, %v1955
    %v3221 = vmul.f32 %v3219, %v1956
    %v3222 = vmul.f32 %v3219, %v1957
    %v3223 = vmul.f32 %v3219, %v1958
    %v3224 = vmul.f32 %v3219, %v1959
    %v3225 = vmul.f32 %v3219, %v1960
    %v3226 = vstv %s1880
    %v3227 = vmul.f32 %v3226, %v1932
    %v3228 = vmul.f32 %v3226, %v1918
    %v3229 = vmul.f32 %v3226, %v1920
    %v3230 = vmul.f32 %v3226, %v1933
    %v3231 = vmul.f32 %v3226, %v1923
    %v3232 = vmul.f32 %v3226, %v1925
    %v3233 = vstv %s1881
    %v3234 = vmul.f32 %v3233, %v1980
    %v3235 = vmul.f32 %v3233, %v1981
    %v3236 = vmul.f32 %v3233, %v1982
    %v3237 = vmul.f32 %v3233, %v1983
    %v3238 = vmul.f32 %v3233, %v1984
    %v3239 = vmul.f32 %v3233, %v1985
    %v3240 = vstv %s1882
    %v3241 = vmul.f32 %v3240, %v2004
    %v3242 = vmul.f32 %v3240, %v2005
    %v3243 = vmul.f32 %v3240, %v2006
    %v3244 = vmul.f32 %v3240, %v2007
    %v3245 = vmul.f32 %v3240, %v2008
    %v3246 = vmul.f32 %v3240, %v2009
    %v3247 = vstv %s1883
    %v3248 = vmul.f32 %v3247, %v1103
    %v3249 = vmul.f32 %v3247, %v1104
    %v3250 = vmul.f32 %v3247, %v1105
    %v3251 = vmul.f32 %v3247, %v1106
    %v3252 = vmul.f32 %v3247, %v1107
    %v3253 = vmul.f32 %v3247, %v1108
    %v3254 = vstv %s1884
    %v3255 = vmul.f32 %v3254, %v2028
    %v3256 = vmul.f32 %v3254, %v2029
    %v3257 = vmul.f32 %v3254, %v2030
    %v3258 = vmul.f32 %v3254, %v2031
    %v3259 = vmul.f32 %v3254, %v2032
    %v3260 = vmul.f32 %v3254, %v2033
    %v3261 = vstv %s1885
    %v3262 = vmul.f32 %v3261, %v2073
    %v3263 = vmul.f32 %v3261, %v2074
    %v3264 = vmul.f32 %v3261, %v2075
    %v3265 = vmul.f32 %v3261, %v2076
    %v3266 = vmul.f32 %v3261, %v2077
    %v3267 = vmul.f32 %v3261, %v2078
    %v3268 = vstv %s1886
    %v3269 = vmul.f32 %v3268, %v2037
    %v3270 = vmul.f32 %v3268, %v2039
    %v3271 = vmul.f32 %v3268, %v2051
    %v3272 = vmul.f32 %v3268, %v2042
    %v3273 = vmul.f32 %v3268, %v2044
    %v3274 = vmul.f32 %v3268, %v2052
    %v3275 = vstv %s1887
    %v3276 = vmul.f32 %v3275, %v2097
    %v3277 = vmul.f32 %v3275, %v2098
    %v3278 = vmul.f32 %v3275, %v2099
    %v3279 = vmul.f32 %v3275, %v2100
    %v3280 = vmul.f32 %v3275, %v2101
    %v3281 = vmul.f32 %v3275, %v2102
    %v3282 = vstv %s1888
    %v3283 = vmul.f32 %v3282, %v2147
    %v3284 = vmul.f32 %v3282, %v2148
    %v3285 = vmul.f32 %v3282, %v2149
    %v3286 = vmul.f32 %v3282, %v2150
    %v3287 = vmul.f32 %v3282, %v2151
    %v3288 = vmul.f32 %v3282, %v2152
    %v3289 = vstv %s1889
    %v3290 = vmul.f32 %v3289, %v2125
    %v3291 = vmul.f32 %v3289, %v2111
    %v3292 = vmul.f32 %v3289, %v2113
    %v3293 = vmul.f32 %v3289, %v2126
    %v3294 = vmul.f32 %v3289, %v2116
    %v3295 = vmul.f32 %v3289, %v2118
    %v3296 = vstv %s1890
    %v3297 = vmul.f32 %v3296, %v2171
    %v3298 = vmul.f32 %v3296, %v2172
    %v3299 = vmul.f32 %v3296, %v2173
    %v3300 = vmul.f32 %v3296, %v2174
    %v3301 = vmul.f32 %v3296, %v2175
    %v3302 = vmul.f32 %v3296, %v2176
    %v3303 = vstv %s1891
    %v3304 = vmul.f32 %v3303, %v2195
    %v3305 = vmul.f32 %v3303, %v2196
    %v3306 = vmul.f32 %v3303, %v2197
    %v3307 = vmul.f32 %v3303, %v2198
    %v3308 = vmul.f32 %v3303, %v2199
    %v3309 = vmul.f32 %v3303, %v2200
    %v3310 = vstv %s1892
    %v3311 = vmul.f32 %v3310, %v1461
    %v3312 = vmul.f32 %v3310, %v1462
    %v3313 = vmul.f32 %v3310, %v1463
    %v3314 = vmul.f32 %v3310, %v1464
    %v3315 = vmul.f32 %v3310, %v1465
    %v3316 = vmul.f32 %v3310, %v1466
    %v3317 = vstv %s1893
    %v3318 = vmul.f32 %v3317, %v2219
    %v3319 = vmul.f32 %v3317, %v2220
    %v3320 = vmul.f32 %v3317, %v2221
    %v3321 = vmul.f32 %v3317, %v2222
    %v3322 = vmul.f32 %v3317, %v2223
    %v3323 = vmul.f32 %v3317, %v2224
    %v3324 = vstv %s1894
    %v3325 = vmul.f32 %v3324, %v2263
    %v3326 = vmul.f32 %v3324, %v2264
    %v3327 = vmul.f32 %v3324, %v2265
    %v3328 = vmul.f32 %v3324, %v2266
    %v3329 = vmul.f32 %v3324, %v2267
    %v3330 = vmul.f32 %v3324, %v2268
    %v3331 = vstv %s1895
    %v3332 = vmul.f32 %v3331, %v2227
    %v3333 = vmul.f32 %v3331, %v2229
    %v3334 = vmul.f32 %v3331, %v2241
    %v3335 = vmul.f32 %v3331, %v2232
    %v3336 = vmul.f32 %v3331, %v2234
    %v3337 = vmul.f32 %v3331, %v2242
    %v3338 = vstv %s1896
    %v3339 = vmul.f32 %v3338, %v2287
    %v3340 = vmul.f32 %v3338, %v2288
    %v3341 = vmul.f32 %v3338, %v2289
    %v3342 = vmul.f32 %v3338, %v2290
    %v3343 = vmul.f32 %v3338, %v2291
    %v3344 = vmul.f32 %v3338, %v2292
    %v3345 = vstv %s1897
    %v3346 = vmul.f32 %v3345, %v2337
    %v3347 = vmul.f32 %v3345, %v2338
    %v3348 = vmul.f32 %v3345, %v2339
    %v3349 = vmul.f32 %v3345, %v2340
    %v3350 = vmul.f32 %v3345, %v2341
    %v3351 = vmul.f32 %v3345, %v2342
    %v3352 = vstv %s1898
    %v3353 = vmul.f32 %v3352, %v2315
    %v3354 = vmul.f32 %v3352, %v2301
    %v3355 = vmul.f32 %v3352, %v2303
    %v3356 = vmul.f32 %v3352, %v2316
    %v3357 = vmul.f32 %v3352, %v2306
    %v3358 = vmul.f32 %v3352, %v2308
    %v3359 = vstv %s1899
    %v3360 = vmul.f32 %v3359, %v2361
    %v3361 = vmul.f32 %v3359, %v2362
    %v3362 = vmul.f32 %v3359, %v2363
    %v3363 = vmul.f32 %v3359, %v2364
    %v3364 = vmul.f32 %v3359, %v2365
    %v3365 = vmul.f32 %v3359, %v2366
    %v3366 = vstv %s1900
    %v3367 = vmul.f32 %v3366, %v2385
    %v3368 = vmul.f32 %v3366, %v2386
    %v3369 = vmul.f32 %v3366, %v2387
    %v3370 = vmul.f32 %v3366, %v2388
    %v3371 = vmul.f32 %v3366, %v2389
    %v3372 = vmul.f32 %v3366, %v2390
    %v3373 = vstv %s1901
    %v3374 = vmul.f32 %v3373, %v1819
    %v3375 = vmul.f32 %v3373, %v1820
    %v3376 = vmul.f32 %v3373, %v1821
    %v3377 = vmul.f32 %v3373, %v1822
    %v3378 = vmul.f32 %v3373, %v1823
    %v3379 = vmul.f32 %v3373, %v1824
    %v3380 = vstv %s1902
    %v3381 = vmul.f32 %v3380, %v2409
    %v3382 = vmul.f32 %v3380, %v2410
    %v3383 = vmul.f32 %v3380, %v2411
    %v3384 = vmul.f32 %v3380, %v2412
    %v3385 = vmul.f32 %v3380, %v2413
    %v3386 = vmul.f32 %v3380, %v2414
    %v3387 = vstv %s1903
    %v3388 = vmul.f32 %v3387, %v2453
    %v3389 = vmul.f32 %v3387, %v2454
    %v3390 = vmul.f32 %v3387, %v2455
    %v3391 = vmul.f32 %v3387, %v2456
    %v3392 = vmul.f32 %v3387, %v2457
    %v3393 = vmul.f32 %v3387, %v2458
    %v3394 = vstv %s1904
    %v3395 = vmul.f32 %v3394, %v2417
    %v3396 = vmul.f32 %v3394, %v2419
    %v3397 = vmul.f32 %v3394, %v2431
    %v3398 = vmul.f32 %v3394, %v2422
    %v3399 = vmul.f32 %v3394, %v2424
    %v3400 = vmul.f32 %v3394, %v2432
    %v3401 = vstv %s1905
    %v3402 = vmul.f32 %v3401, %v2477
    %v3403 = vmul.f32 %v3401, %v2478
    %v3404 = vmul.f32 %v3401, %v2479
    %v3405 = vmul.f32 %v3401, %v2480
    %v3406 = vmul.f32 %v3401, %v2481
    %v3407 = vmul.f32 %v3401, %v2482
    %v3408 = vadd.f32 %v3218, %v3220
    %v3409 = vadd.f32 %v3218, %v3221
    %v3410 = vadd.f32 %v3218, %v3222
    %v3411 = vadd.f32 %v3218, %v3223
    %v3412 = vadd.f32 %v3218, %v3224
    %v3413 = vadd.f32 %v3218, %v3225
    %v3414 = vadd.f32 %v3227, %v3234
    %v3415 = vadd.f32 %v3228, %v3235
    %v3416 = vadd.f32 %v3229, %v3236
    %v3417 = vadd.f32 %v3230, %v3237
    %v3418 = vadd.f32 %v3231, %v3238
    %v3419 = vadd.f32 %v3232, %v3239
    %v3420 = vadd.f32 %v3241, %v3248
    %v3421 = vadd.f32 %v3242, %v3249
    %v3422 = vadd.f32 %v3243, %v3250
    %v3423 = vadd.f32 %v3244, %v3251
    %v3424 = vadd.f32 %v3245, %v3252
    %v3425 = vadd.f32 %v3246, %v3253
    %v3426 = vadd.f32 %v3255, %v3262
    %v3427 = vadd.f32 %v3256, %v3263
    %v3428 = vadd.f32 %v3257, %v3264
    %v3429 = vadd.f32 %v3258, %v3265
    %v3430 = vadd.f32 %v3259, %v3266
    %v3431 = vadd.f32 %v3260, %v3267
    %v3432 = vadd.f32 %v3269, %v3276
    %v3433 = vadd.f32 %v3270, %v3277
    %v3434 = vadd.f32 %v3271, %v3278
    %v3435 = vadd.f32 %v3272, %v3279
    %v3436 = vadd.f32 %v3273, %v3280
    %v3437 = vadd.f32 %v3274, %v3281
    %v3438 = vadd.f32 %v3283, %v3290
    %v3439 = vadd.f32 %v3284, %v3291
    %v3440 = vadd.f32 %v3285, %v3292
    %v3441 = vadd.f32 %v3286, %v3293
    %v3442 = vadd.f32 %v3287, %v3294
    %v3443 = vadd.f32 %v3288, %v3295
    %v3444 = vadd.f32 %v3297, %v3304
    %v3445 = vadd.f32 %v3298, %v3305
    %v3446 = vadd.f32 %v3299, %v3306
    %v3447 = vadd.f32 %v3300, %v3307
    %v3448 = vadd.f32 %v3301, %v3308
    %v3449 = vadd.f32 %v3302, %v3309
    %v3450 = vadd.f32 %v3311, %v3318
    %v3451 = vadd.f32 %v3312, %v3319
    %v3452 = vadd.f32 %v3313, %v3320
    %v3453 = vadd.f32 %v3314, %v3321
    %v3454 = vadd.f32 %v3315, %v3322
    %v3455 = vadd.f32 %v3316, %v3323
    %v3456 = vadd.f32 %v3325, %v3332
    %v3457 = vadd.f32 %v3326, %v3333
    %v3458 = vadd.f32 %v3327, %v3334
    %v3459 = vadd.f32 %v3328, %v3335
    %v3460 = vadd.f32 %v3329, %v3336
    %v3461 = vadd.f32 %v3330, %v3337
    %v3462 = vadd.f32 %v3339, %v3346
    %v3463 = vadd.f32 %v3340, %v3347
    %v3464 = vadd.f32 %v3341, %v3348
    %v3465 = vadd.f32 %v3342, %v3349
    %v3466 = vadd.f32 %v3343, %v3350
    %v3467 = vadd.f32 %v3344, %v3351
    %v3468 = vadd.f32 %v3353, %v3360
    %v3469 = vadd.f32 %v3354, %v3361
    %v3470 = vadd.f32 %v3355, %v3362
    %v3471 = vadd.f32 %v3356, %v3363
    %v3472 = vadd.f32 %v3357, %v3364
    %v3473 = vadd.f32 %v3358, %v3365
    %v3474 = vadd.f32 %v3367, %v3374
    %v3475 = vadd.f32 %v3368, %v3375
    %v3476 = vadd.f32 %v3369, %v3376
    %v3477 = vadd.f32 %v3370, %v3377
    %v3478 = vadd.f32 %v3371, %v3378
    %v3479 = vadd.f32 %v3372, %v3379
    %v3480 = vadd.f32 %v3381, %v3388
    %v3481 = vadd.f32 %v3382, %v3389
    %v3482 = vadd.f32 %v3383, %v3390
    %v3483 = vadd.f32 %v3384, %v3391
    %v3484 = vadd.f32 %v3385, %v3392
    %v3485 = vadd.f32 %v3386, %v3393
    %v3486 = vadd.f32 %v3395, %v3402
    %v3487 = vadd.f32 %v3396, %v3403
    %v3488 = vadd.f32 %v3397, %v3404
    %v3489 = vadd.f32 %v3398, %v3405
    %v3490 = vadd.f32 %v3399, %v3406
    %v3491 = vadd.f32 %v3400, %v3407
    %v3492 = vadd.f32 %v3408, %v3414
    %v3493 = vadd.f32 %v3409, %v3415
    %v3494 = vadd.f32 %v3410, %v3416
    %v3495 = vadd.f32 %v3411, %v3417
    %v3496 = vadd.f32 %v3412, %v3418
    %v3497 = vadd.f32 %v3413, %v3419
    %v3498 = vadd.f32 %v3420, %v3426
    %v3499 = vadd.f32 %v3421, %v3427
    %v3500 = vadd.f32 %v3422, %v3428
    %v3501 = vadd.f32 %v3423, %v3429
    %v3502 = vadd.f32 %v3424, %v3430
    %v3503 = vadd.f32 %v3425, %v3431
    %v3504 = vadd.f32 %v3432, %v3438
    %v3505 = vadd.f32 %v3433, %v3439
    %v3506 = vadd.f32 %v3434, %v3440
    %v3507 = vadd.f32 %v3435, %v3441
    %v3508 = vadd.f32 %v3436, %v3442
    %v3509 = vadd.f32 %v3437, %v3443
    %v3510 = vadd.f32 %v3444, %v3450
    %v3511 = vadd.f32 %v3445, %v3451
    %v3512 = vadd.f32 %v3446, %v3452
    %v3513 = vadd.f32 %v3447, %v3453
    %v3514 = vadd.f32 %v3448, %v3454
    %v3515 = vadd.f32 %v3449, %v3455
    %v3516 = vadd.f32 %v3456, %v3462
    %v3517 = vadd.f32 %v3457, %v3463
    %v3518 = vadd.f32 %v3458, %v3464
    %v3519 = vadd.f32 %v3459, %v3465
    %v3520 = vadd.f32 %v3460, %v3466
    %v3521 = vadd.f32 %v3461, %v3467
    %v3522 = vadd.f32 %v3468, %v3474
    %v3523 = vadd.f32 %v3469, %v3475
    %v3524 = vadd.f32 %v3470, %v3476
    %v3525 = vadd.f32 %v3471, %v3477
    %v3526 = vadd.f32 %v3472, %v3478
    %v3527 = vadd.f32 %v3473, %v3479
    %v3528 = vadd.f32 %v3480, %v3486
    %v3529 = vadd.f32 %v3481, %v3487
    %v3530 = vadd.f32 %v3482, %v3488
    %v3531 = vadd.f32 %v3483, %v3489
    %v3532 = vadd.f32 %v3484, %v3490
    %v3533 = vadd.f32 %v3485, %v3491
    %v3534 = vadd.f32 %v3492, %v3498
    %v3535 = vadd.f32 %v3493, %v3499
    %v3536 = vadd.f32 %v3494, %v3500
    %v3537 = vadd.f32 %v3495, %v3501
    %v3538 = vadd.f32 %v3496, %v3502
    %v3539 = vadd.f32 %v3497, %v3503
    %v3540 = vadd.f32 %v3504, %v3510
    %v3541 = vadd.f32 %v3505, %v3511
    %v3542 = vadd.f32 %v3506, %v3512
    %v3543 = vadd.f32 %v3507, %v3513
    %v3544 = vadd.f32 %v3508, %v3514
    %v3545 = vadd.f32 %v3509, %v3515
    %v3546 = vadd.f32 %v3516, %v3522
    %v3547 = vadd.f32 %v3517, %v3523
    %v3548 = vadd.f32 %v3518, %v3524
    %v3549 = vadd.f32 %v3519, %v3525
    %v3550 = vadd.f32 %v3520, %v3526
    %v3551 = vadd.f32 %v3521, %v3527
    %v3552 = vadd.f32 %v3534, %v3540
    %v3553 = vadd.f32 %v3535, %v3541
    %v3554 = vadd.f32 %v3536, %v3542
    %v3555 = vadd.f32 %v3537, %v3543
    %v3556 = vadd.f32 %v3538, %v3544
    %v3557 = vadd.f32 %v3539, %v3545
    %v3558 = vadd.f32 %v3546, %v3528
    %v3559 = vadd.f32 %v3547, %v3529
    %v3560 = vadd.f32 %v3548, %v3530
    %v3561 = vadd.f32 %v3549, %v3531
    %v3562 = vadd.f32 %v3550, %v3532
    %v3563 = vadd.f32 %v3551, %v3533
    %v3564 = vadd.f32 %v3552, %v3558
    %v3565 = vadd.f32 %v3553, %v3559
    %v3566 = vadd.f32 %v3554, %v3560
    %v3567 = vadd.f32 %v3555, %v3561
    %v3568 = vadd.f32 %v3556, %v3562
    %v3569 = vadd.f32 %v3557, %v3563
    %v3570 = vsel %vm2851, %v3564, 0.0
    %v3571 = vsel %vm2852, %v3565, 0.0
    %v3572 = vsel %vm2853, %v3566, 0.0
    %v3573 = vsel %vm2851, %v3567, 0.0
    %v3574 = vsel %vm2852, %v3568, 0.0
    %v3575 = vsel %vm2853, %v3569, 0.0
    %s3576 = sld [smem:[#allocation2 + $0xa2]]
    %s3577 = sld [smem:[#allocation2 + $0xa3]]
    %s3578 = sld [smem:[#allocation2 + $0xa4]]
    %s3579 = sld [smem:[#allocation2 + $0xa5]]
    %s3580 = sld [smem:[#allocation2 + $0xa6]]
    %s3581 = sld [smem:[#allocation2 + $0xa7]]
    %s3582 = sld [smem:[#allocation2 + $0xa8]]
    %s3583 = sld [smem:[#allocation2 + $0xa9]]
    %s3584 = sld [smem:[#allocation2 + $0xaa]]
    %s3585 = sld [smem:[#allocation2 + $0xab]]
    %s3586 = sld [smem:[#allocation2 + $0xac]]
    %s3587 = sld [smem:[#allocation2 + $0xad]]
    %s3588 = sld [smem:[#allocation2 + $0xae]]
    %s3589 = sld [smem:[#allocation2 + $0xaf]]
    %s3590 = sld [smem:[#allocation2 + $0xb0]]
    %s3591 = sld [smem:[#allocation2 + $0xb1]]
    %s3592 = sld [smem:[#allocation2 + $0xb2]]
    %s3593 = sld [smem:[#allocation2 + $0xb3]]
    %s3594 = sld [smem:[#allocation2 + $0xb4]]
    %s3595 = sld [smem:[#allocation2 + $0xb5]]
    %s3596 = sld [smem:[#allocation2 + $0xb6]]
    %s3597 = sld [smem:[#allocation2 + $0xb7]]
    %s3598 = sld [smem:[#allocation2 + $0xb8]]
    %s3599 = sld [smem:[#allocation2 + $0xb9]]
    %s3600 = sld [smem:[#allocation2 + $0xba]]
    %s3601 = sld [smem:[#allocation2 + $0xbb]]
    %s3602 = sld [smem:[#allocation2 + $0xbc]]
    %s3603 = sld [smem:[#allocation2 + $0xbd]]
    %s3604 = sld [smem:[#allocation2 + $0xbe]]
    %s3605 = sld [smem:[#allocation2 + $0xbf]]
    %s3606 = sld [smem:[#allocation2 + $0xc0]]
    %s3607 = sld [smem:[#allocation2 + $0xc1]]
    %s3608 = sld [smem:[#allocation2 + $0xc2]]
    %s3609 = sld [smem:[#allocation2 + $0xc3]]
    %s3610 = sld [smem:[#allocation2 + $0xc4]]
    %s3611 = sld [smem:[#allocation2 + $0xc5]]
    %s3612 = sld [smem:[#allocation2 + $0xc6]]
    %s3613 = sld [smem:[#allocation2 + $0xc7]]
    %s3614 = sld [smem:[#allocation2 + $0xc8]]
    %s3615 = sld [smem:[#allocation2 + $0xc9]]
    %s3616 = sld [smem:[#allocation2 + $0xca]]
    %s3617 = sld [smem:[#allocation2 + $0xcb]]
    %s3618 = sld [smem:[#allocation2 + $0xcc]]
    %s3619 = sld [smem:[#allocation2 + $0xcd]]
    %s3620 = sld [smem:[#allocation2 + $0xce]]
    %s3621 = sld [smem:[#allocation2 + $0xcf]]
    %s3622 = sld [smem:[#allocation2 + $0xd0]]
    %s3623 = sld [smem:[#allocation2 + $0xd1]]
    %s3624 = sld [smem:[#allocation2 + $0xd2]]
    %s3625 = sld [smem:[#allocation2 + $0xd3]]
    %s3626 = sld [smem:[#allocation2 + $0xd4]]
    %s3627 = sld [smem:[#allocation2 + $0xd5]]
    %s3628 = sld [smem:[#allocation2 + $0xd6]]
    %s3629 = sld [smem:[#allocation2 + $0xd7]]
    %s3630 = sld [smem:[#allocation2 + $0xd8]]
    %s3631 = sld [smem:[#allocation2 + $0xd9]]
    %s3632 = sld [smem:[#allocation2 + $0xda]]
    %s3633 = sld [smem:[#allocation2 + $0xdb]]
    %s3634 = sld [smem:[#allocation2 + $0xdc]]
    %s3635 = sld [smem:[#allocation2 + $0xdd]]
    %s3636 = sld [smem:[#allocation2 + $0xde]]
    %s3637 = sld [smem:[#allocation2 + $0xdf]]
    %s3638 = sld [smem:[#allocation2 + $0xe0]]
    %s3639 = sld [smem:[#allocation2 + $0xe1]]
    %s3640 = sld [smem:[#allocation2 + $0xe2]]
    %s3641 = sld [smem:[#allocation2 + $0xe3]]
    %s3642 = sld [smem:[#allocation2 + $0xe4]]
    %s3643 = sld [smem:[#allocation2 + $0xe5]]
    %s3644 = sld [smem:[#allocation2 + $0xe6]]
    %s3645 = sld [smem:[#allocation2 + $0xe7]]
    %s3646 = sld [smem:[#allocation2 + $0xe8]]
    %s3647 = sld [smem:[#allocation2 + $0xe9]]
    %s3648 = sld [smem:[#allocation2 + $0xea]]
    %s3649 = sld [smem:[#allocation2 + $0xeb]]
    %s3650 = sld [smem:[#allocation2 + $0xec]]
    %s3651 = sld [smem:[#allocation2 + $0xed]]
    %s3652 = sld [smem:[#allocation2 + $0xee]]
    %s3653 = sld [smem:[#allocation2 + $0xef]]
    %s3654 = sld [smem:[#allocation2 + $0xf0]]
    %s3655 = sld [smem:[#allocation2 + $0xf1]]
    %s3656 = sld [smem:[#allocation2 + $0xf2]]
    %s3657 = sld [smem:[#allocation4 + $0x6]]
    %s3658 = sld [smem:[#allocation4 + $0x7]]
    %s3659 = sld [smem:[#allocation4 + $0x8]]
    %vm3664 = vcmask 1043456
    %v3665 = vrot.slane %v2854, 4
    %v3666 = vrot.slane %v2855, 4
    %v3667 = vsel %vm3664, %v3665, %v3666
    %v3668 = vrot.slane %v2857, 4
    %v3669 = vrot.slane %v2858, 4
    %v3670 = vsel %vm3664, %v3668, %v3669
    %v3677 = vsel %vm3664, 0.0, %v3665
    %v3678 = vsel %vm3664, 0.0, %v3668
    %3681 = vrot.lane.b32.xlu0 %v3677, 4
    %v3682 = vpop.permute.xlu0 %3681
    %3683 = vrot.lane.b32.xlu0 %v3667, 4
    %v3684 = vpop.permute.xlu0 %3683
    %3685 = vrot.lane.b32.xlu0 %v3666, 4
    %v3686 = vpop.permute.xlu0 %3685
    %3687 = vrot.lane.b32.xlu0 %v3678, 4
    %v3688 = vpop.permute.xlu0 %3687
    %3689 = vrot.lane.b32.xlu0 %v3670, 4
    %v3690 = vpop.permute.xlu0 %3689
    %3691 = vrot.lane.b32.xlu0 %v3669, 4
    %v3692 = vpop.permute.xlu0 %3691
    %vm3699 = vcmask 31744
    %v3700 = vsel %vm3699, 0.0, %v3682
    %v3701 = vsel %vm3699, 0.0, %v3684
    %v3702 = vsel %vm3699, 0.0, %v3686
    %v3703 = vsel %vm3699, 0.0, %v3688
    %v3704 = vsel %vm3699, 0.0, %v3690
    %v3705 = vsel %vm3699, 0.0, %v3692
    %3706 = vrot.lane.b32.xlu0 %v3677, 124
    %v3707 = vpop.permute.xlu0 %3706
    %3708 = vrot.lane.b32.xlu0 %v3667, 124
    %v3709 = vpop.permute.xlu0 %3708
    %3710 = vrot.lane.b32.xlu0 %v3666, 124
    %v3711 = vpop.permute.xlu0 %3710
    %3712 = vrot.lane.b32.xlu0 %v3678, 124
    %v3713 = vpop.permute.xlu0 %3712
    %3714 = vrot.lane.b32.xlu0 %v3670, 124
    %v3715 = vpop.permute.xlu0 %3714
    %3716 = vrot.lane.b32.xlu0 %v3669, 124
    %v3717 = vpop.permute.xlu0 %3716
    %vm3724 = vcmask 130048
    %v3725 = vsel %vm3724, %v3707, 0.0
    %v3726 = vsel %vm3724, %v3709, 0.0
    %v3727 = vsel %vm3724, %v3711, 0.0
    %v3728 = vsel %vm3724, %v3713, 0.0
    %v3729 = vsel %vm3724, %v3715, 0.0
    %v3730 = vsel %vm3724, %v3717, 0.0
    %3733 = vrot.lane.b32.xlu0 %v2854, 4
    %v3734 = vpop.permute.xlu0 %3733
    %3735 = vrot.lane.b32.xlu0 %v2855, 4
    %v3736 = vpop.permute.xlu0 %3735
    %3737 = vrot.lane.b32.xlu0 %v2856, 4
    %v3738 = vpop.permute.xlu0 %3737
    %3739 = vrot.lane.b32.xlu0 %v2857, 4
    %v3740 = vpop.permute.xlu0 %3739
    %3741 = vrot.lane.b32.xlu0 %v2858, 4
    %v3742 = vpop.permute.xlu0 %3741
    %3743 = vrot.lane.b32.xlu0 %v2859, 4
    %v3744 = vpop.permute.xlu0 %3743
    %v3751 = vsel %vm3699, 0.0, %v3734
    %v3752 = vsel %vm3699, 0.0, %v3736
    %v3753 = vsel %vm3699, 0.0, %v3738
    %v3754 = vsel %vm3699, 0.0, %v3740
    %v3755 = vsel %vm3699, 0.0, %v3742
    %v3756 = vsel %vm3699, 0.0, %v3744
    %3757 = vrot.lane.b32.xlu0 %v2854, 124
    %v3758 = vpop.permute.xlu0 %3757
    %3759 = vrot.lane.b32.xlu0 %v2855, 124
    %v3760 = vpop.permute.xlu0 %3759
    %3761 = vrot.lane.b32.xlu0 %v2856, 124
    %v3762 = vpop.permute.xlu0 %3761
    %3763 = vrot.lane.b32.xlu0 %v2857, 124
    %v3764 = vpop.permute.xlu0 %3763
    %3765 = vrot.lane.b32.xlu0 %v2858, 124
    %v3766 = vpop.permute.xlu0 %3765
    %3767 = vrot.lane.b32.xlu0 %v2859, 124
    %v3768 = vpop.permute.xlu0 %3767
    %v3775 = vsel %vm3724, %v3758, 0.0
    %v3776 = vsel %vm3724, %v3760, 0.0
    %v3777 = vsel %vm3724, %v3762, 0.0
    %v3778 = vsel %vm3724, %v3764, 0.0
    %v3779 = vsel %vm3724, %v3766, 0.0
    %v3780 = vsel %vm3724, %v3768, 0.0
    %v3781 = vrot.slane %v2856, 4
    %v3782 = vsel %vm3664, %v3666, %v3781
    %v3783 = vrot.slane %v2859, 4
    %v3784 = vsel %vm3664, %v3669, %v3783
    %3788 = vrot.lane.b32.xlu0 %v3782, 4
    %v3789 = vpop.permute.xlu0 %3788
    %3790 = vrot.lane.b32.xlu0 0.0, 4
    %v3791 = vpop.permute.xlu0 %3790
    %3792 = vrot.lane.b32.xlu0 %v3784, 4
    %v3793 = vpop.permute.xlu0 %3792
    %v3797 = vsel %vm3699, 0.0, %v3789
    %v3798 = vsel %vm3699, 0.0, %v3791
    %v3799 = vsel %vm3699, 0.0, %v3793
    %3800 = vrot.lane.b32.xlu0 %v3782, 124
    %v3801 = vpop.permute.xlu0 %3800
    %3802 = vrot.lane.b32.xlu0 0.0, 124
    %v3803 = vpop.permute.xlu0 %3802
    %3804 = vrot.lane.b32.xlu0 %v3784, 124
    %v3805 = vpop.permute.xlu0 %3804
    %v3809 = vsel %vm3724, %v3801, 0.0
    %v3810 = vsel %vm3724, %v3803, 0.0
    %v3811 = vsel %vm3724, %v3805, 0.0
    %v3816 = vrot.slane %v3212, 4
    %v3817 = vrot.slane %v3213, 4
    %v3818 = vsel %vm3664, %v3816, %v3817
    %v3819 = vrot.slane %v3215, 4
    %v3820 = vrot.slane %v3216, 4
    %v3821 = vsel %vm3664, %v3819, %v3820
    %v3828 = vsel %vm3664, 0.0, %v3816
    %v3829 = vsel %vm3664, 0.0, %v3819
    %3832 = vrot.lane.b32.xlu0 %v3828, 4
    %v3833 = vpop.permute.xlu0 %3832
    %3834 = vrot.lane.b32.xlu0 %v3818, 4
    %v3835 = vpop.permute.xlu0 %3834
    %3836 = vrot.lane.b32.xlu0 %v3817, 4
    %v3837 = vpop.permute.xlu0 %3836
    %3838 = vrot.lane.b32.xlu0 %v3829, 4
    %v3839 = vpop.permute.xlu0 %3838
    %3840 = vrot.lane.b32.xlu0 %v3821, 4
    %v3841 = vpop.permute.xlu0 %3840
    %3842 = vrot.lane.b32.xlu0 %v3820, 4
    %v3843 = vpop.permute.xlu0 %3842
    %v3850 = vsel %vm3699, 0.0, %v3833
    %v3851 = vsel %vm3699, 0.0, %v3835
    %v3852 = vsel %vm3699, 0.0, %v3837
    %v3853 = vsel %vm3699, 0.0, %v3839
    %v3854 = vsel %vm3699, 0.0, %v3841
    %v3855 = vsel %vm3699, 0.0, %v3843
    %3856 = vrot.lane.b32.xlu0 %v3828, 124
    %v3857 = vpop.permute.xlu0 %3856
    %3858 = vrot.lane.b32.xlu0 %v3818, 124
    %v3859 = vpop.permute.xlu0 %3858
    %3860 = vrot.lane.b32.xlu0 %v3817, 124
    %v3861 = vpop.permute.xlu0 %3860
    %3862 = vrot.lane.b32.xlu0 %v3829, 124
    %v3863 = vpop.permute.xlu0 %3862
    %3864 = vrot.lane.b32.xlu0 %v3821, 124
    %v3865 = vpop.permute.xlu0 %3864
    %3866 = vrot.lane.b32.xlu0 %v3820, 124
    %v3867 = vpop.permute.xlu0 %3866
    %v3874 = vsel %vm3724, %v3857, 0.0
    %v3875 = vsel %vm3724, %v3859, 0.0
    %v3876 = vsel %vm3724, %v3861, 0.0
    %v3877 = vsel %vm3724, %v3863, 0.0
    %v3878 = vsel %vm3724, %v3865, 0.0
    %v3879 = vsel %vm3724, %v3867, 0.0
    %3882 = vrot.lane.b32.xlu0 %v3212, 4
    %v3883 = vpop.permute.xlu0 %3882
    %3884 = vrot.lane.b32.xlu0 %v3213, 4
    %v3885 = vpop.permute.xlu0 %3884
    %3886 = vrot.lane.b32.xlu0 %v3214, 4
    %v3887 = vpop.permute.xlu0 %3886
    %3888 = vrot.lane.b32.xlu0 %v3215, 4
    %v3889 = vpop.permute.xlu0 %3888
    %3890 = vrot.lane.b32.xlu0 %v3216, 4
    %v3891 = vpop.permute.xlu0 %3890
    %3892 = vrot.lane.b32.xlu0 %v3217, 4
    %v3893 = vpop.permute.xlu0 %3892
    %v3900 = vsel %vm3699, 0.0, %v3883
    %v3901 = vsel %vm3699, 0.0, %v3885
    %v3902 = vsel %vm3699, 0.0, %v3887
    %v3903 = vsel %vm3699, 0.0, %v3889
    %v3904 = vsel %vm3699, 0.0, %v3891
    %v3905 = vsel %vm3699, 0.0, %v3893
    %3906 = vrot.lane.b32.xlu0 %v3212, 124
    %v3907 = vpop.permute.xlu0 %3906
    %3908 = vrot.lane.b32.xlu0 %v3213, 124
    %v3909 = vpop.permute.xlu0 %3908
    %3910 = vrot.lane.b32.xlu0 %v3214, 124
    %v3911 = vpop.permute.xlu0 %3910
    %3912 = vrot.lane.b32.xlu0 %v3215, 124
    %v3913 = vpop.permute.xlu0 %3912
    %3914 = vrot.lane.b32.xlu0 %v3216, 124
    %v3915 = vpop.permute.xlu0 %3914
    %3916 = vrot.lane.b32.xlu0 %v3217, 124
    %v3917 = vpop.permute.xlu0 %3916
    %v3924 = vsel %vm3724, %v3907, 0.0
    %v3925 = vsel %vm3724, %v3909, 0.0
    %v3926 = vsel %vm3724, %v3911, 0.0
    %v3927 = vsel %vm3724, %v3913, 0.0
    %v3928 = vsel %vm3724, %v3915, 0.0
    %v3929 = vsel %vm3724, %v3917, 0.0
    %v3930 = vrot.slane %v3214, 4
    %v3931 = vsel %vm3664, %v3817, %v3930
    %v3932 = vrot.slane %v3217, 4
    %v3933 = vsel %vm3664, %v3820, %v3932
    %3936 = vrot.lane.b32.xlu0 %v3931, 4
    %v3937 = vpop.permute.xlu0 %3936
    %3938 = vrot.lane.b32.xlu0 %v3933, 4
    %v3939 = vpop.permute.xlu0 %3938
    %v3942 = vsel %vm3699, 0.0, %v3937
    %v3943 = vsel %vm3699, 0.0, %v3939
    %3944 = vrot.lane.b32.xlu0 %v3931, 124
    %v3945 = vpop.permute.xlu0 %3944
    %3946 = vrot.lane.b32.xlu0 %v3933, 124
    %v3947 = vpop.permute.xlu0 %3946
    %v3950 = vsel %vm3724, %v3945, 0.0
    %v3951 = vsel %vm3724, %v3947, 0.0
    %v3956 = vrot.slane %v3570, 4
    %v3957 = vrot.slane %v3571, 4
    %v3958 = vsel %vm3664, %v3956, %v3957
    %v3959 = vrot.slane %v3573, 4
    %v3960 = vrot.slane %v3574, 4
    %v3961 = vsel %vm3664, %v3959, %v3960
    %v3968 = vsel %vm3664, 0.0, %v3956
    %v3969 = vsel %vm3664, 0.0, %v3959
    %3972 = vrot.lane.b32.xlu0 %v3968, 4
    %v3973 = vpop.permute.xlu0 %3972
    %3974 = vrot.lane.b32.xlu0 %v3958, 4
    %v3975 = vpop.permute.xlu0 %3974
    %3976 = vrot.lane.b32.xlu0 %v3957, 4
    %v3977 = vpop.permute.xlu0 %3976
    %3978 = vrot.lane.b32.xlu0 %v3969, 4
    %v3979 = vpop.permute.xlu0 %3978
    %3980 = vrot.lane.b32.xlu0 %v3961, 4
    %v3981 = vpop.permute.xlu0 %3980
    %3982 = vrot.lane.b32.xlu0 %v3960, 4
    %v3983 = vpop.permute.xlu0 %3982
    %v3990 = vsel %vm3699, 0.0, %v3973
    %v3991 = vsel %vm3699, 0.0, %v3975
    %v3992 = vsel %vm3699, 0.0, %v3977
    %v3993 = vsel %vm3699, 0.0, %v3979
    %v3994 = vsel %vm3699, 0.0, %v3981
    %v3995 = vsel %vm3699, 0.0, %v3983
    %3996 = vrot.lane.b32.xlu0 %v3968, 124
    %v3997 = vpop.permute.xlu0 %3996
    %3998 = vrot.lane.b32.xlu0 %v3958, 124
    %v3999 = vpop.permute.xlu0 %3998
    %4000 = vrot.lane.b32.xlu0 %v3957, 124
    %v4001 = vpop.permute.xlu0 %4000
    %4002 = vrot.lane.b32.xlu0 %v3969, 124
    %v4003 = vpop.permute.xlu0 %4002
    %4004 = vrot.lane.b32.xlu0 %v3961, 124
    %v4005 = vpop.permute.xlu0 %4004
    %4006 = vrot.lane.b32.xlu0 %v3960, 124
    %v4007 = vpop.permute.xlu0 %4006
    %v4014 = vsel %vm3724, %v3997, 0.0
    %v4015 = vsel %vm3724, %v3999, 0.0
    %v4016 = vsel %vm3724, %v4001, 0.0
    %v4017 = vsel %vm3724, %v4003, 0.0
    %v4018 = vsel %vm3724, %v4005, 0.0
    %v4019 = vsel %vm3724, %v4007, 0.0
    %4022 = vrot.lane.b32.xlu0 %v3570, 4
    %v4023 = vpop.permute.xlu0 %4022
    %4024 = vrot.lane.b32.xlu0 %v3571, 4
    %v4025 = vpop.permute.xlu0 %4024
    %4026 = vrot.lane.b32.xlu0 %v3572, 4
    %v4027 = vpop.permute.xlu0 %4026
    %4028 = vrot.lane.b32.xlu0 %v3573, 4
    %v4029 = vpop.permute.xlu0 %4028
    %4030 = vrot.lane.b32.xlu0 %v3574, 4
    %v4031 = vpop.permute.xlu0 %4030
    %4032 = vrot.lane.b32.xlu0 %v3575, 4
    %v4033 = vpop.permute.xlu0 %4032
    %v4040 = vsel %vm3699, 0.0, %v4023
    %v4041 = vsel %vm3699, 0.0, %v4025
    %v4042 = vsel %vm3699, 0.0, %v4027
    %v4043 = vsel %vm3699, 0.0, %v4029
    %v4044 = vsel %vm3699, 0.0, %v4031
    %v4045 = vsel %vm3699, 0.0, %v4033
    %4046 = vrot.lane.b32.xlu0 %v3570, 124
    %v4047 = vpop.permute.xlu0 %4046
    %4048 = vrot.lane.b32.xlu0 %v3571, 124
    %v4049 = vpop.permute.xlu0 %4048
    %4050 = vrot.lane.b32.xlu0 %v3572, 124
    %v4051 = vpop.permute.xlu0 %4050
    %4052 = vrot.lane.b32.xlu0 %v3573, 124
    %v4053 = vpop.permute.xlu0 %4052
    %4054 = vrot.lane.b32.xlu0 %v3574, 124
    %v4055 = vpop.permute.xlu0 %4054
    %4056 = vrot.lane.b32.xlu0 %v3575, 124
    %v4057 = vpop.permute.xlu0 %4056
    %v4064 = vsel %vm3724, %v4047, 0.0
    %v4065 = vsel %vm3724, %v4049, 0.0
    %v4066 = vsel %vm3724, %v4051, 0.0
    %v4067 = vsel %vm3724, %v4053, 0.0
    %v4068 = vsel %vm3724, %v4055, 0.0
    %v4069 = vsel %vm3724, %v4057, 0.0
    %v4070 = vrot.slane %v3572, 4
    %v4071 = vsel %vm3664, %v3957, %v4070
    %v4072 = vrot.slane %v3575, 4
    %v4073 = vsel %vm3664, %v3960, %v4072
    %4076 = vrot.lane.b32.xlu0 %v4071, 4
    %v4077 = vpop.permute.xlu0 %4076
    %4078 = vrot.lane.b32.xlu0 %v4073, 4
    %v4079 = vpop.permute.xlu0 %4078
    %v4082 = vsel %vm3699, 0.0, %v4077
    %v4083 = vsel %vm3699, 0.0, %v4079
    %4084 = vrot.lane.b32.xlu0 %v4071, 124
    %v4085 = vpop.permute.xlu0 %4084
    %4086 = vrot.lane.b32.xlu0 %v4073, 124
    %v4087 = vpop.permute.xlu0 %4086
    %v4090 = vsel %vm3724, %v4085, 0.0
    %v4091 = vsel %vm3724, %v4087, 0.0
    %vm4092 = vcmp.le.s32.totalorder %v722, 8
    %vm4093 = vcmp.le.s32.totalorder %v723, 8
    %vm4094 = vcmp.le.s32.totalorder %v724, 8
    %vm4095 = vmand %vm728, %vm4092
    %vm4096 = vmand %vm729, %vm4093
    %vm4097 = vmand %vm730, %vm4094
    %vm4098 = vmand %vm4095, %vm737
    %vm4099 = vmand %vm4096, %vm737
    %vm4100 = vmand %vm4097, %vm737
    %vm4101 = vcmp.le.s32.totalorder %v727, 8
    %vm4102 = vmand %vm4098, %vm4101
    %vm4103 = vmand %vm4099, %vm4101
    %vm4104 = vmand %vm4100, %vm4101
    %v4105 = vstv %s3657
    %v4106 = vstv %s3576
    %v4107 = vmul.f32 %v4106, %v3700
    %v4108 = vmul.f32 %v4106, %v3701
    %v4109 = vmul.f32 %v4106, %v3702
    %v4110 = vmul.f32 %v4106, %v3703
    %v4111 = vmul.f32 %v4106, %v3704
    %v4112 = vmul.f32 %v4106, %v3705
    %v4113 = vstv %s3577
    %v4114 = vmul.f32 %v4113, %v3677
    %v4115 = vmul.f32 %v4113, %v3667
    %v4116 = vmul.f32 %v4113, %v3666
    %v4117 = vmul.f32 %v4113, %v3678
    %v4118 = vmul.f32 %v4113, %v3670
    %v4119 = vmul.f32 %v4113, %v3669
    %v4120 = vstv %s3578
    %v4121 = vmul.f32 %v4120, %v3725
    %v4122 = vmul.f32 %v4120, %v3726
    %v4123 = vmul.f32 %v4120, %v3727
    %v4124 = vmul.f32 %v4120, %v3728
    %v4125 = vmul.f32 %v4120, %v3729
    %v4126 = vmul.f32 %v4120, %v3730
    %v4127 = vstv %s3579
    %v4128 = vmul.f32 %v4127, %v3751
    %v4129 = vmul.f32 %v4127, %v3752
    %v4130 = vmul.f32 %v4127, %v3753
    %v4131 = vmul.f32 %v4127, %v3754
    %v4132 = vmul.f32 %v4127, %v3755
    %v4133 = vmul.f32 %v4127, %v3756
    %v4134 = vstv %s3580
    %v4135 = vmul.f32 %v4134, %v2854
    %v4136 = vmul.f32 %v4134, %v2855
    %v4137 = vmul.f32 %v4134, %v2856
    %v4138 = vmul.f32 %v4134, %v2857
    %v4139 = vmul.f32 %v4134, %v2858
    %v4140 = vmul.f32 %v4134, %v2859
    %v4141 = vstv %s3581
    %v4142 = vmul.f32 %v4141, %v3775
    %v4143 = vmul.f32 %v4141, %v3776
    %v4144 = vmul.f32 %v4141, %v3777
    %v4145 = vmul.f32 %v4141, %v3778
    %v4146 = vmul.f32 %v4141, %v3779
    %v4147 = vmul.f32 %v4141, %v3780
    %v4148 = vstv %s3582
    %v4149 = vmul.f32 %v4148, %v3701
    %v4150 = vmul.f32 %v4148, %v3797
    %v4151 = vmul.f32 %v4148, %v3798
    %v4152 = vmul.f32 %v4148, %v3704
    %v4153 = vmul.f32 %v4148, %v3799
    %v4154 = vstv %s3583
    %v4155 = vmul.f32 %v4154, %v3667
    %v4156 = vmul.f32 %v4154, %v3782
    %v4157 = vmul.f32 %v4154, 0.0
    %v4158 = vmul.f32 %v4154, %v3670
    %v4159 = vmul.f32 %v4154, %v3784
    %v4160 = vstv %s3584
    %v4161 = vmul.f32 %v4160, %v3726
    %v4162 = vmul.f32 %v4160, %v3809
    %v4163 = vmul.f32 %v4160, %v3810
    %v4164 = vmul.f32 %v4160, %v3729
    %v4165 = vmul.f32 %v4160, %v3811
    %v4166 = vstv %s3585
    %v4167 = vmul.f32 %v4166, %v3850
    %v4168 = vmul.f32 %v4166, %v3851
    %v4169 = vmul.f32 %v4166, %v3852
    %v4170 = vmul.f32 %v4166, %v3853
    %v4171 = vmul.f32 %v4166, %v3854
    %v4172 = vmul.f32 %v4166, %v3855
    %v4173 = vstv %s3586
    %v4174 = vmul.f32 %v4173, %v3828
    %v4175 = vmul.f32 %v4173, %v3818
    %v4176 = vmul.f32 %v4173, %v3817
    %v4177 = vmul.f32 %v4173, %v3829
    %v4178 = vmul.f32 %v4173, %v3821
    %v4179 = vmul.f32 %v4173, %v3820
    %v4180 = vstv %s3587
    %v4181 = vmul.f32 %v4180, %v3874
    %v4182 = vmul.f32 %v4180, %v3875
    %v4183 = vmul.f32 %v4180, %v3876
    %v4184 = vmul.f32 %v4180, %v3877
    %v4185 = vmul.f32 %v4180, %v3878
    %v4186 = vmul.f32 %v4180, %v3879
    %v4187 = vstv %s3588
    %v4188 = vmul.f32 %v4187, %v3900
    %v4189 = vmul.f32 %v4187, %v3901
    %v4190 = vmul.f32 %v4187, %v3902
    %v4191 = vmul.f32 %v4187, %v3903
    %v4192 = vmul.f32 %v4187, %v3904
    %v4193 = vmul.f32 %v4187, %v3905
    %v4194 = vstv %s3589
    %v4195 = vmul.f32 %v4194, %v3212
    %v4196 = vmul.f32 %v4194, %v3213
    %v4197 = vmul.f32 %v4194, %v3214
    %v4198 = vmul.f32 %v4194, %v3215
    %v4199 = vmul.f32 %v4194, %v3216
    %v4200 = vmul.f32 %v4194, %v3217
    %v4201 = vstv %s3590
    %v4202 = vmul.f32 %v4201, %v3924
    %v4203 = vmul.f32 %v4201, %v3925
    %v4204 = vmul.f32 %v4201, %v3926
    %v4205 = vmul.f32 %v4201, %v3927
    %v4206 = vmul.f32 %v4201, %v3928
    %v4207 = vmul.f32 %v4201, %v3929
    %v4208 = vstv %s3591
    %v4209 = vmul.f32 %v4208, %v3851
    %v4210 = vmul.f32 %v4208, %v3942
    %v4211 = vmul.f32 %v4208, %v3798
    %v4212 = vmul.f32 %v4208, %v3854
    %v4213 = vmul.f32 %v4208, %v3943
    %v4214 = vstv %s3592
    %v4215 = vmul.f32 %v4214, %v3818
    %v4216 = vmul.f32 %v4214, %v3931
    %v4217 = vmul.f32 %v4214, 0.0
    %v4218 = vmul.f32 %v4214, %v3821
    %v4219 = vmul.f32 %v4214, %v3933
    %v4220 = vstv %s3593
    %v4221 = vmul.f32 %v4220, %v3875
    %v4222 = vmul.f32 %v4220, %v3950
    %v4223 = vmul.f32 %v4220, %v3810
    %v4224 = vmul.f32 %v4220, %v3878
    %v4225 = vmul.f32 %v4220, %v3951
    %v4226 = vstv %s3594
    %v4227 = vmul.f32 %v4226, %v3990
    %v4228 = vmul.f32 %v4226, %v3991
    %v4229 = vmul.f32 %v4226, %v3992
    %v4230 = vmul.f32 %v4226, %v3993
    %v4231 = vmul.f32 %v4226, %v3994
    %v4232 = vmul.f32 %v4226, %v3995
    %v4233 = vstv %s3595
    %v4234 = vmul.f32 %v4233, %v3968
    %v4235 = vmul.f32 %v4233, %v3958
    %v4236 = vmul.f32 %v4233, %v3957
    %v4237 = vmul.f32 %v4233, %v3969
    %v4238 = vmul.f32 %v4233, %v3961
    %v4239 = vmul.f32 %v4233, %v3960
    %v4240 = vstv %s3596
    %v4241 = vmul.f32 %v4240, %v4014
    %v4242 = vmul.f32 %v4240, %v4015
    %v4243 = vmul.f32 %v4240, %v4016
    %v4244 = vmul.f32 %v4240, %v4017
    %v4245 = vmul.f32 %v4240, %v4018
    %v4246 = vmul.f32 %v4240, %v4019
    %v4247 = vstv %s3597
    %v4248 = vmul.f32 %v4247, %v4040
    %v4249 = vmul.f32 %v4247, %v4041
    %v4250 = vmul.f32 %v4247, %v4042
    %v4251 = vmul.f32 %v4247, %v4043
    %v4252 = vmul.f32 %v4247, %v4044
    %v4253 = vmul.f32 %v4247, %v4045
    %v4254 = vstv %s3598
    %v4255 = vmul.f32 %v4254, %v3570
    %v4256 = vmul.f32 %v4254, %v3571
    %v4257 = vmul.f32 %v4254, %v3572
    %v4258 = vmul.f32 %v4254, %v3573
    %v4259 = vmul.f32 %v4254, %v3574
    %v4260 = vmul.f32 %v4254, %v3575
    %v4261 = vstv %s3599
    %v4262 = vmul.f32 %v4261, %v4064
    %v4263 = vmul.f32 %v4261, %v4065
    %v4264 = vmul.f32 %v4261, %v4066
    %v4265 = vmul.f32 %v4261, %v4067
    %v4266 = vmul.f32 %v4261, %v4068
    %v4267 = vmul.f32 %v4261, %v4069
    %v4268 = vstv %s3600
    %v4269 = vmul.f32 %v4268, %v3991
    %v4270 = vmul.f32 %v4268, %v4082
    %v4271 = vmul.f32 %v4268, %v3798
    %v4272 = vmul.f32 %v4268, %v3994
    %v4273 = vmul.f32 %v4268, %v4083
    %v4274 = vstv %s3601
    %v4275 = vmul.f32 %v4274, %v3958
    %v4276 = vmul.f32 %v4274, %v4071
    %v4277 = vmul.f32 %v4274, 0.0
    %v4278 = vmul.f32 %v4274, %v3961
    %v4279 = vmul.f32 %v4274, %v4073
    %v4280 = vstv %s3602
    %v4281 = vmul.f32 %v4280, %v4015
    %v4282 = vmul.f32 %v4280, %v4090
    %v4283 = vmul.f32 %v4280, %v3810
    %v4284 = vmul.f32 %v4280, %v4018
    %v4285 = vmul.f32 %v4280, %v4091
    %v4286 = vadd.f32 %v4105, %v4107
    %v4287 = vadd.f32 %v4105, %v4108
    %v4288 = vadd.f32 %v4105, %v4109
    %v4289 = vadd.f32 %v4105, %v4110
    %v4290 = vadd.f32 %v4105, %v4111
    %v4291 = vadd.f32 %v4105, %v4112
    %v4292 = vadd.f32 %v4114, %v4121
    %v4293 = vadd.f32 %v4115, %v4122
    %v4294 = vadd.f32 %v4116, %v4123
    %v4295 = vadd.f32 %v4117, %v4124
    %v4296 = vadd.f32 %v4118, %v4125
    %v4297 = vadd.f32 %v4119, %v4126
    %v4298 = vadd.f32 %v4128, %v4135
    %v4299 = vadd.f32 %v4129, %v4136
    %v4300 = vadd.f32 %v4130, %v4137
    %v4301 = vadd.f32 %v4131, %v4138
    %v4302 = vadd.f32 %v4132, %v4139
    %v4303 = vadd.f32 %v4133, %v4140
    %v4304 = vadd.f32 %v4142, %v4149
    %v4305 = vadd.f32 %v4143, %v4150
    %v4306 = vadd.f32 %v4144, %v4151
    %v4307 = vadd.f32 %v4145, %v4152
    %v4308 = vadd.f32 %v4146, %v4153
    %v4309 = vadd.f32 %v4147, %v4151
    %v4310 = vadd.f32 %v4155, %v4161
    %v4311 = vadd.f32 %v4156, %v4162
    %v4312 = vadd.f32 %v4157, %v4163
    %v4313 = vadd.f32 %v4158, %v4164
    %v4314 = vadd.f32 %v4159, %v4165
    %v4315 = vadd.f32 %v4167, %v4174
    %v4316 = vadd.f32 %v4168, %v4175
    %v4317 = vadd.f32 %v4169, %v4176
    %v4318 = vadd.f32 %v4170, %v4177
    %v4319 = vadd.f32 %v4171, %v4178
    %v4320 = vadd.f32 %v4172, %v4179
    %v4321 = vadd.f32 %v4181, %v4188
    %v4322 = vadd.f32 %v4182, %v4189
    %v4323 = vadd.f32 %v4183, %v4190
    %v4324 = vadd.f32 %v4184, %v4191
    %v4325 = vadd.f32 %v4185, %v4192
    %v4326 = vadd.f32 %v4186, %v4193
    %v4327 = vadd.f32 %v4195, %v4202
    %v4328 = vadd.f32 %v4196, %v4203
    %v4329 = vadd.f32 %v4197, %v4204
    %v4330 = vadd.f32 %v4198, %v4205
    %v4331 = vadd.f32 %v4199, %v4206
    %v4332 = vadd.f32 %v4200, %v4207
    %v4333 = vadd.f32 %v4209, %v4215
    %v4334 = vadd.f32 %v4210, %v4216
    %v4335 = vadd.f32 %v4211, %v4217
    %v4336 = vadd.f32 %v4212, %v4218
    %v4337 = vadd.f32 %v4213, %v4219
    %v4338 = vadd.f32 %v4221, %v4227
    %v4339 = vadd.f32 %v4222, %v4228
    %v4340 = vadd.f32 %v4223, %v4229
    %v4341 = vadd.f32 %v4224, %v4230
    %v4342 = vadd.f32 %v4225, %v4231
    %v4343 = vadd.f32 %v4223, %v4232
    %v4344 = vadd.f32 %v4234, %v4241
    %v4345 = vadd.f32 %v4235, %v4242
    %v4346 = vadd.f32 %v4236, %v4243
    %v4347 = vadd.f32 %v4237, %v4244
    %v4348 = vadd.f32 %v4238, %v4245
    %v4349 = vadd.f32 %v4239, %v4246
    %v4350 = vadd.f32 %v4248, %v4255
    %v4351 = vadd.f32 %v4249, %v4256
    %v4352 = vadd.f32 %v4250, %v4257
    %v4353 = vadd.f32 %v4251, %v4258
    %v4354 = vadd.f32 %v4252, %v4259
    %v4355 = vadd.f32 %v4253, %v4260
    %v4356 = vadd.f32 %v4262, %v4269
    %v4357 = vadd.f32 %v4263, %v4270
    %v4358 = vadd.f32 %v4264, %v4271
    %v4359 = vadd.f32 %v4265, %v4272
    %v4360 = vadd.f32 %v4266, %v4273
    %v4361 = vadd.f32 %v4267, %v4271
    %v4362 = vadd.f32 %v4275, %v4281
    %v4363 = vadd.f32 %v4276, %v4282
    %v4364 = vadd.f32 %v4277, %v4283
    %v4365 = vadd.f32 %v4278, %v4284
    %v4366 = vadd.f32 %v4279, %v4285
    %v4367 = vadd.f32 %v4286, %v4292
    %v4368 = vadd.f32 %v4287, %v4293
    %v4369 = vadd.f32 %v4288, %v4294
    %v4370 = vadd.f32 %v4289, %v4295
    %v4371 = vadd.f32 %v4290, %v4296
    %v4372 = vadd.f32 %v4291, %v4297
    %v4373 = vadd.f32 %v4298, %v4304
    %v4374 = vadd.f32 %v4299, %v4305
    %v4375 = vadd.f32 %v4300, %v4306
    %v4376 = vadd.f32 %v4301, %v4307
    %v4377 = vadd.f32 %v4302, %v4308
    %v4378 = vadd.f32 %v4303, %v4309
    %v4379 = vadd.f32 %v4310, %v4315
    %v4380 = vadd.f32 %v4311, %v4316
    %v4381 = vadd.f32 %v4312, %v4317
    %v4382 = vadd.f32 %v4313, %v4318
    %v4383 = vadd.f32 %v4314, %v4319
    %v4384 = vadd.f32 %v4312, %v4320
    %v4385 = vadd.f32 %v4321, %v4327
    %v4386 = vadd.f32 %v4322, %v4328
    %v4387 = vadd.f32 %v4323, %v4329
    %v4388 = vadd.f32 %v4324, %v4330
    %v4389 = vadd.f32 %v4325, %v4331
    %v4390 = vadd.f32 %v4326, %v4332
    %v4391 = vadd.f32 %v4333, %v4338
    %v4392 = vadd.f32 %v4334, %v4339
    %v4393 = vadd.f32 %v4335, %v4340
    %v4394 = vadd.f32 %v4336, %v4341
    %v4395 = vadd.f32 %v4337, %v4342
    %v4396 = vadd.f32 %v4335, %v4343
    %v4397 = vadd.f32 %v4344, %v4350
    %v4398 = vadd.f32 %v4345, %v4351
    %v4399 = vadd.f32 %v4346, %v4352
    %v4400 = vadd.f32 %v4347, %v4353
    %v4401 = vadd.f32 %v4348, %v4354
    %v4402 = vadd.f32 %v4349, %v4355
    %v4403 = vadd.f32 %v4356, %v4362
    %v4404 = vadd.f32 %v4357, %v4363
    %v4405 = vadd.f32 %v4358, %v4364
    %v4406 = vadd.f32 %v4359, %v4365
    %v4407 = vadd.f32 %v4360, %v4366
    %v4408 = vadd.f32 %v4361, %v4364
    %v4409 = vadd.f32 %v4367, %v4373
    %v4410 = vadd.f32 %v4368, %v4374
    %v4411 = vadd.f32 %v4369, %v4375
    %v4412 = vadd.f32 %v4370, %v4376
    %v4413 = vadd.f32 %v4371, %v4377
    %v4414 = vadd.f32 %v4372, %v4378
    %v4415 = vadd.f32 %v4379, %v4385
    %v4416 = vadd.f32 %v4380, %v4386
    %v4417 = vadd.f32 %v4381, %v4387
    %v4418 = vadd.f32 %v4382, %v4388
    %v4419 = vadd.f32 %v4383, %v4389
    %v4420 = vadd.f32 %v4384, %v4390
    %v4421 = vadd.f32 %v4391, %v4397
    %v4422 = vadd.f32 %v4392, %v4398
    %v4423 = vadd.f32 %v4393, %v4399
    %v4424 = vadd.f32 %v4394, %v4400
    %v4425 = vadd.f32 %v4395, %v4401
    %v4426 = vadd.f32 %v4396, %v4402
    %v4427 = vadd.f32 %v4409, %v4415
    %v4428 = vadd.f32 %v4410, %v4416
    %v4429 = vadd.f32 %v4411, %v4417
    %v4430 = vadd.f32 %v4412, %v4418
    %v4431 = vadd.f32 %v4413, %v4419
    %v4432 = vadd.f32 %v4414, %v4420
    %v4433 = vadd.f32 %v4421, %v4403
    %v4434 = vadd.f32 %v4422, %v4404
    %v4435 = vadd.f32 %v4423, %v4405
    %v4436 = vadd.f32 %v4424, %v4406
    %v4437 = vadd.f32 %v4425, %v4407
    %v4438 = vadd.f32 %v4426, %v4408
    %v4439 = vadd.f32 %v4427, %v4433
    %v4440 = vadd.f32 %v4428, %v4434
    %v4441 = vadd.f32 %v4429, %v4435
    %v4442 = vadd.f32 %v4430, %v4436
    %v4443 = vadd.f32 %v4431, %v4437
    %v4444 = vadd.f32 %v4432, %v4438
    %v4445 = vsel %vm4102, 1, 0
    %v4446 = vsel %vm4103, 1, 0
    %v4447 = vsel %vm4104, 1, 0
    %vm4448 = vcmp.eq.s32.totalorder %v4445, 1
    %vm4449 = vcmp.eq.s32.totalorder %v4446, 1
    %vm4450 = vcmp.eq.s32.totalorder %v4447, 1
    %v4451 = vsel %vm4448, %v4439, 0.0
    %v4452 = vsel %vm4449, %v4440, 0.0
    %v4453 = vsel %vm4450, %v4441, 0.0
    %v4454 = vsel %vm4448, %v4442, 0.0
    %v4455 = vsel %vm4449, %v4443, 0.0
    %v4456 = vsel %vm4450, %v4444, 0.0
    %v4457 = vstv %s3658
    %v4458 = vstv %s3603
    %v4459 = vmul.f32 %v4458, %v3700
    %v4460 = vmul.f32 %v4458, %v3701
    %v4461 = vmul.f32 %v4458, %v3702
    %v4462 = vmul.f32 %v4458, %v3703
    %v4463 = vmul.f32 %v4458, %v3704
    %v4464 = vmul.f32 %v4458, %v3705
    %v4465 = vstv %s3604
    %v4466 = vmul.f32 %v4465, %v3677
    %v4467 = vmul.f32 %v4465, %v3667
    %v4468 = vmul.f32 %v4465, %v3666
    %v4469 = vmul.f32 %v4465, %v3678
    %v4470 = vmul.f32 %v4465, %v3670
    %v4471 = vmul.f32 %v4465, %v3669
    %v4472 = vstv %s3605
    %v4473 = vmul.f32 %v4472, %v3725
    %v4474 = vmul.f32 %v4472, %v3726
    %v4475 = vmul.f32 %v4472, %v3727
    %v4476 = vmul.f32 %v4472, %v3728
    %v4477 = vmul.f32 %v4472, %v3729
    %v4478 = vmul.f32 %v4472, %v3730
    %v4479 = vstv %s3606
    %v4480 = vmul.f32 %v4479, %v3751
    %v4481 = vmul.f32 %v4479, %v3752
    %v4482 = vmul.f32 %v4479, %v3753
    %v4483 = vmul.f32 %v4479, %v3754
    %v4484 = vmul.f32 %v4479, %v3755
    %v4485 = vmul.f32 %v4479, %v3756
    %v4486 = vstv %s3607
    %v4487 = vmul.f32 %v4486, %v2854
    %v4488 = vmul.f32 %v4486, %v2855
    %v4489 = vmul.f32 %v4486, %v2856
    %v4490 = vmul.f32 %v4486, %v2857
    %v4491 = vmul.f32 %v4486, %v2858
    %v4492 = vmul.f32 %v4486, %v2859
    %v4493 = vstv %s3608
    %v4494 = vmul.f32 %v4493, %v3775
    %v4495 = vmul.f32 %v4493, %v3776
    %v4496 = vmul.f32 %v4493, %v3777
    %v4497 = vmul.f32 %v4493, %v3778
    %v4498 = vmul.f32 %v4493, %v3779
    %v4499 = vmul.f32 %v4493, %v3780
    %v4500 = vstv %s3609
    %v4501 = vmul.f32 %v4500, %v3701
    %v4502 = vmul.f32 %v4500, %v3797
    %v4503 = vmul.f32 %v4500, %v3798
    %v4504 = vmul.f32 %v4500, %v3704
    %v4505 = vmul.f32 %v4500, %v3799
    %v4506 = vstv %s3610
    %v4507 = vmul.f32 %v4506, %v3667
    %v4508 = vmul.f32 %v4506, %v3782
    %v4509 = vmul.f32 %v4506, 0.0
    %v4510 = vmul.f32 %v4506, %v3670
    %v4511 = vmul.f32 %v4506, %v3784
    %v4512 = vstv %s3611
    %v4513 = vmul.f32 %v4512, %v3726
    %v4514 = vmul.f32 %v4512, %v3809
    %v4515 = vmul.f32 %v4512, %v3810
    %v4516 = vmul.f32 %v4512, %v3729
    %v4517 = vmul.f32 %v4512, %v3811
    %v4518 = vstv %s3612
    %v4519 = vmul.f32 %v4518, %v3850
    %v4520 = vmul.f32 %v4518, %v3851
    %v4521 = vmul.f32 %v4518, %v3852
    %v4522 = vmul.f32 %v4518, %v3853
    %v4523 = vmul.f32 %v4518, %v3854
    %v4524 = vmul.f32 %v4518, %v3855
    %v4525 = vstv %s3613
    %v4526 = vmul.f32 %v4525, %v3828
    %v4527 = vmul.f32 %v4525, %v3818
    %v4528 = vmul.f32 %v4525, %v3817
    %v4529 = vmul.f32 %v4525, %v3829
    %v4530 = vmul.f32 %v4525, %v3821
    %v4531 = vmul.f32 %v4525, %v3820
    %v4532 = vstv %s3614
    %v4533 = vmul.f32 %v4532, %v3874
    %v4534 = vmul.f32 %v4532, %v3875
    %v4535 = vmul.f32 %v4532, %v3876
    %v4536 = vmul.f32 %v4532, %v3877
    %v4537 = vmul.f32 %v4532, %v3878
    %v4538 = vmul.f32 %v4532, %v3879
    %v4539 = vstv %s3615
    %v4540 = vmul.f32 %v4539, %v3900
    %v4541 = vmul.f32 %v4539, %v3901
    %v4542 = vmul.f32 %v4539, %v3902
    %v4543 = vmul.f32 %v4539, %v3903
    %v4544 = vmul.f32 %v4539, %v3904
    %v4545 = vmul.f32 %v4539, %v3905
    %v4546 = vstv %s3616
    %v4547 = vmul.f32 %v4546, %v3212
    %v4548 = vmul.f32 %v4546, %v3213
    %v4549 = vmul.f32 %v4546, %v3214
    %v4550 = vmul.f32 %v4546, %v3215
    %v4551 = vmul.f32 %v4546, %v3216
    %v4552 = vmul.f32 %v4546, %v3217
    %v4553 = vstv %s3617
    %v4554 = vmul.f32 %v4553, %v3924
    %v4555 = vmul.f32 %v4553, %v3925
    %v4556 = vmul.f32 %v4553, %v3926
    %v4557 = vmul.f32 %v4553, %v3927
    %v4558 = vmul.f32 %v4553, %v3928
    %v4559 = vmul.f32 %v4553, %v3929
    %v4560 = vstv %s3618
    %v4561 = vmul.f32 %v4560, %v3851
    %v4562 = vmul.f32 %v4560, %v3942
    %v4563 = vmul.f32 %v4560, %v3798
    %v4564 = vmul.f32 %v4560, %v3854
    %v4565 = vmul.f32 %v4560, %v3943
    %v4566 = vstv %s3619
    %v4567 = vmul.f32 %v4566, %v3818
    %v4568 = vmul.f32 %v4566, %v3931
    %v4569 = vmul.f32 %v4566, 0.0
    %v4570 = vmul.f32 %v4566, %v3821
    %v4571 = vmul.f32 %v4566, %v3933
    %v4572 = vstv %s3620
    %v4573 = vmul.f32 %v4572, %v3875
    %v4574 = vmul.f32 %v4572, %v3950
    %v4575 = vmul.f32 %v4572, %v3810
    %v4576 = vmul.f32 %v4572, %v3878
    %v4577 = vmul.f32 %v4572, %v3951
    %v4578 = vstv %s3621
    %v4579 = vmul.f32 %v4578, %v3990
    %v4580 = vmul.f32 %v4578, %v3991
    %v4581 = vmul.f32 %v4578, %v3992
    %v4582 = vmul.f32 %v4578, %v3993
    %v4583 = vmul.f32 %v4578, %v3994
    %v4584 = vmul.f32 %v4578, %v3995
    %v4585 = vstv %s3622
    %v4586 = vmul.f32 %v4585, %v3968
    %v4587 = vmul.f32 %v4585, %v3958
    %v4588 = vmul.f32 %v4585, %v3957
    %v4589 = vmul.f32 %v4585, %v3969
    %v4590 = vmul.f32 %v4585, %v3961
    %v4591 = vmul.f32 %v4585, %v3960
    %v4592 = vstv %s3623
    %v4593 = vmul.f32 %v4592, %v4014
    %v4594 = vmul.f32 %v4592, %v4015
    %v4595 = vmul.f32 %v4592, %v4016
    %v4596 = vmul.f32 %v4592, %v4017
    %v4597 = vmul.f32 %v4592, %v4018
    %v4598 = vmul.f32 %v4592, %v4019
    %v4599 = vstv %s3624
    %v4600 = vmul.f32 %v4599, %v4040
    %v4601 = vmul.f32 %v4599, %v4041
    %v4602 = vmul.f32 %v4599, %v4042
    %v4603 = vmul.f32 %v4599, %v4043
    %v4604 = vmul.f32 %v4599, %v4044
    %v4605 = vmul.f32 %v4599, %v4045
    %v4606 = vstv %s3625
    %v4607 = vmul.f32 %v4606, %v3570
    %v4608 = vmul.f32 %v4606, %v3571
    %v4609 = vmul.f32 %v4606, %v3572
    %v4610 = vmul.f32 %v4606, %v3573
    %v4611 = vmul.f32 %v4606, %v3574
    %v4612 = vmul.f32 %v4606, %v3575
    %v4613 = vstv %s3626
    %v4614 = vmul.f32 %v4613, %v4064
    %v4615 = vmul.f32 %v4613, %v4065
    %v4616 = vmul.f32 %v4613, %v4066
    %v4617 = vmul.f32 %v4613, %v4067
    %v4618 = vmul.f32 %v4613, %v4068
    %v4619 = vmul.f32 %v4613, %v4069
    %v4620 = vstv %s3627
    %v4621 = vmul.f32 %v4620, %v3991
    %v4622 = vmul.f32 %v4620, %v4082
    %v4623 = vmul.f32 %v4620, %v3798
    %v4624 = vmul.f32 %v4620, %v3994
    %v4625 = vmul.f32 %v4620, %v4083
    %v4626 = vstv %s3628
    %v4627 = vmul.f32 %v4626, %v3958
    %v4628 = vmul.f32 %v4626, %v4071
    %v4629 = vmul.f32 %v4626, 0.0
    %v4630 = vmul.f32 %v4626, %v3961
    %v4631 = vmul.f32 %v4626, %v4073
    %v4632 = vstv %s3629
    %v4633 = vmul.f32 %v4632, %v4015
    %v4634 = vmul.f32 %v4632, %v4090
    %v4635 = vmul.f32 %v4632, %v3810
    %v4636 = vmul.f32 %v4632, %v4018
    %v4637 = vmul.f32 %v4632, %v4091
    %v4638 = vadd.f32 %v4457, %v4459
    %v4639 = vadd.f32 %v4457, %v4460
    %v4640 = vadd.f32 %v4457, %v4461
    %v4641 = vadd.f32 %v4457, %v4462
    %v4642 = vadd.f32 %v4457, %v4463
    %v4643 = vadd.f32 %v4457, %v4464
    %v4644 = vadd.f32 %v4466, %v4473
    %v4645 = vadd.f32 %v4467, %v4474
    %v4646 = vadd.f32 %v4468, %v4475
    %v4647 = vadd.f32 %v4469, %v4476
    %v4648 = vadd.f32 %v4470, %v4477
    %v4649 = vadd.f32 %v4471, %v4478
    %v4650 = vadd.f32 %v4480, %v4487
    %v4651 = vadd.f32 %v4481, %v4488
    %v4652 = vadd.f32 %v4482, %v4489
    %v4653 = vadd.f32 %v4483, %v4490
    %v4654 = vadd.f32 %v4484, %v4491
    %v4655 = vadd.f32 %v4485, %v4492
    %v4656 = vadd.f32 %v4494, %v4501
    %v4657 = vadd.f32 %v4495, %v4502
    %v4658 = vadd.f32 %v4496, %v4503
    %v4659 = vadd.f32 %v4497, %v4504
    %v4660 = vadd.f32 %v4498, %v4505
    %v4661 = vadd.f32 %v4499, %v4503
    %v4662 = vadd.f32 %v4507, %v4513
    %v4663 = vadd.f32 %v4508, %v4514
    %v4664 = vadd.f32 %v4509, %v4515
    %v4665 = vadd.f32 %v4510, %v4516
    %v4666 = vadd.f32 %v4511, %v4517
    %v4667 = vadd.f32 %v4519, %v4526
    %v4668 = vadd.f32 %v4520, %v4527
    %v4669 = vadd.f32 %v4521, %v4528
    %v4670 = vadd.f32 %v4522, %v4529
    %v4671 = vadd.f32 %v4523, %v4530
    %v4672 = vadd.f32 %v4524, %v4531
    %v4673 = vadd.f32 %v4533, %v4540
    %v4674 = vadd.f32 %v4534, %v4541
    %v4675 = vadd.f32 %v4535, %v4542
    %v4676 = vadd.f32 %v4536, %v4543
    %v4677 = vadd.f32 %v4537, %v4544
    %v4678 = vadd.f32 %v4538, %v4545
    %v4679 = vadd.f32 %v4547, %v4554
    %v4680 = vadd.f32 %v4548, %v4555
    %v4681 = vadd.f32 %v4549, %v4556
    %v4682 = vadd.f32 %v4550, %v4557
    %v4683 = vadd.f32 %v4551, %v4558
    %v4684 = vadd.f32 %v4552, %v4559
    %v4685 = vadd.f32 %v4561, %v4567
    %v4686 = vadd.f32 %v4562, %v4568
    %v4687 = vadd.f32 %v4563, %v4569
    %v4688 = vadd.f32 %v4564, %v4570
    %v4689 = vadd.f32 %v4565, %v4571
    %v4690 = vadd.f32 %v4573, %v4579
    %v4691 = vadd.f32 %v4574, %v4580
    %v4692 = vadd.f32 %v4575, %v4581
    %v4693 = vadd.f32 %v4576, %v4582
    %v4694 = vadd.f32 %v4577, %v4583
    %v4695 = vadd.f32 %v4575, %v4584
    %v4696 = vadd.f32 %v4586, %v4593
    %v4697 = vadd.f32 %v4587, %v4594
    %v4698 = vadd.f32 %v4588, %v4595
    %v4699 = vadd.f32 %v4589, %v4596
    %v4700 = vadd.f32 %v4590, %v4597
    %v4701 = vadd.f32 %v4591, %v4598
    %v4702 = vadd.f32 %v4600, %v4607
    %v4703 = vadd.f32 %v4601, %v4608
    %v4704 = vadd.f32 %v4602, %v4609
    %v4705 = vadd.f32 %v4603, %v4610
    %v4706 = vadd.f32 %v4604, %v4611
    %v4707 = vadd.f32 %v4605, %v4612
    %v4708 = vadd.f32 %v4614, %v4621
    %v4709 = vadd.f32 %v4615, %v4622
    %v4710 = vadd.f32 %v4616, %v4623
    %v4711 = vadd.f32 %v4617, %v4624
    %v4712 = vadd.f32 %v4618, %v4625
    %v4713 = vadd.f32 %v4619, %v4623
    %v4714 = vadd.f32 %v4627, %v4633
    %v4715 = vadd.f32 %v4628, %v4634
    %v4716 = vadd.f32 %v4629, %v4635
    %v4717 = vadd.f32 %v4630, %v4636
    %v4718 = vadd.f32 %v4631, %v4637
    %v4719 = vadd.f32 %v4638, %v4644
    %v4720 = vadd.f32 %v4639, %v4645
    %v4721 = vadd.f32 %v4640, %v4646
    %v4722 = vadd.f32 %v4641, %v4647
    %v4723 = vadd.f32 %v4642, %v4648
    %v4724 = vadd.f32 %v4643, %v4649
    %v4725 = vadd.f32 %v4650, %v4656
    %v4726 = vadd.f32 %v4651, %v4657
    %v4727 = vadd.f32 %v4652, %v4658
    %v4728 = vadd.f32 %v4653, %v4659
    %v4729 = vadd.f32 %v4654, %v4660
    %v4730 = vadd.f32 %v4655, %v4661
    %v4731 = vadd.f32 %v4662, %v4667
    %v4732 = vadd.f32 %v4663, %v4668
    %v4733 = vadd.f32 %v4664, %v4669
    %v4734 = vadd.f32 %v4665, %v4670
    %v4735 = vadd.f32 %v4666, %v4671
    %v4736 = vadd.f32 %v4664, %v4672
    %v4737 = vadd.f32 %v4673, %v4679
    %v4738 = vadd.f32 %v4674, %v4680
    %v4739 = vadd.f32 %v4675, %v4681
    %v4740 = vadd.f32 %v4676, %v4682
    %v4741 = vadd.f32 %v4677, %v4683
    %v4742 = vadd.f32 %v4678, %v4684
    %v4743 = vadd.f32 %v4685, %v4690
    %v4744 = vadd.f32 %v4686, %v4691
    %v4745 = vadd.f32 %v4687, %v4692
    %v4746 = vadd.f32 %v4688, %v4693
    %v4747 = vadd.f32 %v4689, %v4694
    %v4748 = vadd.f32 %v4687, %v4695
    %v4749 = vadd.f32 %v4696, %v4702
    %v4750 = vadd.f32 %v4697, %v4703
    %v4751 = vadd.f32 %v4698, %v4704
    %v4752 = vadd.f32 %v4699, %v4705
    %v4753 = vadd.f32 %v4700, %v4706
    %v4754 = vadd.f32 %v4701, %v4707
    %v4755 = vadd.f32 %v4708, %v4714
    %v4756 = vadd.f32 %v4709, %v4715
    %v4757 = vadd.f32 %v4710, %v4716
    %v4758 = vadd.f32 %v4711, %v4717
    %v4759 = vadd.f32 %v4712, %v4718
    %v4760 = vadd.f32 %v4713, %v4716
    %v4761 = vadd.f32 %v4719, %v4725
    %v4762 = vadd.f32 %v4720, %v4726
    %v4763 = vadd.f32 %v4721, %v4727
    %v4764 = vadd.f32 %v4722, %v4728
    %v4765 = vadd.f32 %v4723, %v4729
    %v4766 = vadd.f32 %v4724, %v4730
    %v4767 = vadd.f32 %v4731, %v4737
    %v4768 = vadd.f32 %v4732, %v4738
    %v4769 = vadd.f32 %v4733, %v4739
    %v4770 = vadd.f32 %v4734, %v4740
    %v4771 = vadd.f32 %v4735, %v4741
    %v4772 = vadd.f32 %v4736, %v4742
    %v4773 = vadd.f32 %v4743, %v4749
    %v4774 = vadd.f32 %v4744, %v4750
    %v4775 = vadd.f32 %v4745, %v4751
    %v4776 = vadd.f32 %v4746, %v4752
    %v4777 = vadd.f32 %v4747, %v4753
    %v4778 = vadd.f32 %v4748, %v4754
    %v4779 = vadd.f32 %v4761, %v4767
    %v4780 = vadd.f32 %v4762, %v4768
    %v4781 = vadd.f32 %v4763, %v4769
    %v4782 = vadd.f32 %v4764, %v4770
    %v4783 = vadd.f32 %v4765, %v4771
    %v4784 = vadd.f32 %v4766, %v4772
    %v4785 = vadd.f32 %v4773, %v4755
    %v4786 = vadd.f32 %v4774, %v4756
    %v4787 = vadd.f32 %v4775, %v4757
    %v4788 = vadd.f32 %v4776, %v4758
    %v4789 = vadd.f32 %v4777, %v4759
    %v4790 = vadd.f32 %v4778, %v4760
    %v4791 = vadd.f32 %v4779, %v4785
    %v4792 = vadd.f32 %v4780, %v4786
    %v4793 = vadd.f32 %v4781, %v4787
    %v4794 = vadd.f32 %v4782, %v4788
    %v4795 = vadd.f32 %v4783, %v4789
    %v4796 = vadd.f32 %v4784, %v4790
    %v4797 = vsel %vm4448, %v4791, 0.0
    %v4798 = vsel %vm4449, %v4792, 0.0
    %v4799 = vsel %vm4450, %v4793, 0.0
    %v4800 = vsel %vm4448, %v4794, 0.0
    %v4801 = vsel %vm4449, %v4795, 0.0
    %v4802 = vsel %vm4450, %v4796, 0.0
    %v4803 = vstv %s3659
    %v4804 = vstv %s3630
    %v4805 = vmul.f32 %v4804, %v3700
    %v4806 = vmul.f32 %v4804, %v3701
    %v4807 = vmul.f32 %v4804, %v3702
    %v4808 = vmul.f32 %v4804, %v3703
    %v4809 = vmul.f32 %v4804, %v3704
    %v4810 = vmul.f32 %v4804, %v3705
    %v4811 = vstv %s3631
    %v4812 = vmul.f32 %v4811, %v3677
    %v4813 = vmul.f32 %v4811, %v3667
    %v4814 = vmul.f32 %v4811, %v3666
    %v4815 = vmul.f32 %v4811, %v3678
    %v4816 = vmul.f32 %v4811, %v3670
    %v4817 = vmul.f32 %v4811, %v3669
    %v4818 = vstv %s3632
    %v4819 = vmul.f32 %v4818, %v3725
    %v4820 = vmul.f32 %v4818, %v3726
    %v4821 = vmul.f32 %v4818, %v3727
    %v4822 = vmul.f32 %v4818, %v3728
    %v4823 = vmul.f32 %v4818, %v3729
    %v4824 = vmul.f32 %v4818, %v3730
    %v4825 = vstv %s3633
    %v4826 = vmul.f32 %v4825, %v3751
    %v4827 = vmul.f32 %v4825, %v3752
    %v4828 = vmul.f32 %v4825, %v3753
    %v4829 = vmul.f32 %v4825, %v3754
    %v4830 = vmul.f32 %v4825, %v3755
    %v4831 = vmul.f32 %v4825, %v3756
    %v4832 = vstv %s3634
    %v4833 = vmul.f32 %v4832, %v2854
    %v4834 = vmul.f32 %v4832, %v2855
    %v4835 = vmul.f32 %v4832, %v2856
    %v4836 = vmul.f32 %v4832, %v2857
    %v4837 = vmul.f32 %v4832, %v2858
    %v4838 = vmul.f32 %v4832, %v2859
    %v4839 = vstv %s3635
    %v4840 = vmul.f32 %v4839, %v3775
    %v4841 = vmul.f32 %v4839, %v3776
    %v4842 = vmul.f32 %v4839, %v3777
    %v4843 = vmul.f32 %v4839, %v3778
    %v4844 = vmul.f32 %v4839, %v3779
    %v4845 = vmul.f32 %v4839, %v3780
    %v4846 = vstv %s3636
    %v4847 = vmul.f32 %v4846, %v3701
    %v4848 = vmul.f32 %v4846, %v3797
    %v4849 = vmul.f32 %v4846, %v3798
    %v4850 = vmul.f32 %v4846, %v3704
    %v4851 = vmul.f32 %v4846, %v3799
    %v4852 = vstv %s3637
    %v4853 = vmul.f32 %v4852, %v3667
    %v4854 = vmul.f32 %v4852, %v3782
    %v4855 = vmul.f32 %v4852, 0.0
    %v4856 = vmul.f32 %v4852, %v3670
    %v4857 = vmul.f32 %v4852, %v3784
    %v4858 = vstv %s3638
    %v4859 = vmul.f32 %v4858, %v3726
    %v4860 = vmul.f32 %v4858, %v3809
    %v4861 = vmul.f32 %v4858, %v3810
    %v4862 = vmul.f32 %v4858, %v3729
    %v4863 = vmul.f32 %v4858, %v3811
    %v4864 = vstv %s3639
    %v4865 = vmul.f32 %v4864, %v3850
    %v4866 = vmul.f32 %v4864, %v3851
    %v4867 = vmul.f32 %v4864, %v3852
    %v4868 = vmul.f32 %v4864, %v3853
    %v4869 = vmul.f32 %v4864, %v3854
    %v4870 = vmul.f32 %v4864, %v3855
    %v4871 = vstv %s3640
    %v4872 = vmul.f32 %v4871, %v3828
    %v4873 = vmul.f32 %v4871, %v3818
    %v4874 = vmul.f32 %v4871, %v3817
    %v4875 = vmul.f32 %v4871, %v3829
    %v4876 = vmul.f32 %v4871, %v3821
    %v4877 = vmul.f32 %v4871, %v3820
    %v4878 = vstv %s3641
    %v4879 = vmul.f32 %v4878, %v3874
    %v4880 = vmul.f32 %v4878, %v3875
    %v4881 = vmul.f32 %v4878, %v3876
    %v4882 = vmul.f32 %v4878, %v3877
    %v4883 = vmul.f32 %v4878, %v3878
    %v4884 = vmul.f32 %v4878, %v3879
    %v4885 = vstv %s3642
    %v4886 = vmul.f32 %v4885, %v3900
    %v4887 = vmul.f32 %v4885, %v3901
    %v4888 = vmul.f32 %v4885, %v3902
    %v4889 = vmul.f32 %v4885, %v3903
    %v4890 = vmul.f32 %v4885, %v3904
    %v4891 = vmul.f32 %v4885, %v3905
    %v4892 = vstv %s3643
    %v4893 = vmul.f32 %v4892, %v3212
    %v4894 = vmul.f32 %v4892, %v3213
    %v4895 = vmul.f32 %v4892, %v3214
    %v4896 = vmul.f32 %v4892, %v3215
    %v4897 = vmul.f32 %v4892, %v3216
    %v4898 = vmul.f32 %v4892, %v3217
    %v4899 = vstv %s3644
    %v4900 = vmul.f32 %v4899, %v3924
    %v4901 = vmul.f32 %v4899, %v3925
    %v4902 = vmul.f32 %v4899, %v3926
    %v4903 = vmul.f32 %v4899, %v3927
    %v4904 = vmul.f32 %v4899, %v3928
    %v4905 = vmul.f32 %v4899, %v3929
    %v4906 = vstv %s3645
    %v4907 = vmul.f32 %v4906, %v3851
    %v4908 = vmul.f32 %v4906, %v3942
    %v4909 = vmul.f32 %v4906, %v3798
    %v4910 = vmul.f32 %v4906, %v3854
    %v4911 = vmul.f32 %v4906, %v3943
    %v4912 = vstv %s3646
    %v4913 = vmul.f32 %v4912, %v3818
    %v4914 = vmul.f32 %v4912, %v3931
    %v4915 = vmul.f32 %v4912, 0.0
    %v4916 = vmul.f32 %v4912, %v3821
    %v4917 = vmul.f32 %v4912, %v3933
    %v4918 = vstv %s3647
    %v4919 = vmul.f32 %v4918, %v3875
    %v4920 = vmul.f32 %v4918, %v3950
    %v4921 = vmul.f32 %v4918, %v3810
    %v4922 = vmul.f32 %v4918, %v3878
    %v4923 = vmul.f32 %v4918, %v3951
    %v4924 = vstv %s3648
    %v4925 = vmul.f32 %v4924, %v3990
    %v4926 = vmul.f32 %v4924, %v3991
    %v4927 = vmul.f32 %v4924, %v3992
    %v4928 = vmul.f32 %v4924, %v3993
    %v4929 = vmul.f32 %v4924, %v3994
    %v4930 = vmul.f32 %v4924, %v3995
    %v4931 = vstv %s3649
    %v4932 = vmul.f32 %v4931, %v3968
    %v4933 = vmul.f32 %v4931, %v3958
    %v4934 = vmul.f32 %v4931, %v3957
    %v4935 = vmul.f32 %v4931, %v3969
    %v4936 = vmul.f32 %v4931, %v3961
    %v4937 = vmul.f32 %v4931, %v3960
    %v4938 = vstv %s3650
    %v4939 = vmul.f32 %v4938, %v4014
    %v4940 = vmul.f32 %v4938, %v4015
    %v4941 = vmul.f32 %v4938, %v4016
    %v4942 = vmul.f32 %v4938, %v4017
    %v4943 = vmul.f32 %v4938, %v4018
    %v4944 = vmul.f32 %v4938, %v4019
    %v4945 = vstv %s3651
    %v4946 = vmul.f32 %v4945, %v4040
    %v4947 = vmul.f32 %v4945, %v4041
    %v4948 = vmul.f32 %v4945, %v4042
    %v4949 = vmul.f32 %v4945, %v4043
    %v4950 = vmul.f32 %v4945, %v4044
    %v4951 = vmul.f32 %v4945, %v4045
    %v4952 = vstv %s3652
    %v4953 = vmul.f32 %v4952, %v3570
    %v4954 = vmul.f32 %v4952, %v3571
    %v4955 = vmul.f32 %v4952, %v3572
    %v4956 = vmul.f32 %v4952, %v3573
    %v4957 = vmul.f32 %v4952, %v3574
    %v4958 = vmul.f32 %v4952, %v3575
    %v4959 = vstv %s3653
    %v4960 = vmul.f32 %v4959, %v4064
    %v4961 = vmul.f32 %v4959, %v4065
    %v4962 = vmul.f32 %v4959, %v4066
    %v4963 = vmul.f32 %v4959, %v4067
    %v4964 = vmul.f32 %v4959, %v4068
    %v4965 = vmul.f32 %v4959, %v4069
    %v4966 = vstv %s3654
    %v4967 = vmul.f32 %v4966, %v3991
    %v4968 = vmul.f32 %v4966, %v4082
    %v4969 = vmul.f32 %v4966, %v3798
    %v4970 = vmul.f32 %v4966, %v3994
    %v4971 = vmul.f32 %v4966, %v4083
    %v4972 = vstv %s3655
    %v4973 = vmul.f32 %v4972, %v3958
    %v4974 = vmul.f32 %v4972, %v4071
    %v4975 = vmul.f32 %v4972, 0.0
    %v4976 = vmul.f32 %v4972, %v3961
    %v4977 = vmul.f32 %v4972, %v4073
    %v4978 = vstv %s3656
    %v4979 = vmul.f32 %v4978, %v4015
    %v4980 = vmul.f32 %v4978, %v4090
    %v4981 = vmul.f32 %v4978, %v3810
    %v4982 = vmul.f32 %v4978, %v4018
    %v4983 = vmul.f32 %v4978, %v4091
    %v4984 = vadd.f32 %v4803, %v4805
    %v4985 = vadd.f32 %v4803, %v4806
    %v4986 = vadd.f32 %v4803, %v4807
    %v4987 = vadd.f32 %v4803, %v4808
    %v4988 = vadd.f32 %v4803, %v4809
    %v4989 = vadd.f32 %v4803, %v4810
    %v4990 = vadd.f32 %v4812, %v4819
    %v4991 = vadd.f32 %v4813, %v4820
    %v4992 = vadd.f32 %v4814, %v4821
    %v4993 = vadd.f32 %v4815, %v4822
    %v4994 = vadd.f32 %v4816, %v4823
    %v4995 = vadd.f32 %v4817, %v4824
    %v4996 = vadd.f32 %v4826, %v4833
    %v4997 = vadd.f32 %v4827, %v4834
    %v4998 = vadd.f32 %v4828, %v4835
    %v4999 = vadd.f32 %v4829, %v4836
    %v5000 = vadd.f32 %v4830, %v4837
    %v5001 = vadd.f32 %v4831, %v4838
    %v5002 = vadd.f32 %v4840, %v4847
    %v5003 = vadd.f32 %v4841, %v4848
    %v5004 = vadd.f32 %v4842, %v4849
    %v5005 = vadd.f32 %v4843, %v4850
    %v5006 = vadd.f32 %v4844, %v4851
    %v5007 = vadd.f32 %v4845, %v4849
    %v5008 = vadd.f32 %v4853, %v4859
    %v5009 = vadd.f32 %v4854, %v4860
    %v5010 = vadd.f32 %v4855, %v4861
    %v5011 = vadd.f32 %v4856, %v4862
    %v5012 = vadd.f32 %v4857, %v4863
    %v5013 = vadd.f32 %v4865, %v4872
    %v5014 = vadd.f32 %v4866, %v4873
    %v5015 = vadd.f32 %v4867, %v4874
    %v5016 = vadd.f32 %v4868, %v4875
    %v5017 = vadd.f32 %v4869, %v4876
    %v5018 = vadd.f32 %v4870, %v4877
    %v5019 = vadd.f32 %v4879, %v4886
    %v5020 = vadd.f32 %v4880, %v4887
    %v5021 = vadd.f32 %v4881, %v4888
    %v5022 = vadd.f32 %v4882, %v4889
    %v5023 = vadd.f32 %v4883, %v4890
    %v5024 = vadd.f32 %v4884, %v4891
    %v5025 = vadd.f32 %v4893, %v4900
    %v5026 = vadd.f32 %v4894, %v4901
    %v5027 = vadd.f32 %v4895, %v4902
    %v5028 = vadd.f32 %v4896, %v4903
    %v5029 = vadd.f32 %v4897, %v4904
    %v5030 = vadd.f32 %v4898, %v4905
    %v5031 = vadd.f32 %v4907, %v4913
    %v5032 = vadd.f32 %v4908, %v4914
    %v5033 = vadd.f32 %v4909, %v4915
    %v5034 = vadd.f32 %v4910, %v4916
    %v5035 = vadd.f32 %v4911, %v4917
    %v5036 = vadd.f32 %v4919, %v4925
    %v5037 = vadd.f32 %v4920, %v4926
    %v5038 = vadd.f32 %v4921, %v4927
    %v5039 = vadd.f32 %v4922, %v4928
    %v5040 = vadd.f32 %v4923, %v4929
    %v5041 = vadd.f32 %v4921, %v4930
    %v5042 = vadd.f32 %v4932, %v4939
    %v5043 = vadd.f32 %v4933, %v4940
    %v5044 = vadd.f32 %v4934, %v4941
    %v5045 = vadd.f32 %v4935, %v4942
    %v5046 = vadd.f32 %v4936, %v4943
    %v5047 = vadd.f32 %v4937, %v4944
    %v5048 = vadd.f32 %v4946, %v4953
    %v5049 = vadd.f32 %v4947, %v4954
    %v5050 = vadd.f32 %v4948, %v4955
    %v5051 = vadd.f32 %v4949, %v4956
    %v5052 = vadd.f32 %v4950, %v4957
    %v5053 = vadd.f32 %v4951, %v4958
    %v5054 = vadd.f32 %v4960, %v4967
    %v5055 = vadd.f32 %v4961, %v4968
    %v5056 = vadd.f32 %v4962, %v4969
    %v5057 = vadd.f32 %v4963, %v4970
    %v5058 = vadd.f32 %v4964, %v4971
    %v5059 = vadd.f32 %v4965, %v4969
    %v5060 = vadd.f32 %v4973, %v4979
    %v5061 = vadd.f32 %v4974, %v4980
    %v5062 = vadd.f32 %v4975, %v4981
    %v5063 = vadd.f32 %v4976, %v4982
    %v5064 = vadd.f32 %v4977, %v4983
    %v5065 = vadd.f32 %v4984, %v4990
    %v5066 = vadd.f32 %v4985, %v4991
    %v5067 = vadd.f32 %v4986, %v4992
    %v5068 = vadd.f32 %v4987, %v4993
    %v5069 = vadd.f32 %v4988, %v4994
    %v5070 = vadd.f32 %v4989, %v4995
    %v5071 = vadd.f32 %v4996, %v5002
    %v5072 = vadd.f32 %v4997, %v5003
    %v5073 = vadd.f32 %v4998, %v5004
    %v5074 = vadd.f32 %v4999, %v5005
    %v5075 = vadd.f32 %v5000, %v5006
    %v5076 = vadd.f32 %v5001, %v5007
    %v5077 = vadd.f32 %v5008, %v5013
    %v5078 = vadd.f32 %v5009, %v5014
    %v5079 = vadd.f32 %v5010, %v5015
    %v5080 = vadd.f32 %v5011, %v5016
    %v5081 = vadd.f32 %v5012, %v5017
    %v5082 = vadd.f32 %v5010, %v5018
    %v5083 = vadd.f32 %v5019, %v5025
    %v5084 = vadd.f32 %v5020, %v5026
    %v5085 = vadd.f32 %v5021, %v5027
    %v5086 = vadd.f32 %v5022, %v5028
    %v5087 = vadd.f32 %v5023, %v5029
    %v5088 = vadd.f32 %v5024, %v5030
    %v5089 = vadd.f32 %v5031, %v5036
    %v5090 = vadd.f32 %v5032, %v5037
    %v5091 = vadd.f32 %v5033, %v5038
    %v5092 = vadd.f32 %v5034, %v5039
    %v5093 = vadd.f32 %v5035, %v5040
    %v5094 = vadd.f32 %v5033, %v5041
    %v5095 = vadd.f32 %v5042, %v5048
    %v5096 = vadd.f32 %v5043, %v5049
    %v5097 = vadd.f32 %v5044, %v5050
    %v5098 = vadd.f32 %v5045, %v5051
    %v5099 = vadd.f32 %v5046, %v5052
    %v5100 = vadd.f32 %v5047, %v5053
    %v5101 = vadd.f32 %v5054, %v5060
    %v5102 = vadd.f32 %v5055, %v5061
    %v5103 = vadd.f32 %v5056, %v5062
    %v5104 = vadd.f32 %v5057, %v5063
    %v5105 = vadd.f32 %v5058, %v5064
    %v5106 = vadd.f32 %v5059, %v5062
    %v5107 = vadd.f32 %v5065, %v5071
    %v5108 = vadd.f32 %v5066, %v5072
    %v5109 = vadd.f32 %v5067, %v5073
    %v5110 = vadd.f32 %v5068, %v5074
    %v5111 = vadd.f32 %v5069, %v5075
    %v5112 = vadd.f32 %v5070, %v5076
    %v5113 = vadd.f32 %v5077, %v5083
    %v5114 = vadd.f32 %v5078, %v5084
    %v5115 = vadd.f32 %v5079, %v5085
    %v5116 = vadd.f32 %v5080, %v5086
    %v5117 = vadd.f32 %v5081, %v5087
    %v5118 = vadd.f32 %v5082, %v5088
    %v5119 = vadd.f32 %v5089, %v5095
    %v5120 = vadd.f32 %v5090, %v5096
    %v5121 = vadd.f32 %v5091, %v5097
    %v5122 = vadd.f32 %v5092, %v5098
    %v5123 = vadd.f32 %v5093, %v5099
    %v5124 = vadd.f32 %v5094, %v5100
    %v5125 = vadd.f32 %v5107, %v5113
    %v5126 = vadd.f32 %v5108, %v5114
    %v5127 = vadd.f32 %v5109, %v5115
    %v5128 = vadd.f32 %v5110, %v5116
    %v5129 = vadd.f32 %v5111, %v5117
    %v5130 = vadd.f32 %v5112, %v5118
    %v5131 = vadd.f32 %v5119, %v5101
    %v5132 = vadd.f32 %v5120, %v5102
    %v5133 = vadd.f32 %v5121, %v5103
    %v5134 = vadd.f32 %v5122, %v5104
    %v5135 = vadd.f32 %v5123, %v5105
    %v5136 = vadd.f32 %v5124, %v5106
    %v5137 = vadd.f32 %v5125, %v5131
    %v5138 = vadd.f32 %v5126, %v5132
    %v5139 = vadd.f32 %v5127, %v5133
    %v5140 = vadd.f32 %v5128, %v5134
    %v5141 = vadd.f32 %v5129, %v5135
    %v5142 = vadd.f32 %v5130, %v5136
    %v5143 = vsel %vm4448, %v5137, 0.0
    %v5144 = vsel %vm4449, %v5138, 0.0
    %v5145 = vsel %vm4450, %v5139, 0.0
    %v5146 = vsel %vm4448, %v5140, 0.0
    %v5147 = vsel %vm4449, %v5141, 0.0
    %v5148 = vsel %vm4450, %v5142, 0.0
    %vm5149 = vcmask 162816
    %5150 = vst.msk [vmem:[%s3] sm:$0xff] %vm5149, %v4451
    %5151 = vst.msk [vmem:[%s3 + $0x8] sm:$0xff] %vm5149, %v4452
    %vm5152 = vcmask 158720
    %5153 = vst.msk [vmem:[%s3 + $0x10] sm:$0xf] %vm5152, %v4453
    %5154 = vst.msk [vmem:[%s3 + $0x48] sm:$0xff] %vm5149, %v4454
    %5155 = vst.msk [vmem:[%s3 + $0x50] sm:$0xff] %vm5149, %v4455
    %5156 = vst.msk [vmem:[%s3 + $0x58] sm:$0xf] %vm5152, %v4456
    %s5157 = scalar_lea.vmem %s3, 24
    %5158 = vst.msk [vmem:[%s5157] sm:$0xff] %vm5149, %v4797
    %5159 = vst.msk [vmem:[%s5157 + $0x8] sm:$0xff] %vm5149, %v4798
    %5160 = vst.msk [vmem:[%s5157 + $0x10] sm:$0xf] %vm5152, %v4799
    %5161 = vst.msk [vmem:[%s5157 + $0x48] sm:$0xff] %vm5149, %v4800
    %5162 = vst.msk [vmem:[%s5157 + $0x50] sm:$0xff] %vm5149, %v4801
    %5163 = vst.msk [vmem:[%s5157 + $0x58] sm:$0xf] %vm5152, %v4802
    %s5164 = scalar_lea.vmem %s3, 48
    %5165 = vst.msk [vmem:[%s5164] sm:$0xff] %vm5149, %v5143
    %5166 = vst.msk [vmem:[%s5164 + $0x8] sm:$0xff] %vm5149, %v5144
    %5167 = vst.msk [vmem:[%s5164 + $0x10] sm:$0xf] %vm5152, %v5145
    %5168 = vst.msk [vmem:[%s5164 + $0x48] sm:$0xff] %vm5149, %v5146
    %5169 = vst.msk [vmem:[%s5164 + $0x50] sm:$0xff] %vm5149, %v5147
    %5170 = vst.msk [vmem:[%s5164 + $0x58] sm:$0xf] %vm5152, %v5148
    // Predicated region
    $region22: #{convolutional_max_pooling.1} parent=1 // pred_check
      _
    $region23: #{convolutional_max_pooling.1} parent=1 // pred_check_branch
      %5172 = sbr.rel (0) target = $region25
    $region24: #{convolutional_max_pooling.1} parent=1 // pred_region
      _
    $region25: #{convolutional_max_pooling.1} parent=1 // pred_fallthru
      _
    // Predicated region
    $region26: #{convolutional_max_pooling.1} parent=1 // pred_check
      _
    $region27: #{convolutional_max_pooling.1} parent=1 // pred_check_branch
      %5174 = sbr.rel (0) target = $region29
    $region28: #{convolutional_max_pooling.1} parent=1 // pred_region
      _
    $region29: #{convolutional_max_pooling.1} parent=1 // pred_fallthru
      _
    %5175 = vsyncpa [#allocation3], 1
    %5176 = vsyncpa [#allocation5], 1

</llo_original>
